<compile_context>
chip_gen: v7x
topology: tpu7x:2x2x1
jax: 0.10.0
libtpu: 0.0.40
codegen_flags: <defaults>
</compile_context>

<pallas_src>
import functools

import jax
import jax.numpy as jnp
from jax import lax
from jax.experimental import pallas as pl
from jax.experimental.pallas import tpu as pltpu


def _res_block_kernel(x_ref, tadd_ref,
                      g1_ref, b1_ref, p1_ref, w1_ref, c1b_ref,
                      g2_ref, b2_ref, p2_ref, w2_ref, c2b_ref,
                      scw_ref, scb_ref, cm_ref,
                      o_ref, *, h, w, groups, eps):
    hw = h * w
    cin = x_ref.shape[-1]
    cout = o_ref.shape[-1]

    x = x_ref[0]                                   # (hw, cin), f32

    # Column-validity masks for the three horizontal taps (dj = -1, 0, +1).
    cm_m1 = cm_ref[0]                              # (hw, 1)
    cm_p1 = cm_ref[2]                              # (hw, 1)

    def silu(v):
        return v * (1.0 / (1.0 + jnp.exp(-v)))

    def group_norm(v, p_proj, gamma, beta, gsize):
        # Per-group stats via the group-membership projector P (C, C):
        # (v @ P)[r, c] = sum of v[r, c'] over channels c' in c's group.
        cnt = float(gsize * hw)
        gsum = jnp.sum(jnp.dot(v, p_proj, preferred_element_type=jnp.float32),
                       axis=0, keepdims=True)                      # (1, C)
        gsq = jnp.sum(jnp.dot(v * v, p_proj,
                              preferred_element_type=jnp.float32),
                      axis=0, keepdims=True)                       # (1, C)
        mean = gsum * (1.0 / cnt)
        var = gsq * (1.0 / cnt) - mean * mean
        inv = lax.rsqrt(var + eps)
        return (v - mean) * inv * gamma + beta

    def conv3x3(v, w_taps_ref, bias):
        # 3x3, stride 1, pad 1 conv as 9 shift-and-mask matmuls on (hw, C) data.
        c_out = w_taps_ref.shape[-1]
        acc = jnp.zeros((hw, c_out), jnp.float32)
        for ki in range(3):
            di = ki - 1
            for kj in range(3):
                dj = kj - 1
                d = di * w + dj                    # flat source offset
                if d == 0:
                    sh = v
                elif d > 0:
                    sh = jnp.concatenate(
                        [v[d:, :], jnp.zeros((d, v.shape[1]), v.dtype)], axis=0)
                else:
                    sh = jnp.concatenate(
                        [jnp.zeros((-d, v.shape[1]), v.dtype), v[: hw + d, :]],
                        axis=0)
                if dj == -1:
                    sh = sh * cm_m1
                elif dj == 1:
                    sh = sh * cm_p1
                acc = acc + jnp.dot(sh, w_taps_ref[ki * 3 + kj],
                                    preferred_element_type=jnp.float32)
        return acc + bias

    # --- block['conv1']: GroupNorm -> SiLU -> Conv3x3 -------------------------
    a1 = silu(group_norm(x, p1_ref[...], g1_ref[...], b1_ref[...],
                         cin // groups))
    h1 = conv3x3(a1, w1_ref, c1b_ref[...])                          # (hw, cout)

    # --- + adjust_t(t)[:, :, None, None] (precomputed, broadcast spatially) ---
    h1 = h1 + tadd_ref[0]                                           # (1, cout)

    # --- block['conv2']: GroupNorm -> SiLU -> Dropout(eval=id) -> Conv3x3 -----
    a2 = silu(group_norm(h1, p2_ref[...], g2_ref[...], b2_ref[...],
                         cout // groups))
    h2 = conv3x3(a2, w2_ref, c2b_ref[...])                          # (hw, cout)

    # --- block['adjust_x']: 1x1 conv shortcut, fused as a matmul on x ---------
    sc = jnp.dot(x, scw_ref[...], preferred_element_type=jnp.float32) \
        + scb_ref[...]

    o_ref[0] = (h2 + sc).astype(o_ref.dtype)


def res_block(x, t, params, *, groups=32, eps=1e-5):
    """Pallas ResBlock.forward (inference). x: (b, in_chan, h, w), t: (b, t_chan)."""
    b, cin, h, w = x.shape
    cout = params["conv1_w"].shape[0]
    hw = h * w

    # NCHW -> (b, hw, c): channels on the lane axis (lane-dense output, cout=128).
    x_t = jnp.transpose(x.reshape(b, cin, hw), (0, 2, 1))

    # adjust_t = SiLU -> Linear, computed as ONE batched matmul for all b.
    t_add = (jax.nn.silu(t) @ params["t_w"] + params["t_b"]).reshape(b, 1, cout)

    # Conv weights -> 9 stacked (cin, cout) taps, tap index = ki*3 + kj.
    w1_taps = jnp.transpose(params["conv1_w"], (2, 3, 1, 0)).reshape(9, cin, cout)
    w2_taps = jnp.transpose(params["conv2_w"], (2, 3, 1, 0)).reshape(9, cout, cout)
    # 1x1 shortcut conv as a plain (cin, cout) matmul.
    scw = params["sc_w"][:, :, 0, 0].T

    # Group-membership projectors P[c, c'] = 1 iff same GroupNorm group.
    def projector(c):
        gid = jnp.arange(c) // (c // groups)
        return (gid[:, None] == gid[None, :]).astype(jnp.float32)
    p1, p2 = projector(cin), projector(cout)

    # Column-validity masks for the horizontal taps of the flattened 3x3 conv.
    jj = jnp.arange(hw, dtype=jnp.int32) % w
    cm = jnp.stack([((jj + dj) >= 0) & ((jj + dj) < w) for dj in (-1, 0, 1)],
                   axis=0).astype(jnp.float32).reshape(3, hw, 1)

    def row2d(v):
        return v.reshape(1, -1)

    kernel = functools.partial(_res_block_kernel, h=h, w=w, groups=groups,
                               eps=eps)

    flops = 2 * b * hw * (9 * (cin * cout + cout * cout) + cin * cout)
    cost = pl.CostEstimate(
        flops=flops,
        transcendentals=b * hw * (cin + cout),
        bytes_accessed=4 * (x_t.size + t_add.size + w1_taps.size + w2_taps.size
                            + scw.size + p1.size + p2.size + b * hw * cout))

    def full(rank):
        return lambda i: (0,) * rank

    out = pl.pallas_call(
        kernel,
        out_shape=jax.ShapeDtypeStruct((b, hw, cout), x.dtype),
        grid_spec=pltpu.PrefetchScalarGridSpec(
            num_scalar_prefetch=0,
            grid=(b,),
            in_specs=[
                pl.BlockSpec((1, hw, cin), lambda i: (i, 0, 0)),    # x
                pl.BlockSpec((1, 1, cout), lambda i: (i, 0, 0)),    # t_add
                pl.BlockSpec((1, cin), full(2)),                    # gn1 gamma
                pl.BlockSpec((1, cin), full(2)),                    # gn1 beta
                pl.BlockSpec((cin, cin), full(2)),                  # P1
                pl.BlockSpec((9, cin, cout), full(3)),              # conv1 taps
                pl.BlockSpec((1, cout), full(2)),                   # conv1 bias
                pl.BlockSpec((1, cout), full(2)),                   # gn2 gamma
                pl.BlockSpec((1, cout), full(2)),                   # gn2 beta
                pl.BlockSpec((cout, cout), full(2)),                # P2
                pl.BlockSpec((9, cout, cout), full(3)),             # conv2 taps
                pl.BlockSpec((1, cout), full(2)),                   # conv2 bias
                pl.BlockSpec((cin, cout), full(2)),                 # shortcut W
                pl.BlockSpec((1, cout), full(2)),                   # shortcut b
                pl.BlockSpec((3, hw, 1), full(3)),                  # column masks
            ],
            out_specs=pl.BlockSpec((1, hw, cout), lambda i: (i, 0, 0)),
        ),
        compiler_params=pltpu.CompilerParams(
            dimension_semantics=("parallel",)),
        cost_estimate=cost,
    )(x_t, t_add,
      row2d(params["gn1_g"]), row2d(params["gn1_b"]), p1, w1_taps,
      row2d(params["conv1_b"]),
      row2d(params["gn2_g"]), row2d(params["gn2_b"]), p2, w2_taps,
      row2d(params["conv2_b"]),
      scw, row2d(params["sc_b"]), cm)

    # (b, hw, cout) -> NCHW.
    return jnp.transpose(out, (0, 2, 1)).reshape(b, cout, h, w)


def res_block_ref(x, t, params, *, groups=32, eps=1e-5):
    """Pure-JAX reference mirroring the PyTorch ResBlock.forward (eval mode)."""
    def gn(v, gamma, beta):
        b_, c, hh, ww = v.shape
        g = v.reshape(b_, groups, c // groups, hh, ww)
        mean = g.mean(axis=(2, 3, 4), keepdims=True)
        var = g.var(axis=(2, 3, 4), keepdims=True)
        g = (g - mean) / jnp.sqrt(var + eps)
        v = g.reshape(b_, c, hh, ww)
        return v * gamma[None, :, None, None] + beta[None, :, None, None]

    def conv(v, wgt, bias, pad):
        out = lax.conv_general_dilated(
            v, wgt, window_strides=(1, 1), padding=((pad, pad), (pad, pad)),
            dimension_numbers=("NCHW", "OIHW", "NCHW"))
        return out + bias[None, :, None, None]

    h1 = conv(jax.nn.silu(gn(x, params["gn1_g"], params["gn1_b"])),
              params["conv1_w"], params["conv1_b"], 1)
    t_add = (jax.nn.silu(t) @ params["t_w"] + params["t_b"])[:, :, None, None]
    h2 = conv(jax.nn.silu(gn(h1 + t_add, params["gn2_g"], params["gn2_b"])),
              params["conv2_w"], params["conv2_b"], 1)
    sc = conv(x, params["sc_w"], params["sc_b"], 0)
    return h2 + sc


if __name__ == "__main__":
    B, CIN, COUT, H, W = 2, 64, 128, 16, 16
    TCH, GROUPS = 256, 32

    key = jax.random.PRNGKey(0)
    ks = jax.random.split(key, 16)

    x = jax.random.normal(ks[0], (B, CIN, H, W), dtype=jnp.float32)
    t = jax.random.normal(ks[1], (B, TCH), dtype=jnp.float32)

    # Deterministic "synthetic checkpoint". Linear weight stored as (in, out).
    nrm = lambda k, s: jax.random.normal(k, s, dtype=jnp.float32)
    params = {
        "gn1_g": 1.0 + 0.1 * nrm(ks[2], (CIN,)),
        "gn1_b": 0.1 * nrm(ks[3], (CIN,)),
        "conv1_w": 0.05 * nrm(ks[4], (COUT, CIN, 3, 3)),
        "conv1_b": 0.05 * nrm(ks[5], (COUT,)),
        "t_w": 0.05 * nrm(ks[6], (TCH, COUT)),
        "t_b": 0.05 * nrm(ks[7], (COUT,)),
        "gn2_g": 1.0 + 0.1 * nrm(ks[8], (COUT,)),
        "gn2_b": 0.1 * nrm(ks[9], (COUT,)),
        "conv2_w": 0.05 * nrm(ks[10], (COUT, COUT, 3, 3)),
        "conv2_b": 0.05 * nrm(ks[11], (COUT,)),
        "sc_w": 0.05 * nrm(ks[12], (COUT, CIN, 1, 1)),
        "sc_b": 0.05 * nrm(ks[13], (COUT,)),
    }

    y = res_block(x, t, params, groups=GROUPS)
    y = jax.block_until_ready(y)

    y_ref = res_block_ref(x, t, params, groups=GROUPS)
    assert y.shape == (B, COUT, H, W)
    max_err = float(jnp.max(jnp.abs(y - y_ref)))
    assert jnp.allclose(y, y_ref, atol=1e-3, rtol=1e-3), \
        f"mismatch vs JAX reference (max abs err {max_err})"

    print("KERNEL_OK")
</pallas_src>

<mosaic_0001>
module attributes {stable_mosaic.version = 11 : i64} {
  func.func @_res_block_kernel(%arg0: i32, %arg1: memref<1x256x64xf32, #tpu.memory_space<vmem>>, %arg2: memref<1x1x128xf32, #tpu.memory_space<vmem>>, %arg3: memref<1x64xf32, #tpu.memory_space<vmem>>, %arg4: memref<1x64xf32, #tpu.memory_space<vmem>>, %arg5: memref<64x64xf32, #tpu.memory_space<vmem>>, %arg6: memref<9x64x128xf32, #tpu.memory_space<vmem>>, %arg7: memref<1x128xf32, #tpu.memory_space<vmem>>, %arg8: memref<1x128xf32, #tpu.memory_space<vmem>>, %arg9: memref<1x128xf32, #tpu.memory_space<vmem>>, %arg10: memref<128x128xf32, #tpu.memory_space<vmem>>, %arg11: memref<9x128x128xf32, #tpu.memory_space<vmem>>, %arg12: memref<1x128xf32, #tpu.memory_space<vmem>>, %arg13: memref<64x128xf32, #tpu.memory_space<vmem>>, %arg14: memref<1x128xf32, #tpu.memory_space<vmem>>, %arg15: memref<3x256x1xf32, #tpu.memory_space<vmem>>, %arg16: memref<1x256x128xf32, #tpu.memory_space<vmem>>) attributes {dimension_semantics = [#tpu.dimension_semantics<parallel>], iteration_bounds = array<i64: 2>, scalar_prefetch = 0 : i64, scratch_operands = 0 : i64, tpu.core_type = #tpu.core_type<tc>, window_params = [{transform_indices = @transform_0, window_bounds = array<i64: 1, 256, 64>}, {transform_indices = @transform_1, window_bounds = array<i64: 1, 1, 128>}, {pipeline_mode = #tpu.pipeline_mode<synchronous>, transform_indices = @transform_2, window_bounds = array<i64: 1, 64>}, {pipeline_mode = #tpu.pipeline_mode<synchronous>, transform_indices = @transform_3, window_bounds = array<i64: 1, 64>}, {pipeline_mode = #tpu.pipeline_mode<synchronous>, transform_indices = @transform_4, window_bounds = array<i64: 64, 64>}, {pipeline_mode = #tpu.pipeline_mode<synchronous>, transform_indices = @transform_5, window_bounds = array<i64: 9, 64, 128>}, {pipeline_mode = #tpu.pipeline_mode<synchronous>, transform_indices = @transform_6, window_bounds = array<i64: 1, 128>}, {pipeline_mode = #tpu.pipeline_mode<synchronous>, transform_indices = @transform_7, window_bounds = array<i64: 1, 128>}, {pipeline_mode = #tpu.pipeline_mode<synchronous>, transform_indices = @transform_8, window_bounds = array<i64: 1, 128>}, {pipeline_mode = #tpu.pipeline_mode<synchronous>, transform_indices = @transform_9, window_bounds = array<i64: 128, 128>}, {pipeline_mode = #tpu.pipeline_mode<synchronous>, transform_indices = @transform_10, window_bounds = array<i64: 9, 128, 128>}, {pipeline_mode = #tpu.pipeline_mode<synchronous>, transform_indices = @transform_11, window_bounds = array<i64: 1, 128>}, {pipeline_mode = #tpu.pipeline_mode<synchronous>, transform_indices = @transform_12, window_bounds = array<i64: 64, 128>}, {pipeline_mode = #tpu.pipeline_mode<synchronous>, transform_indices = @transform_13, window_bounds = array<i64: 1, 128>}, {pipeline_mode = #tpu.pipeline_mode<synchronous>, transform_indices = @transform_14, window_bounds = array<i64: 3, 256, 1>}, {transform_indices = @transform_15, window_bounds = array<i64: 1, 256, 128>}]} {
    %c0 = arith.constant 0 : index
    %c0_0 = arith.constant 0 : index
    %c0_1 = arith.constant 0 : index
    %0 = vector.load %arg1[%c0, %c0_0, %c0_1] : memref<1x256x64xf32, #tpu.memory_space<vmem>>, vector<1x256x64xf32>
    %1 = vector.shape_cast %0 : vector<1x256x64xf32> to vector<256x64xf32>
    %c0_2 = arith.constant 0 : index
    %c0_3 = arith.constant 0 : index
    %c0_4 = arith.constant 0 : index
    %2 = vector.load %arg15[%c0_2, %c0_3, %c0_4] : memref<3x256x1xf32, #tpu.memory_space<vmem>>, vector<1x256x1xf32>
    %3 = vector.shape_cast %2 : vector<1x256x1xf32> to vector<256x1xf32>
    %c2 = arith.constant 2 : index
    %c0_5 = arith.constant 0 : index
    %c0_6 = arith.constant 0 : index
    %4 = vector.load %arg15[%c2, %c0_5, %c0_6] : memref<3x256x1xf32, #tpu.memory_space<vmem>>, vector<1x256x1xf32>
    %5 = vector.shape_cast %4 : vector<1x256x1xf32> to vector<256x1xf32>
    %c0_7 = arith.constant 0 : index
    %c0_8 = arith.constant 0 : index
    %6 = vector.load %arg5[%c0_7, %c0_8] : memref<64x64xf32, #tpu.memory_space<vmem>>, vector<64x64xf32>
    %c0_9 = arith.constant 0 : index
    %c0_10 = arith.constant 0 : index
    %7 = vector.load %arg3[%c0_9, %c0_10] : memref<1x64xf32, #tpu.memory_space<vmem>>, vector<1x64xf32>
    %c0_11 = arith.constant 0 : index
    %c0_12 = arith.constant 0 : index
    %8 = vector.load %arg4[%c0_11, %c0_12] : memref<1x64xf32, #tpu.memory_space<vmem>>, vector<1x64xf32>
    %cst = arith.constant dense<0.000000e+00> : vector<256x64xf32>
    %9 = tpu.matmul %1, %6, %cst {dimension_numbers = #tpu.dot_dimension_numbers<[1], [0], [0], [1], [0, 0, 1, 1], [], []>} : vector<256x64xf32>, vector<64x64xf32>, vector<256x64xf32> -> vector<256x64xf32>
    %cst_13 = arith.constant dense<0.000000e+00> : vector<64xf32>
    %10 = vector.multi_reduction <add>, %9, %cst_13 [0] : vector<256x64xf32> to vector<64xf32>
    %11 = vector.shape_cast %10 : vector<64xf32> to vector<1x64xf32>
    %12 = arith.mulf %1, %1 : vector<256x64xf32>
    %cst_14 = arith.constant dense<0.000000e+00> : vector<256x64xf32>
    %13 = tpu.matmul %12, %6, %cst_14 {dimension_numbers = #tpu.dot_dimension_numbers<[1], [0], [0], [1], [0, 0, 1, 1], [], []>} : vector<256x64xf32>, vector<64x64xf32>, vector<256x64xf32> -> vector<256x64xf32>
    %cst_15 = arith.constant dense<0.000000e+00> : vector<64xf32>
    %14 = vector.multi_reduction <add>, %13, %cst_15 [0] : vector<256x64xf32> to vector<64xf32>
    %15 = vector.shape_cast %14 : vector<64xf32> to vector<1x64xf32>
    %cst_16 = arith.constant 0.001953125 : f32
    %16 = vector.broadcast %cst_16 : f32 to vector<1x64xf32>
    %17 = arith.mulf %11, %16 : vector<1x64xf32>
    %cst_17 = arith.constant 0.001953125 : f32
    %18 = vector.broadcast %cst_17 : f32 to vector<1x64xf32>
    %19 = arith.mulf %15, %18 : vector<1x64xf32>
    %20 = arith.mulf %17, %17 : vector<1x64xf32>
    %21 = arith.subf %19, %20 : vector<1x64xf32>
    %cst_18 = arith.constant 9.99999974E-6 : f32
    %22 = vector.broadcast %cst_18 : f32 to vector<1x64xf32>
    %23 = arith.addf %21, %22 : vector<1x64xf32>
    %24 = math.rsqrt %23 : vector<1x64xf32>
    %25 = vector.broadcast %17 : vector<1x64xf32> to vector<256x64xf32>
    %26 = arith.subf %1, %25 : vector<256x64xf32>
    %27 = vector.broadcast %24 : vector<1x64xf32> to vector<256x64xf32>
    %28 = arith.mulf %26, %27 : vector<256x64xf32>
    %29 = vector.broadcast %7 : vector<1x64xf32> to vector<256x64xf32>
    %30 = arith.mulf %28, %29 : vector<256x64xf32>
    %31 = vector.broadcast %8 : vector<1x64xf32> to vector<256x64xf32>
    %32 = arith.addf %30, %31 : vector<256x64xf32>
    %cst_19 = arith.constant 0.000000e+00 : f32
    %33 = vector.broadcast %cst_19 : f32 to vector<256x64xf32>
    %34 = arith.subf %33, %32 : vector<256x64xf32>
    %35 = math.exp %34 : vector<256x64xf32>
    %cst_20 = arith.constant 1.000000e+00 : f32
    %36 = vector.broadcast %cst_20 : f32 to vector<256x64xf32>
    %37 = arith.addf %36, %35 : vector<256x64xf32>
    %cst_21 = arith.constant 1.000000e+00 : f32
    %38 = vector.broadcast %cst_21 : f32 to vector<256x64xf32>
    %39 = arith.divf %38, %37 : vector<256x64xf32>
    %40 = arith.mulf %32, %39 : vector<256x64xf32>
    %c0_22 = arith.constant 0 : index
    %c0_23 = arith.constant 0 : index
    %41 = vector.load %arg7[%c0_22, %c0_23] : memref<1x128xf32, #tpu.memory_space<vmem>>, vector<1x128xf32>
    %cst_24 = arith.constant 0.000000e+00 : f32
    %42 = vector.broadcast %cst_24 : f32 to vector<256x128xf32>
    %cst_25 = arith.constant 0.000000e+00 : f32
    %43 = vector.broadcast %cst_25 : f32 to vector<17x64xf32>
    %44 = vector.extract_strided_slice %40 {offsets = [0, 0], sizes = [239, 64], strides = [1, 1]} : vector<256x64xf32> to vector<239x64xf32>
    %45 = tpu.concatenate %43, %44 in 0 : vector<17x64xf32>, vector<239x64xf32> -> vector<256x64xf32>
    %46 = vector.broadcast %3 : vector<256x1xf32> to vector<256x64xf32>
    %47 = arith.mulf %45, %46 : vector<256x64xf32>
    %c0_26 = arith.constant 0 : index
    %c0_27 = arith.constant 0 : index
    %c0_28 = arith.constant 0 : index
    %48 = vector.load %arg6[%c0_26, %c0_27, %c0_28] : memref<9x64x128xf32, #tpu.memory_space<vmem>>, vector<1x64x128xf32>
    %49 = vector.shape_cast %48 : vector<1x64x128xf32> to vector<64x128xf32>
    %cst_29 = arith.constant dense<0.000000e+00> : vector<256x128xf32>
    %50 = tpu.matmul %47, %49, %cst_29 {dimension_numbers = #tpu.dot_dimension_numbers<[1], [0], [0], [1], [0, 0, 1, 1], [], []>} : vector<256x64xf32>, vector<64x128xf32>, vector<256x128xf32> -> vector<256x128xf32>
    %51 = arith.addf %42, %50 : vector<256x128xf32>
    %cst_30 = arith.constant 0.000000e+00 : f32
    %52 = vector.broadcast %cst_30 : f32 to vector<16x64xf32>
    %53 = vector.extract_strided_slice %40 {offsets = [0, 0], sizes = [240, 64], strides = [1, 1]} : vector<256x64xf32> to vector<240x64xf32>
    %54 = tpu.concatenate %52, %53 in 0 : vector<16x64xf32>, vector<240x64xf32> -> vector<256x64xf32>
    %c1 = arith.constant 1 : index
    %c0_31 = arith.constant 0 : index
    %c0_32 = arith.constant 0 : index
    %55 = vector.load %arg6[%c1, %c0_31, %c0_32] : memref<9x64x128xf32, #tpu.memory_space<vmem>>, vector<1x64x128xf32>
    %56 = vector.shape_cast %55 : vector<1x64x128xf32> to vector<64x128xf32>
    %cst_33 = arith.constant dense<0.000000e+00> : vector<256x128xf32>
    %57 = tpu.matmul %54, %56, %cst_33 {dimension_numbers = #tpu.dot_dimension_numbers<[1], [0], [0], [1], [0, 0, 1, 1], [], []>} : vector<256x64xf32>, vector<64x128xf32>, vector<256x128xf32> -> vector<256x128xf32>
    %58 = arith.addf %51, %57 : vector<256x128xf32>
    %cst_34 = arith.constant 0.000000e+00 : f32
    %59 = vector.broadcast %cst_34 : f32 to vector<15x64xf32>
    %60 = vector.extract_strided_slice %40 {offsets = [0, 0], sizes = [241, 64], strides = [1, 1]} : vector<256x64xf32> to vector<241x64xf32>
    %61 = tpu.concatenate %59, %60 in 0 : vector<15x64xf32>, vector<241x64xf32> -> vector<256x64xf32>
    %62 = vector.broadcast %5 : vector<256x1xf32> to vector<256x64xf32>
    %63 = arith.mulf %61, %62 : vector<256x64xf32>
    %c2_35 = arith.constant 2 : index
    %c0_36 = arith.constant 0 : index
    %c0_37 = arith.constant 0 : index
    %64 = vector.load %arg6[%c2_35, %c0_36, %c0_37] : memref<9x64x128xf32, #tpu.memory_space<vmem>>, vector<1x64x128xf32>
    %65 = vector.shape_cast %64 : vector<1x64x128xf32> to vector<64x128xf32>
    %cst_38 = arith.constant dense<0.000000e+00> : vector<256x128xf32>
    %66 = tpu.matmul %63, %65, %cst_38 {dimension_numbers = #tpu.dot_dimension_numbers<[1], [0], [0], [1], [0, 0, 1, 1], [], []>} : vector<256x64xf32>, vector<64x128xf32>, vector<256x128xf32> -> vector<256x128xf32>
    %67 = arith.addf %58, %66 : vector<256x128xf32>
    %cst_39 = arith.constant 0.000000e+00 : f32
    %68 = vector.broadcast %cst_39 : f32 to vector<1x64xf32>
    %69 = vector.extract_strided_slice %40 {offsets = [0, 0], sizes = [255, 64], strides = [1, 1]} : vector<256x64xf32> to vector<255x64xf32>
    %70 = tpu.concatenate %68, %69 in 0 : vector<1x64xf32>, vector<255x64xf32> -> vector<256x64xf32>
    %71 = vector.broadcast %3 : vector<256x1xf32> to vector<256x64xf32>
    %72 = arith.mulf %70, %71 : vector<256x64xf32>
    %c3 = arith.constant 3 : index
    %c0_40 = arith.constant 0 : index
    %c0_41 = arith.constant 0 : index
    %73 = vector.load %arg6[%c3, %c0_40, %c0_41] : memref<9x64x128xf32, #tpu.memory_space<vmem>>, vector<1x64x128xf32>
    %74 = vector.shape_cast %73 : vector<1x64x128xf32> to vector<64x128xf32>
    %cst_42 = arith.constant dense<0.000000e+00> : vector<256x128xf32>
    %75 = tpu.matmul %72, %74, %cst_42 {dimension_numbers = #tpu.dot_dimension_numbers<[1], [0], [0], [1], [0, 0, 1, 1], [], []>} : vector<256x64xf32>, vector<64x128xf32>, vector<256x128xf32> -> vector<256x128xf32>
    %76 = arith.addf %67, %75 : vector<256x128xf32>
    %c4 = arith.constant 4 : index
    %c0_43 = arith.constant 0 : index
    %c0_44 = arith.constant 0 : index
    %77 = vector.load %arg6[%c4, %c0_43, %c0_44] : memref<9x64x128xf32, #tpu.memory_space<vmem>>, vector<1x64x128xf32>
    %78 = vector.shape_cast %77 : vector<1x64x128xf32> to vector<64x128xf32>
    %cst_45 = arith.constant dense<0.000000e+00> : vector<256x128xf32>
    %79 = tpu.matmul %40, %78, %cst_45 {dimension_numbers = #tpu.dot_dimension_numbers<[1], [0], [0], [1], [0, 0, 1, 1], [], []>} : vector<256x64xf32>, vector<64x128xf32>, vector<256x128xf32> -> vector<256x128xf32>
    %80 = arith.addf %76, %79 : vector<256x128xf32>
    %81 = vector.extract_strided_slice %40 {offsets = [1, 0], sizes = [255, 64], strides = [1, 1]} : vector<256x64xf32> to vector<255x64xf32>
    %cst_46 = arith.constant 0.000000e+00 : f32
    %82 = vector.broadcast %cst_46 : f32 to vector<1x64xf32>
    %83 = tpu.concatenate %81, %82 in 0 : vector<255x64xf32>, vector<1x64xf32> -> vector<256x64xf32>
    %84 = vector.broadcast %5 : vector<256x1xf32> to vector<256x64xf32>
    %85 = arith.mulf %83, %84 : vector<256x64xf32>
    %c5 = arith.constant 5 : index
    %c0_47 = arith.constant 0 : index
    %c0_48 = arith.constant 0 : index
    %86 = vector.load %arg6[%c5, %c0_47, %c0_48] : memref<9x64x128xf32, #tpu.memory_space<vmem>>, vector<1x64x128xf32>
    %87 = vector.shape_cast %86 : vector<1x64x128xf32> to vector<64x128xf32>
    %cst_49 = arith.constant dense<0.000000e+00> : vector<256x128xf32>
    %88 = tpu.matmul %85, %87, %cst_49 {dimension_numbers = #tpu.dot_dimension_numbers<[1], [0], [0], [1], [0, 0, 1, 1], [], []>} : vector<256x64xf32>, vector<64x128xf32>, vector<256x128xf32> -> vector<256x128xf32>
    %89 = arith.addf %80, %88 : vector<256x128xf32>
    %90 = vector.extract_strided_slice %40 {offsets = [15, 0], sizes = [241, 64], strides = [1, 1]} : vector<256x64xf32> to vector<241x64xf32>
    %cst_50 = arith.constant 0.000000e+00 : f32
    %91 = vector.broadcast %cst_50 : f32 to vector<15x64xf32>
    %92 = tpu.concatenate %90, %91 in 0 : vector<241x64xf32>, vector<15x64xf32> -> vector<256x64xf32>
    %93 = vector.broadcast %3 : vector<256x1xf32> to vector<256x64xf32>
    %94 = arith.mulf %92, %93 : vector<256x64xf32>
    %c6 = arith.constant 6 : index
    %c0_51 = arith.constant 0 : index
    %c0_52 = arith.constant 0 : index
    %95 = vector.load %arg6[%c6, %c0_51, %c0_52] : memref<9x64x128xf32, #tpu.memory_space<vmem>>, vector<1x64x128xf32>
    %96 = vector.shape_cast %95 : vector<1x64x128xf32> to vector<64x128xf32>
    %cst_53 = arith.constant dense<0.000000e+00> : vector<256x128xf32>
    %97 = tpu.matmul %94, %96, %cst_53 {dimension_numbers = #tpu.dot_dimension_numbers<[1], [0], [0], [1], [0, 0, 1, 1], [], []>} : vector<256x64xf32>, vector<64x128xf32>, vector<256x128xf32> -> vector<256x128xf32>
    %98 = arith.addf %89, %97 : vector<256x128xf32>
    %99 = vector.extract_strided_slice %40 {offsets = [16, 0], sizes = [240, 64], strides = [1, 1]} : vector<256x64xf32> to vector<240x64xf32>
    %cst_54 = arith.constant 0.000000e+00 : f32
    %100 = vector.broadcast %cst_54 : f32 to vector<16x64xf32>
    %101 = tpu.concatenate %99, %100 in 0 : vector<240x64xf32>, vector<16x64xf32> -> vector<256x64xf32>
    %c7 = arith.constant 7 : index
    %c0_55 = arith.constant 0 : index
    %c0_56 = arith.constant 0 : index
    %102 = vector.load %arg6[%c7, %c0_55, %c0_56] : memref<9x64x128xf32, #tpu.memory_space<vmem>>, vector<1x64x128xf32>
    %103 = vector.shape_cast %102 : vector<1x64x128xf32> to vector<64x128xf32>
    %cst_57 = arith.constant dense<0.000000e+00> : vector<256x128xf32>
    %104 = tpu.matmul %101, %103, %cst_57 {dimension_numbers = #tpu.dot_dimension_numbers<[1], [0], [0], [1], [0, 0, 1, 1], [], []>} : vector<256x64xf32>, vector<64x128xf32>, vector<256x128xf32> -> vector<256x128xf32>
    %105 = arith.addf %98, %104 : vector<256x128xf32>
    %106 = vector.extract_strided_slice %40 {offsets = [17, 0], sizes = [239, 64], strides = [1, 1]} : vector<256x64xf32> to vector<239x64xf32>
    %cst_58 = arith.constant 0.000000e+00 : f32
    %107 = vector.broadcast %cst_58 : f32 to vector<17x64xf32>
    %108 = tpu.concatenate %106, %107 in 0 : vector<239x64xf32>, vector<17x64xf32> -> vector<256x64xf32>
    %109 = vector.broadcast %5 : vector<256x1xf32> to vector<256x64xf32>
    %110 = arith.mulf %108, %109 : vector<256x64xf32>
    %c8 = arith.constant 8 : index
    %c0_59 = arith.constant 0 : index
    %c0_60 = arith.constant 0 : index
    %111 = vector.load %arg6[%c8, %c0_59, %c0_60] : memref<9x64x128xf32, #tpu.memory_space<vmem>>, vector<1x64x128xf32>
    %112 = vector.shape_cast %111 : vector<1x64x128xf32> to vector<64x128xf32>
    %cst_61 = arith.constant dense<0.000000e+00> : vector<256x128xf32>
    %113 = tpu.matmul %110, %112, %cst_61 {dimension_numbers = #tpu.dot_dimension_numbers<[1], [0], [0], [1], [0, 0, 1, 1], [], []>} : vector<256x64xf32>, vector<64x128xf32>, vector<256x128xf32> -> vector<256x128xf32>
    %114 = arith.addf %105, %113 : vector<256x128xf32>
    %115 = vector.broadcast %41 : vector<1x128xf32> to vector<256x128xf32>
    %116 = arith.addf %114, %115 : vector<256x128xf32>
    %c0_62 = arith.constant 0 : index
    %c0_63 = arith.constant 0 : index
    %c0_64 = arith.constant 0 : index
    %117 = vector.load %arg2[%c0_62, %c0_63, %c0_64] : memref<1x1x128xf32, #tpu.memory_space<vmem>>, vector<1x1x128xf32>
    %118 = vector.shape_cast %117 : vector<1x1x128xf32> to vector<1x128xf32>
    %119 = vector.broadcast %118 : vector<1x128xf32> to vector<256x128xf32>
    %120 = arith.addf %116, %119 : vector<256x128xf32>
    %c0_65 = arith.constant 0 : index
    %c0_66 = arith.constant 0 : index
    %121 = vector.load %arg10[%c0_65, %c0_66] : memref<128x128xf32, #tpu.memory_space<vmem>>, vector<128x128xf32>
    %c0_67 = arith.constant 0 : index
    %c0_68 = arith.constant 0 : index
    %122 = vector.load %arg8[%c0_67, %c0_68] : memref<1x128xf32, #tpu.memory_space<vmem>>, vector<1x128xf32>
    %c0_69 = arith.constant 0 : index
    %c0_70 = arith.constant 0 : index
    %123 = vector.load %arg9[%c0_69, %c0_70] : memref<1x128xf32, #tpu.memory_space<vmem>>, vector<1x128xf32>
    %cst_71 = arith.constant dense<0.000000e+00> : vector<256x128xf32>
    %124 = tpu.matmul %120, %121, %cst_71 {dimension_numbers = #tpu.dot_dimension_numbers<[1], [0], [0], [1], [0, 0, 1, 1], [], []>} : vector<256x128xf32>, vector<128x128xf32>, vector<256x128xf32> -> vector<256x128xf32>
    %cst_72 = arith.constant dense<0.000000e+00> : vector<128xf32>
    %125 = vector.multi_reduction <add>, %124, %cst_72 [0] : vector<256x128xf32> to vector<128xf32>
    %126 = vector.shape_cast %125 : vector<128xf32> to vector<1x128xf32>
    %127 = arith.mulf %120, %120 : vector<256x128xf32>
    %cst_73 = arith.constant dense<0.000000e+00> : vector<256x128xf32>
    %128 = tpu.matmul %127, %121, %cst_73 {dimension_numbers = #tpu.dot_dimension_numbers<[1], [0], [0], [1], [0, 0, 1, 1], [], []>} : vector<256x128xf32>, vector<128x128xf32>, vector<256x128xf32> -> vector<256x128xf32>
    %cst_74 = arith.constant dense<0.000000e+00> : vector<128xf32>
    %129 = vector.multi_reduction <add>, %128, %cst_74 [0] : vector<256x128xf32> to vector<128xf32>
    %130 = vector.shape_cast %129 : vector<128xf32> to vector<1x128xf32>
    %cst_75 = arith.constant 9.765625E-4 : f32
    %131 = vector.broadcast %cst_75 : f32 to vector<1x128xf32>
    %132 = arith.mulf %126, %131 : vector<1x128xf32>
    %cst_76 = arith.constant 9.765625E-4 : f32
    %133 = vector.broadcast %cst_76 : f32 to vector<1x128xf32>
    %134 = arith.mulf %130, %133 : vector<1x128xf32>
    %135 = arith.mulf %132, %132 : vector<1x128xf32>
    %136 = arith.subf %134, %135 : vector<1x128xf32>
    %cst_77 = arith.constant 9.99999974E-6 : f32
    %137 = vector.broadcast %cst_77 : f32 to vector<1x128xf32>
    %138 = arith.addf %136, %137 : vector<1x128xf32>
    %139 = math.rsqrt %138 : vector<1x128xf32>
    %140 = vector.broadcast %132 : vector<1x128xf32> to vector<256x128xf32>
    %141 = arith.subf %120, %140 : vector<256x128xf32>
    %142 = vector.broadcast %139 : vector<1x128xf32> to vector<256x128xf32>
    %143 = arith.mulf %141, %142 : vector<256x128xf32>
    %144 = vector.broadcast %122 : vector<1x128xf32> to vector<256x128xf32>
    %145 = arith.mulf %143, %144 : vector<256x128xf32>
    %146 = vector.broadcast %123 : vector<1x128xf32> to vector<256x128xf32>
    %147 = arith.addf %145, %146 : vector<256x128xf32>
    %cst_78 = arith.constant 0.000000e+00 : f32
    %148 = vector.broadcast %cst_78 : f32 to vector<256x128xf32>
    %149 = arith.subf %148, %147 : vector<256x128xf32>
    %150 = math.exp %149 : vector<256x128xf32>
    %cst_79 = arith.constant 1.000000e+00 : f32
    %151 = vector.broadcast %cst_79 : f32 to vector<256x128xf32>
    %152 = arith.addf %151, %150 : vector<256x128xf32>
    %cst_80 = arith.constant 1.000000e+00 : f32
    %153 = vector.broadcast %cst_80 : f32 to vector<256x128xf32>
    %154 = arith.divf %153, %152 : vector<256x128xf32>
    %155 = arith.mulf %147, %154 : vector<256x128xf32>
    %c0_81 = arith.constant 0 : index
    %c0_82 = arith.constant 0 : index
    %156 = vector.load %arg12[%c0_81, %c0_82] : memref<1x128xf32, #tpu.memory_space<vmem>>, vector<1x128xf32>
    %cst_83 = arith.constant 0.000000e+00 : f32
    %157 = vector.broadcast %cst_83 : f32 to vector<256x128xf32>
    %cst_84 = arith.constant 0.000000e+00 : f32
    %158 = vector.broadcast %cst_84 : f32 to vector<17x128xf32>
    %159 = vector.extract_strided_slice %155 {offsets = [0, 0], sizes = [239, 128], strides = [1, 1]} : vector<256x128xf32> to vector<239x128xf32>
    %160 = tpu.concatenate %158, %159 in 0 : vector<17x128xf32>, vector<239x128xf32> -> vector<256x128xf32>
    %161 = vector.broadcast %3 : vector<256x1xf32> to vector<256x128xf32>
    %162 = arith.mulf %160, %161 : vector<256x128xf32>
    %c0_85 = arith.constant 0 : index
    %c0_86 = arith.constant 0 : index
    %c0_87 = arith.constant 0 : index
    %163 = vector.load %arg11[%c0_85, %c0_86, %c0_87] : memref<9x128x128xf32, #tpu.memory_space<vmem>>, vector<1x128x128xf32>
    %164 = vector.shape_cast %163 : vector<1x128x128xf32> to vector<128x128xf32>
    %cst_88 = arith.constant dense<0.000000e+00> : vector<256x128xf32>
    %165 = tpu.matmul %162, %164, %cst_88 {dimension_numbers = #tpu.dot_dimension_numbers<[1], [0], [0], [1], [0, 0, 1, 1], [], []>} : vector<256x128xf32>, vector<128x128xf32>, vector<256x128xf32> -> vector<256x128xf32>
    %166 = arith.addf %157, %165 : vector<256x128xf32>
    %cst_89 = arith.constant 0.000000e+00 : f32
    %167 = vector.broadcast %cst_89 : f32 to vector<16x128xf32>
    %168 = vector.extract_strided_slice %155 {offsets = [0, 0], sizes = [240, 128], strides = [1, 1]} : vector<256x128xf32> to vector<240x128xf32>
    %169 = tpu.concatenate %167, %168 in 0 : vector<16x128xf32>, vector<240x128xf32> -> vector<256x128xf32>
    %c1_90 = arith.constant 1 : index
    %c0_91 = arith.constant 0 : index
    %c0_92 = arith.constant 0 : index
    %170 = vector.load %arg11[%c1_90, %c0_91, %c0_92] : memref<9x128x128xf32, #tpu.memory_space<vmem>>, vector<1x128x128xf32>
    %171 = vector.shape_cast %170 : vector<1x128x128xf32> to vector<128x128xf32>
    %cst_93 = arith.constant dense<0.000000e+00> : vector<256x128xf32>
    %172 = tpu.matmul %169, %171, %cst_93 {dimension_numbers = #tpu.dot_dimension_numbers<[1], [0], [0], [1], [0, 0, 1, 1], [], []>} : vector<256x128xf32>, vector<128x128xf32>, vector<256x128xf32> -> vector<256x128xf32>
    %173 = arith.addf %166, %172 : vector<256x128xf32>
    %cst_94 = arith.constant 0.000000e+00 : f32
    %174 = vector.broadcast %cst_94 : f32 to vector<15x128xf32>
    %175 = vector.extract_strided_slice %155 {offsets = [0, 0], sizes = [241, 128], strides = [1, 1]} : vector<256x128xf32> to vector<241x128xf32>
    %176 = tpu.concatenate %174, %175 in 0 : vector<15x128xf32>, vector<241x128xf32> -> vector<256x128xf32>
    %177 = vector.broadcast %5 : vector<256x1xf32> to vector<256x128xf32>
    %178 = arith.mulf %176, %177 : vector<256x128xf32>
    %c2_95 = arith.constant 2 : index
    %c0_96 = arith.constant 0 : index
    %c0_97 = arith.constant 0 : index
    %179 = vector.load %arg11[%c2_95, %c0_96, %c0_97] : memref<9x128x128xf32, #tpu.memory_space<vmem>>, vector<1x128x128xf32>
    %180 = vector.shape_cast %179 : vector<1x128x128xf32> to vector<128x128xf32>
    %cst_98 = arith.constant dense<0.000000e+00> : vector<256x128xf32>
    %181 = tpu.matmul %178, %180, %cst_98 {dimension_numbers = #tpu.dot_dimension_numbers<[1], [0], [0], [1], [0, 0, 1, 1], [], []>} : vector<256x128xf32>, vector<128x128xf32>, vector<256x128xf32> -> vector<256x128xf32>
    %182 = arith.addf %173, %181 : vector<256x128xf32>
    %cst_99 = arith.constant 0.000000e+00 : f32
    %183 = vector.broadcast %cst_99 : f32 to vector<1x128xf32>
    %184 = vector.extract_strided_slice %155 {offsets = [0, 0], sizes = [255, 128], strides = [1, 1]} : vector<256x128xf32> to vector<255x128xf32>
    %185 = tpu.concatenate %183, %184 in 0 : vector<1x128xf32>, vector<255x128xf32> -> vector<256x128xf32>
    %186 = vector.broadcast %3 : vector<256x1xf32> to vector<256x128xf32>
    %187 = arith.mulf %185, %186 : vector<256x128xf32>
    %c3_100 = arith.constant 3 : index
    %c0_101 = arith.constant 0 : index
    %c0_102 = arith.constant 0 : index
    %188 = vector.load %arg11[%c3_100, %c0_101, %c0_102] : memref<9x128x128xf32, #tpu.memory_space<vmem>>, vector<1x128x128xf32>
    %189 = vector.shape_cast %188 : vector<1x128x128xf32> to vector<128x128xf32>
    %cst_103 = arith.constant dense<0.000000e+00> : vector<256x128xf32>
    %190 = tpu.matmul %187, %189, %cst_103 {dimension_numbers = #tpu.dot_dimension_numbers<[1], [0], [0], [1], [0, 0, 1, 1], [], []>} : vector<256x128xf32>, vector<128x128xf32>, vector<256x128xf32> -> vector<256x128xf32>
    %191 = arith.addf %182, %190 : vector<256x128xf32>
    %c4_104 = arith.constant 4 : index
    %c0_105 = arith.constant 0 : index
    %c0_106 = arith.constant 0 : index
    %192 = vector.load %arg11[%c4_104, %c0_105, %c0_106] : memref<9x128x128xf32, #tpu.memory_space<vmem>>, vector<1x128x128xf32>
    %193 = vector.shape_cast %192 : vector<1x128x128xf32> to vector<128x128xf32>
    %cst_107 = arith.constant dense<0.000000e+00> : vector<256x128xf32>
    %194 = tpu.matmul %155, %193, %cst_107 {dimension_numbers = #tpu.dot_dimension_numbers<[1], [0], [0], [1], [0, 0, 1, 1], [], []>} : vector<256x128xf32>, vector<128x128xf32>, vector<256x128xf32> -> vector<256x128xf32>
    %195 = arith.addf %191, %194 : vector<256x128xf32>
    %196 = vector.extract_strided_slice %155 {offsets = [1, 0], sizes = [255, 128], strides = [1, 1]} : vector<256x128xf32> to vector<255x128xf32>
    %cst_108 = arith.constant 0.000000e+00 : f32
    %197 = vector.broadcast %cst_108 : f32 to vector<1x128xf32>
    %198 = tpu.concatenate %196, %197 in 0 : vector<255x128xf32>, vector<1x128xf32> -> vector<256x128xf32>
    %199 = vector.broadcast %5 : vector<256x1xf32> to vector<256x128xf32>
    %200 = arith.mulf %198, %199 : vector<256x128xf32>
    %c5_109 = arith.constant 5 : index
    %c0_110 = arith.constant 0 : index
    %c0_111 = arith.constant 0 : index
    %201 = vector.load %arg11[%c5_109, %c0_110, %c0_111] : memref<9x128x128xf32, #tpu.memory_space<vmem>>, vector<1x128x128xf32>
    %202 = vector.shape_cast %201 : vector<1x128x128xf32> to vector<128x128xf32>
    %cst_112 = arith.constant dense<0.000000e+00> : vector<256x128xf32>
    %203 = tpu.matmul %200, %202, %cst_112 {dimension_numbers = #tpu.dot_dimension_numbers<[1], [0], [0], [1], [0, 0, 1, 1], [], []>} : vector<256x128xf32>, vector<128x128xf32>, vector<256x128xf32> -> vector<256x128xf32>
    %204 = arith.addf %195, %203 : vector<256x128xf32>
    %205 = vector.extract_strided_slice %155 {offsets = [15, 0], sizes = [241, 128], strides = [1, 1]} : vector<256x128xf32> to vector<241x128xf32>
    %cst_113 = arith.constant 0.000000e+00 : f32
    %206 = vector.broadcast %cst_113 : f32 to vector<15x128xf32>
    %207 = tpu.concatenate %205, %206 in 0 : vector<241x128xf32>, vector<15x128xf32> -> vector<256x128xf32>
    %208 = vector.broadcast %3 : vector<256x1xf32> to vector<256x128xf32>
    %209 = arith.mulf %207, %208 : vector<256x128xf32>
    %c6_114 = arith.constant 6 : index
    %c0_115 = arith.constant 0 : index
    %c0_116 = arith.constant 0 : index
    %210 = vector.load %arg11[%c6_114, %c0_115, %c0_116] : memref<9x128x128xf32, #tpu.memory_space<vmem>>, vector<1x128x128xf32>
    %211 = vector.shape_cast %210 : vector<1x128x128xf32> to vector<128x128xf32>
    %cst_117 = arith.constant dense<0.000000e+00> : vector<256x128xf32>
    %212 = tpu.matmul %209, %211, %cst_117 {dimension_numbers = #tpu.dot_dimension_numbers<[1], [0], [0], [1], [0, 0, 1, 1], [], []>} : vector<256x128xf32>, vector<128x128xf32>, vector<256x128xf32> -> vector<256x128xf32>
    %213 = arith.addf %204, %212 : vector<256x128xf32>
    %214 = vector.extract_strided_slice %155 {offsets = [16, 0], sizes = [240, 128], strides = [1, 1]} : vector<256x128xf32> to vector<240x128xf32>
    %cst_118 = arith.constant 0.000000e+00 : f32
    %215 = vector.broadcast %cst_118 : f32 to vector<16x128xf32>
    %216 = tpu.concatenate %214, %215 in 0 : vector<240x128xf32>, vector<16x128xf32> -> vector<256x128xf32>
    %c7_119 = arith.constant 7 : index
    %c0_120 = arith.constant 0 : index
    %c0_121 = arith.constant 0 : index
    %217 = vector.load %arg11[%c7_119, %c0_120, %c0_121] : memref<9x128x128xf32, #tpu.memory_space<vmem>>, vector<1x128x128xf32>
    %218 = vector.shape_cast %217 : vector<1x128x128xf32> to vector<128x128xf32>
    %cst_122 = arith.constant dense<0.000000e+00> : vector<256x128xf32>
    %219 = tpu.matmul %216, %218, %cst_122 {dimension_numbers = #tpu.dot_dimension_numbers<[1], [0], [0], [1], [0, 0, 1, 1], [], []>} : vector<256x128xf32>, vector<128x128xf32>, vector<256x128xf32> -> vector<256x128xf32>
    %220 = arith.addf %213, %219 : vector<256x128xf32>
    %221 = vector.extract_strided_slice %155 {offsets = [17, 0], sizes = [239, 128], strides = [1, 1]} : vector<256x128xf32> to vector<239x128xf32>
    %cst_123 = arith.constant 0.000000e+00 : f32
    %222 = vector.broadcast %cst_123 : f32 to vector<17x128xf32>
    %223 = tpu.concatenate %221, %222 in 0 : vector<239x128xf32>, vector<17x128xf32> -> vector<256x128xf32>
    %224 = vector.broadcast %5 : vector<256x1xf32> to vector<256x128xf32>
    %225 = arith.mulf %223, %224 : vector<256x128xf32>
    %c8_124 = arith.constant 8 : index
    %c0_125 = arith.constant 0 : index
    %c0_126 = arith.constant 0 : index
    %226 = vector.load %arg11[%c8_124, %c0_125, %c0_126] : memref<9x128x128xf32, #tpu.memory_space<vmem>>, vector<1x128x128xf32>
    %227 = vector.shape_cast %226 : vector<1x128x128xf32> to vector<128x128xf32>
    %cst_127 = arith.constant dense<0.000000e+00> : vector<256x128xf32>
    %228 = tpu.matmul %225, %227, %cst_127 {dimension_numbers = #tpu.dot_dimension_numbers<[1], [0], [0], [1], [0, 0, 1, 1], [], []>} : vector<256x128xf32>, vector<128x128xf32>, vector<256x128xf32> -> vector<256x128xf32>
    %229 = arith.addf %220, %228 : vector<256x128xf32>
    %230 = vector.broadcast %156 : vector<1x128xf32> to vector<256x128xf32>
    %231 = arith.addf %229, %230 : vector<256x128xf32>
    %c0_128 = arith.constant 0 : index
    %c0_129 = arith.constant 0 : index
    %232 = vector.load %arg13[%c0_128, %c0_129] : memref<64x128xf32, #tpu.memory_space<vmem>>, vector<64x128xf32>
    %cst_130 = arith.constant dense<0.000000e+00> : vector<256x128xf32>
    %233 = tpu.matmul %1, %232, %cst_130 {dimension_numbers = #tpu.dot_dimension_numbers<[1], [0], [0], [1], [0, 0, 1, 1], [], []>} : vector<256x64xf32>, vector<64x128xf32>, vector<256x128xf32> -> vector<256x128xf32>
    %c0_131 = arith.constant 0 : index
    %c0_132 = arith.constant 0 : index
    %234 = vector.load %arg14[%c0_131, %c0_132] : memref<1x128xf32, #tpu.memory_space<vmem>>, vector<1x128xf32>
    %235 = vector.broadcast %234 : vector<1x128xf32> to vector<256x128xf32>
    %236 = arith.addf %233, %235 : vector<256x128xf32>
    %237 = arith.addf %231, %236 : vector<256x128xf32>
    %c0_133 = arith.constant 0 : index
    %c0_134 = arith.constant 0 : index
    %c0_135 = arith.constant 0 : index
    %238 = vector.load %arg16[%c0_133, %c0_134, %c0_135] : memref<1x256x128xf32, #tpu.memory_space<vmem>>, vector<1x256x128xf32>
    %239 = vector.shape_cast %238 : vector<1x256x128xf32> to vector<256x128xf32>
    %240 = vector.shape_cast %237 : vector<256x128xf32> to vector<1x256x128xf32>
    tpu.vector_store %arg16[%c0_133, %c0_134, %c0_135], %240 {strides = array<i32>} : memref<1x256x128xf32, #tpu.memory_space<vmem>>, vector<1x256x128xf32>,
    return
  }
  func.func @transform_0(%arg0: i32) -> (i32, i32, i32) {
    %c0_i32 = arith.constant 0 : i32
    %c0_i32_0 = arith.constant 0 : i32
    %c0_i32_1 = arith.constant 0 : i32
    return %arg0, %c0_i32, %c0_i32_0 : i32, i32, i32
  }
  func.func @transform_1(%arg0: i32) -> (i32, i32, i32) {
    %c0_i32 = arith.constant 0 : i32
    %c0_i32_0 = arith.constant 0 : i32
    %c0_i32_1 = arith.constant 0 : i32
    return %arg0, %c0_i32, %c0_i32_0 : i32, i32, i32
  }
  func.func @transform_2(%arg0: i32) -> (i32, i32) {
    %c0_i32 = arith.constant 0 : i32
    %c0_i32_0 = arith.constant 0 : i32
    %c0_i32_1 = arith.constant 0 : i32
    return %c0_i32, %c0_i32_0 : i32, i32
  }
  func.func @transform_3(%arg0: i32) -> (i32, i32) {
    %c0_i32 = arith.constant 0 : i32
    %c0_i32_0 = arith.constant 0 : i32
    %c0_i32_1 = arith.constant 0 : i32
    return %c0_i32, %c0_i32_0 : i32, i32
  }
  func.func @transform_4(%arg0: i32) -> (i32, i32) {
    %c0_i32 = arith.constant 0 : i32
    %c0_i32_0 = arith.constant 0 : i32
    %c0_i32_1 = arith.constant 0 : i32
    return %c0_i32, %c0_i32_0 : i32, i32
  }
  func.func @transform_5(%arg0: i32) -> (i32, i32, i32) {
    %c0_i32 = arith.constant 0 : i32
    %c0_i32_0 = arith.constant 0 : i32
    %c0_i32_1 = arith.constant 0 : i32
    %c0_i32_2 = arith.constant 0 : i32
    return %c0_i32, %c0_i32_0, %c0_i32_1 : i32, i32, i32
  }
  func.func @transform_6(%arg0: i32) -> (i32, i32) {
    %c0_i32 = arith.constant 0 : i32
    %c0_i32_0 = arith.constant 0 : i32
    %c0_i32_1 = arith.constant 0 : i32
    return %c0_i32, %c0_i32_0 : i32, i32
  }
  func.func @transform_7(%arg0: i32) -> (i32, i32) {
    %c0_i32 = arith.constant 0 : i32
    %c0_i32_0 = arith.constant 0 : i32
    %c0_i32_1 = arith.constant 0 : i32
    return %c0_i32, %c0_i32_0 : i32, i32
  }
  func.func @transform_8(%arg0: i32) -> (i32, i32) {
    %c0_i32 = arith.constant 0 : i32
    %c0_i32_0 = arith.constant 0 : i32
    %c0_i32_1 = arith.constant 0 : i32
    return %c0_i32, %c0_i32_0 : i32, i32
  }
  func.func @transform_9(%arg0: i32) -> (i32, i32) {
    %c0_i32 = arith.constant 0 : i32
    %c0_i32_0 = arith.constant 0 : i32
    %c0_i32_1 = arith.constant 0 : i32
    return %c0_i32, %c0_i32_0 : i32, i32
  }
  func.func @transform_10(%arg0: i32) -> (i32, i32, i32) {
    %c0_i32 = arith.constant 0 : i32
    %c0_i32_0 = arith.constant 0 : i32
    %c0_i32_1 = arith.constant 0 : i32
    %c0_i32_2 = arith.constant 0 : i32
    return %c0_i32, %c0_i32_0, %c0_i32_1 : i32, i32, i32
  }
  func.func @transform_11(%arg0: i32) -> (i32, i32) {
    %c0_i32 = arith.constant 0 : i32
    %c0_i32_0 = arith.constant 0 : i32
    %c0_i32_1 = arith.constant 0 : i32
    return %c0_i32, %c0_i32_0 : i32, i32
  }
  func.func @transform_12(%arg0: i32) -> (i32, i32) {
    %c0_i32 = arith.constant 0 : i32
    %c0_i32_0 = arith.constant 0 : i32
    %c0_i32_1 = arith.constant 0 : i32
    return %c0_i32, %c0_i32_0 : i32, i32
  }
  func.func @transform_13(%arg0: i32) -> (i32, i32) {
    %c0_i32 = arith.constant 0 : i32
    %c0_i32_0 = arith.constant 0 : i32
    %c0_i32_1 = arith.constant 0 : i32
    return %c0_i32, %c0_i32_0 : i32, i32
  }
  func.func @transform_14(%arg0: i32) -> (i32, i32, i32) {
    %c0_i32 = arith.constant 0 : i32
    %c0_i32_0 = arith.constant 0 : i32
    %c0_i32_1 = arith.constant 0 : i32
    %c0_i32_2 = arith.constant 0 : i32
    return %c0_i32, %c0_i32_0, %c0_i32_1 : i32, i32, i32
  }
  func.func @transform_15(%arg0: i32) -> (i32, i32, i32) {
    %c0_i32 = arith.constant 0 : i32
    %c0_i32_0 = arith.constant 0 : i32
    %c0_i32_1 = arith.constant 0 : i32
    return %arg0, %c0_i32, %c0_i32_0 : i32, i32, i32
  }
}

</mosaic_0001>

<llo_original>
// kernel: tpu_custom_call.1
$region0: #{tpu_custom_call.1}
  #allocation0 [shape = 'u32[]', space=smem, size = 0x4, offset = 0x4, fixed_abs, tag = 'smem constant byte address 0x4 - core index']
  #allocation1 [shape = 'u32[144,128]{1,0:T(1,128)}', space=vmem, size = 0x12000, scoped, tag = 'internal scratch']
  %s0 = inlined_call_operand.vmem [shape: f32[2,256,64], index: 0, kind: input, shape index: {}]
  %s1 = inlined_call_operand.vmem [shape: f32[2,1,128], index: 1, kind: input, shape index: {}]
  %s2 = inlined_call_operand.vmem [shape: f32[1,64], index: 2, kind: input, shape index: {}]
  %s3 = inlined_call_operand.vmem [shape: f32[1,64], index: 3, kind: input, shape index: {}]
  %s4 = inlined_call_operand.vmem [shape: f32[64,64], index: 4, kind: input, shape index: {}]
  %s5 = inlined_call_operand.hbm [shape: f32[9,64,128], index: 5, kind: input, shape index: {}]
  %s6 = inlined_call_operand.vmem [shape: f32[1,128], index: 6, kind: input, shape index: {}]
  %s7 = inlined_call_operand.vmem [shape: f32[1,128], index: 7, kind: input, shape index: {}]
  %s8 = inlined_call_operand.vmem [shape: f32[1,128], index: 8, kind: input, shape index: {}]
  %s9 = inlined_call_operand.vmem [shape: f32[128,128], index: 9, kind: input, shape index: {}]
  %s10 = inlined_call_operand.vmem [shape: f32[9,128,128], index: 10, kind: input, shape index: {}]
  %s11 = inlined_call_operand.vmem [shape: f32[1,128], index: 11, kind: input, shape index: {}]
  %s12 = inlined_call_operand.vmem [shape: f32[64,128], index: 12, kind: input, shape index: {}]
  %s13 = inlined_call_operand.vmem [shape: f32[1,128], index: 13, kind: input, shape index: {}]
  %s14 = inlined_call_operand.vmem [shape: f32[3,256,1], index: 14, kind: input, shape index: {}]
  %s15 = inlined_call_operand.hbm [shape: f32[2,256,128], index: 15, kind: output, shape index: {}]
  %s16 = sld [smem:[#allocation0]]
  $region97: #{tpu_custom_call.1} parent=0
    _
  %s18 = ssub.s32 1, %s16
  %s19 = scalar_select 0, %s18, %s16
  $region1: #{tpu_custom_call.1} parent=0
    #allocation2 [shape = 'u8[294912]{0}', space=vmem, size = 0x48000, scoped, tag = 'input window, operand 5, single buffered']
    #allocation3 [shape = 's32[2]{0}', space=sflag, size = 0x8, scoped, tag = 'scoped memory for tpu_custom_call.1']
    #allocation4 [shape = 's32[2]{0}', space=sflag, size = 0x8, scoped, tag = 'scoped memory for tpu_custom_call.1']
    #allocation5 [shape = 'u8[262144]{0}', space=vmem, size = 0x40000, scoped, tag = 'output window, operand 0']
    %20 = vsyncpa [#allocation3], 0
    %21 = vsyncpa [#allocation4], 0
    %s22 = scalar_lea.sflag [#allocation4], 1
    %23 = vsyncpa %s22, 0
    loop: start=0, step=1, limit=4
    $region2: #{tpu_custom_call.1} parent=1 // loop_pre_header
      _
    $region3: #{tpu_custom_call.1} parent=1 // loop_header
      %s25 = sphi 0, %s29
      %p26 = scmp.ge.s32.totalorder %s25, 4
      %s35 = sphi 0, %s37
      %s38 = sphi 0, %s35
      %s39 = sphi 0, %s38
      %s55 = sphi 0, %s39
      %s61 = sphi 0, %s63
      %s64 = sphi 0, %s61
      %s65 = sphi 0, %s64
      %s81 = sphi 0, %s65
      %s85 = sphi 0, %s85
      %s87 = sphi 0, %s85
      %s88 = sphi 0, %s87
      %s102 = sphi 0, %s88
      %s106 = sphi 0, %s106
      %s108 = sphi 0, %s106
      %s109 = sphi 0, %s108
      %s123 = sphi 0, %s109
      %s127 = sphi 0, %s127
      %s129 = sphi 0, %s127
      %s130 = sphi 0, %s129
      %s144 = sphi 0, %s130
      %s148 = sphi 0, %s148
      %s150 = sphi 0, %s148
      %s151 = sphi 0, %s150
      %s165 = sphi 0, %s151
      %s169 = sphi 0, %s169
      %s171 = sphi 0, %s169
      %s172 = sphi 0, %s171
      %s186 = sphi 0, %s172
      %s190 = sphi 0, %s190
      %s192 = sphi 0, %s190
      %s193 = sphi 0, %s192
      %s207 = sphi 0, %s193
      %s211 = sphi 0, %s211
      %s213 = sphi 0, %s211
      %s214 = sphi 0, %s213
      %s228 = sphi 0, %s214
      %s232 = sphi 0, %s232
      %s234 = sphi 0, %s232
      %s235 = sphi 0, %s234
      %s249 = sphi 0, %s235
      %s253 = sphi 0, %s253
      %s255 = sphi 0, %s253
      %s256 = sphi 0, %s255
      %s270 = sphi 0, %s256
      %s274 = sphi 0, %s274
      %s276 = sphi 0, %s274
      %s277 = sphi 0, %s276
      %s291 = sphi 0, %s277
      %s295 = sphi 0, %s295
      %s297 = sphi 0, %s295
      %s298 = sphi 0, %s297
      %s312 = sphi 0, %s298
      %s316 = sphi 0, %s316
      %s318 = sphi 0, %s316
      %s319 = sphi 0, %s318
      %s333 = sphi 0, %s319
      %s337 = sphi 0, %s337
      %s339 = sphi 0, %s337
      %s340 = sphi 0, %s339
      %s354 = sphi 0, %s340
      %s360 = sphi 0, %s362
      %s363 = sphi 0, %s360
      %s364 = sphi 0, %s363
      %s380 = sphi 0, %s364
    $region4: #{tpu_custom_call.1} parent=1 // loop_header_branch
      %28 = sbr.rel (%p26) target = $region8
    $region5: #{tpu_custom_call.1} parent=1 // loop_body
      %s30 = ssub.s32 %s25, 1
      %s31 = ssub.s32 %s25, 2
      %s32 = sadd.s32 %s25, 1
      %s33 = ssub.s32 %s25, %s32
      %p34 = scmp.eq.s32.totalorder %s33, 0
      %s36 = sadd.s32 %s35, 1
      %s37 = scalar_select %p34, %s35, %s36
      %p40 = pneg %p34
      %p41 = scmp.eq.s32.totalorder %s25, 1
      %p42 = por %p40, %p41
      %p43 = scmp.ne.s32.totalorder %s35, %s38
      %p44 = scmp.eq.s32.totalorder %s25, 0
      %p45 = por %p43, %p44
      %p46 = scmp.ne.s32.totalorder %s35, %s38
      %p47 = scmp.eq.s32.totalorder %s30, 1
      %p48 = por %p46, %p47
      %p49 = scmp.ne.s32.totalorder %s38, %s39
      %p50 = scmp.eq.s32.totalorder %s30, 0
      %p51 = por %p49, %p50
      %p52 = scmp.ne.s32.totalorder %s38, %s39
      %p53 = scmp.eq.s32.totalorder %s31, 1
      %p54 = por %p52, %p53
      %p56 = scmp.ne.s32.totalorder %s39, %s55
      %p57 = scmp.eq.s32.totalorder %s31, 0
      %p58 = por %p56, %p57
      %s59 = ssub.s32 %s25, %s32
      %p60 = scmp.eq.s32.totalorder %s59, 0
      %s62 = sadd.s32 %s61, 1
      %s63 = scalar_select %p60, %s61, %s62
      %p66 = pneg %p60
      %p67 = scmp.eq.s32.totalorder %s25, 1
      %p68 = por %p66, %p67
      %p69 = scmp.ne.s32.totalorder %s61, %s64
      %p70 = scmp.eq.s32.totalorder %s25, 0
      %p71 = por %p69, %p70
      %p72 = scmp.ne.s32.totalorder %s61, %s64
      %p73 = scmp.eq.s32.totalorder %s30, 1
      %p74 = por %p72, %p73
      %p75 = scmp.ne.s32.totalorder %s64, %s65
      %p76 = scmp.eq.s32.totalorder %s30, 0
      %p77 = por %p75, %p76
      %p78 = scmp.ne.s32.totalorder %s64, %s65
      %p79 = scmp.eq.s32.totalorder %s31, 1
      %p80 = por %p78, %p79
      %p82 = scmp.ne.s32.totalorder %s65, %s81
      %p83 = scmp.eq.s32.totalorder %s31, 0
      %p84 = por %p82, %p83
      %s86 = sadd.s32 %s85, 1
      %p89 = scmp.eq.s32.totalorder %s25, 1
      %p90 = scmp.ne.s32.totalorder %s85, %s87
      %p91 = scmp.eq.s32.totalorder %s25, 0
      %p92 = por %p90, %p91
      %p93 = scmp.ne.s32.totalorder %s85, %s87
      %p94 = scmp.eq.s32.totalorder %s30, 1
      %p95 = por %p93, %p94
      %p96 = scmp.ne.s32.totalorder %s87, %s88
      %p97 = scmp.eq.s32.totalorder %s30, 0
      %p98 = por %p96, %p97
      %p99 = scmp.ne.s32.totalorder %s87, %s88
      %p100 = scmp.eq.s32.totalorder %s31, 1
      %p101 = por %p99, %p100
      %p103 = scmp.ne.s32.totalorder %s88, %s102
      %p104 = scmp.eq.s32.totalorder %s31, 0
      %p105 = por %p103, %p104
      %s107 = sadd.s32 %s106, 1
      %p110 = scmp.eq.s32.totalorder %s25, 1
      %p111 = scmp.ne.s32.totalorder %s106, %s108
      %p112 = scmp.eq.s32.totalorder %s25, 0
      %p113 = por %p111, %p112
      %p114 = scmp.ne.s32.totalorder %s106, %s108
      %p115 = scmp.eq.s32.totalorder %s30, 1
      %p116 = por %p114, %p115
      %p117 = scmp.ne.s32.totalorder %s108, %s109
      %p118 = scmp.eq.s32.totalorder %s30, 0
      %p119 = por %p117, %p118
      %p120 = scmp.ne.s32.totalorder %s108, %s109
      %p121 = scmp.eq.s32.totalorder %s31, 1
      %p122 = por %p120, %p121
      %p124 = scmp.ne.s32.totalorder %s109, %s123
      %p125 = scmp.eq.s32.totalorder %s31, 0
      %p126 = por %p124, %p125
      %s128 = sadd.s32 %s127, 1
      %p131 = scmp.eq.s32.totalorder %s25, 1
      %p132 = scmp.ne.s32.totalorder %s127, %s129
      %p133 = scmp.eq.s32.totalorder %s25, 0
      %p134 = por %p132, %p133
      %p135 = scmp.ne.s32.totalorder %s127, %s129
      %p136 = scmp.eq.s32.totalorder %s30, 1
      %p137 = por %p135, %p136
      %p138 = scmp.ne.s32.totalorder %s129, %s130
      %p139 = scmp.eq.s32.totalorder %s30, 0
      %p140 = por %p138, %p139
      %p141 = scmp.ne.s32.totalorder %s129, %s130
      %p142 = scmp.eq.s32.totalorder %s31, 1
      %p143 = por %p141, %p142
      %p145 = scmp.ne.s32.totalorder %s130, %s144
      %p146 = scmp.eq.s32.totalorder %s31, 0
      %p147 = por %p145, %p146
      %s149 = sadd.s32 %s148, 1
      %p152 = scmp.eq.s32.totalorder %s25, 1
      %p153 = scmp.ne.s32.totalorder %s148, %s150
      %p154 = scmp.eq.s32.totalorder %s25, 0
      %p155 = por %p153, %p154
      %p156 = scmp.ne.s32.totalorder %s148, %s150
      %p157 = scmp.eq.s32.totalorder %s30, 1
      %p158 = por %p156, %p157
      %p159 = scmp.ne.s32.totalorder %s150, %s151
      %p160 = scmp.eq.s32.totalorder %s30, 0
      %p161 = por %p159, %p160
      %p162 = scmp.ne.s32.totalorder %s150, %s151
      %p163 = scmp.eq.s32.totalorder %s31, 1
      %p164 = por %p162, %p163
      %p166 = scmp.ne.s32.totalorder %s151, %s165
      %p167 = scmp.eq.s32.totalorder %s31, 0
      %p168 = por %p166, %p167
      %s170 = sadd.s32 %s169, 1
      %p173 = scmp.eq.s32.totalorder %s25, 1
      %p174 = scmp.ne.s32.totalorder %s169, %s171
      %p175 = scmp.eq.s32.totalorder %s25, 0
      %p176 = por %p174, %p175
      %p177 = scmp.ne.s32.totalorder %s169, %s171
      %p178 = scmp.eq.s32.totalorder %s30, 1
      %p179 = por %p177, %p178
      %p180 = scmp.ne.s32.totalorder %s171, %s172
      %p181 = scmp.eq.s32.totalorder %s30, 0
      %p182 = por %p180, %p181
      %p183 = scmp.ne.s32.totalorder %s171, %s172
      %p184 = scmp.eq.s32.totalorder %s31, 1
      %p185 = por %p183, %p184
      %p187 = scmp.ne.s32.totalorder %s172, %s186
      %p188 = scmp.eq.s32.totalorder %s31, 0
      %p189 = por %p187, %p188
      %s191 = sadd.s32 %s190, 1
      %p194 = scmp.eq.s32.totalorder %s25, 1
      %p195 = scmp.ne.s32.totalorder %s190, %s192
      %p196 = scmp.eq.s32.totalorder %s25, 0
      %p197 = por %p195, %p196
      %p198 = scmp.ne.s32.totalorder %s190, %s192
      %p199 = scmp.eq.s32.totalorder %s30, 1
      %p200 = por %p198, %p199
      %p201 = scmp.ne.s32.totalorder %s192, %s193
      %p202 = scmp.eq.s32.totalorder %s30, 0
      %p203 = por %p201, %p202
      %p204 = scmp.ne.s32.totalorder %s192, %s193
      %p205 = scmp.eq.s32.totalorder %s31, 1
      %p206 = por %p204, %p205
      %p208 = scmp.ne.s32.totalorder %s193, %s207
      %p209 = scmp.eq.s32.totalorder %s31, 0
      %p210 = por %p208, %p209
      %s212 = sadd.s32 %s211, 1
      %p215 = scmp.eq.s32.totalorder %s25, 1
      %p216 = scmp.ne.s32.totalorder %s211, %s213
      %p217 = scmp.eq.s32.totalorder %s25, 0
      %p218 = por %p216, %p217
      %p219 = scmp.ne.s32.totalorder %s211, %s213
      %p220 = scmp.eq.s32.totalorder %s30, 1
      %p221 = por %p219, %p220
      %p222 = scmp.ne.s32.totalorder %s213, %s214
      %p223 = scmp.eq.s32.totalorder %s30, 0
      %p224 = por %p222, %p223
      %p225 = scmp.ne.s32.totalorder %s213, %s214
      %p226 = scmp.eq.s32.totalorder %s31, 1
      %p227 = por %p225, %p226
      %p229 = scmp.ne.s32.totalorder %s214, %s228
      %p230 = scmp.eq.s32.totalorder %s31, 0
      %p231 = por %p229, %p230
      %s233 = sadd.s32 %s232, 1
      %p236 = scmp.eq.s32.totalorder %s25, 1
      %p237 = scmp.ne.s32.totalorder %s232, %s234
      %p238 = scmp.eq.s32.totalorder %s25, 0
      %p239 = por %p237, %p238
      %p240 = scmp.ne.s32.totalorder %s232, %s234
      %p241 = scmp.eq.s32.totalorder %s30, 1
      %p242 = por %p240, %p241
      %p243 = scmp.ne.s32.totalorder %s234, %s235
      %p244 = scmp.eq.s32.totalorder %s30, 0
      %p245 = por %p243, %p244
      %p246 = scmp.ne.s32.totalorder %s234, %s235
      %p247 = scmp.eq.s32.totalorder %s31, 1
      %p248 = por %p246, %p247
      %p250 = scmp.ne.s32.totalorder %s235, %s249
      %p251 = scmp.eq.s32.totalorder %s31, 0
      %p252 = por %p250, %p251
      %s254 = sadd.s32 %s253, 1
      %p257 = scmp.eq.s32.totalorder %s25, 1
      %p258 = scmp.ne.s32.totalorder %s253, %s255
      %p259 = scmp.eq.s32.totalorder %s25, 0
      %p260 = por %p258, %p259
      %p261 = scmp.ne.s32.totalorder %s253, %s255
      %p262 = scmp.eq.s32.totalorder %s30, 1
      %p263 = por %p261, %p262
      %p264 = scmp.ne.s32.totalorder %s255, %s256
      %p265 = scmp.eq.s32.totalorder %s30, 0
      %p266 = por %p264, %p265
      %p267 = scmp.ne.s32.totalorder %s255, %s256
      %p268 = scmp.eq.s32.totalorder %s31, 1
      %p269 = por %p267, %p268
      %p271 = scmp.ne.s32.totalorder %s256, %s270
      %p272 = scmp.eq.s32.totalorder %s31, 0
      %p273 = por %p271, %p272
      %s275 = sadd.s32 %s274, 1
      %p278 = scmp.eq.s32.totalorder %s25, 1
      %p279 = scmp.ne.s32.totalorder %s274, %s276
      %p280 = scmp.eq.s32.totalorder %s25, 0
      %p281 = por %p279, %p280
      %p282 = scmp.ne.s32.totalorder %s274, %s276
      %p283 = scmp.eq.s32.totalorder %s30, 1
      %p284 = por %p282, %p283
      %p285 = scmp.ne.s32.totalorder %s276, %s277
      %p286 = scmp.eq.s32.totalorder %s30, 0
      %p287 = por %p285, %p286
      %p288 = scmp.ne.s32.totalorder %s276, %s277
      %p289 = scmp.eq.s32.totalorder %s31, 1
      %p290 = por %p288, %p289
      %p292 = scmp.ne.s32.totalorder %s277, %s291
      %p293 = scmp.eq.s32.totalorder %s31, 0
      %p294 = por %p292, %p293
      %s296 = sadd.s32 %s295, 1
      %p299 = scmp.eq.s32.totalorder %s25, 1
      %p300 = scmp.ne.s32.totalorder %s295, %s297
      %p301 = scmp.eq.s32.totalorder %s25, 0
      %p302 = por %p300, %p301
      %p303 = scmp.ne.s32.totalorder %s295, %s297
      %p304 = scmp.eq.s32.totalorder %s30, 1
      %p305 = por %p303, %p304
      %p306 = scmp.ne.s32.totalorder %s297, %s298
      %p307 = scmp.eq.s32.totalorder %s30, 0
      %p308 = por %p306, %p307
      %p309 = scmp.ne.s32.totalorder %s297, %s298
      %p310 = scmp.eq.s32.totalorder %s31, 1
      %p311 = por %p309, %p310
      %p313 = scmp.ne.s32.totalorder %s298, %s312
      %p314 = scmp.eq.s32.totalorder %s31, 0
      %p315 = por %p313, %p314
      %s317 = sadd.s32 %s316, 1
      %p320 = scmp.eq.s32.totalorder %s25, 1
      %p321 = scmp.ne.s32.totalorder %s316, %s318
      %p322 = scmp.eq.s32.totalorder %s25, 0
      %p323 = por %p321, %p322
      %p324 = scmp.ne.s32.totalorder %s316, %s318
      %p325 = scmp.eq.s32.totalorder %s30, 1
      %p326 = por %p324, %p325
      %p327 = scmp.ne.s32.totalorder %s318, %s319
      %p328 = scmp.eq.s32.totalorder %s30, 0
      %p329 = por %p327, %p328
      %p330 = scmp.ne.s32.totalorder %s318, %s319
      %p331 = scmp.eq.s32.totalorder %s31, 1
      %p332 = por %p330, %p331
      %p334 = scmp.ne.s32.totalorder %s319, %s333
      %p335 = scmp.eq.s32.totalorder %s31, 0
      %p336 = por %p334, %p335
      %s338 = sadd.s32 %s337, 1
      %p341 = scmp.eq.s32.totalorder %s25, 1
      %p342 = scmp.ne.s32.totalorder %s337, %s339
      %p343 = scmp.eq.s32.totalorder %s25, 0
      %p344 = por %p342, %p343
      %p345 = scmp.ne.s32.totalorder %s337, %s339
      %p346 = scmp.eq.s32.totalorder %s30, 1
      %p347 = por %p345, %p346
      %p348 = scmp.ne.s32.totalorder %s339, %s340
      %p349 = scmp.eq.s32.totalorder %s30, 0
      %p350 = por %p348, %p349
      %p351 = scmp.ne.s32.totalorder %s339, %s340
      %p352 = scmp.eq.s32.totalorder %s31, 1
      %p353 = por %p351, %p352
      %p355 = scmp.ne.s32.totalorder %s340, %s354
      %p356 = scmp.eq.s32.totalorder %s31, 0
      %p357 = por %p355, %p356
      %s358 = ssub.s32 %s25, %s32
      %p359 = scmp.eq.s32.totalorder %s358, 0
      %s361 = sadd.s32 %s360, 1
      %s362 = scalar_select %p359, %s360, %s361
      %p365 = pneg %p359
      %p366 = scmp.eq.s32.totalorder %s25, 1
      %p367 = por %p365, %p366
      %p368 = scmp.ne.s32.totalorder %s360, %s363
      %p369 = scmp.eq.s32.totalorder %s25, 0
      %p370 = por %p368, %p369
      %p371 = scmp.ne.s32.totalorder %s360, %s363
      %p372 = scmp.eq.s32.totalorder %s30, 1
      %p373 = por %p371, %p372
      %p374 = scmp.ne.s32.totalorder %s363, %s364
      %p375 = scmp.eq.s32.totalorder %s30, 0
      %p376 = por %p374, %p375
      %p377 = scmp.ne.s32.totalorder %s363, %s364
      %p378 = scmp.eq.s32.totalorder %s31, 1
      %p379 = por %p377, %p378
      %p381 = scmp.ne.s32.totalorder %s364, %s380
      %p382 = scmp.eq.s32.totalorder %s31, 0
      %p383 = por %p381, %p382
      %p384 = scmp.le.s32.totalorder 1, %s25
      %p385 = scmp.lt.s32.totalorder %s25, 3
      %p386 = pnand %p384, %p385
      %p387 = pneg %p386
      // Predicated region
      $region9: #{tpu_custom_call.1} parent=5 // pred_check
        _
      $region10: #{tpu_custom_call.1} parent=5 // pred_check_branch
        %389 = sbr.rel (%p386) target = $region12
      $region11: #{tpu_custom_call.1} parent=5 // pred_region
        %s390 = ssub.s32 %s25, 1
        // Predicated region
        $region13: #{tpu_custom_call.1} parent=11 // pred_check
          %p391 = pneg %p98
        $region14: #{tpu_custom_call.1} parent=11 // pred_check_branch
          %393 = sbr.rel (%p391) target = $region16
        $region15: #{tpu_custom_call.1} parent=11 // pred_region
          _
        $region16: #{tpu_custom_call.1} parent=11 // pred_fallthru
          _
        // Predicated region
        $region17: #{tpu_custom_call.1} parent=11 // pred_check
          %p394 = pneg %p119
        $region18: #{tpu_custom_call.1} parent=11 // pred_check_branch
          %396 = sbr.rel (%p394) target = $region20
        $region19: #{tpu_custom_call.1} parent=11 // pred_region
          _
        $region20: #{tpu_custom_call.1} parent=11 // pred_fallthru
          _
        // Predicated region
        $region21: #{tpu_custom_call.1} parent=11 // pred_check
          %p397 = pneg %p140
        $region22: #{tpu_custom_call.1} parent=11 // pred_check_branch
          %399 = sbr.rel (%p397) target = $region24
        $region23: #{tpu_custom_call.1} parent=11 // pred_region
          _
        $region24: #{tpu_custom_call.1} parent=11 // pred_fallthru
          _
        // Predicated region
        $region25: #{tpu_custom_call.1} parent=11 // pred_check
          %p400 = pneg %p161
        $region26: #{tpu_custom_call.1} parent=11 // pred_check_branch
          %402 = sbr.rel (%p400) target = $region28
        $region27: #{tpu_custom_call.1} parent=11 // pred_region
          %s404 = ssub.s32 9216, 9216
          %405 = vsyncadd [#allocation3], %s404
          %s406 = sshll.u32 [#allocation2], 4
          %s407 = int_to_ptr.vmem [resolvable:$true] %s406
          %412 = dma.hbm_to_vmem [thread:$0]  %s5, 9216, %s407, [#allocation3], 128, 128, 8
        $region28: #{tpu_custom_call.1} parent=11 // pred_fallthru
          _
        // Predicated region
        $region29: #{tpu_custom_call.1} parent=11 // pred_check
          %p413 = pneg %p182
        $region30: #{tpu_custom_call.1} parent=11 // pred_check_branch
          %415 = sbr.rel (%p413) target = $region32
        $region31: #{tpu_custom_call.1} parent=11 // pred_region
          _
        $region32: #{tpu_custom_call.1} parent=11 // pred_fallthru
          _
        // Predicated region
        $region33: #{tpu_custom_call.1} parent=11 // pred_check
          %p416 = pneg %p203
        $region34: #{tpu_custom_call.1} parent=11 // pred_check_branch
          %418 = sbr.rel (%p416) target = $region36
        $region35: #{tpu_custom_call.1} parent=11 // pred_region
          _
        $region36: #{tpu_custom_call.1} parent=11 // pred_fallthru
          _
        // Predicated region
        $region37: #{tpu_custom_call.1} parent=11 // pred_check
          %p419 = pneg %p224
        $region38: #{tpu_custom_call.1} parent=11 // pred_check_branch
          %421 = sbr.rel (%p419) target = $region40
        $region39: #{tpu_custom_call.1} parent=11 // pred_region
          _
        $region40: #{tpu_custom_call.1} parent=11 // pred_fallthru
          _
        // Predicated region
        $region41: #{tpu_custom_call.1} parent=11 // pred_check
          %p422 = pneg %p245
        $region42: #{tpu_custom_call.1} parent=11 // pred_check_branch
          %424 = sbr.rel (%p422) target = $region44
        $region43: #{tpu_custom_call.1} parent=11 // pred_region
          _
        $region44: #{tpu_custom_call.1} parent=11 // pred_fallthru
          _
        // Predicated region
        $region45: #{tpu_custom_call.1} parent=11 // pred_check
          %p425 = pneg %p266
        $region46: #{tpu_custom_call.1} parent=11 // pred_check_branch
          %427 = sbr.rel (%p425) target = $region48
        $region47: #{tpu_custom_call.1} parent=11 // pred_region
          _
        $region48: #{tpu_custom_call.1} parent=11 // pred_fallthru
          _
        // Predicated region
        $region49: #{tpu_custom_call.1} parent=11 // pred_check
          %p428 = pneg %p287
        $region50: #{tpu_custom_call.1} parent=11 // pred_check_branch
          %430 = sbr.rel (%p428) target = $region52
        $region51: #{tpu_custom_call.1} parent=11 // pred_region
          _
        $region52: #{tpu_custom_call.1} parent=11 // pred_fallthru
          _
        // Predicated region
        $region53: #{tpu_custom_call.1} parent=11 // pred_check
          %p431 = pneg %p308
        $region54: #{tpu_custom_call.1} parent=11 // pred_check_branch
          %433 = sbr.rel (%p431) target = $region56
        $region55: #{tpu_custom_call.1} parent=11 // pred_region
          _
        $region56: #{tpu_custom_call.1} parent=11 // pred_fallthru
          _
        // Predicated region
        $region57: #{tpu_custom_call.1} parent=11 // pred_check
          %p434 = pneg %p329
        $region58: #{tpu_custom_call.1} parent=11 // pred_check_branch
          %436 = sbr.rel (%p434) target = $region60
        $region59: #{tpu_custom_call.1} parent=11 // pred_region
          _
        $region60: #{tpu_custom_call.1} parent=11 // pred_fallthru
          _
        // Predicated region
        $region61: #{tpu_custom_call.1} parent=11 // pred_check
          %p437 = pneg %p350
        $region62: #{tpu_custom_call.1} parent=11 // pred_check_branch
          %439 = sbr.rel (%p437) target = $region64
        $region63: #{tpu_custom_call.1} parent=11 // pred_region
          _
        $region64: #{tpu_custom_call.1} parent=11 // pred_fallthru
          _
      $region12: #{tpu_custom_call.1} parent=5 // pred_fallthru
        _
      %p440 = scmp.lt.s32.totalorder %s25, 2
      // Predicated region
      $region65: #{tpu_custom_call.1} parent=5 // pred_check
        %p441 = pneg %p440
      $region66: #{tpu_custom_call.1} parent=5 // pred_check_branch
        %443 = sbr.rel (%p441) target = $region68
      $region67: #{tpu_custom_call.1} parent=5 // pred_region
        // Predicated region
        $region69: #{tpu_custom_call.1} parent=67 // pred_check
          %p444 = pneg %p45
        $region70: #{tpu_custom_call.1} parent=67 // pred_check_branch
          %446 = sbr.rel (%p444) target = $region72
        $region71: #{tpu_custom_call.1} parent=67 // pred_region
          %p447 = scmp.lt.s32.totalorder %s25, 1
          %s448 = scalar_select %p447, %s25, 1
          %s449 = smul.addr %s448, 32
          %s450 = smul.addr %s449, 8
          %s451 = scalar_lea.vmem %s0, %s450
        $region72: #{tpu_custom_call.1} parent=67 // pred_fallthru
          _
        // Predicated region
        $region73: #{tpu_custom_call.1} parent=67 // pred_check
          %p452 = pneg %p71
        $region74: #{tpu_custom_call.1} parent=67 // pred_check_branch
          %454 = sbr.rel (%p452) target = $region76
        $region75: #{tpu_custom_call.1} parent=67 // pred_region
          %p455 = scmp.lt.s32.totalorder %s25, 1
          %s456 = scalar_select %p455, %s25, 1
          %s457 = scalar_lea.vmem %s1, %s456
        $region76: #{tpu_custom_call.1} parent=67 // pred_fallthru
          _
      $region68: #{tpu_custom_call.1} parent=5 // pred_fallthru
        _
      %p458 = scmp.le.s32.totalorder 1, %s25
      %p459 = scmp.lt.s32.totalorder %s25, 3
      %p460 = pnand %p458, %p459
      %p461 = pneg %p460
      // Predicated region
      $region77: #{tpu_custom_call.1} parent=5 // pred_check
        _
      $region78: #{tpu_custom_call.1} parent=5 // pred_check_branch
        %463 = sbr.rel (%p460) target = $region80
      $region79: #{tpu_custom_call.1} parent=5 // pred_region
        %s464 = ssub.s32 %s25, 1
        // Predicated region
        $region81: #{tpu_custom_call.1} parent=79 // pred_check
          %p465 = pneg %p161
        $region82: #{tpu_custom_call.1} parent=79 // pred_check_branch
          %467 = sbr.rel (%p465) target = $region84
        $region83: #{tpu_custom_call.1} parent=79 // pred_region
          %468 = dma.done [#allocation3], 9216
        $region84: #{tpu_custom_call.1} parent=79 // pred_fallthru
          _
        %p469 = scmp.lt.s32.totalorder %s30, 1
        %s470 = scalar_select %p469, %s30, 1
        %s471 = smul.addr %s470, 32
        %s472 = smul.addr %s471, 8
        %s473 = scalar_lea.vmem %s0, %s472
        %p474 = pneg %p51
        %p475 = pneg %p48
        %p476 = scmp.lt.s32.totalorder %s30, 1
        %s477 = scalar_select %p476, %s30, 1
        %s478 = scalar_lea.vmem %s1, %s477
        %p479 = pneg %p77
        %p480 = pneg %p74
        %p481 = pneg %p98
        %p482 = pneg %p95
        %p483 = pneg %p119
        %p484 = pneg %p116
        %p485 = pneg %p140
        %p486 = pneg %p137
        %p487 = pneg %p161
        %p488 = pneg %p158
        %p489 = pneg %p182
        %p490 = pneg %p179
        %p491 = pneg %p203
        %p492 = pneg %p200
        %p493 = pneg %p224
        %p494 = pneg %p221
        %p495 = pneg %p245
        %p496 = pneg %p242
        %p497 = pneg %p266
        %p498 = pneg %p263
        %p499 = pneg %p287
        %p500 = pneg %p284
        %p501 = pneg %p308
        %p502 = pneg %p305
        %p503 = pneg %p329
        %p504 = pneg %p326
        %p505 = pneg %p350
        %p506 = pneg %p347
        %p507 = pneg %p376
        %p508 = pneg %p373
        %s509 = sand.u32 %s363, 1
        %s510 = scalar_lea.sflag [#allocation4], %s509
        %s511 = sand.u32 %s363, 1
        %s512 = smul.addr %s511, 256
        %s513 = scalar_lea.vmem [#allocation5], %s512
        %p514 = scmp.lt.s32.totalorder %s30, 1
        %s515 = scalar_select %p514, %s30, 1
        %s516 = smul.addr %s515, 32
        %s517 = smul.addr %s516, 8
        %s518 = scalar_lea.vmem %s0, %s517
        %p519 = scmp.lt.s32.totalorder %s30, 1
        %s520 = scalar_select %p519, %s30, 1
        %s521 = scalar_lea.vmem %s1, %s520
        %v522 = vld [vmem:[%s518] sm:$0xff]
        %v523 = vld [vmem:[%s518 + $0x8] sm:$0xff]
        %v524 = vld [vmem:[%s518 + $0x10] sm:$0xff]
        %v525 = vld [vmem:[%s518 + $0x18] sm:$0xff]
        %v526 = vld [vmem:[%s518 + $0x20] sm:$0xff]
        %v527 = vld [vmem:[%s518 + $0x28] sm:$0xff]
        %v528 = vld [vmem:[%s518 + $0x30] sm:$0xff]
        %v529 = vld [vmem:[%s518 + $0x38] sm:$0xff]
        %v530 = vld [vmem:[%s518 + $0x40] sm:$0xff]
        %v531 = vld [vmem:[%s518 + $0x48] sm:$0xff]
        %v532 = vld [vmem:[%s518 + $0x50] sm:$0xff]
        %v533 = vld [vmem:[%s518 + $0x58] sm:$0xff]
        %v534 = vld [vmem:[%s518 + $0x60] sm:$0xff]
        %v535 = vld [vmem:[%s518 + $0x68] sm:$0xff]
        %v536 = vld [vmem:[%s518 + $0x70] sm:$0xff]
        %v537 = vld [vmem:[%s518 + $0x78] sm:$0xff]
        %v538 = vld [vmem:[%s518 + $0x80] sm:$0xff]
        %v539 = vld [vmem:[%s518 + $0x88] sm:$0xff]
        %v540 = vld [vmem:[%s518 + $0x90] sm:$0xff]
        %v541 = vld [vmem:[%s518 + $0x98] sm:$0xff]
        %v542 = vld [vmem:[%s518 + $0xa0] sm:$0xff]
        %v543 = vld [vmem:[%s518 + $0xa8] sm:$0xff]
        %v544 = vld [vmem:[%s518 + $0xb0] sm:$0xff]
        %v545 = vld [vmem:[%s518 + $0xb8] sm:$0xff]
        %v546 = vld [vmem:[%s518 + $0xc0] sm:$0xff]
        %v547 = vld [vmem:[%s518 + $0xc8] sm:$0xff]
        %v548 = vld [vmem:[%s518 + $0xd0] sm:$0xff]
        %v549 = vld [vmem:[%s518 + $0xd8] sm:$0xff]
        %v550 = vld [vmem:[%s518 + $0xe0] sm:$0xff]
        %v551 = vld [vmem:[%s518 + $0xe8] sm:$0xff]
        %v552 = vld [vmem:[%s518 + $0xf0] sm:$0xff]
        %v553 = vld [vmem:[%s518 + $0xf8] sm:$0xff]
        %v554 = vld [vmem:[%s14] sm:$0xff]
        %v555 = vld [vmem:[%s14 + $0x8] sm:$0xff]
        %v556 = vld [vmem:[%s14 + $0x10] sm:$0xff]
        %v557 = vld [vmem:[%s14 + $0x18] sm:$0xff]
        %v558 = vld [vmem:[%s14 + $0x20] sm:$0xff]
        %v559 = vld [vmem:[%s14 + $0x28] sm:$0xff]
        %v560 = vld [vmem:[%s14 + $0x30] sm:$0xff]
        %v561 = vld [vmem:[%s14 + $0x38] sm:$0xff]
        %v562 = vld [vmem:[%s14 + $0x40] sm:$0xff]
        %v563 = vld [vmem:[%s14 + $0x48] sm:$0xff]
        %v564 = vld [vmem:[%s14 + $0x50] sm:$0xff]
        %v565 = vld [vmem:[%s14 + $0x58] sm:$0xff]
        %v566 = vld [vmem:[%s14 + $0x60] sm:$0xff]
        %v567 = vld [vmem:[%s14 + $0x68] sm:$0xff]
        %v568 = vld [vmem:[%s14 + $0x70] sm:$0xff]
        %v569 = vld [vmem:[%s14 + $0x78] sm:$0xff]
        %v570 = vld [vmem:[%s14 + $0x80] sm:$0xff]
        %v571 = vld [vmem:[%s14 + $0x88] sm:$0xff]
        %v572 = vld [vmem:[%s14 + $0x90] sm:$0xff]
        %v573 = vld [vmem:[%s14 + $0x98] sm:$0xff]
        %v574 = vld [vmem:[%s14 + $0xa0] sm:$0xff]
        %v575 = vld [vmem:[%s14 + $0xa8] sm:$0xff]
        %v576 = vld [vmem:[%s14 + $0xb0] sm:$0xff]
        %v577 = vld [vmem:[%s14 + $0xb8] sm:$0xff]
        %v578 = vld [vmem:[%s14 + $0xc0] sm:$0xff]
        %v579 = vld [vmem:[%s14 + $0xc8] sm:$0xff]
        %v580 = vld [vmem:[%s14 + $0xd0] sm:$0xff]
        %v581 = vld [vmem:[%s14 + $0xd8] sm:$0xff]
        %v582 = vld [vmem:[%s14 + $0xe0] sm:$0xff]
        %v583 = vld [vmem:[%s14 + $0xe8] sm:$0xff]
        %v584 = vld [vmem:[%s14 + $0xf0] sm:$0xff]
        %v585 = vld [vmem:[%s14 + $0xf8] sm:$0xff]
        %s586 = scalar_lea.vmem %s14, 512
        %v587 = vld [vmem:[%s586] sm:$0xff]
        %v588 = vld [vmem:[%s586 + $0x8] sm:$0xff]
        %v589 = vld [vmem:[%s586 + $0x10] sm:$0xff]
        %v590 = vld [vmem:[%s586 + $0x18] sm:$0xff]
        %v591 = vld [vmem:[%s586 + $0x20] sm:$0xff]
        %v592 = vld [vmem:[%s586 + $0x28] sm:$0xff]
        %v593 = vld [vmem:[%s586 + $0x30] sm:$0xff]
        %v594 = vld [vmem:[%s586 + $0x38] sm:$0xff]
        %v595 = vld [vmem:[%s586 + $0x40] sm:$0xff]
        %v596 = vld [vmem:[%s586 + $0x48] sm:$0xff]
        %v597 = vld [vmem:[%s586 + $0x50] sm:$0xff]
        %v598 = vld [vmem:[%s586 + $0x58] sm:$0xff]
        %v599 = vld [vmem:[%s586 + $0x60] sm:$0xff]
        %v600 = vld [vmem:[%s586 + $0x68] sm:$0xff]
        %v601 = vld [vmem:[%s586 + $0x70] sm:$0xff]
        %v602 = vld [vmem:[%s586 + $0x78] sm:$0xff]
        %v603 = vld [vmem:[%s586 + $0x80] sm:$0xff]
        %v604 = vld [vmem:[%s586 + $0x88] sm:$0xff]
        %v605 = vld [vmem:[%s586 + $0x90] sm:$0xff]
        %v606 = vld [vmem:[%s586 + $0x98] sm:$0xff]
        %v607 = vld [vmem:[%s586 + $0xa0] sm:$0xff]
        %v608 = vld [vmem:[%s586 + $0xa8] sm:$0xff]
        %v609 = vld [vmem:[%s586 + $0xb0] sm:$0xff]
        %v610 = vld [vmem:[%s586 + $0xb8] sm:$0xff]
        %v611 = vld [vmem:[%s586 + $0xc0] sm:$0xff]
        %v612 = vld [vmem:[%s586 + $0xc8] sm:$0xff]
        %v613 = vld [vmem:[%s586 + $0xd0] sm:$0xff]
        %v614 = vld [vmem:[%s586 + $0xd8] sm:$0xff]
        %v615 = vld [vmem:[%s586 + $0xe0] sm:$0xff]
        %v616 = vld [vmem:[%s586 + $0xe8] sm:$0xff]
        %v617 = vld [vmem:[%s586 + $0xf0] sm:$0xff]
        %v618 = vld [vmem:[%s586 + $0xf8] sm:$0xff]
        %v619 = vld [vmem:[%s4] sm:$0xff]
        %v620 = vld [vmem:[%s4 + $0x8] sm:$0xff]
        %v621 = vld [vmem:[%s4 + $0x10] sm:$0xff]
        %v622 = vld [vmem:[%s4 + $0x18] sm:$0xff]
        %v623 = vld [vmem:[%s4 + $0x20] sm:$0xff]
        %v624 = vld [vmem:[%s4 + $0x28] sm:$0xff]
        %v625 = vld [vmem:[%s4 + $0x30] sm:$0xff]
        %v626 = vld [vmem:[%s4 + $0x38] sm:$0xff]
        %v627 = vld [vmem:[%s2] sm:$0x1]
        %v628 = vld [vmem:[%s3] sm:$0x1]
        %vm629 = vcmask 523264
        %v631 = vsel %vm629, %v522, 0
        %v634 = vsel %vm629, %v523, 0
        %v637 = vsel %vm629, %v524, 0
        %v640 = vsel %vm629, %v525, 0
        %v643 = vsel %vm629, %v526, 0
        %v646 = vsel %vm629, %v527, 0
        %v649 = vsel %vm629, %v528, 0
        %v652 = vsel %vm629, %v529, 0
        %v655 = vsel %vm629, %v530, 0
        %v658 = vsel %vm629, %v531, 0
        %v661 = vsel %vm629, %v532, 0
        %v664 = vsel %vm629, %v533, 0
        %v667 = vsel %vm629, %v534, 0
        %v670 = vsel %vm629, %v535, 0
        %v673 = vsel %vm629, %v536, 0
        %v676 = vsel %vm629, %v537, 0
        %v679 = vsel %vm629, %v538, 0
        %v682 = vsel %vm629, %v539, 0
        %v685 = vsel %vm629, %v540, 0
        %v688 = vsel %vm629, %v541, 0
        %v691 = vsel %vm629, %v542, 0
        %v694 = vsel %vm629, %v543, 0
        %v697 = vsel %vm629, %v544, 0
        %v700 = vsel %vm629, %v545, 0
        %v703 = vsel %vm629, %v546, 0
        %v706 = vsel %vm629, %v547, 0
        %v709 = vsel %vm629, %v548, 0
        %v712 = vsel %vm629, %v549, 0
        %v715 = vsel %vm629, %v550, 0
        %v718 = vsel %vm629, %v551, 0
        %v721 = vsel %vm629, %v552, 0
        %v724 = vsel %vm629, %v553, 0
        %726 = vmatprep.subr.mxu0 0.0
        %727 = vmatpush1.msra.mxu0 %v619
        %728 = vmatprep.subr.mxu0 0.0
        %729 = vmatpush1.msra.mxu0 %v620
        %730 = vmatprep.subr.mxu0 0.0
        %731 = vmatpush1.msra.mxu0 %v621
        %732 = vmatprep.subr.mxu0 0.0
        %733 = vmatpush1.msra.mxu0 %v622
        %734 = vmatprep.subr.mxu0 0.0
        %735 = vmatpush1.msra.mxu0 %v623
        %736 = vmatprep.subr.mxu0 0.0
        %737 = vmatpush1.msra.mxu0 %v624
        %738 = vmatprep.subr.mxu0 0.0
        %739 = vmatpush1.msra.mxu0 %v625
        %740 = vmatprep.subr.mxu0 0.0
        %741 = vmatpush1.msra.mxu0 %v626
        %742 = vmatprep.subr.mxu0 0.0
        %743 = vmatpush1.msra.mxu0 0.0
        %744 = vmatprep.subr.mxu0 0.0
        %745 = vmatpush1.msra.mxu0 0.0
        %746 = vmatprep.subr.mxu0 0.0
        %747 = vmatpush1.msra.mxu0 0.0
        %748 = vmatprep.subr.mxu0 0.0
        %749 = vmatpush1.msra.mxu0 0.0
        %750 = vmatprep.subr.mxu0 0.0
        %751 = vmatpush1.msra.mxu0 0.0
        %752 = vmatprep.subr.mxu0 0.0
        %753 = vmatpush1.msra.mxu0 0.0
        %754 = vmatprep.subr.mxu0 0.0
        %755 = vmatpush1.msra.mxu0 0.0
        %756 = vmatprep.subr.mxu0 0.0
        %757 = vmatpush1.msra.mxu0 0.0
        %758 = vmatprep.subr.mxu0 0.0
        %759 = vmatpush1.msra.mxu0 0.0
        %760 = vmatprep.subr.mxu0 0.0
        %761 = vmatpush1.msra.mxu0 0.0
        %762 = vmatprep.subr.mxu0 0.0
        %763 = vmatpush1.msra.mxu0 0.0
        %764 = vmatprep.subr.mxu0 0.0
        %765 = vmatpush1.msra.mxu0 0.0
        %766 = vmatprep.subr.mxu0 0.0
        %767 = vmatpush1.msra.mxu0 0.0
        %768 = vmatprep.subr.mxu0 0.0
        %769 = vmatpush1.msra.mxu0 0.0
        %770 = vmatprep.subr.mxu0 0.0
        %771 = vmatpush1.msra.mxu0 0.0
        %772 = vmatprep.subr.mxu0 0.0
        %773 = vmatpush1.msra.mxu0 0.0
        %774 = vmatprep.subr.mxu0 0.0
        %775 = vmatpush1.msra.mxu0 0.0
        %776 = vmatprep.subr.mxu0 0.0
        %777 = vmatpush1.msra.mxu0 0.0
        %778 = vmatprep.subr.mxu0 0.0
        %779 = vmatpush1.msra.mxu0 0.0
        %780 = vmatprep.subr.mxu0 0.0
        %781 = vmatpush1.msra.mxu0 0.0
        %782 = vmatprep.subr.mxu0 0.0
        %783 = vmatpush1.msra.mxu0 0.0
        %784 = vmatprep.subr.mxu0 0.0
        %785 = vmatpush1.msra.mxu0 0.0
        %786 = vmatprep.subr.mxu0 0.0
        %787 = vmatpush1.msra.mxu0 0.0
        %788 = vmatprep.subr.mxu0 0.0
        %789 = vmatpush1.msra.mxu0 0.0
        %790 = vmatprep.mubr.f32.mxu0 0.0
        %791 = vmatmul.mubr.f32.gmra.mrb[0].mxu0 %v631
        %v792 = vpop.f32.mrb[0].mxu0
        %v793 = vadd.f32 0.0, %v792
        %v794 = vpop.f32.mrb[0].mxu0
        %795 = vmatprep.mubr.f32.mxu0 0.0
        %796 = vmatmul.mubr.f32.gmra.mrb[0].mxu0 %v634
        %v797 = vpop.f32.mrb[0].mxu0
        %v798 = vadd.f32 0.0, %v797
        %v799 = vpop.f32.mrb[0].mxu0
        %800 = vmatprep.mubr.f32.mxu0 0.0
        %801 = vmatmul.mubr.f32.gmra.mrb[0].mxu0 %v637
        %v802 = vpop.f32.mrb[0].mxu0
        %v803 = vadd.f32 0.0, %v802
        %v804 = vpop.f32.mrb[0].mxu0
        %805 = vmatprep.mubr.f32.mxu0 0.0
        %806 = vmatmul.mubr.f32.gmra.mrb[0].mxu0 %v640
        %v807 = vpop.f32.mrb[0].mxu0
        %v808 = vadd.f32 0.0, %v807
        %v809 = vpop.f32.mrb[0].mxu0
        %810 = vmatprep.mubr.f32.mxu0 0.0
        %811 = vmatmul.mubr.f32.gmra.mrb[0].mxu0 %v643
        %v812 = vpop.f32.mrb[0].mxu0
        %v813 = vadd.f32 0.0, %v812
        %v814 = vpop.f32.mrb[0].mxu0
        %815 = vmatprep.mubr.f32.mxu0 0.0
        %816 = vmatmul.mubr.f32.gmra.mrb[0].mxu0 %v646
        %v817 = vpop.f32.mrb[0].mxu0
        %v818 = vadd.f32 0.0, %v817
        %v819 = vpop.f32.mrb[0].mxu0
        %820 = vmatprep.mubr.f32.mxu0 0.0
        %821 = vmatmul.mubr.f32.gmra.mrb[0].mxu0 %v649
        %v822 = vpop.f32.mrb[0].mxu0
        %v823 = vadd.f32 0.0, %v822
        %v824 = vpop.f32.mrb[0].mxu0
        %825 = vmatprep.mubr.f32.mxu0 0.0
        %826 = vmatmul.mubr.f32.gmra.mrb[0].mxu0 %v652
        %v827 = vpop.f32.mrb[0].mxu0
        %v828 = vadd.f32 0.0, %v827
        %v829 = vpop.f32.mrb[0].mxu0
        %830 = vmatprep.mubr.f32.mxu0 0.0
        %831 = vmatmul.mubr.f32.gmra.mrb[0].mxu0 %v655
        %v832 = vpop.f32.mrb[0].mxu0
        %v833 = vadd.f32 0.0, %v832
        %v834 = vpop.f32.mrb[0].mxu0
        %835 = vmatprep.mubr.f32.mxu0 0.0
        %836 = vmatmul.mubr.f32.gmra.mrb[0].mxu0 %v658
        %v837 = vpop.f32.mrb[0].mxu0
        %v838 = vadd.f32 0.0, %v837
        %v839 = vpop.f32.mrb[0].mxu0
        %840 = vmatprep.mubr.f32.mxu0 0.0
        %841 = vmatmul.mubr.f32.gmra.mrb[0].mxu0 %v661
        %v842 = vpop.f32.mrb[0].mxu0
        %v843 = vadd.f32 0.0, %v842
        %v844 = vpop.f32.mrb[0].mxu0
        %845 = vmatprep.mubr.f32.mxu0 0.0
        %846 = vmatmul.mubr.f32.gmra.mrb[0].mxu0 %v664
        %v847 = vpop.f32.mrb[0].mxu0
        %v848 = vadd.f32 0.0, %v847
        %v849 = vpop.f32.mrb[0].mxu0
        %850 = vmatprep.mubr.f32.mxu0 0.0
        %851 = vmatmul.mubr.f32.gmra.mrb[0].mxu0 %v667
        %v852 = vpop.f32.mrb[0].mxu0
        %v853 = vadd.f32 0.0, %v852
        %v854 = vpop.f32.mrb[0].mxu0
        %855 = vmatprep.mubr.f32.mxu0 0.0
        %856 = vmatmul.mubr.f32.gmra.mrb[0].mxu0 %v670
        %v857 = vpop.f32.mrb[0].mxu0
        %v858 = vadd.f32 0.0, %v857
        %v859 = vpop.f32.mrb[0].mxu0
        %860 = vmatprep.mubr.f32.mxu0 0.0
        %861 = vmatmul.mubr.f32.gmra.mrb[0].mxu0 %v673
        %v862 = vpop.f32.mrb[0].mxu0
        %v863 = vadd.f32 0.0, %v862
        %v864 = vpop.f32.mrb[0].mxu0
        %865 = vmatprep.mubr.f32.mxu0 0.0
        %866 = vmatmul.mubr.f32.gmra.mrb[0].mxu0 %v676
        %v867 = vpop.f32.mrb[0].mxu0
        %v868 = vadd.f32 0.0, %v867
        %v869 = vpop.f32.mrb[0].mxu0
        %870 = vmatprep.mubr.f32.mxu0 0.0
        %871 = vmatmul.mubr.f32.gmra.mrb[0].mxu0 %v679
        %v872 = vpop.f32.mrb[0].mxu0
        %v873 = vadd.f32 0.0, %v872
        %v874 = vpop.f32.mrb[0].mxu0
        %875 = vmatprep.mubr.f32.mxu0 0.0
        %876 = vmatmul.mubr.f32.gmra.mrb[0].mxu0 %v682
        %v877 = vpop.f32.mrb[0].mxu0
        %v878 = vadd.f32 0.0, %v877
        %v879 = vpop.f32.mrb[0].mxu0
        %880 = vmatprep.mubr.f32.mxu0 0.0
        %881 = vmatmul.mubr.f32.gmra.mrb[0].mxu0 %v685
        %v882 = vpop.f32.mrb[0].mxu0
        %v883 = vadd.f32 0.0, %v882
        %v884 = vpop.f32.mrb[0].mxu0
        %885 = vmatprep.mubr.f32.mxu0 0.0
        %886 = vmatmul.mubr.f32.gmra.mrb[0].mxu0 %v688
        %v887 = vpop.f32.mrb[0].mxu0
        %v888 = vadd.f32 0.0, %v887
        %v889 = vpop.f32.mrb[0].mxu0
        %890 = vmatprep.mubr.f32.mxu0 0.0
        %891 = vmatmul.mubr.f32.gmra.mrb[0].mxu0 %v691
        %v892 = vpop.f32.mrb[0].mxu0
        %v893 = vadd.f32 0.0, %v892
        %v894 = vpop.f32.mrb[0].mxu0
        %895 = vmatprep.mubr.f32.mxu0 0.0
        %896 = vmatmul.mubr.f32.gmra.mrb[0].mxu0 %v694
        %v897 = vpop.f32.mrb[0].mxu0
        %v898 = vadd.f32 0.0, %v897
        %v899 = vpop.f32.mrb[0].mxu0
        %900 = vmatprep.mubr.f32.mxu0 0.0
        %901 = vmatmul.mubr.f32.gmra.mrb[0].mxu0 %v697
        %v902 = vpop.f32.mrb[0].mxu0
        %v903 = vadd.f32 0.0, %v902
        %v904 = vpop.f32.mrb[0].mxu0
        %905 = vmatprep.mubr.f32.mxu0 0.0
        %906 = vmatmul.mubr.f32.gmra.mrb[0].mxu0 %v700
        %v907 = vpop.f32.mrb[0].mxu0
        %v908 = vadd.f32 0.0, %v907
        %v909 = vpop.f32.mrb[0].mxu0
        %910 = vmatprep.mubr.f32.mxu0 0.0
        %911 = vmatmul.mubr.f32.gmra.mrb[0].mxu0 %v703
        %v912 = vpop.f32.mrb[0].mxu0
        %v913 = vadd.f32 0.0, %v912
        %v914 = vpop.f32.mrb[0].mxu0
        %915 = vmatprep.mubr.f32.mxu0 0.0
        %916 = vmatmul.mubr.f32.gmra.mrb[0].mxu0 %v706
        %v917 = vpop.f32.mrb[0].mxu0
        %v918 = vadd.f32 0.0, %v917
        %v919 = vpop.f32.mrb[0].mxu0
        %920 = vmatprep.mubr.f32.mxu0 0.0
        %921 = vmatmul.mubr.f32.gmra.mrb[0].mxu0 %v709
        %v922 = vpop.f32.mrb[0].mxu0
        %v923 = vadd.f32 0.0, %v922
        %v924 = vpop.f32.mrb[0].mxu0
        %925 = vmatprep.mubr.f32.mxu0 0.0
        %926 = vmatmul.mubr.f32.gmra.mrb[0].mxu0 %v712
        %v927 = vpop.f32.mrb[0].mxu0
        %v928 = vadd.f32 0.0, %v927
        %v929 = vpop.f32.mrb[0].mxu0
        %930 = vmatprep.mubr.f32.mxu0 0.0
        %931 = vmatmul.mubr.f32.gmra.mrb[0].mxu0 %v715
        %v932 = vpop.f32.mrb[0].mxu0
        %v933 = vadd.f32 0.0, %v932
        %v934 = vpop.f32.mrb[0].mxu0
        %935 = vmatprep.mubr.f32.mxu0 0.0
        %936 = vmatmul.mubr.f32.gmra.mrb[0].mxu0 %v718
        %v937 = vpop.f32.mrb[0].mxu0
        %v938 = vadd.f32 0.0, %v937
        %v939 = vpop.f32.mrb[0].mxu0
        %940 = vmatprep.mubr.f32.mxu0 0.0
        %941 = vmatmul.mubr.f32.gmra.mrb[0].mxu0 %v721
        %v942 = vpop.f32.mrb[0].mxu0
        %v943 = vadd.f32 0.0, %v942
        %v944 = vpop.f32.mrb[0].mxu0
        %945 = vmatprep.mubr.f32.mxu0 0.0
        %946 = vmatmul.mubr.f32.gmra.mrb[0].mxu0 %v724
        %v947 = vpop.f32.mrb[0].mxu0
        %v948 = vadd.f32 0.0, %v947
        %v949 = vpop.f32.mrb[0].mxu0
        %950 = vdwg.mxu0
        %v951 = vsel %vm629, %v793, 0.0
        %v952 = vsel %vm629, %v798, 0.0
        %v953 = vadd.f32 %v951, %v952
        %v954 = vsel %vm629, %v803, 0.0
        %v955 = vadd.f32 %v953, %v954
        %v956 = vsel %vm629, %v808, 0.0
        %v957 = vadd.f32 %v955, %v956
        %v958 = vsel %vm629, %v813, 0.0
        %v959 = vadd.f32 %v957, %v958
        %v960 = vsel %vm629, %v818, 0.0
        %v961 = vadd.f32 %v959, %v960
        %v962 = vsel %vm629, %v823, 0.0
        %v963 = vadd.f32 %v961, %v962
        %v964 = vsel %vm629, %v828, 0.0
        %v965 = vadd.f32 %v963, %v964
        %v966 = vsel %vm629, %v833, 0.0
        %v967 = vadd.f32 %v965, %v966
        %v968 = vsel %vm629, %v838, 0.0
        %v969 = vadd.f32 %v967, %v968
        %v970 = vsel %vm629, %v843, 0.0
        %v971 = vadd.f32 %v969, %v970
        %v972 = vsel %vm629, %v848, 0.0
        %v973 = vadd.f32 %v971, %v972
        %v974 = vsel %vm629, %v853, 0.0
        %v975 = vadd.f32 %v973, %v974
        %v976 = vsel %vm629, %v858, 0.0
        %v977 = vadd.f32 %v975, %v976
        %v978 = vsel %vm629, %v863, 0.0
        %v979 = vadd.f32 %v977, %v978
        %v980 = vsel %vm629, %v868, 0.0
        %v981 = vadd.f32 %v979, %v980
        %v982 = vsel %vm629, %v873, 0.0
        %v983 = vadd.f32 %v981, %v982
        %v984 = vsel %vm629, %v878, 0.0
        %v985 = vadd.f32 %v983, %v984
        %v986 = vsel %vm629, %v883, 0.0
        %v987 = vadd.f32 %v985, %v986
        %v988 = vsel %vm629, %v888, 0.0
        %v989 = vadd.f32 %v987, %v988
        %v990 = vsel %vm629, %v893, 0.0
        %v991 = vadd.f32 %v989, %v990
        %v992 = vsel %vm629, %v898, 0.0
        %v993 = vadd.f32 %v991, %v992
        %v994 = vsel %vm629, %v903, 0.0
        %v995 = vadd.f32 %v993, %v994
        %v996 = vsel %vm629, %v908, 0.0
        %v997 = vadd.f32 %v995, %v996
        %v998 = vsel %vm629, %v913, 0.0
        %v999 = vadd.f32 %v997, %v998
        %v1000 = vsel %vm629, %v918, 0.0
        %v1001 = vadd.f32 %v999, %v1000
        %v1002 = vsel %vm629, %v923, 0.0
        %v1003 = vadd.f32 %v1001, %v1002
        %v1004 = vsel %vm629, %v928, 0.0
        %v1005 = vadd.f32 %v1003, %v1004
        %v1006 = vsel %vm629, %v933, 0.0
        %v1007 = vadd.f32 %v1005, %v1006
        %v1008 = vsel %vm629, %v938, 0.0
        %v1009 = vadd.f32 %v1007, %v1008
        %v1010 = vsel %vm629, %v943, 0.0
        %v1011 = vadd.f32 %v1009, %v1010
        %v1012 = vsel %vm629, %v948, 0.0
        %v1013 = vadd.f32 %v1011, %v1012
        %v1014 = vrot.slane %v1013, 4
        %v1015 = vadd.f32 %v1013, %v1014
        %v1016 = vrot.slane %v1015, 2
        %v1017 = vadd.f32 %v1015, %v1016
        %v1018 = vrot.slane %v1017, 1
        %v1019 = vadd.f32 %v1017, %v1018
        %v1020 = vmul.f32 %v522, %v522
        %v1021 = vmul.f32 %v523, %v523
        %v1022 = vmul.f32 %v524, %v524
        %v1023 = vmul.f32 %v525, %v525
        %v1024 = vmul.f32 %v526, %v526
        %v1025 = vmul.f32 %v527, %v527
        %v1026 = vmul.f32 %v528, %v528
        %v1027 = vmul.f32 %v529, %v529
        %v1028 = vmul.f32 %v530, %v530
        %v1029 = vmul.f32 %v531, %v531
        %v1030 = vmul.f32 %v532, %v532
        %v1031 = vmul.f32 %v533, %v533
        %v1032 = vmul.f32 %v534, %v534
        %v1033 = vmul.f32 %v535, %v535
        %v1034 = vmul.f32 %v536, %v536
        %v1035 = vmul.f32 %v537, %v537
        %v1036 = vmul.f32 %v538, %v538
        %v1037 = vmul.f32 %v539, %v539
        %v1038 = vmul.f32 %v540, %v540
        %v1039 = vmul.f32 %v541, %v541
        %v1040 = vmul.f32 %v542, %v542
        %v1041 = vmul.f32 %v543, %v543
        %v1042 = vmul.f32 %v544, %v544
        %v1043 = vmul.f32 %v545, %v545
        %v1044 = vmul.f32 %v546, %v546
        %v1045 = vmul.f32 %v547, %v547
        %v1046 = vmul.f32 %v548, %v548
        %v1047 = vmul.f32 %v549, %v549
        %v1048 = vmul.f32 %v550, %v550
        %v1049 = vmul.f32 %v551, %v551
        %v1050 = vmul.f32 %v552, %v552
        %v1051 = vmul.f32 %v553, %v553
        %v1053 = vsel %vm629, %v1020, 0
        %v1056 = vsel %vm629, %v1021, 0
        %v1059 = vsel %vm629, %v1022, 0
        %v1062 = vsel %vm629, %v1023, 0
        %v1065 = vsel %vm629, %v1024, 0
        %v1068 = vsel %vm629, %v1025, 0
        %v1071 = vsel %vm629, %v1026, 0
        %v1074 = vsel %vm629, %v1027, 0
        %v1077 = vsel %vm629, %v1028, 0
        %v1080 = vsel %vm629, %v1029, 0
        %v1083 = vsel %vm629, %v1030, 0
        %v1086 = vsel %vm629, %v1031, 0
        %v1089 = vsel %vm629, %v1032, 0
        %v1092 = vsel %vm629, %v1033, 0
        %v1095 = vsel %vm629, %v1034, 0
        %v1098 = vsel %vm629, %v1035, 0
        %v1101 = vsel %vm629, %v1036, 0
        %v1104 = vsel %vm629, %v1037, 0
        %v1107 = vsel %vm629, %v1038, 0
        %v1110 = vsel %vm629, %v1039, 0
        %v1113 = vsel %vm629, %v1040, 0
        %v1116 = vsel %vm629, %v1041, 0
        %v1119 = vsel %vm629, %v1042, 0
        %v1122 = vsel %vm629, %v1043, 0
        %v1125 = vsel %vm629, %v1044, 0
        %v1128 = vsel %vm629, %v1045, 0
        %v1131 = vsel %vm629, %v1046, 0
        %v1134 = vsel %vm629, %v1047, 0
        %v1137 = vsel %vm629, %v1048, 0
        %v1140 = vsel %vm629, %v1049, 0
        %v1143 = vsel %vm629, %v1050, 0
        %v1146 = vsel %vm629, %v1051, 0
        %1148 = vmatprep.subr.mxu0 0.0
        %1149 = vmatpush1.msra.mxu0 %v619
        %1150 = vmatprep.subr.mxu0 0.0
        %1151 = vmatpush1.msra.mxu0 %v620
        %1152 = vmatprep.subr.mxu0 0.0
        %1153 = vmatpush1.msra.mxu0 %v621
        %1154 = vmatprep.subr.mxu0 0.0
        %1155 = vmatpush1.msra.mxu0 %v622
        %1156 = vmatprep.subr.mxu0 0.0
        %1157 = vmatpush1.msra.mxu0 %v623
        %1158 = vmatprep.subr.mxu0 0.0
        %1159 = vmatpush1.msra.mxu0 %v624
        %1160 = vmatprep.subr.mxu0 0.0
        %1161 = vmatpush1.msra.mxu0 %v625
        %1162 = vmatprep.subr.mxu0 0.0
        %1163 = vmatpush1.msra.mxu0 %v626
        %1164 = vmatprep.subr.mxu0 0.0
        %1165 = vmatpush1.msra.mxu0 0.0
        %1166 = vmatprep.subr.mxu0 0.0
        %1167 = vmatpush1.msra.mxu0 0.0
        %1168 = vmatprep.subr.mxu0 0.0
        %1169 = vmatpush1.msra.mxu0 0.0
        %1170 = vmatprep.subr.mxu0 0.0
        %1171 = vmatpush1.msra.mxu0 0.0
        %1172 = vmatprep.subr.mxu0 0.0
        %1173 = vmatpush1.msra.mxu0 0.0
        %1174 = vmatprep.subr.mxu0 0.0
        %1175 = vmatpush1.msra.mxu0 0.0
        %1176 = vmatprep.subr.mxu0 0.0
        %1177 = vmatpush1.msra.mxu0 0.0
        %1178 = vmatprep.subr.mxu0 0.0
        %1179 = vmatpush1.msra.mxu0 0.0
        %1180 = vmatprep.subr.mxu0 0.0
        %1181 = vmatpush1.msra.mxu0 0.0
        %1182 = vmatprep.subr.mxu0 0.0
        %1183 = vmatpush1.msra.mxu0 0.0
        %1184 = vmatprep.subr.mxu0 0.0
        %1185 = vmatpush1.msra.mxu0 0.0
        %1186 = vmatprep.subr.mxu0 0.0
        %1187 = vmatpush1.msra.mxu0 0.0
        %1188 = vmatprep.subr.mxu0 0.0
        %1189 = vmatpush1.msra.mxu0 0.0
        %1190 = vmatprep.subr.mxu0 0.0
        %1191 = vmatpush1.msra.mxu0 0.0
        %1192 = vmatprep.subr.mxu0 0.0
        %1193 = vmatpush1.msra.mxu0 0.0
        %1194 = vmatprep.subr.mxu0 0.0
        %1195 = vmatpush1.msra.mxu0 0.0
        %1196 = vmatprep.subr.mxu0 0.0
        %1197 = vmatpush1.msra.mxu0 0.0
        %1198 = vmatprep.subr.mxu0 0.0
        %1199 = vmatpush1.msra.mxu0 0.0
        %1200 = vmatprep.subr.mxu0 0.0
        %1201 = vmatpush1.msra.mxu0 0.0
        %1202 = vmatprep.subr.mxu0 0.0
        %1203 = vmatpush1.msra.mxu0 0.0
        %1204 = vmatprep.subr.mxu0 0.0
        %1205 = vmatpush1.msra.mxu0 0.0
        %1206 = vmatprep.subr.mxu0 0.0
        %1207 = vmatpush1.msra.mxu0 0.0
        %1208 = vmatprep.subr.mxu0 0.0
        %1209 = vmatpush1.msra.mxu0 0.0
        %1210 = vmatprep.subr.mxu0 0.0
        %1211 = vmatpush1.msra.mxu0 0.0
        %1212 = vmatprep.mubr.f32.mxu0 0.0
        %1213 = vmatmul.mubr.f32.gmra.mrb[0].mxu0 %v1053
        %v1214 = vpop.f32.mrb[0].mxu0
        %v1215 = vadd.f32 0.0, %v1214
        %v1216 = vpop.f32.mrb[0].mxu0
        %1217 = vmatprep.mubr.f32.mxu0 0.0
        %1218 = vmatmul.mubr.f32.gmra.mrb[0].mxu0 %v1056
        %v1219 = vpop.f32.mrb[0].mxu0
        %v1220 = vadd.f32 0.0, %v1219
        %v1221 = vpop.f32.mrb[0].mxu0
        %1222 = vmatprep.mubr.f32.mxu0 0.0
        %1223 = vmatmul.mubr.f32.gmra.mrb[0].mxu0 %v1059
        %v1224 = vpop.f32.mrb[0].mxu0
        %v1225 = vadd.f32 0.0, %v1224
        %v1226 = vpop.f32.mrb[0].mxu0
        %1227 = vmatprep.mubr.f32.mxu0 0.0
        %1228 = vmatmul.mubr.f32.gmra.mrb[0].mxu0 %v1062
        %v1229 = vpop.f32.mrb[0].mxu0
        %v1230 = vadd.f32 0.0, %v1229
        %v1231 = vpop.f32.mrb[0].mxu0
        %1232 = vmatprep.mubr.f32.mxu0 0.0
        %1233 = vmatmul.mubr.f32.gmra.mrb[0].mxu0 %v1065
        %v1234 = vpop.f32.mrb[0].mxu0
        %v1235 = vadd.f32 0.0, %v1234
        %v1236 = vpop.f32.mrb[0].mxu0
        %1237 = vmatprep.mubr.f32.mxu0 0.0
        %1238 = vmatmul.mubr.f32.gmra.mrb[0].mxu0 %v1068
        %v1239 = vpop.f32.mrb[0].mxu0
        %v1240 = vadd.f32 0.0, %v1239
        %v1241 = vpop.f32.mrb[0].mxu0
        %1242 = vmatprep.mubr.f32.mxu0 0.0
        %1243 = vmatmul.mubr.f32.gmra.mrb[0].mxu0 %v1071
        %v1244 = vpop.f32.mrb[0].mxu0
        %v1245 = vadd.f32 0.0, %v1244
        %v1246 = vpop.f32.mrb[0].mxu0
        %1247 = vmatprep.mubr.f32.mxu0 0.0
        %1248 = vmatmul.mubr.f32.gmra.mrb[0].mxu0 %v1074
        %v1249 = vpop.f32.mrb[0].mxu0
        %v1250 = vadd.f32 0.0, %v1249
        %v1251 = vpop.f32.mrb[0].mxu0
        %1252 = vmatprep.mubr.f32.mxu0 0.0
        %1253 = vmatmul.mubr.f32.gmra.mrb[0].mxu0 %v1077
        %v1254 = vpop.f32.mrb[0].mxu0
        %v1255 = vadd.f32 0.0, %v1254
        %v1256 = vpop.f32.mrb[0].mxu0
        %1257 = vmatprep.mubr.f32.mxu0 0.0
        %1258 = vmatmul.mubr.f32.gmra.mrb[0].mxu0 %v1080
        %v1259 = vpop.f32.mrb[0].mxu0
        %v1260 = vadd.f32 0.0, %v1259
        %v1261 = vpop.f32.mrb[0].mxu0
        %1262 = vmatprep.mubr.f32.mxu0 0.0
        %1263 = vmatmul.mubr.f32.gmra.mrb[0].mxu0 %v1083
        %v1264 = vpop.f32.mrb[0].mxu0
        %v1265 = vadd.f32 0.0, %v1264
        %v1266 = vpop.f32.mrb[0].mxu0
        %1267 = vmatprep.mubr.f32.mxu0 0.0
        %1268 = vmatmul.mubr.f32.gmra.mrb[0].mxu0 %v1086
        %v1269 = vpop.f32.mrb[0].mxu0
        %v1270 = vadd.f32 0.0, %v1269
        %v1271 = vpop.f32.mrb[0].mxu0
        %1272 = vmatprep.mubr.f32.mxu0 0.0
        %1273 = vmatmul.mubr.f32.gmra.mrb[0].mxu0 %v1089
        %v1274 = vpop.f32.mrb[0].mxu0
        %v1275 = vadd.f32 0.0, %v1274
        %v1276 = vpop.f32.mrb[0].mxu0
        %1277 = vmatprep.mubr.f32.mxu0 0.0
        %1278 = vmatmul.mubr.f32.gmra.mrb[0].mxu0 %v1092
        %v1279 = vpop.f32.mrb[0].mxu0
        %v1280 = vadd.f32 0.0, %v1279
        %v1281 = vpop.f32.mrb[0].mxu0
        %1282 = vmatprep.mubr.f32.mxu0 0.0
        %1283 = vmatmul.mubr.f32.gmra.mrb[0].mxu0 %v1095
        %v1284 = vpop.f32.mrb[0].mxu0
        %v1285 = vadd.f32 0.0, %v1284
        %v1286 = vpop.f32.mrb[0].mxu0
        %1287 = vmatprep.mubr.f32.mxu0 0.0
        %1288 = vmatmul.mubr.f32.gmra.mrb[0].mxu0 %v1098
        %v1289 = vpop.f32.mrb[0].mxu0
        %v1290 = vadd.f32 0.0, %v1289
        %v1291 = vpop.f32.mrb[0].mxu0
        %1292 = vmatprep.mubr.f32.mxu0 0.0
        %1293 = vmatmul.mubr.f32.gmra.mrb[0].mxu0 %v1101
        %v1294 = vpop.f32.mrb[0].mxu0
        %v1295 = vadd.f32 0.0, %v1294
        %v1296 = vpop.f32.mrb[0].mxu0
        %1297 = vmatprep.mubr.f32.mxu0 0.0
        %1298 = vmatmul.mubr.f32.gmra.mrb[0].mxu0 %v1104
        %v1299 = vpop.f32.mrb[0].mxu0
        %v1300 = vadd.f32 0.0, %v1299
        %v1301 = vpop.f32.mrb[0].mxu0
        %1302 = vmatprep.mubr.f32.mxu0 0.0
        %1303 = vmatmul.mubr.f32.gmra.mrb[0].mxu0 %v1107
        %v1304 = vpop.f32.mrb[0].mxu0
        %v1305 = vadd.f32 0.0, %v1304
        %v1306 = vpop.f32.mrb[0].mxu0
        %1307 = vmatprep.mubr.f32.mxu0 0.0
        %1308 = vmatmul.mubr.f32.gmra.mrb[0].mxu0 %v1110
        %v1309 = vpop.f32.mrb[0].mxu0
        %v1310 = vadd.f32 0.0, %v1309
        %v1311 = vpop.f32.mrb[0].mxu0
        %1312 = vmatprep.mubr.f32.mxu0 0.0
        %1313 = vmatmul.mubr.f32.gmra.mrb[0].mxu0 %v1113
        %v1314 = vpop.f32.mrb[0].mxu0
        %v1315 = vadd.f32 0.0, %v1314
        %v1316 = vpop.f32.mrb[0].mxu0
        %1317 = vmatprep.mubr.f32.mxu0 0.0
        %1318 = vmatmul.mubr.f32.gmra.mrb[0].mxu0 %v1116
        %v1319 = vpop.f32.mrb[0].mxu0
        %v1320 = vadd.f32 0.0, %v1319
        %v1321 = vpop.f32.mrb[0].mxu0
        %1322 = vmatprep.mubr.f32.mxu0 0.0
        %1323 = vmatmul.mubr.f32.gmra.mrb[0].mxu0 %v1119
        %v1324 = vpop.f32.mrb[0].mxu0
        %v1325 = vadd.f32 0.0, %v1324
        %v1326 = vpop.f32.mrb[0].mxu0
        %1327 = vmatprep.mubr.f32.mxu0 0.0
        %1328 = vmatmul.mubr.f32.gmra.mrb[0].mxu0 %v1122
        %v1329 = vpop.f32.mrb[0].mxu0
        %v1330 = vadd.f32 0.0, %v1329
        %v1331 = vpop.f32.mrb[0].mxu0
        %1332 = vmatprep.mubr.f32.mxu0 0.0
        %1333 = vmatmul.mubr.f32.gmra.mrb[0].mxu0 %v1125
        %v1334 = vpop.f32.mrb[0].mxu0
        %v1335 = vadd.f32 0.0, %v1334
        %v1336 = vpop.f32.mrb[0].mxu0
        %1337 = vmatprep.mubr.f32.mxu0 0.0
        %1338 = vmatmul.mubr.f32.gmra.mrb[0].mxu0 %v1128
        %v1339 = vpop.f32.mrb[0].mxu0
        %v1340 = vadd.f32 0.0, %v1339
        %v1341 = vpop.f32.mrb[0].mxu0
        %1342 = vmatprep.mubr.f32.mxu0 0.0
        %1343 = vmatmul.mubr.f32.gmra.mrb[0].mxu0 %v1131
        %v1344 = vpop.f32.mrb[0].mxu0
        %v1345 = vadd.f32 0.0, %v1344
        %v1346 = vpop.f32.mrb[0].mxu0
        %1347 = vmatprep.mubr.f32.mxu0 0.0
        %1348 = vmatmul.mubr.f32.gmra.mrb[0].mxu0 %v1134
        %v1349 = vpop.f32.mrb[0].mxu0
        %v1350 = vadd.f32 0.0, %v1349
        %v1351 = vpop.f32.mrb[0].mxu0
        %1352 = vmatprep.mubr.f32.mxu0 0.0
        %1353 = vmatmul.mubr.f32.gmra.mrb[0].mxu0 %v1137
        %v1354 = vpop.f32.mrb[0].mxu0
        %v1355 = vadd.f32 0.0, %v1354
        %v1356 = vpop.f32.mrb[0].mxu0
        %1357 = vmatprep.mubr.f32.mxu0 0.0
        %1358 = vmatmul.mubr.f32.gmra.mrb[0].mxu0 %v1140
        %v1359 = vpop.f32.mrb[0].mxu0
        %v1360 = vadd.f32 0.0, %v1359
        %v1361 = vpop.f32.mrb[0].mxu0
        %1362 = vmatprep.mubr.f32.mxu0 0.0
        %1363 = vmatmul.mubr.f32.gmra.mrb[0].mxu0 %v1143
        %v1364 = vpop.f32.mrb[0].mxu0
        %v1365 = vadd.f32 0.0, %v1364
        %v1366 = vpop.f32.mrb[0].mxu0
        %1367 = vmatprep.mubr.f32.mxu0 0.0
        %1368 = vmatmul.mubr.f32.gmra.mrb[0].mxu0 %v1146
        %v1369 = vpop.f32.mrb[0].mxu0
        %v1370 = vadd.f32 0.0, %v1369
        %v1371 = vpop.f32.mrb[0].mxu0
        %1372 = vdwg.mxu0
        %v1373 = vsel %vm629, %v1215, 0.0
        %v1374 = vsel %vm629, %v1220, 0.0
        %v1375 = vadd.f32 %v1373, %v1374
        %v1376 = vsel %vm629, %v1225, 0.0
        %v1377 = vadd.f32 %v1375, %v1376
        %v1378 = vsel %vm629, %v1230, 0.0
        %v1379 = vadd.f32 %v1377, %v1378
        %v1380 = vsel %vm629, %v1235, 0.0
        %v1381 = vadd.f32 %v1379, %v1380
        %v1382 = vsel %vm629, %v1240, 0.0
        %v1383 = vadd.f32 %v1381, %v1382
        %v1384 = vsel %vm629, %v1245, 0.0
        %v1385 = vadd.f32 %v1383, %v1384
        %v1386 = vsel %vm629, %v1250, 0.0
        %v1387 = vadd.f32 %v1385, %v1386
        %v1388 = vsel %vm629, %v1255, 0.0
        %v1389 = vadd.f32 %v1387, %v1388
        %v1390 = vsel %vm629, %v1260, 0.0
        %v1391 = vadd.f32 %v1389, %v1390
        %v1392 = vsel %vm629, %v1265, 0.0
        %v1393 = vadd.f32 %v1391, %v1392
        %v1394 = vsel %vm629, %v1270, 0.0
        %v1395 = vadd.f32 %v1393, %v1394
        %v1396 = vsel %vm629, %v1275, 0.0
        %v1397 = vadd.f32 %v1395, %v1396
        %v1398 = vsel %vm629, %v1280, 0.0
        %v1399 = vadd.f32 %v1397, %v1398
        %v1400 = vsel %vm629, %v1285, 0.0
        %v1401 = vadd.f32 %v1399, %v1400
        %v1402 = vsel %vm629, %v1290, 0.0
        %v1403 = vadd.f32 %v1401, %v1402
        %v1404 = vsel %vm629, %v1295, 0.0
        %v1405 = vadd.f32 %v1403, %v1404
        %v1406 = vsel %vm629, %v1300, 0.0
        %v1407 = vadd.f32 %v1405, %v1406
        %v1408 = vsel %vm629, %v1305, 0.0
        %v1409 = vadd.f32 %v1407, %v1408
        %v1410 = vsel %vm629, %v1310, 0.0
        %v1411 = vadd.f32 %v1409, %v1410
        %v1412 = vsel %vm629, %v1315, 0.0
        %v1413 = vadd.f32 %v1411, %v1412
        %v1414 = vsel %vm629, %v1320, 0.0
        %v1415 = vadd.f32 %v1413, %v1414
        %v1416 = vsel %vm629, %v1325, 0.0
        %v1417 = vadd.f32 %v1415, %v1416
        %v1418 = vsel %vm629, %v1330, 0.0
        %v1419 = vadd.f32 %v1417, %v1418
        %v1420 = vsel %vm629, %v1335, 0.0
        %v1421 = vadd.f32 %v1419, %v1420
        %v1422 = vsel %vm629, %v1340, 0.0
        %v1423 = vadd.f32 %v1421, %v1422
        %v1424 = vsel %vm629, %v1345, 0.0
        %v1425 = vadd.f32 %v1423, %v1424
        %v1426 = vsel %vm629, %v1350, 0.0
        %v1427 = vadd.f32 %v1425, %v1426
        %v1428 = vsel %vm629, %v1355, 0.0
        %v1429 = vadd.f32 %v1427, %v1428
        %v1430 = vsel %vm629, %v1360, 0.0
        %v1431 = vadd.f32 %v1429, %v1430
        %v1432 = vsel %vm629, %v1365, 0.0
        %v1433 = vadd.f32 %v1431, %v1432
        %v1434 = vsel %vm629, %v1370, 0.0
        %v1435 = vadd.f32 %v1433, %v1434
        %v1436 = vrot.slane %v1435, 4
        %v1437 = vadd.f32 %v1435, %v1436
        %v1438 = vrot.slane %v1437, 2
        %v1439 = vadd.f32 %v1437, %v1438
        %v1440 = vrot.slane %v1439, 1
        %v1441 = vadd.f32 %v1439, %v1440
        %v1442 = vmul.f32 %v1019, 0.001953125
        %v1443 = vmul.f32 %v1441, 0.001953125
        %v1444 = vmul.f32 %v1442, %v1442
        %v1445 = vsub.f32 %v1443, %v1444
        %v1446 = vadd.f32 %v1445, 1e-05
        %v1447 = vrsqrt.pop %v1446
        %v1448 = vsub.f32 %v522, %v1442
        %v1449 = vsub.f32 %v523, %v1442
        %v1450 = vsub.f32 %v524, %v1442
        %v1451 = vsub.f32 %v525, %v1442
        %v1452 = vsub.f32 %v526, %v1442
        %v1453 = vsub.f32 %v527, %v1442
        %v1454 = vsub.f32 %v528, %v1442
        %v1455 = vsub.f32 %v529, %v1442
        %v1456 = vsub.f32 %v530, %v1442
        %v1457 = vsub.f32 %v531, %v1442
        %v1458 = vsub.f32 %v532, %v1442
        %v1459 = vsub.f32 %v533, %v1442
        %v1460 = vsub.f32 %v534, %v1442
        %v1461 = vsub.f32 %v535, %v1442
        %v1462 = vsub.f32 %v536, %v1442
        %v1463 = vsub.f32 %v537, %v1442
        %v1464 = vsub.f32 %v538, %v1442
        %v1465 = vsub.f32 %v539, %v1442
        %v1466 = vsub.f32 %v540, %v1442
        %v1467 = vsub.f32 %v541, %v1442
        %v1468 = vsub.f32 %v542, %v1442
        %v1469 = vsub.f32 %v543, %v1442
        %v1470 = vsub.f32 %v544, %v1442
        %v1471 = vsub.f32 %v545, %v1442
        %v1472 = vsub.f32 %v546, %v1442
        %v1473 = vsub.f32 %v547, %v1442
        %v1474 = vsub.f32 %v548, %v1442
        %v1475 = vsub.f32 %v549, %v1442
        %v1476 = vsub.f32 %v550, %v1442
        %v1477 = vsub.f32 %v551, %v1442
        %v1478 = vsub.f32 %v552, %v1442
        %v1479 = vsub.f32 %v553, %v1442
        %v1480 = vmul.f32 %v1448, %v1447
        %v1481 = vmul.f32 %v1449, %v1447
        %v1482 = vmul.f32 %v1450, %v1447
        %v1483 = vmul.f32 %v1451, %v1447
        %v1484 = vmul.f32 %v1452, %v1447
        %v1485 = vmul.f32 %v1453, %v1447
        %v1486 = vmul.f32 %v1454, %v1447
        %v1487 = vmul.f32 %v1455, %v1447
        %v1488 = vmul.f32 %v1456, %v1447
        %v1489 = vmul.f32 %v1457, %v1447
        %v1490 = vmul.f32 %v1458, %v1447
        %v1491 = vmul.f32 %v1459, %v1447
        %v1492 = vmul.f32 %v1460, %v1447
        %v1493 = vmul.f32 %v1461, %v1447
        %v1494 = vmul.f32 %v1462, %v1447
        %v1495 = vmul.f32 %v1463, %v1447
        %v1496 = vmul.f32 %v1464, %v1447
        %v1497 = vmul.f32 %v1465, %v1447
        %v1498 = vmul.f32 %v1466, %v1447
        %v1499 = vmul.f32 %v1467, %v1447
        %v1500 = vmul.f32 %v1468, %v1447
        %v1501 = vmul.f32 %v1469, %v1447
        %v1502 = vmul.f32 %v1470, %v1447
        %v1503 = vmul.f32 %v1471, %v1447
        %v1504 = vmul.f32 %v1472, %v1447
        %v1505 = vmul.f32 %v1473, %v1447
        %v1506 = vmul.f32 %v1474, %v1447
        %v1507 = vmul.f32 %v1475, %v1447
        %v1508 = vmul.f32 %v1476, %v1447
        %v1509 = vmul.f32 %v1477, %v1447
        %v1510 = vmul.f32 %v1478, %v1447
        %v1511 = vmul.f32 %v1479, %v1447
        %v1513 = vlaneseq
        %v1514 = vshrl.u32 %v1513, 7
        %v1515 = vsub.s32 0, %v1514
        %v1516 = vrot.slane %v627, %v1515
        %v1518 = vmul.f32 %v1480, %v1516
        %v1519 = vmul.f32 %v1481, %v1516
        %v1520 = vmul.f32 %v1482, %v1516
        %v1521 = vmul.f32 %v1483, %v1516
        %v1522 = vmul.f32 %v1484, %v1516
        %v1523 = vmul.f32 %v1485, %v1516
        %v1524 = vmul.f32 %v1486, %v1516
        %v1525 = vmul.f32 %v1487, %v1516
        %v1526 = vmul.f32 %v1488, %v1516
        %v1527 = vmul.f32 %v1489, %v1516
        %v1528 = vmul.f32 %v1490, %v1516
        %v1529 = vmul.f32 %v1491, %v1516
        %v1530 = vmul.f32 %v1492, %v1516
        %v1531 = vmul.f32 %v1493, %v1516
        %v1532 = vmul.f32 %v1494, %v1516
        %v1533 = vmul.f32 %v1495, %v1516
        %v1534 = vmul.f32 %v1496, %v1516
        %v1535 = vmul.f32 %v1497, %v1516
        %v1536 = vmul.f32 %v1498, %v1516
        %v1537 = vmul.f32 %v1499, %v1516
        %v1538 = vmul.f32 %v1500, %v1516
        %v1539 = vmul.f32 %v1501, %v1516
        %v1540 = vmul.f32 %v1502, %v1516
        %v1541 = vmul.f32 %v1503, %v1516
        %v1542 = vmul.f32 %v1504, %v1516
        %v1543 = vmul.f32 %v1505, %v1516
        %v1544 = vmul.f32 %v1506, %v1516
        %v1545 = vmul.f32 %v1507, %v1516
        %v1546 = vmul.f32 %v1508, %v1516
        %v1547 = vmul.f32 %v1509, %v1516
        %v1548 = vmul.f32 %v1510, %v1516
        %v1549 = vmul.f32 %v1511, %v1516
        %v1551 = vlaneseq
        %v1552 = vshrl.u32 %v1551, 7
        %v1553 = vsub.s32 0, %v1552
        %v1554 = vrot.slane %v628, %v1553
        %v1556 = vadd.f32 %v1518, %v1554
        %v1557 = vadd.f32 %v1519, %v1554
        %v1558 = vadd.f32 %v1520, %v1554
        %v1559 = vadd.f32 %v1521, %v1554
        %v1560 = vadd.f32 %v1522, %v1554
        %v1561 = vadd.f32 %v1523, %v1554
        %v1562 = vadd.f32 %v1524, %v1554
        %v1563 = vadd.f32 %v1525, %v1554
        %v1564 = vadd.f32 %v1526, %v1554
        %v1565 = vadd.f32 %v1527, %v1554
        %v1566 = vadd.f32 %v1528, %v1554
        %v1567 = vadd.f32 %v1529, %v1554
        %v1568 = vadd.f32 %v1530, %v1554
        %v1569 = vadd.f32 %v1531, %v1554
        %v1570 = vadd.f32 %v1532, %v1554
        %v1571 = vadd.f32 %v1533, %v1554
        %v1572 = vadd.f32 %v1534, %v1554
        %v1573 = vadd.f32 %v1535, %v1554
        %v1574 = vadd.f32 %v1536, %v1554
        %v1575 = vadd.f32 %v1537, %v1554
        %v1576 = vadd.f32 %v1538, %v1554
        %v1577 = vadd.f32 %v1539, %v1554
        %v1578 = vadd.f32 %v1540, %v1554
        %v1579 = vadd.f32 %v1541, %v1554
        %v1580 = vadd.f32 %v1542, %v1554
        %v1581 = vadd.f32 %v1543, %v1554
        %v1582 = vadd.f32 %v1544, %v1554
        %v1583 = vadd.f32 %v1545, %v1554
        %v1584 = vadd.f32 %v1546, %v1554
        %v1585 = vadd.f32 %v1547, %v1554
        %v1586 = vadd.f32 %v1548, %v1554
        %v1587 = vadd.f32 %v1549, %v1554
        %v1588 = vsub.f32 0.0, %v1556
        %v1589 = vsub.f32 0.0, %v1557
        %v1590 = vsub.f32 0.0, %v1558
        %v1591 = vsub.f32 0.0, %v1559
        %v1592 = vsub.f32 0.0, %v1560
        %v1593 = vsub.f32 0.0, %v1561
        %v1594 = vsub.f32 0.0, %v1562
        %v1595 = vsub.f32 0.0, %v1563
        %v1596 = vsub.f32 0.0, %v1564
        %v1597 = vsub.f32 0.0, %v1565
        %v1598 = vsub.f32 0.0, %v1566
        %v1599 = vsub.f32 0.0, %v1567
        %v1600 = vsub.f32 0.0, %v1568
        %v1601 = vsub.f32 0.0, %v1569
        %v1602 = vsub.f32 0.0, %v1570
        %v1603 = vsub.f32 0.0, %v1571
        %v1604 = vsub.f32 0.0, %v1572
        %v1605 = vsub.f32 0.0, %v1573
        %v1606 = vsub.f32 0.0, %v1574
        %v1607 = vsub.f32 0.0, %v1575
        %v1608 = vsub.f32 0.0, %v1576
        %v1609 = vsub.f32 0.0, %v1577
        %v1610 = vsub.f32 0.0, %v1578
        %v1611 = vsub.f32 0.0, %v1579
        %v1612 = vsub.f32 0.0, %v1580
        %v1613 = vsub.f32 0.0, %v1581
        %v1614 = vsub.f32 0.0, %v1582
        %v1615 = vsub.f32 0.0, %v1583
        %v1616 = vsub.f32 0.0, %v1584
        %v1617 = vsub.f32 0.0, %v1585
        %v1618 = vsub.f32 0.0, %v1586
        %v1619 = vsub.f32 0.0, %v1587
        %v1620 = vmul.f32 %v1588, 1.442695
        %v1621 = vpow.pop %v1620
        %v1622 = vmul.f32 %v1589, 1.442695
        %v1623 = vpow.pop %v1622
        %v1624 = vmul.f32 %v1590, 1.442695
        %v1625 = vpow.pop %v1624
        %v1626 = vmul.f32 %v1591, 1.442695
        %v1627 = vpow.pop %v1626
        %v1628 = vmul.f32 %v1592, 1.442695
        %v1629 = vpow.pop %v1628
        %v1630 = vmul.f32 %v1593, 1.442695
        %v1631 = vpow.pop %v1630
        %v1632 = vmul.f32 %v1594, 1.442695
        %v1633 = vpow.pop %v1632
        %v1634 = vmul.f32 %v1595, 1.442695
        %v1635 = vpow.pop %v1634
        %v1636 = vmul.f32 %v1596, 1.442695
        %v1637 = vpow.pop %v1636
        %v1638 = vmul.f32 %v1597, 1.442695
        %v1639 = vpow.pop %v1638
        %v1640 = vmul.f32 %v1598, 1.442695
        %v1641 = vpow.pop %v1640
        %v1642 = vmul.f32 %v1599, 1.442695
        %v1643 = vpow.pop %v1642
        %v1644 = vmul.f32 %v1600, 1.442695
        %v1645 = vpow.pop %v1644
        %v1646 = vmul.f32 %v1601, 1.442695
        %v1647 = vpow.pop %v1646
        %v1648 = vmul.f32 %v1602, 1.442695
        %v1649 = vpow.pop %v1648
        %v1650 = vmul.f32 %v1603, 1.442695
        %v1651 = vpow.pop %v1650
        %v1652 = vmul.f32 %v1604, 1.442695
        %v1653 = vpow.pop %v1652
        %v1654 = vmul.f32 %v1605, 1.442695
        %v1655 = vpow.pop %v1654
        %v1656 = vmul.f32 %v1606, 1.442695
        %v1657 = vpow.pop %v1656
        %v1658 = vmul.f32 %v1607, 1.442695
        %v1659 = vpow.pop %v1658
        %v1660 = vmul.f32 %v1608, 1.442695
        %v1661 = vpow.pop %v1660
        %v1662 = vmul.f32 %v1609, 1.442695
        %v1663 = vpow.pop %v1662
        %v1664 = vmul.f32 %v1610, 1.442695
        %v1665 = vpow.pop %v1664
        %v1666 = vmul.f32 %v1611, 1.442695
        %v1667 = vpow.pop %v1666
        %v1668 = vmul.f32 %v1612, 1.442695
        %v1669 = vpow.pop %v1668
        %v1670 = vmul.f32 %v1613, 1.442695
        %v1671 = vpow.pop %v1670
        %v1672 = vmul.f32 %v1614, 1.442695
        %v1673 = vpow.pop %v1672
        %v1674 = vmul.f32 %v1615, 1.442695
        %v1675 = vpow.pop %v1674
        %v1676 = vmul.f32 %v1616, 1.442695
        %v1677 = vpow.pop %v1676
        %v1678 = vmul.f32 %v1617, 1.442695
        %v1679 = vpow.pop %v1678
        %v1680 = vmul.f32 %v1618, 1.442695
        %v1681 = vpow.pop %v1680
        %v1682 = vmul.f32 %v1619, 1.442695
        %v1683 = vpow.pop %v1682
        %v1684 = vadd.f32 %v1621, 1.0
        %v1685 = vadd.f32 %v1623, 1.0
        %v1686 = vadd.f32 %v1625, 1.0
        %v1687 = vadd.f32 %v1627, 1.0
        %v1688 = vadd.f32 %v1629, 1.0
        %v1689 = vadd.f32 %v1631, 1.0
        %v1690 = vadd.f32 %v1633, 1.0
        %v1691 = vadd.f32 %v1635, 1.0
        %v1692 = vadd.f32 %v1637, 1.0
        %v1693 = vadd.f32 %v1639, 1.0
        %v1694 = vadd.f32 %v1641, 1.0
        %v1695 = vadd.f32 %v1643, 1.0
        %v1696 = vadd.f32 %v1645, 1.0
        %v1697 = vadd.f32 %v1647, 1.0
        %v1698 = vadd.f32 %v1649, 1.0
        %v1699 = vadd.f32 %v1651, 1.0
        %v1700 = vadd.f32 %v1653, 1.0
        %v1701 = vadd.f32 %v1655, 1.0
        %v1702 = vadd.f32 %v1657, 1.0
        %v1703 = vadd.f32 %v1659, 1.0
        %v1704 = vadd.f32 %v1661, 1.0
        %v1705 = vadd.f32 %v1663, 1.0
        %v1706 = vadd.f32 %v1665, 1.0
        %v1707 = vadd.f32 %v1667, 1.0
        %v1708 = vadd.f32 %v1669, 1.0
        %v1709 = vadd.f32 %v1671, 1.0
        %v1710 = vadd.f32 %v1673, 1.0
        %v1711 = vadd.f32 %v1675, 1.0
        %v1712 = vadd.f32 %v1677, 1.0
        %v1713 = vadd.f32 %v1679, 1.0
        %v1714 = vadd.f32 %v1681, 1.0
        %v1715 = vadd.f32 %v1683, 1.0
        %v1716 = vrcp.pop %v1684
        %v1717 = vmul.f32 1.0, %v1716
        %v1718 = vrcp.pop %v1685
        %v1719 = vmul.f32 1.0, %v1718
        %v1720 = vrcp.pop %v1686
        %v1721 = vmul.f32 1.0, %v1720
        %v1722 = vrcp.pop %v1687
        %v1723 = vmul.f32 1.0, %v1722
        %v1724 = vrcp.pop %v1688
        %v1725 = vmul.f32 1.0, %v1724
        %v1726 = vrcp.pop %v1689
        %v1727 = vmul.f32 1.0, %v1726
        %v1728 = vrcp.pop %v1690
        %v1729 = vmul.f32 1.0, %v1728
        %v1730 = vrcp.pop %v1691
        %v1731 = vmul.f32 1.0, %v1730
        %v1732 = vrcp.pop %v1692
        %v1733 = vmul.f32 1.0, %v1732
        %v1734 = vrcp.pop %v1693
        %v1735 = vmul.f32 1.0, %v1734
        %v1736 = vrcp.pop %v1694
        %v1737 = vmul.f32 1.0, %v1736
        %v1738 = vrcp.pop %v1695
        %v1739 = vmul.f32 1.0, %v1738
        %v1740 = vrcp.pop %v1696
        %v1741 = vmul.f32 1.0, %v1740
        %v1742 = vrcp.pop %v1697
        %v1743 = vmul.f32 1.0, %v1742
        %v1744 = vrcp.pop %v1698
        %v1745 = vmul.f32 1.0, %v1744
        %v1746 = vrcp.pop %v1699
        %v1747 = vmul.f32 1.0, %v1746
        %v1748 = vrcp.pop %v1700
        %v1749 = vmul.f32 1.0, %v1748
        %v1750 = vrcp.pop %v1701
        %v1751 = vmul.f32 1.0, %v1750
        %v1752 = vrcp.pop %v1702
        %v1753 = vmul.f32 1.0, %v1752
        %v1754 = vrcp.pop %v1703
        %v1755 = vmul.f32 1.0, %v1754
        %v1756 = vrcp.pop %v1704
        %v1757 = vmul.f32 1.0, %v1756
        %v1758 = vrcp.pop %v1705
        %v1759 = vmul.f32 1.0, %v1758
        %v1760 = vrcp.pop %v1706
        %v1761 = vmul.f32 1.0, %v1760
        %v1762 = vrcp.pop %v1707
        %v1763 = vmul.f32 1.0, %v1762
        %v1764 = vrcp.pop %v1708
        %v1765 = vmul.f32 1.0, %v1764
        %v1766 = vrcp.pop %v1709
        %v1767 = vmul.f32 1.0, %v1766
        %v1768 = vrcp.pop %v1710
        %v1769 = vmul.f32 1.0, %v1768
        %v1770 = vrcp.pop %v1711
        %v1771 = vmul.f32 1.0, %v1770
        %v1772 = vrcp.pop %v1712
        %v1773 = vmul.f32 1.0, %v1772
        %v1774 = vrcp.pop %v1713
        %v1775 = vmul.f32 1.0, %v1774
        %v1776 = vrcp.pop %v1714
        %v1777 = vmul.f32 1.0, %v1776
        %v1778 = vrcp.pop %v1715
        %v1779 = vmul.f32 1.0, %v1778
        %v1780 = vmul.f32 %v1556, %v1717
        %v1781 = vmul.f32 %v1557, %v1719
        %v1782 = vmul.f32 %v1558, %v1721
        %v1783 = vmul.f32 %v1559, %v1723
        %v1784 = vmul.f32 %v1560, %v1725
        %v1785 = vmul.f32 %v1561, %v1727
        %v1786 = vmul.f32 %v1562, %v1729
        %v1787 = vmul.f32 %v1563, %v1731
        %v1788 = vmul.f32 %v1564, %v1733
        %v1789 = vmul.f32 %v1565, %v1735
        %v1790 = vmul.f32 %v1566, %v1737
        %v1791 = vmul.f32 %v1567, %v1739
        %v1792 = vmul.f32 %v1568, %v1741
        %v1793 = vmul.f32 %v1569, %v1743
        %v1794 = vmul.f32 %v1570, %v1745
        %v1795 = vmul.f32 %v1571, %v1747
        %v1796 = vmul.f32 %v1572, %v1749
        %v1797 = vmul.f32 %v1573, %v1751
        %v1798 = vmul.f32 %v1574, %v1753
        %v1799 = vmul.f32 %v1575, %v1755
        %v1800 = vmul.f32 %v1576, %v1757
        %v1801 = vmul.f32 %v1577, %v1759
        %v1802 = vmul.f32 %v1578, %v1761
        %v1803 = vmul.f32 %v1579, %v1763
        %v1804 = vmul.f32 %v1580, %v1765
        %v1805 = vmul.f32 %v1581, %v1767
        %v1806 = vmul.f32 %v1582, %v1769
        %v1807 = vmul.f32 %v1583, %v1771
        %v1808 = vmul.f32 %v1584, %v1773
        %v1809 = vmul.f32 %v1585, %v1775
        %v1810 = vmul.f32 %v1586, %v1777
        %v1811 = vmul.f32 %v1587, %v1779
        %v1812 = vld [vmem:[%s6] sm:$0x1]
        %vm1843 = vcmask 1040384
        %v1844 = vrot.slane %v1780, 7
        %v1845 = vrot.slane %v1781, 7
        %v1846 = vsel %vm1843, %v1844, %v1845
        %v1847 = vrot.slane %v1782, 7
        %v1848 = vsel %vm1843, %v1845, %v1847
        %v1849 = vrot.slane %v1783, 7
        %v1850 = vsel %vm1843, %v1847, %v1849
        %v1851 = vrot.slane %v1784, 7
        %v1852 = vsel %vm1843, %v1849, %v1851
        %v1853 = vrot.slane %v1785, 7
        %v1854 = vsel %vm1843, %v1851, %v1853
        %v1855 = vrot.slane %v1786, 7
        %v1856 = vsel %vm1843, %v1853, %v1855
        %v1857 = vrot.slane %v1787, 7
        %v1858 = vsel %vm1843, %v1855, %v1857
        %v1859 = vrot.slane %v1788, 7
        %v1860 = vsel %vm1843, %v1857, %v1859
        %v1861 = vrot.slane %v1789, 7
        %v1862 = vsel %vm1843, %v1859, %v1861
        %v1863 = vrot.slane %v1790, 7
        %v1864 = vsel %vm1843, %v1861, %v1863
        %v1865 = vrot.slane %v1791, 7
        %v1866 = vsel %vm1843, %v1863, %v1865
        %v1867 = vrot.slane %v1792, 7
        %v1868 = vsel %vm1843, %v1865, %v1867
        %v1869 = vrot.slane %v1793, 7
        %v1870 = vsel %vm1843, %v1867, %v1869
        %v1871 = vrot.slane %v1794, 7
        %v1872 = vsel %vm1843, %v1869, %v1871
        %v1873 = vrot.slane %v1795, 7
        %v1874 = vsel %vm1843, %v1871, %v1873
        %v1875 = vrot.slane %v1796, 7
        %v1876 = vsel %vm1843, %v1873, %v1875
        %v1877 = vrot.slane %v1797, 7
        %v1878 = vsel %vm1843, %v1875, %v1877
        %v1879 = vrot.slane %v1798, 7
        %v1880 = vsel %vm1843, %v1877, %v1879
        %v1881 = vrot.slane %v1799, 7
        %v1882 = vsel %vm1843, %v1879, %v1881
        %v1883 = vrot.slane %v1800, 7
        %v1884 = vsel %vm1843, %v1881, %v1883
        %v1885 = vrot.slane %v1801, 7
        %v1886 = vsel %vm1843, %v1883, %v1885
        %v1887 = vrot.slane %v1802, 7
        %v1888 = vsel %vm1843, %v1885, %v1887
        %v1889 = vrot.slane %v1803, 7
        %v1890 = vsel %vm1843, %v1887, %v1889
        %v1891 = vrot.slane %v1804, 7
        %v1892 = vsel %vm1843, %v1889, %v1891
        %v1893 = vrot.slane %v1805, 7
        %v1894 = vsel %vm1843, %v1891, %v1893
        %v1895 = vrot.slane %v1806, 7
        %v1896 = vsel %vm1843, %v1893, %v1895
        %v1897 = vrot.slane %v1807, 7
        %v1898 = vsel %vm1843, %v1895, %v1897
        %v1899 = vrot.slane %v1808, 7
        %v1900 = vsel %vm1843, %v1897, %v1899
        %v1901 = vrot.slane %v1809, 7
        %v1902 = vsel %vm1843, %v1899, %v1901
        %v1933 = vsel %vm1843, 0.0, %v1844
        %1935 = vset.pattern.permute.xlu0 0
        %1936 = vperm.xlu0 %1935, %v554
        %v1937 = vpop.permute.xlu0 %1936
        %1940 = vset.pattern.permute.xlu0 0
        %1941 = vperm.xlu0 %1940, %v555
        %v1942 = vpop.permute.xlu0 %1941
        %1945 = vset.pattern.permute.xlu0 0
        %1946 = vperm.xlu0 %1945, %v556
        %v1947 = vpop.permute.xlu0 %1946
        %1950 = vset.pattern.permute.xlu0 0
        %1951 = vperm.xlu0 %1950, %v557
        %v1952 = vpop.permute.xlu0 %1951
        %1955 = vset.pattern.permute.xlu0 0
        %1956 = vperm.xlu0 %1955, %v558
        %v1957 = vpop.permute.xlu0 %1956
        %1960 = vset.pattern.permute.xlu0 0
        %1961 = vperm.xlu0 %1960, %v559
        %v1962 = vpop.permute.xlu0 %1961
        %1965 = vset.pattern.permute.xlu0 0
        %1966 = vperm.xlu0 %1965, %v560
        %v1967 = vpop.permute.xlu0 %1966
        %1970 = vset.pattern.permute.xlu0 0
        %1971 = vperm.xlu0 %1970, %v561
        %v1972 = vpop.permute.xlu0 %1971
        %1975 = vset.pattern.permute.xlu0 0
        %1976 = vperm.xlu0 %1975, %v562
        %v1977 = vpop.permute.xlu0 %1976
        %1980 = vset.pattern.permute.xlu0 0
        %1981 = vperm.xlu0 %1980, %v563
        %v1982 = vpop.permute.xlu0 %1981
        %1985 = vset.pattern.permute.xlu0 0
        %1986 = vperm.xlu0 %1985, %v564
        %v1987 = vpop.permute.xlu0 %1986
        %1990 = vset.pattern.permute.xlu0 0
        %1991 = vperm.xlu0 %1990, %v565
        %v1992 = vpop.permute.xlu0 %1991
        %1995 = vset.pattern.permute.xlu0 0
        %1996 = vperm.xlu0 %1995, %v566
        %v1997 = vpop.permute.xlu0 %1996
        %2000 = vset.pattern.permute.xlu0 0
        %2001 = vperm.xlu0 %2000, %v567
        %v2002 = vpop.permute.xlu0 %2001
        %2005 = vset.pattern.permute.xlu0 0
        %2006 = vperm.xlu0 %2005, %v568
        %v2007 = vpop.permute.xlu0 %2006
        %2010 = vset.pattern.permute.xlu0 0
        %2011 = vperm.xlu0 %2010, %v569
        %v2012 = vpop.permute.xlu0 %2011
        %2015 = vset.pattern.permute.xlu0 0
        %2016 = vperm.xlu0 %2015, %v570
        %v2017 = vpop.permute.xlu0 %2016
        %2020 = vset.pattern.permute.xlu0 0
        %2021 = vperm.xlu0 %2020, %v571
        %v2022 = vpop.permute.xlu0 %2021
        %2025 = vset.pattern.permute.xlu0 0
        %2026 = vperm.xlu0 %2025, %v572
        %v2027 = vpop.permute.xlu0 %2026
        %2030 = vset.pattern.permute.xlu0 0
        %2031 = vperm.xlu0 %2030, %v573
        %v2032 = vpop.permute.xlu0 %2031
        %2035 = vset.pattern.permute.xlu0 0
        %2036 = vperm.xlu0 %2035, %v574
        %v2037 = vpop.permute.xlu0 %2036
        %2040 = vset.pattern.permute.xlu0 0
        %2041 = vperm.xlu0 %2040, %v575
        %v2042 = vpop.permute.xlu0 %2041
        %2045 = vset.pattern.permute.xlu0 0
        %2046 = vperm.xlu0 %2045, %v576
        %v2047 = vpop.permute.xlu0 %2046
        %2050 = vset.pattern.permute.xlu0 0
        %2051 = vperm.xlu0 %2050, %v577
        %v2052 = vpop.permute.xlu0 %2051
        %2055 = vset.pattern.permute.xlu0 0
        %2056 = vperm.xlu0 %2055, %v578
        %v2057 = vpop.permute.xlu0 %2056
        %2060 = vset.pattern.permute.xlu0 0
        %2061 = vperm.xlu0 %2060, %v579
        %v2062 = vpop.permute.xlu0 %2061
        %2065 = vset.pattern.permute.xlu0 0
        %2066 = vperm.xlu0 %2065, %v580
        %v2067 = vpop.permute.xlu0 %2066
        %2070 = vset.pattern.permute.xlu0 0
        %2071 = vperm.xlu0 %2070, %v581
        %v2072 = vpop.permute.xlu0 %2071
        %2075 = vset.pattern.permute.xlu0 0
        %2076 = vperm.xlu0 %2075, %v582
        %v2077 = vpop.permute.xlu0 %2076
        %2080 = vset.pattern.permute.xlu0 0
        %2081 = vperm.xlu0 %2080, %v583
        %v2082 = vpop.permute.xlu0 %2081
        %2085 = vset.pattern.permute.xlu0 0
        %2086 = vperm.xlu0 %2085, %v584
        %v2087 = vpop.permute.xlu0 %2086
        %2090 = vset.pattern.permute.xlu0 0
        %2091 = vperm.xlu0 %2090, %v585
        %v2092 = vpop.permute.xlu0 %2091
        %v2094 = vmul.f32 %v1937, 0.0
        %v2095 = vmul.f32 %v1942, 0.0
        %v2096 = vmul.f32 %v1933, %v1947
        %v2097 = vmul.f32 %v1846, %v1952
        %v2098 = vmul.f32 %v1848, %v1957
        %v2099 = vmul.f32 %v1850, %v1962
        %v2100 = vmul.f32 %v1852, %v1967
        %v2101 = vmul.f32 %v1854, %v1972
        %v2102 = vmul.f32 %v1856, %v1977
        %v2103 = vmul.f32 %v1858, %v1982
        %v2104 = vmul.f32 %v1860, %v1987
        %v2105 = vmul.f32 %v1862, %v1992
        %v2106 = vmul.f32 %v1864, %v1997
        %v2107 = vmul.f32 %v1866, %v2002
        %v2108 = vmul.f32 %v1868, %v2007
        %v2109 = vmul.f32 %v1870, %v2012
        %v2110 = vmul.f32 %v1872, %v2017
        %v2111 = vmul.f32 %v1874, %v2022
        %v2112 = vmul.f32 %v1876, %v2027
        %v2113 = vmul.f32 %v1878, %v2032
        %v2114 = vmul.f32 %v1880, %v2037
        %v2115 = vmul.f32 %v1882, %v2042
        %v2116 = vmul.f32 %v1884, %v2047
        %v2117 = vmul.f32 %v1886, %v2052
        %v2118 = vmul.f32 %v1888, %v2057
        %v2119 = vmul.f32 %v1890, %v2062
        %v2120 = vmul.f32 %v1892, %v2067
        %v2121 = vmul.f32 %v1894, %v2072
        %v2122 = vmul.f32 %v1896, %v2077
        %v2123 = vmul.f32 %v1898, %v2082
        %v2124 = vmul.f32 %v1900, %v2087
        %v2125 = vmul.f32 %v1902, %v2092
        %v2126 = vld [vmem:[#allocation2] sm:$0xff]
        %v2127 = vld [vmem:[#allocation2 + $0x8] sm:$0xff]
        %v2128 = vld [vmem:[#allocation2 + $0x10] sm:$0xff]
        %v2129 = vld [vmem:[#allocation2 + $0x18] sm:$0xff]
        %v2130 = vld [vmem:[#allocation2 + $0x20] sm:$0xff]
        %v2131 = vld [vmem:[#allocation2 + $0x28] sm:$0xff]
        %v2132 = vld [vmem:[#allocation2 + $0x30] sm:$0xff]
        %v2133 = vld [vmem:[#allocation2 + $0x38] sm:$0xff]
        %s2134 = scalar_lea.vmem [#allocation2], 64
        %v2135 = vld [vmem:[%s2134] sm:$0xff]
        %v2136 = vld [vmem:[%s2134 + $0x8] sm:$0xff]
        %v2137 = vld [vmem:[%s2134 + $0x10] sm:$0xff]
        %v2138 = vld [vmem:[%s2134 + $0x18] sm:$0xff]
        %v2139 = vld [vmem:[%s2134 + $0x20] sm:$0xff]
        %v2140 = vld [vmem:[%s2134 + $0x28] sm:$0xff]
        %v2141 = vld [vmem:[%s2134 + $0x30] sm:$0xff]
        %v2142 = vld [vmem:[%s2134 + $0x38] sm:$0xff]
        %v2144 = vsel %vm629, 0.0, 0
        %v2146 = vsel %vm629, %v1780, 0
        %v2148 = vsel %vm629, %v1781, 0
        %v2150 = vsel %vm629, %v1782, 0
        %v2152 = vsel %vm629, %v1783, 0
        %v2154 = vsel %vm629, %v1784, 0
        %v2156 = vsel %vm629, %v1785, 0
        %v2158 = vsel %vm629, %v1786, 0
        %v2160 = vsel %vm629, %v1787, 0
        %v2162 = vsel %vm629, %v1788, 0
        %v2164 = vsel %vm629, %v1789, 0
        %v2166 = vsel %vm629, %v1790, 0
        %v2168 = vsel %vm629, %v1791, 0
        %v2170 = vsel %vm629, %v1792, 0
        %v2172 = vsel %vm629, %v1793, 0
        %v2174 = vsel %vm629, %v1794, 0
        %v2176 = vsel %vm629, %v1795, 0
        %v2178 = vsel %vm629, %v1796, 0
        %v2180 = vsel %vm629, %v1797, 0
        %v2182 = vsel %vm629, %v1798, 0
        %v2184 = vsel %vm629, %v1799, 0
        %v2186 = vsel %vm629, %v1800, 0
        %v2188 = vsel %vm629, %v1801, 0
        %v2190 = vsel %vm629, %v1802, 0
        %v2192 = vsel %vm629, %v1803, 0
        %v2194 = vsel %vm629, %v1804, 0
        %v2196 = vsel %vm629, %v1805, 0
        %v2198 = vsel %vm629, %v1806, 0
        %v2200 = vsel %vm629, %v1807, 0
        %v2202 = vsel %vm629, %v1808, 0
        %v2204 = vsel %vm629, %v1809, 0
        %2206 = vmatprep.subr.mxu0 0.0
        %2207 = vmatpush1.msra.mxu0 %v2135
        %2208 = vmatprep.subr.mxu0 0.0
        %2209 = vmatpush1.msra.mxu0 %v2136
        %2210 = vmatprep.subr.mxu0 0.0
        %2211 = vmatpush1.msra.mxu0 %v2137
        %2212 = vmatprep.subr.mxu0 0.0
        %2213 = vmatpush1.msra.mxu0 %v2138
        %2214 = vmatprep.subr.mxu0 0.0
        %2215 = vmatpush1.msra.mxu0 %v2139
        %2216 = vmatprep.subr.mxu0 0.0
        %2217 = vmatpush1.msra.mxu0 %v2140
        %2218 = vmatprep.subr.mxu0 0.0
        %2219 = vmatpush1.msra.mxu0 %v2141
        %2220 = vmatprep.subr.mxu0 0.0
        %2221 = vmatpush1.msra.mxu0 %v2142
        %2222 = vmatprep.subr.mxu0 0.0
        %2223 = vmatpush1.msra.mxu0 0.0
        %2224 = vmatprep.subr.mxu0 0.0
        %2225 = vmatpush1.msra.mxu0 0.0
        %2226 = vmatprep.subr.mxu0 0.0
        %2227 = vmatpush1.msra.mxu0 0.0
        %2228 = vmatprep.subr.mxu0 0.0
        %2229 = vmatpush1.msra.mxu0 0.0
        %2230 = vmatprep.subr.mxu0 0.0
        %2231 = vmatpush1.msra.mxu0 0.0
        %2232 = vmatprep.subr.mxu0 0.0
        %2233 = vmatpush1.msra.mxu0 0.0
        %2234 = vmatprep.subr.mxu0 0.0
        %2235 = vmatpush1.msra.mxu0 0.0
        %2236 = vmatprep.subr.mxu0 0.0
        %2237 = vmatpush1.msra.mxu0 0.0
        %2238 = vmatprep.subr.mxu0 0.0
        %2239 = vmatpush1.msra.mxu0 0.0
        %2240 = vmatprep.subr.mxu0 0.0
        %2241 = vmatpush1.msra.mxu0 0.0
        %2242 = vmatprep.subr.mxu0 0.0
        %2243 = vmatpush1.msra.mxu0 0.0
        %2244 = vmatprep.subr.mxu0 0.0
        %2245 = vmatpush1.msra.mxu0 0.0
        %2246 = vmatprep.subr.mxu0 0.0
        %2247 = vmatpush1.msra.mxu0 0.0
        %2248 = vmatprep.subr.mxu0 0.0
        %2249 = vmatpush1.msra.mxu0 0.0
        %2250 = vmatprep.subr.mxu0 0.0
        %2251 = vmatpush1.msra.mxu0 0.0
        %2252 = vmatprep.subr.mxu0 0.0
        %2253 = vmatpush1.msra.mxu0 0.0
        %2254 = vmatprep.subr.mxu0 0.0
        %2255 = vmatpush1.msra.mxu0 0.0
        %2256 = vmatprep.subr.mxu0 0.0
        %2257 = vmatpush1.msra.mxu0 0.0
        %2258 = vmatprep.subr.mxu0 0.0
        %2259 = vmatpush1.msra.mxu0 0.0
        %2260 = vmatprep.subr.mxu0 0.0
        %2261 = vmatpush1.msra.mxu0 0.0
        %2262 = vmatprep.subr.mxu0 0.0
        %2263 = vmatpush1.msra.mxu0 0.0
        %2264 = vmatprep.subr.mxu0 0.0
        %2265 = vmatpush1.msra.mxu0 0.0
        %2266 = vmatprep.subr.mxu0 0.0
        %2267 = vmatpush1.msra.mxu0 0.0
        %2268 = vmatprep.subr.mxu0 0.0
        %2269 = vmatpush1.msra.mxu0 0.0
        %2270 = vmatprep.mubr.f32.mxu0 0.0
        %2271 = vmatmul.mubr.f32.gmra.mrb[0].mxu0 %v2144
        %v2272 = vpop.f32.mrb[0].mxu0
        %v2273 = vadd.f32 0.0, %v2272
        %v2274 = vpop.f32.mrb[0].mxu0
        %2275 = vmatprep.mubr.f32.mxu0 0.0
        %2276 = vmatmul.mubr.f32.gmra.mrb[0].mxu0 %v2144
        %v2277 = vpop.f32.mrb[0].mxu0
        %v2278 = vadd.f32 0.0, %v2277
        %v2279 = vpop.f32.mrb[0].mxu0
        %2280 = vmatprep.mubr.f32.mxu0 0.0
        %2281 = vmatmul.mubr.f32.gmra.mrb[0].mxu0 %v2146
        %v2282 = vpop.f32.mrb[0].mxu0
        %v2283 = vadd.f32 0.0, %v2282
        %v2284 = vpop.f32.mrb[0].mxu0
        %2285 = vmatprep.mubr.f32.mxu0 0.0
        %2286 = vmatmul.mubr.f32.gmra.mrb[0].mxu0 %v2148
        %v2287 = vpop.f32.mrb[0].mxu0
        %v2288 = vadd.f32 0.0, %v2287
        %v2289 = vpop.f32.mrb[0].mxu0
        %2290 = vmatprep.mubr.f32.mxu0 0.0
        %2291 = vmatmul.mubr.f32.gmra.mrb[0].mxu0 %v2150
        %v2292 = vpop.f32.mrb[0].mxu0
        %v2293 = vadd.f32 0.0, %v2292
        %v2294 = vpop.f32.mrb[0].mxu0
        %2295 = vmatprep.mubr.f32.mxu0 0.0
        %2296 = vmatmul.mubr.f32.gmra.mrb[0].mxu0 %v2152
        %v2297 = vpop.f32.mrb[0].mxu0
        %v2298 = vadd.f32 0.0, %v2297
        %v2299 = vpop.f32.mrb[0].mxu0
        %2300 = vmatprep.mubr.f32.mxu0 0.0
        %2301 = vmatmul.mubr.f32.gmra.mrb[0].mxu0 %v2154
        %v2302 = vpop.f32.mrb[0].mxu0
        %v2303 = vadd.f32 0.0, %v2302
        %v2304 = vpop.f32.mrb[0].mxu0
        %2305 = vmatprep.mubr.f32.mxu0 0.0
        %2306 = vmatmul.mubr.f32.gmra.mrb[0].mxu0 %v2156
        %v2307 = vpop.f32.mrb[0].mxu0
        %v2308 = vadd.f32 0.0, %v2307
        %v2309 = vpop.f32.mrb[0].mxu0
        %2310 = vmatprep.mubr.f32.mxu0 0.0
        %2311 = vmatmul.mubr.f32.gmra.mrb[0].mxu0 %v2158
        %v2312 = vpop.f32.mrb[0].mxu0
        %v2313 = vadd.f32 0.0, %v2312
        %v2314 = vpop.f32.mrb[0].mxu0
        %2315 = vmatprep.mubr.f32.mxu0 0.0
        %2316 = vmatmul.mubr.f32.gmra.mrb[0].mxu0 %v2160
        %v2317 = vpop.f32.mrb[0].mxu0
        %v2318 = vadd.f32 0.0, %v2317
        %v2319 = vpop.f32.mrb[0].mxu0
        %2320 = vmatprep.mubr.f32.mxu0 0.0
        %2321 = vmatmul.mubr.f32.gmra.mrb[0].mxu0 %v2162
        %v2322 = vpop.f32.mrb[0].mxu0
        %v2323 = vadd.f32 0.0, %v2322
        %v2324 = vpop.f32.mrb[0].mxu0
        %2325 = vmatprep.mubr.f32.mxu0 0.0
        %2326 = vmatmul.mubr.f32.gmra.mrb[0].mxu0 %v2164
        %v2327 = vpop.f32.mrb[0].mxu0
        %v2328 = vadd.f32 0.0, %v2327
        %v2329 = vpop.f32.mrb[0].mxu0
        %2330 = vmatprep.mubr.f32.mxu0 0.0
        %2331 = vmatmul.mubr.f32.gmra.mrb[0].mxu0 %v2166
        %v2332 = vpop.f32.mrb[0].mxu0
        %v2333 = vadd.f32 0.0, %v2332
        %v2334 = vpop.f32.mrb[0].mxu0
        %2335 = vmatprep.mubr.f32.mxu0 0.0
        %2336 = vmatmul.mubr.f32.gmra.mrb[0].mxu0 %v2168
        %v2337 = vpop.f32.mrb[0].mxu0
        %v2338 = vadd.f32 0.0, %v2337
        %v2339 = vpop.f32.mrb[0].mxu0
        %2340 = vmatprep.mubr.f32.mxu0 0.0
        %2341 = vmatmul.mubr.f32.gmra.mrb[0].mxu0 %v2170
        %v2342 = vpop.f32.mrb[0].mxu0
        %v2343 = vadd.f32 0.0, %v2342
        %v2344 = vpop.f32.mrb[0].mxu0
        %2345 = vmatprep.mubr.f32.mxu0 0.0
        %2346 = vmatmul.mubr.f32.gmra.mrb[0].mxu0 %v2172
        %v2347 = vpop.f32.mrb[0].mxu0
        %v2348 = vadd.f32 0.0, %v2347
        %v2349 = vpop.f32.mrb[0].mxu0
        %2350 = vmatprep.mubr.f32.mxu0 0.0
        %2351 = vmatmul.mubr.f32.gmra.mrb[0].mxu0 %v2174
        %v2352 = vpop.f32.mrb[0].mxu0
        %v2353 = vadd.f32 0.0, %v2352
        %v2354 = vpop.f32.mrb[0].mxu0
        %2355 = vmatprep.mubr.f32.mxu0 0.0
        %2356 = vmatmul.mubr.f32.gmra.mrb[0].mxu0 %v2176
        %v2357 = vpop.f32.mrb[0].mxu0
        %v2358 = vadd.f32 0.0, %v2357
        %v2359 = vpop.f32.mrb[0].mxu0
        %2360 = vmatprep.mubr.f32.mxu0 0.0
        %2361 = vmatmul.mubr.f32.gmra.mrb[0].mxu0 %v2178
        %v2362 = vpop.f32.mrb[0].mxu0
        %v2363 = vadd.f32 0.0, %v2362
        %v2364 = vpop.f32.mrb[0].mxu0
        %2365 = vmatprep.mubr.f32.mxu0 0.0
        %2366 = vmatmul.mubr.f32.gmra.mrb[0].mxu0 %v2180
        %v2367 = vpop.f32.mrb[0].mxu0
        %v2368 = vadd.f32 0.0, %v2367
        %v2369 = vpop.f32.mrb[0].mxu0
        %2370 = vmatprep.mubr.f32.mxu0 0.0
        %2371 = vmatmul.mubr.f32.gmra.mrb[0].mxu0 %v2182
        %v2372 = vpop.f32.mrb[0].mxu0
        %v2373 = vadd.f32 0.0, %v2372
        %v2374 = vpop.f32.mrb[0].mxu0
        %2375 = vmatprep.mubr.f32.mxu0 0.0
        %2376 = vmatmul.mubr.f32.gmra.mrb[0].mxu0 %v2184
        %v2377 = vpop.f32.mrb[0].mxu0
        %v2378 = vadd.f32 0.0, %v2377
        %v2379 = vpop.f32.mrb[0].mxu0
        %2380 = vmatprep.mubr.f32.mxu0 0.0
        %2381 = vmatmul.mubr.f32.gmra.mrb[0].mxu0 %v2186
        %v2382 = vpop.f32.mrb[0].mxu0
        %v2383 = vadd.f32 0.0, %v2382
        %v2384 = vpop.f32.mrb[0].mxu0
        %2385 = vmatprep.mubr.f32.mxu0 0.0
        %2386 = vmatmul.mubr.f32.gmra.mrb[0].mxu0 %v2188
        %v2387 = vpop.f32.mrb[0].mxu0
        %v2388 = vadd.f32 0.0, %v2387
        %v2389 = vpop.f32.mrb[0].mxu0
        %2390 = vmatprep.mubr.f32.mxu0 0.0
        %2391 = vmatmul.mubr.f32.gmra.mrb[0].mxu0 %v2190
        %v2392 = vpop.f32.mrb[0].mxu0
        %v2393 = vadd.f32 0.0, %v2392
        %v2394 = vpop.f32.mrb[0].mxu0
        %2395 = vmatprep.mubr.f32.mxu0 0.0
        %2396 = vmatmul.mubr.f32.gmra.mrb[0].mxu0 %v2192
        %v2397 = vpop.f32.mrb[0].mxu0
        %v2398 = vadd.f32 0.0, %v2397
        %v2399 = vpop.f32.mrb[0].mxu0
        %2400 = vmatprep.mubr.f32.mxu0 0.0
        %2401 = vmatmul.mubr.f32.gmra.mrb[0].mxu0 %v2194
        %v2402 = vpop.f32.mrb[0].mxu0
        %v2403 = vadd.f32 0.0, %v2402
        %v2404 = vpop.f32.mrb[0].mxu0
        %2405 = vmatprep.mubr.f32.mxu0 0.0
        %2406 = vmatmul.mubr.f32.gmra.mrb[0].mxu0 %v2196
        %v2407 = vpop.f32.mrb[0].mxu0
        %v2408 = vadd.f32 0.0, %v2407
        %v2409 = vpop.f32.mrb[0].mxu0
        %2410 = vmatprep.mubr.f32.mxu0 0.0
        %2411 = vmatmul.mubr.f32.gmra.mrb[0].mxu0 %v2198
        %v2412 = vpop.f32.mrb[0].mxu0
        %v2413 = vadd.f32 0.0, %v2412
        %v2414 = vpop.f32.mrb[0].mxu0
        %2415 = vmatprep.mubr.f32.mxu0 0.0
        %2416 = vmatmul.mubr.f32.gmra.mrb[0].mxu0 %v2200
        %v2417 = vpop.f32.mrb[0].mxu0
        %v2418 = vadd.f32 0.0, %v2417
        %v2419 = vpop.f32.mrb[0].mxu0
        %2420 = vmatprep.mubr.f32.mxu0 0.0
        %2421 = vmatmul.mubr.f32.gmra.mrb[0].mxu0 %v2202
        %v2422 = vpop.f32.mrb[0].mxu0
        %v2423 = vadd.f32 0.0, %v2422
        %v2424 = vpop.f32.mrb[0].mxu0
        %2425 = vmatprep.mubr.f32.mxu0 0.0
        %2426 = vmatmul.mubr.f32.gmra.mrb[0].mxu0 %v2204
        %v2427 = vpop.f32.mrb[0].mxu0
        %v2428 = vadd.f32 0.0, %v2427
        %v2429 = vpop.f32.mrb[0].mxu0
        %2430 = vdwg.mxu0
        %v2432 = vsel %vm629, %v2094, 0
        %v2435 = vsel %vm629, %v2095, 0
        %v2438 = vsel %vm629, %v2096, 0
        %v2441 = vsel %vm629, %v2097, 0
        %v2444 = vsel %vm629, %v2098, 0
        %v2447 = vsel %vm629, %v2099, 0
        %v2450 = vsel %vm629, %v2100, 0
        %v2453 = vsel %vm629, %v2101, 0
        %v2456 = vsel %vm629, %v2102, 0
        %v2459 = vsel %vm629, %v2103, 0
        %v2462 = vsel %vm629, %v2104, 0
        %v2465 = vsel %vm629, %v2105, 0
        %v2468 = vsel %vm629, %v2106, 0
        %v2471 = vsel %vm629, %v2107, 0
        %v2474 = vsel %vm629, %v2108, 0
        %v2477 = vsel %vm629, %v2109, 0
        %v2480 = vsel %vm629, %v2110, 0
        %v2483 = vsel %vm629, %v2111, 0
        %v2486 = vsel %vm629, %v2112, 0
        %v2489 = vsel %vm629, %v2113, 0
        %v2492 = vsel %vm629, %v2114, 0
        %v2495 = vsel %vm629, %v2115, 0
        %v2498 = vsel %vm629, %v2116, 0
        %v2501 = vsel %vm629, %v2117, 0
        %v2504 = vsel %vm629, %v2118, 0
        %v2507 = vsel %vm629, %v2119, 0
        %v2510 = vsel %vm629, %v2120, 0
        %v2513 = vsel %vm629, %v2121, 0
        %v2516 = vsel %vm629, %v2122, 0
        %v2519 = vsel %vm629, %v2123, 0
        %v2522 = vsel %vm629, %v2124, 0
        %v2525 = vsel %vm629, %v2125, 0
        %2527 = vmatprep.subr.mxu0 0.0
        %2528 = vmatpush1.msra.mxu0 %v2126
        %2529 = vmatprep.subr.mxu0 0.0
        %2530 = vmatpush1.msra.mxu0 %v2127
        %2531 = vmatprep.subr.mxu0 0.0
        %2532 = vmatpush1.msra.mxu0 %v2128
        %2533 = vmatprep.subr.mxu0 0.0
        %2534 = vmatpush1.msra.mxu0 %v2129
        %2535 = vmatprep.subr.mxu0 0.0
        %2536 = vmatpush1.msra.mxu0 %v2130
        %2537 = vmatprep.subr.mxu0 0.0
        %2538 = vmatpush1.msra.mxu0 %v2131
        %2539 = vmatprep.subr.mxu0 0.0
        %2540 = vmatpush1.msra.mxu0 %v2132
        %2541 = vmatprep.subr.mxu0 0.0
        %2542 = vmatpush1.msra.mxu0 %v2133
        %2543 = vmatprep.subr.mxu0 0.0
        %2544 = vmatpush1.msra.mxu0 0.0
        %2545 = vmatprep.subr.mxu0 0.0
        %2546 = vmatpush1.msra.mxu0 0.0
        %2547 = vmatprep.subr.mxu0 0.0
        %2548 = vmatpush1.msra.mxu0 0.0
        %2549 = vmatprep.subr.mxu0 0.0
        %2550 = vmatpush1.msra.mxu0 0.0
        %2551 = vmatprep.subr.mxu0 0.0
        %2552 = vmatpush1.msra.mxu0 0.0
        %2553 = vmatprep.subr.mxu0 0.0
        %2554 = vmatpush1.msra.mxu0 0.0
        %2555 = vmatprep.subr.mxu0 0.0
        %2556 = vmatpush1.msra.mxu0 0.0
        %2557 = vmatprep.subr.mxu0 0.0
        %2558 = vmatpush1.msra.mxu0 0.0
        %2559 = vmatprep.subr.mxu0 0.0
        %2560 = vmatpush1.msra.mxu0 0.0
        %2561 = vmatprep.subr.mxu0 0.0
        %2562 = vmatpush1.msra.mxu0 0.0
        %2563 = vmatprep.subr.mxu0 0.0
        %2564 = vmatpush1.msra.mxu0 0.0
        %2565 = vmatprep.subr.mxu0 0.0
        %2566 = vmatpush1.msra.mxu0 0.0
        %2567 = vmatprep.subr.mxu0 0.0
        %2568 = vmatpush1.msra.mxu0 0.0
        %2569 = vmatprep.subr.mxu0 0.0
        %2570 = vmatpush1.msra.mxu0 0.0
        %2571 = vmatprep.subr.mxu0 0.0
        %2572 = vmatpush1.msra.mxu0 0.0
        %2573 = vmatprep.subr.mxu0 0.0
        %2574 = vmatpush1.msra.mxu0 0.0
        %2575 = vmatprep.subr.mxu0 0.0
        %2576 = vmatpush1.msra.mxu0 0.0
        %2577 = vmatprep.subr.mxu0 0.0
        %2578 = vmatpush1.msra.mxu0 0.0
        %2579 = vmatprep.subr.mxu0 0.0
        %2580 = vmatpush1.msra.mxu0 0.0
        %2581 = vmatprep.subr.mxu0 0.0
        %2582 = vmatpush1.msra.mxu0 0.0
        %2583 = vmatprep.subr.mxu0 0.0
        %2584 = vmatpush1.msra.mxu0 0.0
        %2585 = vmatprep.subr.mxu0 0.0
        %2586 = vmatpush1.msra.mxu0 0.0
        %2587 = vmatprep.subr.mxu0 0.0
        %2588 = vmatpush1.msra.mxu0 0.0
        %2589 = vmatprep.subr.mxu0 0.0
        %2590 = vmatpush1.msra.mxu0 0.0
        %2591 = vmatprep.mubr.f32.mxu0 0.0
        %2592 = vmatmul.mubr.f32.gmra.mrb[0].mxu0 %v2432
        %v2593 = vpop.f32.mrb[0].mxu0
        %v2594 = vadd.f32 %v2273, %v2593
        %v2595 = vpop.f32.mrb[0].mxu0
        %2596 = vmatprep.mubr.f32.mxu0 0.0
        %2597 = vmatmul.mubr.f32.gmra.mrb[0].mxu0 %v2435
        %v2598 = vpop.f32.mrb[0].mxu0
        %v2599 = vadd.f32 %v2278, %v2598
        %v2600 = vpop.f32.mrb[0].mxu0
        %2601 = vmatprep.mubr.f32.mxu0 0.0
        %2602 = vmatmul.mubr.f32.gmra.mrb[0].mxu0 %v2438
        %v2603 = vpop.f32.mrb[0].mxu0
        %v2604 = vadd.f32 %v2283, %v2603
        %v2605 = vpop.f32.mrb[0].mxu0
        %2606 = vmatprep.mubr.f32.mxu0 0.0
        %2607 = vmatmul.mubr.f32.gmra.mrb[0].mxu0 %v2441
        %v2608 = vpop.f32.mrb[0].mxu0
        %v2609 = vadd.f32 %v2288, %v2608
        %v2610 = vpop.f32.mrb[0].mxu0
        %2611 = vmatprep.mubr.f32.mxu0 0.0
        %2612 = vmatmul.mubr.f32.gmra.mrb[0].mxu0 %v2444
        %v2613 = vpop.f32.mrb[0].mxu0
        %v2614 = vadd.f32 %v2293, %v2613
        %v2615 = vpop.f32.mrb[0].mxu0
        %2616 = vmatprep.mubr.f32.mxu0 0.0
        %2617 = vmatmul.mubr.f32.gmra.mrb[0].mxu0 %v2447
        %v2618 = vpop.f32.mrb[0].mxu0
        %v2619 = vadd.f32 %v2298, %v2618
        %v2620 = vpop.f32.mrb[0].mxu0
        %2621 = vmatprep.mubr.f32.mxu0 0.0
        %2622 = vmatmul.mubr.f32.gmra.mrb[0].mxu0 %v2450
        %v2623 = vpop.f32.mrb[0].mxu0
        %v2624 = vadd.f32 %v2303, %v2623
        %v2625 = vpop.f32.mrb[0].mxu0
        %2626 = vmatprep.mubr.f32.mxu0 0.0
        %2627 = vmatmul.mubr.f32.gmra.mrb[0].mxu0 %v2453
        %v2628 = vpop.f32.mrb[0].mxu0
        %v2629 = vadd.f32 %v2308, %v2628
        %v2630 = vpop.f32.mrb[0].mxu0
        %2631 = vmatprep.mubr.f32.mxu0 0.0
        %2632 = vmatmul.mubr.f32.gmra.mrb[0].mxu0 %v2456
        %v2633 = vpop.f32.mrb[0].mxu0
        %v2634 = vadd.f32 %v2313, %v2633
        %v2635 = vpop.f32.mrb[0].mxu0
        %2636 = vmatprep.mubr.f32.mxu0 0.0
        %2637 = vmatmul.mubr.f32.gmra.mrb[0].mxu0 %v2459
        %v2638 = vpop.f32.mrb[0].mxu0
        %v2639 = vadd.f32 %v2318, %v2638
        %v2640 = vpop.f32.mrb[0].mxu0
        %2641 = vmatprep.mubr.f32.mxu0 0.0
        %2642 = vmatmul.mubr.f32.gmra.mrb[0].mxu0 %v2462
        %v2643 = vpop.f32.mrb[0].mxu0
        %v2644 = vadd.f32 %v2323, %v2643
        %v2645 = vpop.f32.mrb[0].mxu0
        %2646 = vmatprep.mubr.f32.mxu0 0.0
        %2647 = vmatmul.mubr.f32.gmra.mrb[0].mxu0 %v2465
        %v2648 = vpop.f32.mrb[0].mxu0
        %v2649 = vadd.f32 %v2328, %v2648
        %v2650 = vpop.f32.mrb[0].mxu0
        %2651 = vmatprep.mubr.f32.mxu0 0.0
        %2652 = vmatmul.mubr.f32.gmra.mrb[0].mxu0 %v2468
        %v2653 = vpop.f32.mrb[0].mxu0
        %v2654 = vadd.f32 %v2333, %v2653
        %v2655 = vpop.f32.mrb[0].mxu0
        %2656 = vmatprep.mubr.f32.mxu0 0.0
        %2657 = vmatmul.mubr.f32.gmra.mrb[0].mxu0 %v2471
        %v2658 = vpop.f32.mrb[0].mxu0
        %v2659 = vadd.f32 %v2338, %v2658
        %v2660 = vpop.f32.mrb[0].mxu0
        %2661 = vmatprep.mubr.f32.mxu0 0.0
        %2662 = vmatmul.mubr.f32.gmra.mrb[0].mxu0 %v2474
        %v2663 = vpop.f32.mrb[0].mxu0
        %v2664 = vadd.f32 %v2343, %v2663
        %v2665 = vpop.f32.mrb[0].mxu0
        %2666 = vmatprep.mubr.f32.mxu0 0.0
        %2667 = vmatmul.mubr.f32.gmra.mrb[0].mxu0 %v2477
        %v2668 = vpop.f32.mrb[0].mxu0
        %v2669 = vadd.f32 %v2348, %v2668
        %v2670 = vpop.f32.mrb[0].mxu0
        %2671 = vmatprep.mubr.f32.mxu0 0.0
        %2672 = vmatmul.mubr.f32.gmra.mrb[0].mxu0 %v2480
        %v2673 = vpop.f32.mrb[0].mxu0
        %v2674 = vadd.f32 %v2353, %v2673
        %v2675 = vpop.f32.mrb[0].mxu0
        %2676 = vmatprep.mubr.f32.mxu0 0.0
        %2677 = vmatmul.mubr.f32.gmra.mrb[0].mxu0 %v2483
        %v2678 = vpop.f32.mrb[0].mxu0
        %v2679 = vadd.f32 %v2358, %v2678
        %v2680 = vpop.f32.mrb[0].mxu0
        %2681 = vmatprep.mubr.f32.mxu0 0.0
        %2682 = vmatmul.mubr.f32.gmra.mrb[0].mxu0 %v2486
        %v2683 = vpop.f32.mrb[0].mxu0
        %v2684 = vadd.f32 %v2363, %v2683
        %v2685 = vpop.f32.mrb[0].mxu0
        %2686 = vmatprep.mubr.f32.mxu0 0.0
        %2687 = vmatmul.mubr.f32.gmra.mrb[0].mxu0 %v2489
        %v2688 = vpop.f32.mrb[0].mxu0
        %v2689 = vadd.f32 %v2368, %v2688
        %v2690 = vpop.f32.mrb[0].mxu0
        %2691 = vmatprep.mubr.f32.mxu0 0.0
        %2692 = vmatmul.mubr.f32.gmra.mrb[0].mxu0 %v2492
        %v2693 = vpop.f32.mrb[0].mxu0
        %v2694 = vadd.f32 %v2373, %v2693
        %v2695 = vpop.f32.mrb[0].mxu0
        %2696 = vmatprep.mubr.f32.mxu0 0.0
        %2697 = vmatmul.mubr.f32.gmra.mrb[0].mxu0 %v2495
        %v2698 = vpop.f32.mrb[0].mxu0
        %v2699 = vadd.f32 %v2378, %v2698
        %v2700 = vpop.f32.mrb[0].mxu0
        %2701 = vmatprep.mubr.f32.mxu0 0.0
        %2702 = vmatmul.mubr.f32.gmra.mrb[0].mxu0 %v2498
        %v2703 = vpop.f32.mrb[0].mxu0
        %v2704 = vadd.f32 %v2383, %v2703
        %v2705 = vpop.f32.mrb[0].mxu0
        %2706 = vmatprep.mubr.f32.mxu0 0.0
        %2707 = vmatmul.mubr.f32.gmra.mrb[0].mxu0 %v2501
        %v2708 = vpop.f32.mrb[0].mxu0
        %v2709 = vadd.f32 %v2388, %v2708
        %v2710 = vpop.f32.mrb[0].mxu0
        %2711 = vmatprep.mubr.f32.mxu0 0.0
        %2712 = vmatmul.mubr.f32.gmra.mrb[0].mxu0 %v2504
        %v2713 = vpop.f32.mrb[0].mxu0
        %v2714 = vadd.f32 %v2393, %v2713
        %v2715 = vpop.f32.mrb[0].mxu0
        %2716 = vmatprep.mubr.f32.mxu0 0.0
        %2717 = vmatmul.mubr.f32.gmra.mrb[0].mxu0 %v2507
        %v2718 = vpop.f32.mrb[0].mxu0
        %v2719 = vadd.f32 %v2398, %v2718
        %v2720 = vpop.f32.mrb[0].mxu0
        %2721 = vmatprep.mubr.f32.mxu0 0.0
        %2722 = vmatmul.mubr.f32.gmra.mrb[0].mxu0 %v2510
        %v2723 = vpop.f32.mrb[0].mxu0
        %v2724 = vadd.f32 %v2403, %v2723
        %v2725 = vpop.f32.mrb[0].mxu0
        %2726 = vmatprep.mubr.f32.mxu0 0.0
        %2727 = vmatmul.mubr.f32.gmra.mrb[0].mxu0 %v2513
        %v2728 = vpop.f32.mrb[0].mxu0
        %v2729 = vadd.f32 %v2408, %v2728
        %v2730 = vpop.f32.mrb[0].mxu0
        %2731 = vmatprep.mubr.f32.mxu0 0.0
        %2732 = vmatmul.mubr.f32.gmra.mrb[0].mxu0 %v2516
        %v2733 = vpop.f32.mrb[0].mxu0
        %v2734 = vadd.f32 %v2413, %v2733
        %v2735 = vpop.f32.mrb[0].mxu0
        %2736 = vmatprep.mubr.f32.mxu0 0.0
        %2737 = vmatmul.mubr.f32.gmra.mrb[0].mxu0 %v2519
        %v2738 = vpop.f32.mrb[0].mxu0
        %v2739 = vadd.f32 %v2418, %v2738
        %v2740 = vpop.f32.mrb[0].mxu0
        %2741 = vmatprep.mubr.f32.mxu0 0.0
        %2742 = vmatmul.mubr.f32.gmra.mrb[0].mxu0 %v2522
        %v2743 = vpop.f32.mrb[0].mxu0
        %v2744 = vadd.f32 %v2423, %v2743
        %v2745 = vpop.f32.mrb[0].mxu0
        %2746 = vmatprep.mubr.f32.mxu0 0.0
        %2747 = vmatmul.mubr.f32.gmra.mrb[0].mxu0 %v2525
        %v2748 = vpop.f32.mrb[0].mxu0
        %v2749 = vadd.f32 %v2428, %v2748
        %v2750 = vpop.f32.mrb[0].mxu0
        %2751 = vdwg.mxu0
        %vm2753 = vcmask 1046528
        %v2754 = vrot.slane %v1780, 1
        %v2755 = vrot.slane %v1781, 1
        %v2756 = vsel %vm2753, %v2754, %v2755
        %v2757 = vrot.slane %v1782, 1
        %v2758 = vsel %vm2753, %v2755, %v2757
        %v2759 = vrot.slane %v1783, 1
        %v2760 = vsel %vm2753, %v2757, %v2759
        %v2761 = vrot.slane %v1784, 1
        %v2762 = vsel %vm2753, %v2759, %v2761
        %v2763 = vrot.slane %v1785, 1
        %v2764 = vsel %vm2753, %v2761, %v2763
        %v2765 = vrot.slane %v1786, 1
        %v2766 = vsel %vm2753, %v2763, %v2765
        %v2767 = vrot.slane %v1787, 1
        %v2768 = vsel %vm2753, %v2765, %v2767
        %v2769 = vrot.slane %v1788, 1
        %v2770 = vsel %vm2753, %v2767, %v2769
        %v2771 = vrot.slane %v1789, 1
        %v2772 = vsel %vm2753, %v2769, %v2771
        %v2773 = vrot.slane %v1790, 1
        %v2774 = vsel %vm2753, %v2771, %v2773
        %v2775 = vrot.slane %v1791, 1
        %v2776 = vsel %vm2753, %v2773, %v2775
        %v2777 = vrot.slane %v1792, 1
        %v2778 = vsel %vm2753, %v2775, %v2777
        %v2779 = vrot.slane %v1793, 1
        %v2780 = vsel %vm2753, %v2777, %v2779
        %v2781 = vrot.slane %v1794, 1
        %v2782 = vsel %vm2753, %v2779, %v2781
        %v2783 = vrot.slane %v1795, 1
        %v2784 = vsel %vm2753, %v2781, %v2783
        %v2785 = vrot.slane %v1796, 1
        %v2786 = vsel %vm2753, %v2783, %v2785
        %v2787 = vrot.slane %v1797, 1
        %v2788 = vsel %vm2753, %v2785, %v2787
        %v2789 = vrot.slane %v1798, 1
        %v2790 = vsel %vm2753, %v2787, %v2789
        %v2791 = vrot.slane %v1799, 1
        %v2792 = vsel %vm2753, %v2789, %v2791
        %v2793 = vrot.slane %v1800, 1
        %v2794 = vsel %vm2753, %v2791, %v2793
        %v2795 = vrot.slane %v1801, 1
        %v2796 = vsel %vm2753, %v2793, %v2795
        %v2797 = vrot.slane %v1802, 1
        %v2798 = vsel %vm2753, %v2795, %v2797
        %v2799 = vrot.slane %v1803, 1
        %v2800 = vsel %vm2753, %v2797, %v2799
        %v2801 = vrot.slane %v1804, 1
        %v2802 = vsel %vm2753, %v2799, %v2801
        %v2803 = vrot.slane %v1805, 1
        %v2804 = vsel %vm2753, %v2801, %v2803
        %v2805 = vrot.slane %v1806, 1
        %v2806 = vsel %vm2753, %v2803, %v2805
        %v2807 = vrot.slane %v1807, 1
        %v2808 = vsel %vm2753, %v2805, %v2807
        %v2809 = vrot.slane %v1808, 1
        %v2810 = vsel %vm2753, %v2807, %v2809
        %v2811 = vrot.slane %v1809, 1
        %v2812 = vsel %vm2753, %v2809, %v2811
        %v2813 = vrot.slane %v1810, 1
        %v2814 = vsel %vm2753, %v2811, %v2813
        %v2846 = vsel %vm2753, 0.0, %v2754
        %2848 = vset.pattern.permute.xlu0 0
        %2849 = vperm.xlu0 %2848, %v587
        %v2850 = vpop.permute.xlu0 %2849
        %2853 = vset.pattern.permute.xlu0 0
        %2854 = vperm.xlu0 %2853, %v588
        %v2855 = vpop.permute.xlu0 %2854
        %2858 = vset.pattern.permute.xlu0 0
        %2859 = vperm.xlu0 %2858, %v589
        %v2860 = vpop.permute.xlu0 %2859
        %2863 = vset.pattern.permute.xlu0 0
        %2864 = vperm.xlu0 %2863, %v590
        %v2865 = vpop.permute.xlu0 %2864
        %2868 = vset.pattern.permute.xlu0 0
        %2869 = vperm.xlu0 %2868, %v591
        %v2870 = vpop.permute.xlu0 %2869
        %2873 = vset.pattern.permute.xlu0 0
        %2874 = vperm.xlu0 %2873, %v592
        %v2875 = vpop.permute.xlu0 %2874
        %2878 = vset.pattern.permute.xlu0 0
        %2879 = vperm.xlu0 %2878, %v593
        %v2880 = vpop.permute.xlu0 %2879
        %2883 = vset.pattern.permute.xlu0 0
        %2884 = vperm.xlu0 %2883, %v594
        %v2885 = vpop.permute.xlu0 %2884
        %2888 = vset.pattern.permute.xlu0 0
        %2889 = vperm.xlu0 %2888, %v595
        %v2890 = vpop.permute.xlu0 %2889
        %2893 = vset.pattern.permute.xlu0 0
        %2894 = vperm.xlu0 %2893, %v596
        %v2895 = vpop.permute.xlu0 %2894
        %2898 = vset.pattern.permute.xlu0 0
        %2899 = vperm.xlu0 %2898, %v597
        %v2900 = vpop.permute.xlu0 %2899
        %2903 = vset.pattern.permute.xlu0 0
        %2904 = vperm.xlu0 %2903, %v598
        %v2905 = vpop.permute.xlu0 %2904
        %2908 = vset.pattern.permute.xlu0 0
        %2909 = vperm.xlu0 %2908, %v599
        %v2910 = vpop.permute.xlu0 %2909
        %2913 = vset.pattern.permute.xlu0 0
        %2914 = vperm.xlu0 %2913, %v600
        %v2915 = vpop.permute.xlu0 %2914
        %2918 = vset.pattern.permute.xlu0 0
        %2919 = vperm.xlu0 %2918, %v601
        %v2920 = vpop.permute.xlu0 %2919
        %2923 = vset.pattern.permute.xlu0 0
        %2924 = vperm.xlu0 %2923, %v602
        %v2925 = vpop.permute.xlu0 %2924
        %2928 = vset.pattern.permute.xlu0 0
        %2929 = vperm.xlu0 %2928, %v603
        %v2930 = vpop.permute.xlu0 %2929
        %2933 = vset.pattern.permute.xlu0 0
        %2934 = vperm.xlu0 %2933, %v604
        %v2935 = vpop.permute.xlu0 %2934
        %2938 = vset.pattern.permute.xlu0 0
        %2939 = vperm.xlu0 %2938, %v605
        %v2940 = vpop.permute.xlu0 %2939
        %2943 = vset.pattern.permute.xlu0 0
        %2944 = vperm.xlu0 %2943, %v606
        %v2945 = vpop.permute.xlu0 %2944
        %2948 = vset.pattern.permute.xlu0 0
        %2949 = vperm.xlu0 %2948, %v607
        %v2950 = vpop.permute.xlu0 %2949
        %2953 = vset.pattern.permute.xlu0 0
        %2954 = vperm.xlu0 %2953, %v608
        %v2955 = vpop.permute.xlu0 %2954
        %2958 = vset.pattern.permute.xlu0 0
        %2959 = vperm.xlu0 %2958, %v609
        %v2960 = vpop.permute.xlu0 %2959
        %2963 = vset.pattern.permute.xlu0 0
        %2964 = vperm.xlu0 %2963, %v610
        %v2965 = vpop.permute.xlu0 %2964
        %2968 = vset.pattern.permute.xlu0 0
        %2969 = vperm.xlu0 %2968, %v611
        %v2970 = vpop.permute.xlu0 %2969
        %2973 = vset.pattern.permute.xlu0 0
        %2974 = vperm.xlu0 %2973, %v612
        %v2975 = vpop.permute.xlu0 %2974
        %2978 = vset.pattern.permute.xlu0 0
        %2979 = vperm.xlu0 %2978, %v613
        %v2980 = vpop.permute.xlu0 %2979
        %2983 = vset.pattern.permute.xlu0 0
        %2984 = vperm.xlu0 %2983, %v614
        %v2985 = vpop.permute.xlu0 %2984
        %2988 = vset.pattern.permute.xlu0 0
        %2989 = vperm.xlu0 %2988, %v615
        %v2990 = vpop.permute.xlu0 %2989
        %2993 = vset.pattern.permute.xlu0 0
        %2994 = vperm.xlu0 %2993, %v616
        %v2995 = vpop.permute.xlu0 %2994
        %2998 = vset.pattern.permute.xlu0 0
        %2999 = vperm.xlu0 %2998, %v617
        %v3000 = vpop.permute.xlu0 %2999
        %3003 = vset.pattern.permute.xlu0 0
        %3004 = vperm.xlu0 %3003, %v618
        %v3005 = vpop.permute.xlu0 %3004
        %v3007 = vmul.f32 %v2850, 0.0
        %v3008 = vmul.f32 %v2846, %v2855
        %v3009 = vmul.f32 %v2756, %v2860
        %v3010 = vmul.f32 %v2758, %v2865
        %v3011 = vmul.f32 %v2760, %v2870
        %v3012 = vmul.f32 %v2762, %v2875
        %v3013 = vmul.f32 %v2764, %v2880
        %v3014 = vmul.f32 %v2766, %v2885
        %v3015 = vmul.f32 %v2768, %v2890
        %v3016 = vmul.f32 %v2770, %v2895
        %v3017 = vmul.f32 %v2772, %v2900
        %v3018 = vmul.f32 %v2774, %v2905
        %v3019 = vmul.f32 %v2776, %v2910
        %v3020 = vmul.f32 %v2778, %v2915
        %v3021 = vmul.f32 %v2780, %v2920
        %v3022 = vmul.f32 %v2782, %v2925
        %v3023 = vmul.f32 %v2784, %v2930
        %v3024 = vmul.f32 %v2786, %v2935
        %v3025 = vmul.f32 %v2788, %v2940
        %v3026 = vmul.f32 %v2790, %v2945
        %v3027 = vmul.f32 %v2792, %v2950
        %v3028 = vmul.f32 %v2794, %v2955
        %v3029 = vmul.f32 %v2796, %v2960
        %v3030 = vmul.f32 %v2798, %v2965
        %v3031 = vmul.f32 %v2800, %v2970
        %v3032 = vmul.f32 %v2802, %v2975
        %v3033 = vmul.f32 %v2804, %v2980
        %v3034 = vmul.f32 %v2806, %v2985
        %v3035 = vmul.f32 %v2808, %v2990
        %v3036 = vmul.f32 %v2810, %v2995
        %v3037 = vmul.f32 %v2812, %v3000
        %v3038 = vmul.f32 %v2814, %v3005
        %s3039 = scalar_lea.vmem [#allocation2], 128
        %v3040 = vld [vmem:[%s3039] sm:$0xff]
        %v3041 = vld [vmem:[%s3039 + $0x8] sm:$0xff]
        %v3042 = vld [vmem:[%s3039 + $0x10] sm:$0xff]
        %v3043 = vld [vmem:[%s3039 + $0x18] sm:$0xff]
        %v3044 = vld [vmem:[%s3039 + $0x20] sm:$0xff]
        %v3045 = vld [vmem:[%s3039 + $0x28] sm:$0xff]
        %v3046 = vld [vmem:[%s3039 + $0x30] sm:$0xff]
        %v3047 = vld [vmem:[%s3039 + $0x38] sm:$0xff]
        %v3049 = vsel %vm629, %v3007, 0
        %v3052 = vsel %vm629, %v3008, 0
        %v3055 = vsel %vm629, %v3009, 0
        %v3058 = vsel %vm629, %v3010, 0
        %v3061 = vsel %vm629, %v3011, 0
        %v3064 = vsel %vm629, %v3012, 0
        %v3067 = vsel %vm629, %v3013, 0
        %v3070 = vsel %vm629, %v3014, 0
        %v3073 = vsel %vm629, %v3015, 0
        %v3076 = vsel %vm629, %v3016, 0
        %v3079 = vsel %vm629, %v3017, 0
        %v3082 = vsel %vm629, %v3018, 0
        %v3085 = vsel %vm629, %v3019, 0
        %v3088 = vsel %vm629, %v3020, 0
        %v3091 = vsel %vm629, %v3021, 0
        %v3094 = vsel %vm629, %v3022, 0
        %v3097 = vsel %vm629, %v3023, 0
        %v3100 = vsel %vm629, %v3024, 0
        %v3103 = vsel %vm629, %v3025, 0
        %v3106 = vsel %vm629, %v3026, 0
        %v3109 = vsel %vm629, %v3027, 0
        %v3112 = vsel %vm629, %v3028, 0
        %v3115 = vsel %vm629, %v3029, 0
        %v3118 = vsel %vm629, %v3030, 0
        %v3121 = vsel %vm629, %v3031, 0
        %v3124 = vsel %vm629, %v3032, 0
        %v3127 = vsel %vm629, %v3033, 0
        %v3130 = vsel %vm629, %v3034, 0
        %v3133 = vsel %vm629, %v3035, 0
        %v3136 = vsel %vm629, %v3036, 0
        %v3139 = vsel %vm629, %v3037, 0
        %v3142 = vsel %vm629, %v3038, 0
        %3144 = vmatprep.subr.mxu0 0.0
        %3145 = vmatpush1.msra.mxu0 %v3040
        %3146 = vmatprep.subr.mxu0 0.0
        %3147 = vmatpush1.msra.mxu0 %v3041
        %3148 = vmatprep.subr.mxu0 0.0
        %3149 = vmatpush1.msra.mxu0 %v3042
        %3150 = vmatprep.subr.mxu0 0.0
        %3151 = vmatpush1.msra.mxu0 %v3043
        %3152 = vmatprep.subr.mxu0 0.0
        %3153 = vmatpush1.msra.mxu0 %v3044
        %3154 = vmatprep.subr.mxu0 0.0
        %3155 = vmatpush1.msra.mxu0 %v3045
        %3156 = vmatprep.subr.mxu0 0.0
        %3157 = vmatpush1.msra.mxu0 %v3046
        %3158 = vmatprep.subr.mxu0 0.0
        %3159 = vmatpush1.msra.mxu0 %v3047
        %3160 = vmatprep.subr.mxu0 0.0
        %3161 = vmatpush1.msra.mxu0 0.0
        %3162 = vmatprep.subr.mxu0 0.0
        %3163 = vmatpush1.msra.mxu0 0.0
        %3164 = vmatprep.subr.mxu0 0.0
        %3165 = vmatpush1.msra.mxu0 0.0
        %3166 = vmatprep.subr.mxu0 0.0
        %3167 = vmatpush1.msra.mxu0 0.0
        %3168 = vmatprep.subr.mxu0 0.0
        %3169 = vmatpush1.msra.mxu0 0.0
        %3170 = vmatprep.subr.mxu0 0.0
        %3171 = vmatpush1.msra.mxu0 0.0
        %3172 = vmatprep.subr.mxu0 0.0
        %3173 = vmatpush1.msra.mxu0 0.0
        %3174 = vmatprep.subr.mxu0 0.0
        %3175 = vmatpush1.msra.mxu0 0.0
        %3176 = vmatprep.subr.mxu0 0.0
        %3177 = vmatpush1.msra.mxu0 0.0
        %3178 = vmatprep.subr.mxu0 0.0
        %3179 = vmatpush1.msra.mxu0 0.0
        %3180 = vmatprep.subr.mxu0 0.0
        %3181 = vmatpush1.msra.mxu0 0.0
        %3182 = vmatprep.subr.mxu0 0.0
        %3183 = vmatpush1.msra.mxu0 0.0
        %3184 = vmatprep.subr.mxu0 0.0
        %3185 = vmatpush1.msra.mxu0 0.0
        %3186 = vmatprep.subr.mxu0 0.0
        %3187 = vmatpush1.msra.mxu0 0.0
        %3188 = vmatprep.subr.mxu0 0.0
        %3189 = vmatpush1.msra.mxu0 0.0
        %3190 = vmatprep.subr.mxu0 0.0
        %3191 = vmatpush1.msra.mxu0 0.0
        %3192 = vmatprep.subr.mxu0 0.0
        %3193 = vmatpush1.msra.mxu0 0.0
        %3194 = vmatprep.subr.mxu0 0.0
        %3195 = vmatpush1.msra.mxu0 0.0
        %3196 = vmatprep.subr.mxu0 0.0
        %3197 = vmatpush1.msra.mxu0 0.0
        %3198 = vmatprep.subr.mxu0 0.0
        %3199 = vmatpush1.msra.mxu0 0.0
        %3200 = vmatprep.subr.mxu0 0.0
        %3201 = vmatpush1.msra.mxu0 0.0
        %3202 = vmatprep.subr.mxu0 0.0
        %3203 = vmatpush1.msra.mxu0 0.0
        %3204 = vmatprep.subr.mxu0 0.0
        %3205 = vmatpush1.msra.mxu0 0.0
        %3206 = vmatprep.subr.mxu0 0.0
        %3207 = vmatpush1.msra.mxu0 0.0
        %3208 = vmatprep.mubr.f32.mxu0 0.0
        %3209 = vmatmul.mubr.f32.gmra.mrb[0].mxu0 %v3049
        %v3210 = vpop.f32.mrb[0].mxu0
        %v3211 = vadd.f32 0.0, %v3210
        %v3212 = vpop.f32.mrb[0].mxu0
        %3213 = vmatprep.mubr.f32.mxu0 0.0
        %3214 = vmatmul.mubr.f32.gmra.mrb[0].mxu0 %v3052
        %v3215 = vpop.f32.mrb[0].mxu0
        %v3216 = vadd.f32 0.0, %v3215
        %v3217 = vpop.f32.mrb[0].mxu0
        %3218 = vmatprep.mubr.f32.mxu0 0.0
        %3219 = vmatmul.mubr.f32.gmra.mrb[0].mxu0 %v3055
        %v3220 = vpop.f32.mrb[0].mxu0
        %v3221 = vadd.f32 0.0, %v3220
        %v3222 = vpop.f32.mrb[0].mxu0
        %3223 = vmatprep.mubr.f32.mxu0 0.0
        %3224 = vmatmul.mubr.f32.gmra.mrb[0].mxu0 %v3058
        %v3225 = vpop.f32.mrb[0].mxu0
        %v3226 = vadd.f32 0.0, %v3225
        %v3227 = vpop.f32.mrb[0].mxu0
        %3228 = vmatprep.mubr.f32.mxu0 0.0
        %3229 = vmatmul.mubr.f32.gmra.mrb[0].mxu0 %v3061
        %v3230 = vpop.f32.mrb[0].mxu0
        %v3231 = vadd.f32 0.0, %v3230
        %v3232 = vpop.f32.mrb[0].mxu0
        %3233 = vmatprep.mubr.f32.mxu0 0.0
        %3234 = vmatmul.mubr.f32.gmra.mrb[0].mxu0 %v3064
        %v3235 = vpop.f32.mrb[0].mxu0
        %v3236 = vadd.f32 0.0, %v3235
        %v3237 = vpop.f32.mrb[0].mxu0
        %3238 = vmatprep.mubr.f32.mxu0 0.0
        %3239 = vmatmul.mubr.f32.gmra.mrb[0].mxu0 %v3067
        %v3240 = vpop.f32.mrb[0].mxu0
        %v3241 = vadd.f32 0.0, %v3240
        %v3242 = vpop.f32.mrb[0].mxu0
        %3243 = vmatprep.mubr.f32.mxu0 0.0
        %3244 = vmatmul.mubr.f32.gmra.mrb[0].mxu0 %v3070
        %v3245 = vpop.f32.mrb[0].mxu0
        %v3246 = vadd.f32 0.0, %v3245
        %v3247 = vpop.f32.mrb[0].mxu0
        %3248 = vmatprep.mubr.f32.mxu0 0.0
        %3249 = vmatmul.mubr.f32.gmra.mrb[0].mxu0 %v3073
        %v3250 = vpop.f32.mrb[0].mxu0
        %v3251 = vadd.f32 0.0, %v3250
        %v3252 = vpop.f32.mrb[0].mxu0
        %3253 = vmatprep.mubr.f32.mxu0 0.0
        %3254 = vmatmul.mubr.f32.gmra.mrb[0].mxu0 %v3076
        %v3255 = vpop.f32.mrb[0].mxu0
        %v3256 = vadd.f32 0.0, %v3255
        %v3257 = vpop.f32.mrb[0].mxu0
        %3258 = vmatprep.mubr.f32.mxu0 0.0
        %3259 = vmatmul.mubr.f32.gmra.mrb[0].mxu0 %v3079
        %v3260 = vpop.f32.mrb[0].mxu0
        %v3261 = vadd.f32 0.0, %v3260
        %v3262 = vpop.f32.mrb[0].mxu0
        %3263 = vmatprep.mubr.f32.mxu0 0.0
        %3264 = vmatmul.mubr.f32.gmra.mrb[0].mxu0 %v3082
        %v3265 = vpop.f32.mrb[0].mxu0
        %v3266 = vadd.f32 0.0, %v3265
        %v3267 = vpop.f32.mrb[0].mxu0
        %3268 = vmatprep.mubr.f32.mxu0 0.0
        %3269 = vmatmul.mubr.f32.gmra.mrb[0].mxu0 %v3085
        %v3270 = vpop.f32.mrb[0].mxu0
        %v3271 = vadd.f32 0.0, %v3270
        %v3272 = vpop.f32.mrb[0].mxu0
        %3273 = vmatprep.mubr.f32.mxu0 0.0
        %3274 = vmatmul.mubr.f32.gmra.mrb[0].mxu0 %v3088
        %v3275 = vpop.f32.mrb[0].mxu0
        %v3276 = vadd.f32 0.0, %v3275
        %v3277 = vpop.f32.mrb[0].mxu0
        %3278 = vmatprep.mubr.f32.mxu0 0.0
        %3279 = vmatmul.mubr.f32.gmra.mrb[0].mxu0 %v3091
        %v3280 = vpop.f32.mrb[0].mxu0
        %v3281 = vadd.f32 0.0, %v3280
        %v3282 = vpop.f32.mrb[0].mxu0
        %3283 = vmatprep.mubr.f32.mxu0 0.0
        %3284 = vmatmul.mubr.f32.gmra.mrb[0].mxu0 %v3094
        %v3285 = vpop.f32.mrb[0].mxu0
        %v3286 = vadd.f32 0.0, %v3285
        %v3287 = vpop.f32.mrb[0].mxu0
        %3288 = vmatprep.mubr.f32.mxu0 0.0
        %3289 = vmatmul.mubr.f32.gmra.mrb[0].mxu0 %v3097
        %v3290 = vpop.f32.mrb[0].mxu0
        %v3291 = vadd.f32 0.0, %v3290
        %v3292 = vpop.f32.mrb[0].mxu0
        %3293 = vmatprep.mubr.f32.mxu0 0.0
        %3294 = vmatmul.mubr.f32.gmra.mrb[0].mxu0 %v3100
        %v3295 = vpop.f32.mrb[0].mxu0
        %v3296 = vadd.f32 0.0, %v3295
        %v3297 = vpop.f32.mrb[0].mxu0
        %3298 = vmatprep.mubr.f32.mxu0 0.0
        %3299 = vmatmul.mubr.f32.gmra.mrb[0].mxu0 %v3103
        %v3300 = vpop.f32.mrb[0].mxu0
        %v3301 = vadd.f32 0.0, %v3300
        %v3302 = vpop.f32.mrb[0].mxu0
        %3303 = vmatprep.mubr.f32.mxu0 0.0
        %3304 = vmatmul.mubr.f32.gmra.mrb[0].mxu0 %v3106
        %v3305 = vpop.f32.mrb[0].mxu0
        %v3306 = vadd.f32 0.0, %v3305
        %v3307 = vpop.f32.mrb[0].mxu0
        %3308 = vmatprep.mubr.f32.mxu0 0.0
        %3309 = vmatmul.mubr.f32.gmra.mrb[0].mxu0 %v3109
        %v3310 = vpop.f32.mrb[0].mxu0
        %v3311 = vadd.f32 0.0, %v3310
        %v3312 = vpop.f32.mrb[0].mxu0
        %3313 = vmatprep.mubr.f32.mxu0 0.0
        %3314 = vmatmul.mubr.f32.gmra.mrb[0].mxu0 %v3112
        %v3315 = vpop.f32.mrb[0].mxu0
        %v3316 = vadd.f32 0.0, %v3315
        %v3317 = vpop.f32.mrb[0].mxu0
        %3318 = vmatprep.mubr.f32.mxu0 0.0
        %3319 = vmatmul.mubr.f32.gmra.mrb[0].mxu0 %v3115
        %v3320 = vpop.f32.mrb[0].mxu0
        %v3321 = vadd.f32 0.0, %v3320
        %v3322 = vpop.f32.mrb[0].mxu0
        %3323 = vmatprep.mubr.f32.mxu0 0.0
        %3324 = vmatmul.mubr.f32.gmra.mrb[0].mxu0 %v3118
        %v3325 = vpop.f32.mrb[0].mxu0
        %v3326 = vadd.f32 0.0, %v3325
        %v3327 = vpop.f32.mrb[0].mxu0
        %3328 = vmatprep.mubr.f32.mxu0 0.0
        %3329 = vmatmul.mubr.f32.gmra.mrb[0].mxu0 %v3121
        %v3330 = vpop.f32.mrb[0].mxu0
        %v3331 = vadd.f32 0.0, %v3330
        %v3332 = vpop.f32.mrb[0].mxu0
        %3333 = vmatprep.mubr.f32.mxu0 0.0
        %3334 = vmatmul.mubr.f32.gmra.mrb[0].mxu0 %v3124
        %v3335 = vpop.f32.mrb[0].mxu0
        %v3336 = vadd.f32 0.0, %v3335
        %v3337 = vpop.f32.mrb[0].mxu0
        %3338 = vmatprep.mubr.f32.mxu0 0.0
        %3339 = vmatmul.mubr.f32.gmra.mrb[0].mxu0 %v3127
        %v3340 = vpop.f32.mrb[0].mxu0
        %v3341 = vadd.f32 0.0, %v3340
        %v3342 = vpop.f32.mrb[0].mxu0
        %3343 = vmatprep.mubr.f32.mxu0 0.0
        %3344 = vmatmul.mubr.f32.gmra.mrb[0].mxu0 %v3130
        %v3345 = vpop.f32.mrb[0].mxu0
        %v3346 = vadd.f32 0.0, %v3345
        %v3347 = vpop.f32.mrb[0].mxu0
        %3348 = vmatprep.mubr.f32.mxu0 0.0
        %3349 = vmatmul.mubr.f32.gmra.mrb[0].mxu0 %v3133
        %v3350 = vpop.f32.mrb[0].mxu0
        %v3351 = vadd.f32 0.0, %v3350
        %v3352 = vpop.f32.mrb[0].mxu0
        %3353 = vmatprep.mubr.f32.mxu0 0.0
        %3354 = vmatmul.mubr.f32.gmra.mrb[0].mxu0 %v3136
        %v3355 = vpop.f32.mrb[0].mxu0
        %v3356 = vadd.f32 0.0, %v3355
        %v3357 = vpop.f32.mrb[0].mxu0
        %3358 = vmatprep.mubr.f32.mxu0 0.0
        %3359 = vmatmul.mubr.f32.gmra.mrb[0].mxu0 %v3139
        %v3360 = vpop.f32.mrb[0].mxu0
        %v3361 = vadd.f32 0.0, %v3360
        %v3362 = vpop.f32.mrb[0].mxu0
        %3363 = vmatprep.mubr.f32.mxu0 0.0
        %3364 = vmatmul.mubr.f32.gmra.mrb[0].mxu0 %v3142
        %v3365 = vpop.f32.mrb[0].mxu0
        %v3366 = vadd.f32 0.0, %v3365
        %v3367 = vpop.f32.mrb[0].mxu0
        %3368 = vdwg.mxu0
        %v3369 = vadd.f32 %v2594, %v3211
        %v3370 = vadd.f32 %v2599, %v3216
        %v3371 = vadd.f32 %v2604, %v3221
        %v3372 = vadd.f32 %v2609, %v3226
        %v3373 = vadd.f32 %v2614, %v3231
        %v3374 = vadd.f32 %v2619, %v3236
        %v3375 = vadd.f32 %v2624, %v3241
        %v3376 = vadd.f32 %v2629, %v3246
        %v3377 = vadd.f32 %v2634, %v3251
        %v3378 = vadd.f32 %v2639, %v3256
        %v3379 = vadd.f32 %v2644, %v3261
        %v3380 = vadd.f32 %v2649, %v3266
        %v3381 = vadd.f32 %v2654, %v3271
        %v3382 = vadd.f32 %v2659, %v3276
        %v3383 = vadd.f32 %v2664, %v3281
        %v3384 = vadd.f32 %v2669, %v3286
        %v3385 = vadd.f32 %v2674, %v3291
        %v3386 = vadd.f32 %v2679, %v3296
        %v3387 = vadd.f32 %v2684, %v3301
        %v3388 = vadd.f32 %v2689, %v3306
        %v3389 = vadd.f32 %v2694, %v3311
        %v3390 = vadd.f32 %v2699, %v3316
        %v3391 = vadd.f32 %v2704, %v3321
        %v3392 = vadd.f32 %v2709, %v3326
        %v3393 = vadd.f32 %v2714, %v3331
        %v3394 = vadd.f32 %v2719, %v3336
        %v3395 = vadd.f32 %v2724, %v3341
        %v3396 = vadd.f32 %v2729, %v3346
        %v3397 = vadd.f32 %v2734, %v3351
        %v3398 = vadd.f32 %v2739, %v3356
        %v3399 = vadd.f32 %v2744, %v3361
        %v3400 = vadd.f32 %v2749, %v3366
        %v3402 = vrot.slane %v1810, 7
        %v3403 = vsel %vm1843, %v1901, %v3402
        %v3404 = vrot.slane %v1811, 7
        %v3405 = vsel %vm1843, %v3402, %v3404
        %v3408 = vmul.f32 %v1933, %v1937
        %v3409 = vmul.f32 %v1846, %v1942
        %v3410 = vmul.f32 %v1848, %v1947
        %v3411 = vmul.f32 %v1850, %v1952
        %v3412 = vmul.f32 %v1852, %v1957
        %v3413 = vmul.f32 %v1854, %v1962
        %v3414 = vmul.f32 %v1856, %v1967
        %v3415 = vmul.f32 %v1858, %v1972
        %v3416 = vmul.f32 %v1860, %v1977
        %v3417 = vmul.f32 %v1862, %v1982
        %v3418 = vmul.f32 %v1864, %v1987
        %v3419 = vmul.f32 %v1866, %v1992
        %v3420 = vmul.f32 %v1868, %v1997
        %v3421 = vmul.f32 %v1870, %v2002
        %v3422 = vmul.f32 %v1872, %v2007
        %v3423 = vmul.f32 %v1874, %v2012
        %v3424 = vmul.f32 %v1876, %v2017
        %v3425 = vmul.f32 %v1878, %v2022
        %v3426 = vmul.f32 %v1880, %v2027
        %v3427 = vmul.f32 %v1882, %v2032
        %v3428 = vmul.f32 %v1884, %v2037
        %v3429 = vmul.f32 %v1886, %v2042
        %v3430 = vmul.f32 %v1888, %v2047
        %v3431 = vmul.f32 %v1890, %v2052
        %v3432 = vmul.f32 %v1892, %v2057
        %v3433 = vmul.f32 %v1894, %v2062
        %v3434 = vmul.f32 %v1896, %v2067
        %v3435 = vmul.f32 %v1898, %v2072
        %v3436 = vmul.f32 %v1900, %v2077
        %v3437 = vmul.f32 %v1902, %v2082
        %v3438 = vmul.f32 %v3403, %v2087
        %v3439 = vmul.f32 %v3405, %v2092
        %s3440 = scalar_lea.vmem [#allocation2], 192
        %v3441 = vld [vmem:[%s3440] sm:$0xff]
        %v3442 = vld [vmem:[%s3440 + $0x8] sm:$0xff]
        %v3443 = vld [vmem:[%s3440 + $0x10] sm:$0xff]
        %v3444 = vld [vmem:[%s3440 + $0x18] sm:$0xff]
        %v3445 = vld [vmem:[%s3440 + $0x20] sm:$0xff]
        %v3446 = vld [vmem:[%s3440 + $0x28] sm:$0xff]
        %v3447 = vld [vmem:[%s3440 + $0x30] sm:$0xff]
        %v3448 = vld [vmem:[%s3440 + $0x38] sm:$0xff]
        %v3450 = vsel %vm629, %v3408, 0
        %v3453 = vsel %vm629, %v3409, 0
        %v3456 = vsel %vm629, %v3410, 0
        %v3459 = vsel %vm629, %v3411, 0
        %v3462 = vsel %vm629, %v3412, 0
        %v3465 = vsel %vm629, %v3413, 0
        %v3468 = vsel %vm629, %v3414, 0
        %v3471 = vsel %vm629, %v3415, 0
        %v3474 = vsel %vm629, %v3416, 0
        %v3477 = vsel %vm629, %v3417, 0
        %v3480 = vsel %vm629, %v3418, 0
        %v3483 = vsel %vm629, %v3419, 0
        %v3486 = vsel %vm629, %v3420, 0
        %v3489 = vsel %vm629, %v3421, 0
        %v3492 = vsel %vm629, %v3422, 0
        %v3495 = vsel %vm629, %v3423, 0
        %v3498 = vsel %vm629, %v3424, 0
        %v3501 = vsel %vm629, %v3425, 0
        %v3504 = vsel %vm629, %v3426, 0
        %v3507 = vsel %vm629, %v3427, 0
        %v3510 = vsel %vm629, %v3428, 0
        %v3513 = vsel %vm629, %v3429, 0
        %v3516 = vsel %vm629, %v3430, 0
        %v3519 = vsel %vm629, %v3431, 0
        %v3522 = vsel %vm629, %v3432, 0
        %v3525 = vsel %vm629, %v3433, 0
        %v3528 = vsel %vm629, %v3434, 0
        %v3531 = vsel %vm629, %v3435, 0
        %v3534 = vsel %vm629, %v3436, 0
        %v3537 = vsel %vm629, %v3437, 0
        %v3540 = vsel %vm629, %v3438, 0
        %v3543 = vsel %vm629, %v3439, 0
        %3545 = vmatprep.subr.mxu0 0.0
        %3546 = vmatpush1.msra.mxu0 %v3441
        %3547 = vmatprep.subr.mxu0 0.0
        %3548 = vmatpush1.msra.mxu0 %v3442
        %3549 = vmatprep.subr.mxu0 0.0
        %3550 = vmatpush1.msra.mxu0 %v3443
        %3551 = vmatprep.subr.mxu0 0.0
        %3552 = vmatpush1.msra.mxu0 %v3444
        %3553 = vmatprep.subr.mxu0 0.0
        %3554 = vmatpush1.msra.mxu0 %v3445
        %3555 = vmatprep.subr.mxu0 0.0
        %3556 = vmatpush1.msra.mxu0 %v3446
        %3557 = vmatprep.subr.mxu0 0.0
        %3558 = vmatpush1.msra.mxu0 %v3447
        %3559 = vmatprep.subr.mxu0 0.0
        %3560 = vmatpush1.msra.mxu0 %v3448
        %3561 = vmatprep.subr.mxu0 0.0
        %3562 = vmatpush1.msra.mxu0 0.0
        %3563 = vmatprep.subr.mxu0 0.0
        %3564 = vmatpush1.msra.mxu0 0.0
        %3565 = vmatprep.subr.mxu0 0.0
        %3566 = vmatpush1.msra.mxu0 0.0
        %3567 = vmatprep.subr.mxu0 0.0
        %3568 = vmatpush1.msra.mxu0 0.0
        %3569 = vmatprep.subr.mxu0 0.0
        %3570 = vmatpush1.msra.mxu0 0.0
        %3571 = vmatprep.subr.mxu0 0.0
        %3572 = vmatpush1.msra.mxu0 0.0
        %3573 = vmatprep.subr.mxu0 0.0
        %3574 = vmatpush1.msra.mxu0 0.0
        %3575 = vmatprep.subr.mxu0 0.0
        %3576 = vmatpush1.msra.mxu0 0.0
        %3577 = vmatprep.subr.mxu0 0.0
        %3578 = vmatpush1.msra.mxu0 0.0
        %3579 = vmatprep.subr.mxu0 0.0
        %3580 = vmatpush1.msra.mxu0 0.0
        %3581 = vmatprep.subr.mxu0 0.0
        %3582 = vmatpush1.msra.mxu0 0.0
        %3583 = vmatprep.subr.mxu0 0.0
        %3584 = vmatpush1.msra.mxu0 0.0
        %3585 = vmatprep.subr.mxu0 0.0
        %3586 = vmatpush1.msra.mxu0 0.0
        %3587 = vmatprep.subr.mxu0 0.0
        %3588 = vmatpush1.msra.mxu0 0.0
        %3589 = vmatprep.subr.mxu0 0.0
        %3590 = vmatpush1.msra.mxu0 0.0
        %3591 = vmatprep.subr.mxu0 0.0
        %3592 = vmatpush1.msra.mxu0 0.0
        %3593 = vmatprep.subr.mxu0 0.0
        %3594 = vmatpush1.msra.mxu0 0.0
        %3595 = vmatprep.subr.mxu0 0.0
        %3596 = vmatpush1.msra.mxu0 0.0
        %3597 = vmatprep.subr.mxu0 0.0
        %3598 = vmatpush1.msra.mxu0 0.0
        %3599 = vmatprep.subr.mxu0 0.0
        %3600 = vmatpush1.msra.mxu0 0.0
        %3601 = vmatprep.subr.mxu0 0.0
        %3602 = vmatpush1.msra.mxu0 0.0
        %3603 = vmatprep.subr.mxu0 0.0
        %3604 = vmatpush1.msra.mxu0 0.0
        %3605 = vmatprep.subr.mxu0 0.0
        %3606 = vmatpush1.msra.mxu0 0.0
        %3607 = vmatprep.subr.mxu0 0.0
        %3608 = vmatpush1.msra.mxu0 0.0
        %3609 = vmatprep.mubr.f32.mxu0 0.0
        %3610 = vmatmul.mubr.f32.gmra.mrb[0].mxu0 %v3450
        %v3611 = vpop.f32.mrb[0].mxu0
        %v3612 = vadd.f32 0.0, %v3611
        %v3613 = vpop.f32.mrb[0].mxu0
        %3614 = vmatprep.mubr.f32.mxu0 0.0
        %3615 = vmatmul.mubr.f32.gmra.mrb[0].mxu0 %v3453
        %v3616 = vpop.f32.mrb[0].mxu0
        %v3617 = vadd.f32 0.0, %v3616
        %v3618 = vpop.f32.mrb[0].mxu0
        %3619 = vmatprep.mubr.f32.mxu0 0.0
        %3620 = vmatmul.mubr.f32.gmra.mrb[0].mxu0 %v3456
        %v3621 = vpop.f32.mrb[0].mxu0
        %v3622 = vadd.f32 0.0, %v3621
        %v3623 = vpop.f32.mrb[0].mxu0
        %3624 = vmatprep.mubr.f32.mxu0 0.0
        %3625 = vmatmul.mubr.f32.gmra.mrb[0].mxu0 %v3459
        %v3626 = vpop.f32.mrb[0].mxu0
        %v3627 = vadd.f32 0.0, %v3626
        %v3628 = vpop.f32.mrb[0].mxu0
        %3629 = vmatprep.mubr.f32.mxu0 0.0
        %3630 = vmatmul.mubr.f32.gmra.mrb[0].mxu0 %v3462
        %v3631 = vpop.f32.mrb[0].mxu0
        %v3632 = vadd.f32 0.0, %v3631
        %v3633 = vpop.f32.mrb[0].mxu0
        %3634 = vmatprep.mubr.f32.mxu0 0.0
        %3635 = vmatmul.mubr.f32.gmra.mrb[0].mxu0 %v3465
        %v3636 = vpop.f32.mrb[0].mxu0
        %v3637 = vadd.f32 0.0, %v3636
        %v3638 = vpop.f32.mrb[0].mxu0
        %3639 = vmatprep.mubr.f32.mxu0 0.0
        %3640 = vmatmul.mubr.f32.gmra.mrb[0].mxu0 %v3468
        %v3641 = vpop.f32.mrb[0].mxu0
        %v3642 = vadd.f32 0.0, %v3641
        %v3643 = vpop.f32.mrb[0].mxu0
        %3644 = vmatprep.mubr.f32.mxu0 0.0
        %3645 = vmatmul.mubr.f32.gmra.mrb[0].mxu0 %v3471
        %v3646 = vpop.f32.mrb[0].mxu0
        %v3647 = vadd.f32 0.0, %v3646
        %v3648 = vpop.f32.mrb[0].mxu0
        %3649 = vmatprep.mubr.f32.mxu0 0.0
        %3650 = vmatmul.mubr.f32.gmra.mrb[0].mxu0 %v3474
        %v3651 = vpop.f32.mrb[0].mxu0
        %v3652 = vadd.f32 0.0, %v3651
        %v3653 = vpop.f32.mrb[0].mxu0
        %3654 = vmatprep.mubr.f32.mxu0 0.0
        %3655 = vmatmul.mubr.f32.gmra.mrb[0].mxu0 %v3477
        %v3656 = vpop.f32.mrb[0].mxu0
        %v3657 = vadd.f32 0.0, %v3656
        %v3658 = vpop.f32.mrb[0].mxu0
        %3659 = vmatprep.mubr.f32.mxu0 0.0
        %3660 = vmatmul.mubr.f32.gmra.mrb[0].mxu0 %v3480
        %v3661 = vpop.f32.mrb[0].mxu0
        %v3662 = vadd.f32 0.0, %v3661
        %v3663 = vpop.f32.mrb[0].mxu0
        %3664 = vmatprep.mubr.f32.mxu0 0.0
        %3665 = vmatmul.mubr.f32.gmra.mrb[0].mxu0 %v3483
        %v3666 = vpop.f32.mrb[0].mxu0
        %v3667 = vadd.f32 0.0, %v3666
        %v3668 = vpop.f32.mrb[0].mxu0
        %3669 = vmatprep.mubr.f32.mxu0 0.0
        %3670 = vmatmul.mubr.f32.gmra.mrb[0].mxu0 %v3486
        %v3671 = vpop.f32.mrb[0].mxu0
        %v3672 = vadd.f32 0.0, %v3671
        %v3673 = vpop.f32.mrb[0].mxu0
        %3674 = vmatprep.mubr.f32.mxu0 0.0
        %3675 = vmatmul.mubr.f32.gmra.mrb[0].mxu0 %v3489
        %v3676 = vpop.f32.mrb[0].mxu0
        %v3677 = vadd.f32 0.0, %v3676
        %v3678 = vpop.f32.mrb[0].mxu0
        %3679 = vmatprep.mubr.f32.mxu0 0.0
        %3680 = vmatmul.mubr.f32.gmra.mrb[0].mxu0 %v3492
        %v3681 = vpop.f32.mrb[0].mxu0
        %v3682 = vadd.f32 0.0, %v3681
        %v3683 = vpop.f32.mrb[0].mxu0
        %3684 = vmatprep.mubr.f32.mxu0 0.0
        %3685 = vmatmul.mubr.f32.gmra.mrb[0].mxu0 %v3495
        %v3686 = vpop.f32.mrb[0].mxu0
        %v3687 = vadd.f32 0.0, %v3686
        %v3688 = vpop.f32.mrb[0].mxu0
        %3689 = vmatprep.mubr.f32.mxu0 0.0
        %3690 = vmatmul.mubr.f32.gmra.mrb[0].mxu0 %v3498
        %v3691 = vpop.f32.mrb[0].mxu0
        %v3692 = vadd.f32 0.0, %v3691
        %v3693 = vpop.f32.mrb[0].mxu0
        %3694 = vmatprep.mubr.f32.mxu0 0.0
        %3695 = vmatmul.mubr.f32.gmra.mrb[0].mxu0 %v3501
        %v3696 = vpop.f32.mrb[0].mxu0
        %v3697 = vadd.f32 0.0, %v3696
        %v3698 = vpop.f32.mrb[0].mxu0
        %3699 = vmatprep.mubr.f32.mxu0 0.0
        %3700 = vmatmul.mubr.f32.gmra.mrb[0].mxu0 %v3504
        %v3701 = vpop.f32.mrb[0].mxu0
        %v3702 = vadd.f32 0.0, %v3701
        %v3703 = vpop.f32.mrb[0].mxu0
        %3704 = vmatprep.mubr.f32.mxu0 0.0
        %3705 = vmatmul.mubr.f32.gmra.mrb[0].mxu0 %v3507
        %v3706 = vpop.f32.mrb[0].mxu0
        %v3707 = vadd.f32 0.0, %v3706
        %v3708 = vpop.f32.mrb[0].mxu0
        %3709 = vmatprep.mubr.f32.mxu0 0.0
        %3710 = vmatmul.mubr.f32.gmra.mrb[0].mxu0 %v3510
        %v3711 = vpop.f32.mrb[0].mxu0
        %v3712 = vadd.f32 0.0, %v3711
        %v3713 = vpop.f32.mrb[0].mxu0
        %3714 = vmatprep.mubr.f32.mxu0 0.0
        %3715 = vmatmul.mubr.f32.gmra.mrb[0].mxu0 %v3513
        %v3716 = vpop.f32.mrb[0].mxu0
        %v3717 = vadd.f32 0.0, %v3716
        %v3718 = vpop.f32.mrb[0].mxu0
        %3719 = vmatprep.mubr.f32.mxu0 0.0
        %3720 = vmatmul.mubr.f32.gmra.mrb[0].mxu0 %v3516
        %v3721 = vpop.f32.mrb[0].mxu0
        %v3722 = vadd.f32 0.0, %v3721
        %v3723 = vpop.f32.mrb[0].mxu0
        %3724 = vmatprep.mubr.f32.mxu0 0.0
        %3725 = vmatmul.mubr.f32.gmra.mrb[0].mxu0 %v3519
        %v3726 = vpop.f32.mrb[0].mxu0
        %v3727 = vadd.f32 0.0, %v3726
        %v3728 = vpop.f32.mrb[0].mxu0
        %3729 = vmatprep.mubr.f32.mxu0 0.0
        %3730 = vmatmul.mubr.f32.gmra.mrb[0].mxu0 %v3522
        %v3731 = vpop.f32.mrb[0].mxu0
        %v3732 = vadd.f32 0.0, %v3731
        %v3733 = vpop.f32.mrb[0].mxu0
        %3734 = vmatprep.mubr.f32.mxu0 0.0
        %3735 = vmatmul.mubr.f32.gmra.mrb[0].mxu0 %v3525
        %v3736 = vpop.f32.mrb[0].mxu0
        %v3737 = vadd.f32 0.0, %v3736
        %v3738 = vpop.f32.mrb[0].mxu0
        %3739 = vmatprep.mubr.f32.mxu0 0.0
        %3740 = vmatmul.mubr.f32.gmra.mrb[0].mxu0 %v3528
        %v3741 = vpop.f32.mrb[0].mxu0
        %v3742 = vadd.f32 0.0, %v3741
        %v3743 = vpop.f32.mrb[0].mxu0
        %3744 = vmatprep.mubr.f32.mxu0 0.0
        %3745 = vmatmul.mubr.f32.gmra.mrb[0].mxu0 %v3531
        %v3746 = vpop.f32.mrb[0].mxu0
        %v3747 = vadd.f32 0.0, %v3746
        %v3748 = vpop.f32.mrb[0].mxu0
        %3749 = vmatprep.mubr.f32.mxu0 0.0
        %3750 = vmatmul.mubr.f32.gmra.mrb[0].mxu0 %v3534
        %v3751 = vpop.f32.mrb[0].mxu0
        %v3752 = vadd.f32 0.0, %v3751
        %v3753 = vpop.f32.mrb[0].mxu0
        %3754 = vmatprep.mubr.f32.mxu0 0.0
        %3755 = vmatmul.mubr.f32.gmra.mrb[0].mxu0 %v3537
        %v3756 = vpop.f32.mrb[0].mxu0
        %v3757 = vadd.f32 0.0, %v3756
        %v3758 = vpop.f32.mrb[0].mxu0
        %3759 = vmatprep.mubr.f32.mxu0 0.0
        %3760 = vmatmul.mubr.f32.gmra.mrb[0].mxu0 %v3540
        %v3761 = vpop.f32.mrb[0].mxu0
        %v3762 = vadd.f32 0.0, %v3761
        %v3763 = vpop.f32.mrb[0].mxu0
        %3764 = vmatprep.mubr.f32.mxu0 0.0
        %3765 = vmatmul.mubr.f32.gmra.mrb[0].mxu0 %v3543
        %v3766 = vpop.f32.mrb[0].mxu0
        %v3767 = vadd.f32 0.0, %v3766
        %v3768 = vpop.f32.mrb[0].mxu0
        %3769 = vdwg.mxu0
        %v3770 = vadd.f32 %v3369, %v3612
        %v3771 = vadd.f32 %v3370, %v3617
        %v3772 = vadd.f32 %v3371, %v3622
        %v3773 = vadd.f32 %v3372, %v3627
        %v3774 = vadd.f32 %v3373, %v3632
        %v3775 = vadd.f32 %v3374, %v3637
        %v3776 = vadd.f32 %v3375, %v3642
        %v3777 = vadd.f32 %v3376, %v3647
        %v3778 = vadd.f32 %v3377, %v3652
        %v3779 = vadd.f32 %v3378, %v3657
        %v3780 = vadd.f32 %v3379, %v3662
        %v3781 = vadd.f32 %v3380, %v3667
        %v3782 = vadd.f32 %v3381, %v3672
        %v3783 = vadd.f32 %v3382, %v3677
        %v3784 = vadd.f32 %v3383, %v3682
        %v3785 = vadd.f32 %v3384, %v3687
        %v3786 = vadd.f32 %v3385, %v3692
        %v3787 = vadd.f32 %v3386, %v3697
        %v3788 = vadd.f32 %v3387, %v3702
        %v3789 = vadd.f32 %v3388, %v3707
        %v3790 = vadd.f32 %v3389, %v3712
        %v3791 = vadd.f32 %v3390, %v3717
        %v3792 = vadd.f32 %v3391, %v3722
        %v3793 = vadd.f32 %v3392, %v3727
        %v3794 = vadd.f32 %v3393, %v3732
        %v3795 = vadd.f32 %v3394, %v3737
        %v3796 = vadd.f32 %v3395, %v3742
        %v3797 = vadd.f32 %v3396, %v3747
        %v3798 = vadd.f32 %v3397, %v3752
        %v3799 = vadd.f32 %v3398, %v3757
        %v3800 = vadd.f32 %v3399, %v3762
        %v3801 = vadd.f32 %v3400, %v3767
        %s3802 = scalar_lea.vmem [#allocation2], 256
        %v3803 = vld [vmem:[%s3802] sm:$0xff]
        %v3804 = vld [vmem:[%s3802 + $0x8] sm:$0xff]
        %v3805 = vld [vmem:[%s3802 + $0x10] sm:$0xff]
        %v3806 = vld [vmem:[%s3802 + $0x18] sm:$0xff]
        %v3807 = vld [vmem:[%s3802 + $0x20] sm:$0xff]
        %v3808 = vld [vmem:[%s3802 + $0x28] sm:$0xff]
        %v3809 = vld [vmem:[%s3802 + $0x30] sm:$0xff]
        %v3810 = vld [vmem:[%s3802 + $0x38] sm:$0xff]
        %v3811 = vsel %vm629, %v1810, 0
        %v3813 = vsel %vm629, %v1811, 0
        %3815 = vmatprep.subr.mxu0 0.0
        %3816 = vmatpush1.msra.mxu0 %v3803
        %3817 = vmatprep.subr.mxu0 0.0
        %3818 = vmatpush1.msra.mxu0 %v3804
        %3819 = vmatprep.subr.mxu0 0.0
        %3820 = vmatpush1.msra.mxu0 %v3805
        %3821 = vmatprep.subr.mxu0 0.0
        %3822 = vmatpush1.msra.mxu0 %v3806
        %3823 = vmatprep.subr.mxu0 0.0
        %3824 = vmatpush1.msra.mxu0 %v3807
        %3825 = vmatprep.subr.mxu0 0.0
        %3826 = vmatpush1.msra.mxu0 %v3808
        %3827 = vmatprep.subr.mxu0 0.0
        %3828 = vmatpush1.msra.mxu0 %v3809
        %3829 = vmatprep.subr.mxu0 0.0
        %3830 = vmatpush1.msra.mxu0 %v3810
        %3831 = vmatprep.subr.mxu0 0.0
        %3832 = vmatpush1.msra.mxu0 0.0
        %3833 = vmatprep.subr.mxu0 0.0
        %3834 = vmatpush1.msra.mxu0 0.0
        %3835 = vmatprep.subr.mxu0 0.0
        %3836 = vmatpush1.msra.mxu0 0.0
        %3837 = vmatprep.subr.mxu0 0.0
        %3838 = vmatpush1.msra.mxu0 0.0
        %3839 = vmatprep.subr.mxu0 0.0
        %3840 = vmatpush1.msra.mxu0 0.0
        %3841 = vmatprep.subr.mxu0 0.0
        %3842 = vmatpush1.msra.mxu0 0.0
        %3843 = vmatprep.subr.mxu0 0.0
        %3844 = vmatpush1.msra.mxu0 0.0
        %3845 = vmatprep.subr.mxu0 0.0
        %3846 = vmatpush1.msra.mxu0 0.0
        %3847 = vmatprep.subr.mxu0 0.0
        %3848 = vmatpush1.msra.mxu0 0.0
        %3849 = vmatprep.subr.mxu0 0.0
        %3850 = vmatpush1.msra.mxu0 0.0
        %3851 = vmatprep.subr.mxu0 0.0
        %3852 = vmatpush1.msra.mxu0 0.0
        %3853 = vmatprep.subr.mxu0 0.0
        %3854 = vmatpush1.msra.mxu0 0.0
        %3855 = vmatprep.subr.mxu0 0.0
        %3856 = vmatpush1.msra.mxu0 0.0
        %3857 = vmatprep.subr.mxu0 0.0
        %3858 = vmatpush1.msra.mxu0 0.0
        %3859 = vmatprep.subr.mxu0 0.0
        %3860 = vmatpush1.msra.mxu0 0.0
        %3861 = vmatprep.subr.mxu0 0.0
        %3862 = vmatpush1.msra.mxu0 0.0
        %3863 = vmatprep.subr.mxu0 0.0
        %3864 = vmatpush1.msra.mxu0 0.0
        %3865 = vmatprep.subr.mxu0 0.0
        %3866 = vmatpush1.msra.mxu0 0.0
        %3867 = vmatprep.subr.mxu0 0.0
        %3868 = vmatpush1.msra.mxu0 0.0
        %3869 = vmatprep.subr.mxu0 0.0
        %3870 = vmatpush1.msra.mxu0 0.0
        %3871 = vmatprep.subr.mxu0 0.0
        %3872 = vmatpush1.msra.mxu0 0.0
        %3873 = vmatprep.subr.mxu0 0.0
        %3874 = vmatpush1.msra.mxu0 0.0
        %3875 = vmatprep.subr.mxu0 0.0
        %3876 = vmatpush1.msra.mxu0 0.0
        %3877 = vmatprep.subr.mxu0 0.0
        %3878 = vmatpush1.msra.mxu0 0.0
        %3879 = vmatprep.mubr.f32.mxu0 0.0
        %3880 = vmatmul.mubr.f32.gmra.mrb[0].mxu0 %v2146
        %v3881 = vpop.f32.mrb[0].mxu0
        %v3882 = vadd.f32 0.0, %v3881
        %v3883 = vpop.f32.mrb[0].mxu0
        %3884 = vmatprep.mubr.f32.mxu0 0.0
        %3885 = vmatmul.mubr.f32.gmra.mrb[0].mxu0 %v2148
        %v3886 = vpop.f32.mrb[0].mxu0
        %v3887 = vadd.f32 0.0, %v3886
        %v3888 = vpop.f32.mrb[0].mxu0
        %3889 = vmatprep.mubr.f32.mxu0 0.0
        %3890 = vmatmul.mubr.f32.gmra.mrb[0].mxu0 %v2150
        %v3891 = vpop.f32.mrb[0].mxu0
        %v3892 = vadd.f32 0.0, %v3891
        %v3893 = vpop.f32.mrb[0].mxu0
        %3894 = vmatprep.mubr.f32.mxu0 0.0
        %3895 = vmatmul.mubr.f32.gmra.mrb[0].mxu0 %v2152
        %v3896 = vpop.f32.mrb[0].mxu0
        %v3897 = vadd.f32 0.0, %v3896
        %v3898 = vpop.f32.mrb[0].mxu0
        %3899 = vmatprep.mubr.f32.mxu0 0.0
        %3900 = vmatmul.mubr.f32.gmra.mrb[0].mxu0 %v2154
        %v3901 = vpop.f32.mrb[0].mxu0
        %v3902 = vadd.f32 0.0, %v3901
        %v3903 = vpop.f32.mrb[0].mxu0
        %3904 = vmatprep.mubr.f32.mxu0 0.0
        %3905 = vmatmul.mubr.f32.gmra.mrb[0].mxu0 %v2156
        %v3906 = vpop.f32.mrb[0].mxu0
        %v3907 = vadd.f32 0.0, %v3906
        %v3908 = vpop.f32.mrb[0].mxu0
        %3909 = vmatprep.mubr.f32.mxu0 0.0
        %3910 = vmatmul.mubr.f32.gmra.mrb[0].mxu0 %v2158
        %v3911 = vpop.f32.mrb[0].mxu0
        %v3912 = vadd.f32 0.0, %v3911
        %v3913 = vpop.f32.mrb[0].mxu0
        %3914 = vmatprep.mubr.f32.mxu0 0.0
        %3915 = vmatmul.mubr.f32.gmra.mrb[0].mxu0 %v2160
        %v3916 = vpop.f32.mrb[0].mxu0
        %v3917 = vadd.f32 0.0, %v3916
        %v3918 = vpop.f32.mrb[0].mxu0
        %3919 = vmatprep.mubr.f32.mxu0 0.0
        %3920 = vmatmul.mubr.f32.gmra.mrb[0].mxu0 %v2162
        %v3921 = vpop.f32.mrb[0].mxu0
        %v3922 = vadd.f32 0.0, %v3921
        %v3923 = vpop.f32.mrb[0].mxu0
        %3924 = vmatprep.mubr.f32.mxu0 0.0
        %3925 = vmatmul.mubr.f32.gmra.mrb[0].mxu0 %v2164
        %v3926 = vpop.f32.mrb[0].mxu0
        %v3927 = vadd.f32 0.0, %v3926
        %v3928 = vpop.f32.mrb[0].mxu0
        %3929 = vmatprep.mubr.f32.mxu0 0.0
        %3930 = vmatmul.mubr.f32.gmra.mrb[0].mxu0 %v2166
        %v3931 = vpop.f32.mrb[0].mxu0
        %v3932 = vadd.f32 0.0, %v3931
        %v3933 = vpop.f32.mrb[0].mxu0
        %3934 = vmatprep.mubr.f32.mxu0 0.0
        %3935 = vmatmul.mubr.f32.gmra.mrb[0].mxu0 %v2168
        %v3936 = vpop.f32.mrb[0].mxu0
        %v3937 = vadd.f32 0.0, %v3936
        %v3938 = vpop.f32.mrb[0].mxu0
        %3939 = vmatprep.mubr.f32.mxu0 0.0
        %3940 = vmatmul.mubr.f32.gmra.mrb[0].mxu0 %v2170
        %v3941 = vpop.f32.mrb[0].mxu0
        %v3942 = vadd.f32 0.0, %v3941
        %v3943 = vpop.f32.mrb[0].mxu0
        %3944 = vmatprep.mubr.f32.mxu0 0.0
        %3945 = vmatmul.mubr.f32.gmra.mrb[0].mxu0 %v2172
        %v3946 = vpop.f32.mrb[0].mxu0
        %v3947 = vadd.f32 0.0, %v3946
        %v3948 = vpop.f32.mrb[0].mxu0
        %3949 = vmatprep.mubr.f32.mxu0 0.0
        %3950 = vmatmul.mubr.f32.gmra.mrb[0].mxu0 %v2174
        %v3951 = vpop.f32.mrb[0].mxu0
        %v3952 = vadd.f32 0.0, %v3951
        %v3953 = vpop.f32.mrb[0].mxu0
        %3954 = vmatprep.mubr.f32.mxu0 0.0
        %3955 = vmatmul.mubr.f32.gmra.mrb[0].mxu0 %v2176
        %v3956 = vpop.f32.mrb[0].mxu0
        %v3957 = vadd.f32 0.0, %v3956
        %v3958 = vpop.f32.mrb[0].mxu0
        %3959 = vmatprep.mubr.f32.mxu0 0.0
        %3960 = vmatmul.mubr.f32.gmra.mrb[0].mxu0 %v2178
        %v3961 = vpop.f32.mrb[0].mxu0
        %v3962 = vadd.f32 0.0, %v3961
        %v3963 = vpop.f32.mrb[0].mxu0
        %3964 = vmatprep.mubr.f32.mxu0 0.0
        %3965 = vmatmul.mubr.f32.gmra.mrb[0].mxu0 %v2180
        %v3966 = vpop.f32.mrb[0].mxu0
        %v3967 = vadd.f32 0.0, %v3966
        %v3968 = vpop.f32.mrb[0].mxu0
        %3969 = vmatprep.mubr.f32.mxu0 0.0
        %3970 = vmatmul.mubr.f32.gmra.mrb[0].mxu0 %v2182
        %v3971 = vpop.f32.mrb[0].mxu0
        %v3972 = vadd.f32 0.0, %v3971
        %v3973 = vpop.f32.mrb[0].mxu0
        %3974 = vmatprep.mubr.f32.mxu0 0.0
        %3975 = vmatmul.mubr.f32.gmra.mrb[0].mxu0 %v2184
        %v3976 = vpop.f32.mrb[0].mxu0
        %v3977 = vadd.f32 0.0, %v3976
        %v3978 = vpop.f32.mrb[0].mxu0
        %3979 = vmatprep.mubr.f32.mxu0 0.0
        %3980 = vmatmul.mubr.f32.gmra.mrb[0].mxu0 %v2186
        %v3981 = vpop.f32.mrb[0].mxu0
        %v3982 = vadd.f32 0.0, %v3981
        %v3983 = vpop.f32.mrb[0].mxu0
        %3984 = vmatprep.mubr.f32.mxu0 0.0
        %3985 = vmatmul.mubr.f32.gmra.mrb[0].mxu0 %v2188
        %v3986 = vpop.f32.mrb[0].mxu0
        %v3987 = vadd.f32 0.0, %v3986
        %v3988 = vpop.f32.mrb[0].mxu0
        %3989 = vmatprep.mubr.f32.mxu0 0.0
        %3990 = vmatmul.mubr.f32.gmra.mrb[0].mxu0 %v2190
        %v3991 = vpop.f32.mrb[0].mxu0
        %v3992 = vadd.f32 0.0, %v3991
        %v3993 = vpop.f32.mrb[0].mxu0
        %3994 = vmatprep.mubr.f32.mxu0 0.0
        %3995 = vmatmul.mubr.f32.gmra.mrb[0].mxu0 %v2192
        %v3996 = vpop.f32.mrb[0].mxu0
        %v3997 = vadd.f32 0.0, %v3996
        %v3998 = vpop.f32.mrb[0].mxu0
        %3999 = vmatprep.mubr.f32.mxu0 0.0
        %4000 = vmatmul.mubr.f32.gmra.mrb[0].mxu0 %v2194
        %v4001 = vpop.f32.mrb[0].mxu0
        %v4002 = vadd.f32 0.0, %v4001
        %v4003 = vpop.f32.mrb[0].mxu0
        %4004 = vmatprep.mubr.f32.mxu0 0.0
        %4005 = vmatmul.mubr.f32.gmra.mrb[0].mxu0 %v2196
        %v4006 = vpop.f32.mrb[0].mxu0
        %v4007 = vadd.f32 0.0, %v4006
        %v4008 = vpop.f32.mrb[0].mxu0
        %4009 = vmatprep.mubr.f32.mxu0 0.0
        %4010 = vmatmul.mubr.f32.gmra.mrb[0].mxu0 %v2198
        %v4011 = vpop.f32.mrb[0].mxu0
        %v4012 = vadd.f32 0.0, %v4011
        %v4013 = vpop.f32.mrb[0].mxu0
        %4014 = vmatprep.mubr.f32.mxu0 0.0
        %4015 = vmatmul.mubr.f32.gmra.mrb[0].mxu0 %v2200
        %v4016 = vpop.f32.mrb[0].mxu0
        %v4017 = vadd.f32 0.0, %v4016
        %v4018 = vpop.f32.mrb[0].mxu0
        %4019 = vmatprep.mubr.f32.mxu0 0.0
        %4020 = vmatmul.mubr.f32.gmra.mrb[0].mxu0 %v2202
        %v4021 = vpop.f32.mrb[0].mxu0
        %v4022 = vadd.f32 0.0, %v4021
        %v4023 = vpop.f32.mrb[0].mxu0
        %4024 = vmatprep.mubr.f32.mxu0 0.0
        %4025 = vmatmul.mubr.f32.gmra.mrb[0].mxu0 %v2204
        %v4026 = vpop.f32.mrb[0].mxu0
        %v4027 = vadd.f32 0.0, %v4026
        %v4028 = vpop.f32.mrb[0].mxu0
        %4029 = vmatprep.mubr.f32.mxu0 0.0
        %4030 = vmatmul.mubr.f32.gmra.mrb[0].mxu0 %v3811
        %v4031 = vpop.f32.mrb[0].mxu0
        %v4032 = vadd.f32 0.0, %v4031
        %v4033 = vpop.f32.mrb[0].mxu0
        %4034 = vmatprep.mubr.f32.mxu0 0.0
        %4035 = vmatmul.mubr.f32.gmra.mrb[0].mxu0 %v3813
        %v4036 = vpop.f32.mrb[0].mxu0
        %v4037 = vadd.f32 0.0, %v4036
        %v4038 = vpop.f32.mrb[0].mxu0
        %4039 = vdwg.mxu0
        %v4040 = vadd.f32 %v3770, %v3882
        %v4041 = vadd.f32 %v3771, %v3887
        %v4042 = vadd.f32 %v3772, %v3892
        %v4043 = vadd.f32 %v3773, %v3897
        %v4044 = vadd.f32 %v3774, %v3902
        %v4045 = vadd.f32 %v3775, %v3907
        %v4046 = vadd.f32 %v3776, %v3912
        %v4047 = vadd.f32 %v3777, %v3917
        %v4048 = vadd.f32 %v3778, %v3922
        %v4049 = vadd.f32 %v3779, %v3927
        %v4050 = vadd.f32 %v3780, %v3932
        %v4051 = vadd.f32 %v3781, %v3937
        %v4052 = vadd.f32 %v3782, %v3942
        %v4053 = vadd.f32 %v3783, %v3947
        %v4054 = vadd.f32 %v3784, %v3952
        %v4055 = vadd.f32 %v3785, %v3957
        %v4056 = vadd.f32 %v3786, %v3962
        %v4057 = vadd.f32 %v3787, %v3967
        %v4058 = vadd.f32 %v3788, %v3972
        %v4059 = vadd.f32 %v3789, %v3977
        %v4060 = vadd.f32 %v3790, %v3982
        %v4061 = vadd.f32 %v3791, %v3987
        %v4062 = vadd.f32 %v3792, %v3992
        %v4063 = vadd.f32 %v3793, %v3997
        %v4064 = vadd.f32 %v3794, %v4002
        %v4065 = vadd.f32 %v3795, %v4007
        %v4066 = vadd.f32 %v3796, %v4012
        %v4067 = vadd.f32 %v3797, %v4017
        %v4068 = vadd.f32 %v3798, %v4022
        %v4069 = vadd.f32 %v3799, %v4027
        %v4070 = vadd.f32 %v3800, %v4032
        %v4071 = vadd.f32 %v3801, %v4037
        %v4072 = vrot.slane %v1811, 1
        %v4073 = vsel %vm2753, %v2813, %v4072
        %v4076 = vsel %vm2753, %v4072, 0.0
        %v4077 = vmul.f32 %v2756, %v2850
        %v4078 = vmul.f32 %v2758, %v2855
        %v4079 = vmul.f32 %v2760, %v2860
        %v4080 = vmul.f32 %v2762, %v2865
        %v4081 = vmul.f32 %v2764, %v2870
        %v4082 = vmul.f32 %v2766, %v2875
        %v4083 = vmul.f32 %v2768, %v2880
        %v4084 = vmul.f32 %v2770, %v2885
        %v4085 = vmul.f32 %v2772, %v2890
        %v4086 = vmul.f32 %v2774, %v2895
        %v4087 = vmul.f32 %v2776, %v2900
        %v4088 = vmul.f32 %v2778, %v2905
        %v4089 = vmul.f32 %v2780, %v2910
        %v4090 = vmul.f32 %v2782, %v2915
        %v4091 = vmul.f32 %v2784, %v2920
        %v4092 = vmul.f32 %v2786, %v2925
        %v4093 = vmul.f32 %v2788, %v2930
        %v4094 = vmul.f32 %v2790, %v2935
        %v4095 = vmul.f32 %v2792, %v2940
        %v4096 = vmul.f32 %v2794, %v2945
        %v4097 = vmul.f32 %v2796, %v2950
        %v4098 = vmul.f32 %v2798, %v2955
        %v4099 = vmul.f32 %v2800, %v2960
        %v4100 = vmul.f32 %v2802, %v2965
        %v4101 = vmul.f32 %v2804, %v2970
        %v4102 = vmul.f32 %v2806, %v2975
        %v4103 = vmul.f32 %v2808, %v2980
        %v4104 = vmul.f32 %v2810, %v2985
        %v4105 = vmul.f32 %v2812, %v2990
        %v4106 = vmul.f32 %v2814, %v2995
        %v4107 = vmul.f32 %v4073, %v3000
        %v4108 = vmul.f32 %v4076, %v3005
        %s4109 = scalar_lea.vmem [#allocation2], 320
        %v4110 = vld [vmem:[%s4109] sm:$0xff]
        %v4111 = vld [vmem:[%s4109 + $0x8] sm:$0xff]
        %v4112 = vld [vmem:[%s4109 + $0x10] sm:$0xff]
        %v4113 = vld [vmem:[%s4109 + $0x18] sm:$0xff]
        %v4114 = vld [vmem:[%s4109 + $0x20] sm:$0xff]
        %v4115 = vld [vmem:[%s4109 + $0x28] sm:$0xff]
        %v4116 = vld [vmem:[%s4109 + $0x30] sm:$0xff]
        %v4117 = vld [vmem:[%s4109 + $0x38] sm:$0xff]
        %v4119 = vsel %vm629, %v4077, 0
        %v4122 = vsel %vm629, %v4078, 0
        %v4125 = vsel %vm629, %v4079, 0
        %v4128 = vsel %vm629, %v4080, 0
        %v4131 = vsel %vm629, %v4081, 0
        %v4134 = vsel %vm629, %v4082, 0
        %v4137 = vsel %vm629, %v4083, 0
        %v4140 = vsel %vm629, %v4084, 0
        %v4143 = vsel %vm629, %v4085, 0
        %v4146 = vsel %vm629, %v4086, 0
        %v4149 = vsel %vm629, %v4087, 0
        %v4152 = vsel %vm629, %v4088, 0
        %v4155 = vsel %vm629, %v4089, 0
        %v4158 = vsel %vm629, %v4090, 0
        %v4161 = vsel %vm629, %v4091, 0
        %v4164 = vsel %vm629, %v4092, 0
        %v4167 = vsel %vm629, %v4093, 0
        %v4170 = vsel %vm629, %v4094, 0
        %v4173 = vsel %vm629, %v4095, 0
        %v4176 = vsel %vm629, %v4096, 0
        %v4179 = vsel %vm629, %v4097, 0
        %v4182 = vsel %vm629, %v4098, 0
        %v4185 = vsel %vm629, %v4099, 0
        %v4188 = vsel %vm629, %v4100, 0
        %v4191 = vsel %vm629, %v4101, 0
        %v4194 = vsel %vm629, %v4102, 0
        %v4197 = vsel %vm629, %v4103, 0
        %v4200 = vsel %vm629, %v4104, 0
        %v4203 = vsel %vm629, %v4105, 0
        %v4206 = vsel %vm629, %v4106, 0
        %v4209 = vsel %vm629, %v4107, 0
        %v4212 = vsel %vm629, %v4108, 0
        %4214 = vmatprep.subr.mxu0 0.0
        %4215 = vmatpush1.msra.mxu0 %v4110
        %4216 = vmatprep.subr.mxu0 0.0
        %4217 = vmatpush1.msra.mxu0 %v4111
        %4218 = vmatprep.subr.mxu0 0.0
        %4219 = vmatpush1.msra.mxu0 %v4112
        %4220 = vmatprep.subr.mxu0 0.0
        %4221 = vmatpush1.msra.mxu0 %v4113
        %4222 = vmatprep.subr.mxu0 0.0
        %4223 = vmatpush1.msra.mxu0 %v4114
        %4224 = vmatprep.subr.mxu0 0.0
        %4225 = vmatpush1.msra.mxu0 %v4115
        %4226 = vmatprep.subr.mxu0 0.0
        %4227 = vmatpush1.msra.mxu0 %v4116
        %4228 = vmatprep.subr.mxu0 0.0
        %4229 = vmatpush1.msra.mxu0 %v4117
        %4230 = vmatprep.subr.mxu0 0.0
        %4231 = vmatpush1.msra.mxu0 0.0
        %4232 = vmatprep.subr.mxu0 0.0
        %4233 = vmatpush1.msra.mxu0 0.0
        %4234 = vmatprep.subr.mxu0 0.0
        %4235 = vmatpush1.msra.mxu0 0.0
        %4236 = vmatprep.subr.mxu0 0.0
        %4237 = vmatpush1.msra.mxu0 0.0
        %4238 = vmatprep.subr.mxu0 0.0
        %4239 = vmatpush1.msra.mxu0 0.0
        %4240 = vmatprep.subr.mxu0 0.0
        %4241 = vmatpush1.msra.mxu0 0.0
        %4242 = vmatprep.subr.mxu0 0.0
        %4243 = vmatpush1.msra.mxu0 0.0
        %4244 = vmatprep.subr.mxu0 0.0
        %4245 = vmatpush1.msra.mxu0 0.0
        %4246 = vmatprep.subr.mxu0 0.0
        %4247 = vmatpush1.msra.mxu0 0.0
        %4248 = vmatprep.subr.mxu0 0.0
        %4249 = vmatpush1.msra.mxu0 0.0
        %4250 = vmatprep.subr.mxu0 0.0
        %4251 = vmatpush1.msra.mxu0 0.0
        %4252 = vmatprep.subr.mxu0 0.0
        %4253 = vmatpush1.msra.mxu0 0.0
        %4254 = vmatprep.subr.mxu0 0.0
        %4255 = vmatpush1.msra.mxu0 0.0
        %4256 = vmatprep.subr.mxu0 0.0
        %4257 = vmatpush1.msra.mxu0 0.0
        %4258 = vmatprep.subr.mxu0 0.0
        %4259 = vmatpush1.msra.mxu0 0.0
        %4260 = vmatprep.subr.mxu0 0.0
        %4261 = vmatpush1.msra.mxu0 0.0
        %4262 = vmatprep.subr.mxu0 0.0
        %4263 = vmatpush1.msra.mxu0 0.0
        %4264 = vmatprep.subr.mxu0 0.0
        %4265 = vmatpush1.msra.mxu0 0.0
        %4266 = vmatprep.subr.mxu0 0.0
        %4267 = vmatpush1.msra.mxu0 0.0
        %4268 = vmatprep.subr.mxu0 0.0
        %4269 = vmatpush1.msra.mxu0 0.0
        %4270 = vmatprep.subr.mxu0 0.0
        %4271 = vmatpush1.msra.mxu0 0.0
        %4272 = vmatprep.subr.mxu0 0.0
        %4273 = vmatpush1.msra.mxu0 0.0
        %4274 = vmatprep.subr.mxu0 0.0
        %4275 = vmatpush1.msra.mxu0 0.0
        %4276 = vmatprep.subr.mxu0 0.0
        %4277 = vmatpush1.msra.mxu0 0.0
        %4278 = vmatprep.mubr.f32.mxu0 0.0
        %4279 = vmatmul.mubr.f32.gmra.mrb[0].mxu0 %v4119
        %v4280 = vpop.f32.mrb[0].mxu0
        %v4281 = vadd.f32 0.0, %v4280
        %v4282 = vpop.f32.mrb[0].mxu0
        %4283 = vmatprep.mubr.f32.mxu0 0.0
        %4284 = vmatmul.mubr.f32.gmra.mrb[0].mxu0 %v4122
        %v4285 = vpop.f32.mrb[0].mxu0
        %v4286 = vadd.f32 0.0, %v4285
        %v4287 = vpop.f32.mrb[0].mxu0
        %4288 = vmatprep.mubr.f32.mxu0 0.0
        %4289 = vmatmul.mubr.f32.gmra.mrb[0].mxu0 %v4125
        %v4290 = vpop.f32.mrb[0].mxu0
        %v4291 = vadd.f32 0.0, %v4290
        %v4292 = vpop.f32.mrb[0].mxu0
        %4293 = vmatprep.mubr.f32.mxu0 0.0
        %4294 = vmatmul.mubr.f32.gmra.mrb[0].mxu0 %v4128
        %v4295 = vpop.f32.mrb[0].mxu0
        %v4296 = vadd.f32 0.0, %v4295
        %v4297 = vpop.f32.mrb[0].mxu0
        %4298 = vmatprep.mubr.f32.mxu0 0.0
        %4299 = vmatmul.mubr.f32.gmra.mrb[0].mxu0 %v4131
        %v4300 = vpop.f32.mrb[0].mxu0
        %v4301 = vadd.f32 0.0, %v4300
        %v4302 = vpop.f32.mrb[0].mxu0
        %4303 = vmatprep.mubr.f32.mxu0 0.0
        %4304 = vmatmul.mubr.f32.gmra.mrb[0].mxu0 %v4134
        %v4305 = vpop.f32.mrb[0].mxu0
        %v4306 = vadd.f32 0.0, %v4305
        %v4307 = vpop.f32.mrb[0].mxu0
        %4308 = vmatprep.mubr.f32.mxu0 0.0
        %4309 = vmatmul.mubr.f32.gmra.mrb[0].mxu0 %v4137
        %v4310 = vpop.f32.mrb[0].mxu0
        %v4311 = vadd.f32 0.0, %v4310
        %v4312 = vpop.f32.mrb[0].mxu0
        %4313 = vmatprep.mubr.f32.mxu0 0.0
        %4314 = vmatmul.mubr.f32.gmra.mrb[0].mxu0 %v4140
        %v4315 = vpop.f32.mrb[0].mxu0
        %v4316 = vadd.f32 0.0, %v4315
        %v4317 = vpop.f32.mrb[0].mxu0
        %4318 = vmatprep.mubr.f32.mxu0 0.0
        %4319 = vmatmul.mubr.f32.gmra.mrb[0].mxu0 %v4143
        %v4320 = vpop.f32.mrb[0].mxu0
        %v4321 = vadd.f32 0.0, %v4320
        %v4322 = vpop.f32.mrb[0].mxu0
        %4323 = vmatprep.mubr.f32.mxu0 0.0
        %4324 = vmatmul.mubr.f32.gmra.mrb[0].mxu0 %v4146
        %v4325 = vpop.f32.mrb[0].mxu0
        %v4326 = vadd.f32 0.0, %v4325
        %v4327 = vpop.f32.mrb[0].mxu0
        %4328 = vmatprep.mubr.f32.mxu0 0.0
        %4329 = vmatmul.mubr.f32.gmra.mrb[0].mxu0 %v4149
        %v4330 = vpop.f32.mrb[0].mxu0
        %v4331 = vadd.f32 0.0, %v4330
        %v4332 = vpop.f32.mrb[0].mxu0
        %4333 = vmatprep.mubr.f32.mxu0 0.0
        %4334 = vmatmul.mubr.f32.gmra.mrb[0].mxu0 %v4152
        %v4335 = vpop.f32.mrb[0].mxu0
        %v4336 = vadd.f32 0.0, %v4335
        %v4337 = vpop.f32.mrb[0].mxu0
        %4338 = vmatprep.mubr.f32.mxu0 0.0
        %4339 = vmatmul.mubr.f32.gmra.mrb[0].mxu0 %v4155
        %v4340 = vpop.f32.mrb[0].mxu0
        %v4341 = vadd.f32 0.0, %v4340
        %v4342 = vpop.f32.mrb[0].mxu0
        %4343 = vmatprep.mubr.f32.mxu0 0.0
        %4344 = vmatmul.mubr.f32.gmra.mrb[0].mxu0 %v4158
        %v4345 = vpop.f32.mrb[0].mxu0
        %v4346 = vadd.f32 0.0, %v4345
        %v4347 = vpop.f32.mrb[0].mxu0
        %4348 = vmatprep.mubr.f32.mxu0 0.0
        %4349 = vmatmul.mubr.f32.gmra.mrb[0].mxu0 %v4161
        %v4350 = vpop.f32.mrb[0].mxu0
        %v4351 = vadd.f32 0.0, %v4350
        %v4352 = vpop.f32.mrb[0].mxu0
        %4353 = vmatprep.mubr.f32.mxu0 0.0
        %4354 = vmatmul.mubr.f32.gmra.mrb[0].mxu0 %v4164
        %v4355 = vpop.f32.mrb[0].mxu0
        %v4356 = vadd.f32 0.0, %v4355
        %v4357 = vpop.f32.mrb[0].mxu0
        %4358 = vmatprep.mubr.f32.mxu0 0.0
        %4359 = vmatmul.mubr.f32.gmra.mrb[0].mxu0 %v4167
        %v4360 = vpop.f32.mrb[0].mxu0
        %v4361 = vadd.f32 0.0, %v4360
        %v4362 = vpop.f32.mrb[0].mxu0
        %4363 = vmatprep.mubr.f32.mxu0 0.0
        %4364 = vmatmul.mubr.f32.gmra.mrb[0].mxu0 %v4170
        %v4365 = vpop.f32.mrb[0].mxu0
        %v4366 = vadd.f32 0.0, %v4365
        %v4367 = vpop.f32.mrb[0].mxu0
        %4368 = vmatprep.mubr.f32.mxu0 0.0
        %4369 = vmatmul.mubr.f32.gmra.mrb[0].mxu0 %v4173
        %v4370 = vpop.f32.mrb[0].mxu0
        %v4371 = vadd.f32 0.0, %v4370
        %v4372 = vpop.f32.mrb[0].mxu0
        %4373 = vmatprep.mubr.f32.mxu0 0.0
        %4374 = vmatmul.mubr.f32.gmra.mrb[0].mxu0 %v4176
        %v4375 = vpop.f32.mrb[0].mxu0
        %v4376 = vadd.f32 0.0, %v4375
        %v4377 = vpop.f32.mrb[0].mxu0
        %4378 = vmatprep.mubr.f32.mxu0 0.0
        %4379 = vmatmul.mubr.f32.gmra.mrb[0].mxu0 %v4179
        %v4380 = vpop.f32.mrb[0].mxu0
        %v4381 = vadd.f32 0.0, %v4380
        %v4382 = vpop.f32.mrb[0].mxu0
        %4383 = vmatprep.mubr.f32.mxu0 0.0
        %4384 = vmatmul.mubr.f32.gmra.mrb[0].mxu0 %v4182
        %v4385 = vpop.f32.mrb[0].mxu0
        %v4386 = vadd.f32 0.0, %v4385
        %v4387 = vpop.f32.mrb[0].mxu0
        %4388 = vmatprep.mubr.f32.mxu0 0.0
        %4389 = vmatmul.mubr.f32.gmra.mrb[0].mxu0 %v4185
        %v4390 = vpop.f32.mrb[0].mxu0
        %v4391 = vadd.f32 0.0, %v4390
        %v4392 = vpop.f32.mrb[0].mxu0
        %4393 = vmatprep.mubr.f32.mxu0 0.0
        %4394 = vmatmul.mubr.f32.gmra.mrb[0].mxu0 %v4188
        %v4395 = vpop.f32.mrb[0].mxu0
        %v4396 = vadd.f32 0.0, %v4395
        %v4397 = vpop.f32.mrb[0].mxu0
        %4398 = vmatprep.mubr.f32.mxu0 0.0
        %4399 = vmatmul.mubr.f32.gmra.mrb[0].mxu0 %v4191
        %v4400 = vpop.f32.mrb[0].mxu0
        %v4401 = vadd.f32 0.0, %v4400
        %v4402 = vpop.f32.mrb[0].mxu0
        %4403 = vmatprep.mubr.f32.mxu0 0.0
        %4404 = vmatmul.mubr.f32.gmra.mrb[0].mxu0 %v4194
        %v4405 = vpop.f32.mrb[0].mxu0
        %v4406 = vadd.f32 0.0, %v4405
        %v4407 = vpop.f32.mrb[0].mxu0
        %4408 = vmatprep.mubr.f32.mxu0 0.0
        %4409 = vmatmul.mubr.f32.gmra.mrb[0].mxu0 %v4197
        %v4410 = vpop.f32.mrb[0].mxu0
        %v4411 = vadd.f32 0.0, %v4410
        %v4412 = vpop.f32.mrb[0].mxu0
        %4413 = vmatprep.mubr.f32.mxu0 0.0
        %4414 = vmatmul.mubr.f32.gmra.mrb[0].mxu0 %v4200
        %v4415 = vpop.f32.mrb[0].mxu0
        %v4416 = vadd.f32 0.0, %v4415
        %v4417 = vpop.f32.mrb[0].mxu0
        %4418 = vmatprep.mubr.f32.mxu0 0.0
        %4419 = vmatmul.mubr.f32.gmra.mrb[0].mxu0 %v4203
        %v4420 = vpop.f32.mrb[0].mxu0
        %v4421 = vadd.f32 0.0, %v4420
        %v4422 = vpop.f32.mrb[0].mxu0
        %4423 = vmatprep.mubr.f32.mxu0 0.0
        %4424 = vmatmul.mubr.f32.gmra.mrb[0].mxu0 %v4206
        %v4425 = vpop.f32.mrb[0].mxu0
        %v4426 = vadd.f32 0.0, %v4425
        %v4427 = vpop.f32.mrb[0].mxu0
        %4428 = vmatprep.mubr.f32.mxu0 0.0
        %4429 = vmatmul.mubr.f32.gmra.mrb[0].mxu0 %v4209
        %v4430 = vpop.f32.mrb[0].mxu0
        %v4431 = vadd.f32 0.0, %v4430
        %v4432 = vpop.f32.mrb[0].mxu0
        %4433 = vmatprep.mubr.f32.mxu0 0.0
        %4434 = vmatmul.mubr.f32.gmra.mrb[0].mxu0 %v4212
        %v4435 = vpop.f32.mrb[0].mxu0
        %v4436 = vadd.f32 0.0, %v4435
        %v4437 = vpop.f32.mrb[0].mxu0
        %4438 = vdwg.mxu0
        %v4439 = vadd.f32 %v4040, %v4281
        %v4440 = vadd.f32 %v4041, %v4286
        %v4441 = vadd.f32 %v4042, %v4291
        %v4442 = vadd.f32 %v4043, %v4296
        %v4443 = vadd.f32 %v4044, %v4301
        %v4444 = vadd.f32 %v4045, %v4306
        %v4445 = vadd.f32 %v4046, %v4311
        %v4446 = vadd.f32 %v4047, %v4316
        %v4447 = vadd.f32 %v4048, %v4321
        %v4448 = vadd.f32 %v4049, %v4326
        %v4449 = vadd.f32 %v4050, %v4331
        %v4450 = vadd.f32 %v4051, %v4336
        %v4451 = vadd.f32 %v4052, %v4341
        %v4452 = vadd.f32 %v4053, %v4346
        %v4453 = vadd.f32 %v4054, %v4351
        %v4454 = vadd.f32 %v4055, %v4356
        %v4455 = vadd.f32 %v4056, %v4361
        %v4456 = vadd.f32 %v4057, %v4366
        %v4457 = vadd.f32 %v4058, %v4371
        %v4458 = vadd.f32 %v4059, %v4376
        %v4459 = vadd.f32 %v4060, %v4381
        %v4460 = vadd.f32 %v4061, %v4386
        %v4461 = vadd.f32 %v4062, %v4391
        %v4462 = vadd.f32 %v4063, %v4396
        %v4463 = vadd.f32 %v4064, %v4401
        %v4464 = vadd.f32 %v4065, %v4406
        %v4465 = vadd.f32 %v4066, %v4411
        %v4466 = vadd.f32 %v4067, %v4416
        %v4467 = vadd.f32 %v4068, %v4421
        %v4468 = vadd.f32 %v4069, %v4426
        %v4469 = vadd.f32 %v4070, %v4431
        %v4470 = vadd.f32 %v4071, %v4436
        %v4472 = vsel %vm1843, %v3404, 0.0
        %v4473 = vmul.f32 %v1848, %v1937
        %v4474 = vmul.f32 %v1850, %v1942
        %v4475 = vmul.f32 %v1852, %v1947
        %v4476 = vmul.f32 %v1854, %v1952
        %v4477 = vmul.f32 %v1856, %v1957
        %v4478 = vmul.f32 %v1858, %v1962
        %v4479 = vmul.f32 %v1860, %v1967
        %v4480 = vmul.f32 %v1862, %v1972
        %v4481 = vmul.f32 %v1864, %v1977
        %v4482 = vmul.f32 %v1866, %v1982
        %v4483 = vmul.f32 %v1868, %v1987
        %v4484 = vmul.f32 %v1870, %v1992
        %v4485 = vmul.f32 %v1872, %v1997
        %v4486 = vmul.f32 %v1874, %v2002
        %v4487 = vmul.f32 %v1876, %v2007
        %v4488 = vmul.f32 %v1878, %v2012
        %v4489 = vmul.f32 %v1880, %v2017
        %v4490 = vmul.f32 %v1882, %v2022
        %v4491 = vmul.f32 %v1884, %v2027
        %v4492 = vmul.f32 %v1886, %v2032
        %v4493 = vmul.f32 %v1888, %v2037
        %v4494 = vmul.f32 %v1890, %v2042
        %v4495 = vmul.f32 %v1892, %v2047
        %v4496 = vmul.f32 %v1894, %v2052
        %v4497 = vmul.f32 %v1896, %v2057
        %v4498 = vmul.f32 %v1898, %v2062
        %v4499 = vmul.f32 %v1900, %v2067
        %v4500 = vmul.f32 %v1902, %v2072
        %v4501 = vmul.f32 %v3403, %v2077
        %v4502 = vmul.f32 %v3405, %v2082
        %v4503 = vmul.f32 %v4472, %v2087
        %v4504 = vmul.f32 %v2092, 0.0
        %s4505 = scalar_lea.vmem [#allocation2], 384
        %v4506 = vld [vmem:[%s4505] sm:$0xff]
        %v4507 = vld [vmem:[%s4505 + $0x8] sm:$0xff]
        %v4508 = vld [vmem:[%s4505 + $0x10] sm:$0xff]
        %v4509 = vld [vmem:[%s4505 + $0x18] sm:$0xff]
        %v4510 = vld [vmem:[%s4505 + $0x20] sm:$0xff]
        %v4511 = vld [vmem:[%s4505 + $0x28] sm:$0xff]
        %v4512 = vld [vmem:[%s4505 + $0x30] sm:$0xff]
        %v4513 = vld [vmem:[%s4505 + $0x38] sm:$0xff]
        %v4515 = vsel %vm629, %v4473, 0
        %v4518 = vsel %vm629, %v4474, 0
        %v4521 = vsel %vm629, %v4475, 0
        %v4524 = vsel %vm629, %v4476, 0
        %v4527 = vsel %vm629, %v4477, 0
        %v4530 = vsel %vm629, %v4478, 0
        %v4533 = vsel %vm629, %v4479, 0
        %v4536 = vsel %vm629, %v4480, 0
        %v4539 = vsel %vm629, %v4481, 0
        %v4542 = vsel %vm629, %v4482, 0
        %v4545 = vsel %vm629, %v4483, 0
        %v4548 = vsel %vm629, %v4484, 0
        %v4551 = vsel %vm629, %v4485, 0
        %v4554 = vsel %vm629, %v4486, 0
        %v4557 = vsel %vm629, %v4487, 0
        %v4560 = vsel %vm629, %v4488, 0
        %v4563 = vsel %vm629, %v4489, 0
        %v4566 = vsel %vm629, %v4490, 0
        %v4569 = vsel %vm629, %v4491, 0
        %v4572 = vsel %vm629, %v4492, 0
        %v4575 = vsel %vm629, %v4493, 0
        %v4578 = vsel %vm629, %v4494, 0
        %v4581 = vsel %vm629, %v4495, 0
        %v4584 = vsel %vm629, %v4496, 0
        %v4587 = vsel %vm629, %v4497, 0
        %v4590 = vsel %vm629, %v4498, 0
        %v4593 = vsel %vm629, %v4499, 0
        %v4596 = vsel %vm629, %v4500, 0
        %v4599 = vsel %vm629, %v4501, 0
        %v4602 = vsel %vm629, %v4502, 0
        %v4605 = vsel %vm629, %v4503, 0
        %v4608 = vsel %vm629, %v4504, 0
        %4610 = vmatprep.subr.mxu0 0.0
        %4611 = vmatpush1.msra.mxu0 %v4506
        %4612 = vmatprep.subr.mxu0 0.0
        %4613 = vmatpush1.msra.mxu0 %v4507
        %4614 = vmatprep.subr.mxu0 0.0
        %4615 = vmatpush1.msra.mxu0 %v4508
        %4616 = vmatprep.subr.mxu0 0.0
        %4617 = vmatpush1.msra.mxu0 %v4509
        %4618 = vmatprep.subr.mxu0 0.0
        %4619 = vmatpush1.msra.mxu0 %v4510
        %4620 = vmatprep.subr.mxu0 0.0
        %4621 = vmatpush1.msra.mxu0 %v4511
        %4622 = vmatprep.subr.mxu0 0.0
        %4623 = vmatpush1.msra.mxu0 %v4512
        %4624 = vmatprep.subr.mxu0 0.0
        %4625 = vmatpush1.msra.mxu0 %v4513
        %4626 = vmatprep.subr.mxu0 0.0
        %4627 = vmatpush1.msra.mxu0 0.0
        %4628 = vmatprep.subr.mxu0 0.0
        %4629 = vmatpush1.msra.mxu0 0.0
        %4630 = vmatprep.subr.mxu0 0.0
        %4631 = vmatpush1.msra.mxu0 0.0
        %4632 = vmatprep.subr.mxu0 0.0
        %4633 = vmatpush1.msra.mxu0 0.0
        %4634 = vmatprep.subr.mxu0 0.0
        %4635 = vmatpush1.msra.mxu0 0.0
        %4636 = vmatprep.subr.mxu0 0.0
        %4637 = vmatpush1.msra.mxu0 0.0
        %4638 = vmatprep.subr.mxu0 0.0
        %4639 = vmatpush1.msra.mxu0 0.0
        %4640 = vmatprep.subr.mxu0 0.0
        %4641 = vmatpush1.msra.mxu0 0.0
        %4642 = vmatprep.subr.mxu0 0.0
        %4643 = vmatpush1.msra.mxu0 0.0
        %4644 = vmatprep.subr.mxu0 0.0
        %4645 = vmatpush1.msra.mxu0 0.0
        %4646 = vmatprep.subr.mxu0 0.0
        %4647 = vmatpush1.msra.mxu0 0.0
        %4648 = vmatprep.subr.mxu0 0.0
        %4649 = vmatpush1.msra.mxu0 0.0
        %4650 = vmatprep.subr.mxu0 0.0
        %4651 = vmatpush1.msra.mxu0 0.0
        %4652 = vmatprep.subr.mxu0 0.0
        %4653 = vmatpush1.msra.mxu0 0.0
        %4654 = vmatprep.subr.mxu0 0.0
        %4655 = vmatpush1.msra.mxu0 0.0
        %4656 = vmatprep.subr.mxu0 0.0
        %4657 = vmatpush1.msra.mxu0 0.0
        %4658 = vmatprep.subr.mxu0 0.0
        %4659 = vmatpush1.msra.mxu0 0.0
        %4660 = vmatprep.subr.mxu0 0.0
        %4661 = vmatpush1.msra.mxu0 0.0
        %4662 = vmatprep.subr.mxu0 0.0
        %4663 = vmatpush1.msra.mxu0 0.0
        %4664 = vmatprep.subr.mxu0 0.0
        %4665 = vmatpush1.msra.mxu0 0.0
        %4666 = vmatprep.subr.mxu0 0.0
        %4667 = vmatpush1.msra.mxu0 0.0
        %4668 = vmatprep.subr.mxu0 0.0
        %4669 = vmatpush1.msra.mxu0 0.0
        %4670 = vmatprep.subr.mxu0 0.0
        %4671 = vmatpush1.msra.mxu0 0.0
        %4672 = vmatprep.subr.mxu0 0.0
        %4673 = vmatpush1.msra.mxu0 0.0
        %4674 = vmatprep.mubr.f32.mxu0 0.0
        %4675 = vmatmul.mubr.f32.gmra.mrb[0].mxu0 %v4515
        %v4676 = vpop.f32.mrb[0].mxu0
        %v4677 = vadd.f32 0.0, %v4676
        %v4678 = vpop.f32.mrb[0].mxu0
        %4679 = vmatprep.mubr.f32.mxu0 0.0
        %4680 = vmatmul.mubr.f32.gmra.mrb[0].mxu0 %v4518
        %v4681 = vpop.f32.mrb[0].mxu0
        %v4682 = vadd.f32 0.0, %v4681
        %v4683 = vpop.f32.mrb[0].mxu0
        %4684 = vmatprep.mubr.f32.mxu0 0.0
        %4685 = vmatmul.mubr.f32.gmra.mrb[0].mxu0 %v4521
        %v4686 = vpop.f32.mrb[0].mxu0
        %v4687 = vadd.f32 0.0, %v4686
        %v4688 = vpop.f32.mrb[0].mxu0
        %4689 = vmatprep.mubr.f32.mxu0 0.0
        %4690 = vmatmul.mubr.f32.gmra.mrb[0].mxu0 %v4524
        %v4691 = vpop.f32.mrb[0].mxu0
        %v4692 = vadd.f32 0.0, %v4691
        %v4693 = vpop.f32.mrb[0].mxu0
        %4694 = vmatprep.mubr.f32.mxu0 0.0
        %4695 = vmatmul.mubr.f32.gmra.mrb[0].mxu0 %v4527
        %v4696 = vpop.f32.mrb[0].mxu0
        %v4697 = vadd.f32 0.0, %v4696
        %v4698 = vpop.f32.mrb[0].mxu0
        %4699 = vmatprep.mubr.f32.mxu0 0.0
        %4700 = vmatmul.mubr.f32.gmra.mrb[0].mxu0 %v4530
        %v4701 = vpop.f32.mrb[0].mxu0
        %v4702 = vadd.f32 0.0, %v4701
        %v4703 = vpop.f32.mrb[0].mxu0
        %4704 = vmatprep.mubr.f32.mxu0 0.0
        %4705 = vmatmul.mubr.f32.gmra.mrb[0].mxu0 %v4533
        %v4706 = vpop.f32.mrb[0].mxu0
        %v4707 = vadd.f32 0.0, %v4706
        %v4708 = vpop.f32.mrb[0].mxu0
        %4709 = vmatprep.mubr.f32.mxu0 0.0
        %4710 = vmatmul.mubr.f32.gmra.mrb[0].mxu0 %v4536
        %v4711 = vpop.f32.mrb[0].mxu0
        %v4712 = vadd.f32 0.0, %v4711
        %v4713 = vpop.f32.mrb[0].mxu0
        %4714 = vmatprep.mubr.f32.mxu0 0.0
        %4715 = vmatmul.mubr.f32.gmra.mrb[0].mxu0 %v4539
        %v4716 = vpop.f32.mrb[0].mxu0
        %v4717 = vadd.f32 0.0, %v4716
        %v4718 = vpop.f32.mrb[0].mxu0
        %4719 = vmatprep.mubr.f32.mxu0 0.0
        %4720 = vmatmul.mubr.f32.gmra.mrb[0].mxu0 %v4542
        %v4721 = vpop.f32.mrb[0].mxu0
        %v4722 = vadd.f32 0.0, %v4721
        %v4723 = vpop.f32.mrb[0].mxu0
        %4724 = vmatprep.mubr.f32.mxu0 0.0
        %4725 = vmatmul.mubr.f32.gmra.mrb[0].mxu0 %v4545
        %v4726 = vpop.f32.mrb[0].mxu0
        %v4727 = vadd.f32 0.0, %v4726
        %v4728 = vpop.f32.mrb[0].mxu0
        %4729 = vmatprep.mubr.f32.mxu0 0.0
        %4730 = vmatmul.mubr.f32.gmra.mrb[0].mxu0 %v4548
        %v4731 = vpop.f32.mrb[0].mxu0
        %v4732 = vadd.f32 0.0, %v4731
        %v4733 = vpop.f32.mrb[0].mxu0
        %4734 = vmatprep.mubr.f32.mxu0 0.0
        %4735 = vmatmul.mubr.f32.gmra.mrb[0].mxu0 %v4551
        %v4736 = vpop.f32.mrb[0].mxu0
        %v4737 = vadd.f32 0.0, %v4736
        %v4738 = vpop.f32.mrb[0].mxu0
        %4739 = vmatprep.mubr.f32.mxu0 0.0
        %4740 = vmatmul.mubr.f32.gmra.mrb[0].mxu0 %v4554
        %v4741 = vpop.f32.mrb[0].mxu0
        %v4742 = vadd.f32 0.0, %v4741
        %v4743 = vpop.f32.mrb[0].mxu0
        %4744 = vmatprep.mubr.f32.mxu0 0.0
        %4745 = vmatmul.mubr.f32.gmra.mrb[0].mxu0 %v4557
        %v4746 = vpop.f32.mrb[0].mxu0
        %v4747 = vadd.f32 0.0, %v4746
        %v4748 = vpop.f32.mrb[0].mxu0
        %4749 = vmatprep.mubr.f32.mxu0 0.0
        %4750 = vmatmul.mubr.f32.gmra.mrb[0].mxu0 %v4560
        %v4751 = vpop.f32.mrb[0].mxu0
        %v4752 = vadd.f32 0.0, %v4751
        %v4753 = vpop.f32.mrb[0].mxu0
        %4754 = vmatprep.mubr.f32.mxu0 0.0
        %4755 = vmatmul.mubr.f32.gmra.mrb[0].mxu0 %v4563
        %v4756 = vpop.f32.mrb[0].mxu0
        %v4757 = vadd.f32 0.0, %v4756
        %v4758 = vpop.f32.mrb[0].mxu0
        %4759 = vmatprep.mubr.f32.mxu0 0.0
        %4760 = vmatmul.mubr.f32.gmra.mrb[0].mxu0 %v4566
        %v4761 = vpop.f32.mrb[0].mxu0
        %v4762 = vadd.f32 0.0, %v4761
        %v4763 = vpop.f32.mrb[0].mxu0
        %4764 = vmatprep.mubr.f32.mxu0 0.0
        %4765 = vmatmul.mubr.f32.gmra.mrb[0].mxu0 %v4569
        %v4766 = vpop.f32.mrb[0].mxu0
        %v4767 = vadd.f32 0.0, %v4766
        %v4768 = vpop.f32.mrb[0].mxu0
        %4769 = vmatprep.mubr.f32.mxu0 0.0
        %4770 = vmatmul.mubr.f32.gmra.mrb[0].mxu0 %v4572
        %v4771 = vpop.f32.mrb[0].mxu0
        %v4772 = vadd.f32 0.0, %v4771
        %v4773 = vpop.f32.mrb[0].mxu0
        %4774 = vmatprep.mubr.f32.mxu0 0.0
        %4775 = vmatmul.mubr.f32.gmra.mrb[0].mxu0 %v4575
        %v4776 = vpop.f32.mrb[0].mxu0
        %v4777 = vadd.f32 0.0, %v4776
        %v4778 = vpop.f32.mrb[0].mxu0
        %4779 = vmatprep.mubr.f32.mxu0 0.0
        %4780 = vmatmul.mubr.f32.gmra.mrb[0].mxu0 %v4578
        %v4781 = vpop.f32.mrb[0].mxu0
        %v4782 = vadd.f32 0.0, %v4781
        %v4783 = vpop.f32.mrb[0].mxu0
        %4784 = vmatprep.mubr.f32.mxu0 0.0
        %4785 = vmatmul.mubr.f32.gmra.mrb[0].mxu0 %v4581
        %v4786 = vpop.f32.mrb[0].mxu0
        %v4787 = vadd.f32 0.0, %v4786
        %v4788 = vpop.f32.mrb[0].mxu0
        %4789 = vmatprep.mubr.f32.mxu0 0.0
        %4790 = vmatmul.mubr.f32.gmra.mrb[0].mxu0 %v4584
        %v4791 = vpop.f32.mrb[0].mxu0
        %v4792 = vadd.f32 0.0, %v4791
        %v4793 = vpop.f32.mrb[0].mxu0
        %4794 = vmatprep.mubr.f32.mxu0 0.0
        %4795 = vmatmul.mubr.f32.gmra.mrb[0].mxu0 %v4587
        %v4796 = vpop.f32.mrb[0].mxu0
        %v4797 = vadd.f32 0.0, %v4796
        %v4798 = vpop.f32.mrb[0].mxu0
        %4799 = vmatprep.mubr.f32.mxu0 0.0
        %4800 = vmatmul.mubr.f32.gmra.mrb[0].mxu0 %v4590
        %v4801 = vpop.f32.mrb[0].mxu0
        %v4802 = vadd.f32 0.0, %v4801
        %v4803 = vpop.f32.mrb[0].mxu0
        %4804 = vmatprep.mubr.f32.mxu0 0.0
        %4805 = vmatmul.mubr.f32.gmra.mrb[0].mxu0 %v4593
        %v4806 = vpop.f32.mrb[0].mxu0
        %v4807 = vadd.f32 0.0, %v4806
        %v4808 = vpop.f32.mrb[0].mxu0
        %4809 = vmatprep.mubr.f32.mxu0 0.0
        %4810 = vmatmul.mubr.f32.gmra.mrb[0].mxu0 %v4596
        %v4811 = vpop.f32.mrb[0].mxu0
        %v4812 = vadd.f32 0.0, %v4811
        %v4813 = vpop.f32.mrb[0].mxu0
        %4814 = vmatprep.mubr.f32.mxu0 0.0
        %4815 = vmatmul.mubr.f32.gmra.mrb[0].mxu0 %v4599
        %v4816 = vpop.f32.mrb[0].mxu0
        %v4817 = vadd.f32 0.0, %v4816
        %v4818 = vpop.f32.mrb[0].mxu0
        %4819 = vmatprep.mubr.f32.mxu0 0.0
        %4820 = vmatmul.mubr.f32.gmra.mrb[0].mxu0 %v4602
        %v4821 = vpop.f32.mrb[0].mxu0
        %v4822 = vadd.f32 0.0, %v4821
        %v4823 = vpop.f32.mrb[0].mxu0
        %4824 = vmatprep.mubr.f32.mxu0 0.0
        %4825 = vmatmul.mubr.f32.gmra.mrb[0].mxu0 %v4605
        %v4826 = vpop.f32.mrb[0].mxu0
        %v4827 = vadd.f32 0.0, %v4826
        %v4828 = vpop.f32.mrb[0].mxu0
        %4829 = vmatprep.mubr.f32.mxu0 0.0
        %4830 = vmatmul.mubr.f32.gmra.mrb[0].mxu0 %v4608
        %v4831 = vpop.f32.mrb[0].mxu0
        %v4832 = vadd.f32 0.0, %v4831
        %v4833 = vpop.f32.mrb[0].mxu0
        %4834 = vdwg.mxu0
        %v4835 = vadd.f32 %v4439, %v4677
        %v4836 = vadd.f32 %v4440, %v4682
        %v4837 = vadd.f32 %v4441, %v4687
        %v4838 = vadd.f32 %v4442, %v4692
        %v4839 = vadd.f32 %v4443, %v4697
        %v4840 = vadd.f32 %v4444, %v4702
        %v4841 = vadd.f32 %v4445, %v4707
        %v4842 = vadd.f32 %v4446, %v4712
        %v4843 = vadd.f32 %v4447, %v4717
        %v4844 = vadd.f32 %v4448, %v4722
        %v4845 = vadd.f32 %v4449, %v4727
        %v4846 = vadd.f32 %v4450, %v4732
        %v4847 = vadd.f32 %v4451, %v4737
        %v4848 = vadd.f32 %v4452, %v4742
        %v4849 = vadd.f32 %v4453, %v4747
        %v4850 = vadd.f32 %v4454, %v4752
        %v4851 = vadd.f32 %v4455, %v4757
        %v4852 = vadd.f32 %v4456, %v4762
        %v4853 = vadd.f32 %v4457, %v4767
        %v4854 = vadd.f32 %v4458, %v4772
        %v4855 = vadd.f32 %v4459, %v4777
        %v4856 = vadd.f32 %v4460, %v4782
        %v4857 = vadd.f32 %v4461, %v4787
        %v4858 = vadd.f32 %v4462, %v4792
        %v4859 = vadd.f32 %v4463, %v4797
        %v4860 = vadd.f32 %v4464, %v4802
        %v4861 = vadd.f32 %v4465, %v4807
        %v4862 = vadd.f32 %v4466, %v4812
        %v4863 = vadd.f32 %v4467, %v4817
        %v4864 = vadd.f32 %v4468, %v4822
        %v4865 = vadd.f32 %v4469, %v4827
        %v4866 = vadd.f32 %v4470, %v4832
        %s4867 = scalar_lea.vmem [#allocation2], 448
        %v4868 = vld [vmem:[%s4867] sm:$0xff]
        %v4869 = vld [vmem:[%s4867 + $0x8] sm:$0xff]
        %v4870 = vld [vmem:[%s4867 + $0x10] sm:$0xff]
        %v4871 = vld [vmem:[%s4867 + $0x18] sm:$0xff]
        %v4872 = vld [vmem:[%s4867 + $0x20] sm:$0xff]
        %v4873 = vld [vmem:[%s4867 + $0x28] sm:$0xff]
        %v4874 = vld [vmem:[%s4867 + $0x30] sm:$0xff]
        %v4875 = vld [vmem:[%s4867 + $0x38] sm:$0xff]
        %4876 = vmatprep.subr.mxu0 0.0
        %4877 = vmatpush1.msra.mxu0 %v4868
        %4878 = vmatprep.subr.mxu0 0.0
        %4879 = vmatpush1.msra.mxu0 %v4869
        %4880 = vmatprep.subr.mxu0 0.0
        %4881 = vmatpush1.msra.mxu0 %v4870
        %4882 = vmatprep.subr.mxu0 0.0
        %4883 = vmatpush1.msra.mxu0 %v4871
        %4884 = vmatprep.subr.mxu0 0.0
        %4885 = vmatpush1.msra.mxu0 %v4872
        %4886 = vmatprep.subr.mxu0 0.0
        %4887 = vmatpush1.msra.mxu0 %v4873
        %4888 = vmatprep.subr.mxu0 0.0
        %4889 = vmatpush1.msra.mxu0 %v4874
        %4890 = vmatprep.subr.mxu0 0.0
        %4891 = vmatpush1.msra.mxu0 %v4875
        %4892 = vmatprep.subr.mxu0 0.0
        %4893 = vmatpush1.msra.mxu0 0.0
        %4894 = vmatprep.subr.mxu0 0.0
        %4895 = vmatpush1.msra.mxu0 0.0
        %4896 = vmatprep.subr.mxu0 0.0
        %4897 = vmatpush1.msra.mxu0 0.0
        %4898 = vmatprep.subr.mxu0 0.0
        %4899 = vmatpush1.msra.mxu0 0.0
        %4900 = vmatprep.subr.mxu0 0.0
        %4901 = vmatpush1.msra.mxu0 0.0
        %4902 = vmatprep.subr.mxu0 0.0
        %4903 = vmatpush1.msra.mxu0 0.0
        %4904 = vmatprep.subr.mxu0 0.0
        %4905 = vmatpush1.msra.mxu0 0.0
        %4906 = vmatprep.subr.mxu0 0.0
        %4907 = vmatpush1.msra.mxu0 0.0
        %4908 = vmatprep.subr.mxu0 0.0
        %4909 = vmatpush1.msra.mxu0 0.0
        %4910 = vmatprep.subr.mxu0 0.0
        %4911 = vmatpush1.msra.mxu0 0.0
        %4912 = vmatprep.subr.mxu0 0.0
        %4913 = vmatpush1.msra.mxu0 0.0
        %4914 = vmatprep.subr.mxu0 0.0
        %4915 = vmatpush1.msra.mxu0 0.0
        %4916 = vmatprep.subr.mxu0 0.0
        %4917 = vmatpush1.msra.mxu0 0.0
        %4918 = vmatprep.subr.mxu0 0.0
        %4919 = vmatpush1.msra.mxu0 0.0
        %4920 = vmatprep.subr.mxu0 0.0
        %4921 = vmatpush1.msra.mxu0 0.0
        %4922 = vmatprep.subr.mxu0 0.0
        %4923 = vmatpush1.msra.mxu0 0.0
        %4924 = vmatprep.subr.mxu0 0.0
        %4925 = vmatpush1.msra.mxu0 0.0
        %4926 = vmatprep.subr.mxu0 0.0
        %4927 = vmatpush1.msra.mxu0 0.0
        %4928 = vmatprep.subr.mxu0 0.0
        %4929 = vmatpush1.msra.mxu0 0.0
        %4930 = vmatprep.subr.mxu0 0.0
        %4931 = vmatpush1.msra.mxu0 0.0
        %4932 = vmatprep.subr.mxu0 0.0
        %4933 = vmatpush1.msra.mxu0 0.0
        %4934 = vmatprep.subr.mxu0 0.0
        %4935 = vmatpush1.msra.mxu0 0.0
        %4936 = vmatprep.subr.mxu0 0.0
        %4937 = vmatpush1.msra.mxu0 0.0
        %4938 = vmatprep.subr.mxu0 0.0
        %4939 = vmatpush1.msra.mxu0 0.0
        %4940 = vmatprep.mubr.f32.mxu0 0.0
        %4941 = vmatmul.mubr.f32.gmra.mrb[0].mxu0 %v2150
        %v4942 = vpop.f32.mrb[0].mxu0
        %v4943 = vadd.f32 0.0, %v4942
        %v4944 = vpop.f32.mrb[0].mxu0
        %4945 = vmatprep.mubr.f32.mxu0 0.0
        %4946 = vmatmul.mubr.f32.gmra.mrb[0].mxu0 %v2152
        %v4947 = vpop.f32.mrb[0].mxu0
        %v4948 = vadd.f32 0.0, %v4947
        %v4949 = vpop.f32.mrb[0].mxu0
        %4950 = vmatprep.mubr.f32.mxu0 0.0
        %4951 = vmatmul.mubr.f32.gmra.mrb[0].mxu0 %v2154
        %v4952 = vpop.f32.mrb[0].mxu0
        %v4953 = vadd.f32 0.0, %v4952
        %v4954 = vpop.f32.mrb[0].mxu0
        %4955 = vmatprep.mubr.f32.mxu0 0.0
        %4956 = vmatmul.mubr.f32.gmra.mrb[0].mxu0 %v2156
        %v4957 = vpop.f32.mrb[0].mxu0
        %v4958 = vadd.f32 0.0, %v4957
        %v4959 = vpop.f32.mrb[0].mxu0
        %4960 = vmatprep.mubr.f32.mxu0 0.0
        %4961 = vmatmul.mubr.f32.gmra.mrb[0].mxu0 %v2158
        %v4962 = vpop.f32.mrb[0].mxu0
        %v4963 = vadd.f32 0.0, %v4962
        %v4964 = vpop.f32.mrb[0].mxu0
        %4965 = vmatprep.mubr.f32.mxu0 0.0
        %4966 = vmatmul.mubr.f32.gmra.mrb[0].mxu0 %v2160
        %v4967 = vpop.f32.mrb[0].mxu0
        %v4968 = vadd.f32 0.0, %v4967
        %v4969 = vpop.f32.mrb[0].mxu0
        %4970 = vmatprep.mubr.f32.mxu0 0.0
        %4971 = vmatmul.mubr.f32.gmra.mrb[0].mxu0 %v2162
        %v4972 = vpop.f32.mrb[0].mxu0
        %v4973 = vadd.f32 0.0, %v4972
        %v4974 = vpop.f32.mrb[0].mxu0
        %4975 = vmatprep.mubr.f32.mxu0 0.0
        %4976 = vmatmul.mubr.f32.gmra.mrb[0].mxu0 %v2164
        %v4977 = vpop.f32.mrb[0].mxu0
        %v4978 = vadd.f32 0.0, %v4977
        %v4979 = vpop.f32.mrb[0].mxu0
        %4980 = vmatprep.mubr.f32.mxu0 0.0
        %4981 = vmatmul.mubr.f32.gmra.mrb[0].mxu0 %v2166
        %v4982 = vpop.f32.mrb[0].mxu0
        %v4983 = vadd.f32 0.0, %v4982
        %v4984 = vpop.f32.mrb[0].mxu0
        %4985 = vmatprep.mubr.f32.mxu0 0.0
        %4986 = vmatmul.mubr.f32.gmra.mrb[0].mxu0 %v2168
        %v4987 = vpop.f32.mrb[0].mxu0
        %v4988 = vadd.f32 0.0, %v4987
        %v4989 = vpop.f32.mrb[0].mxu0
        %4990 = vmatprep.mubr.f32.mxu0 0.0
        %4991 = vmatmul.mubr.f32.gmra.mrb[0].mxu0 %v2170
        %v4992 = vpop.f32.mrb[0].mxu0
        %v4993 = vadd.f32 0.0, %v4992
        %v4994 = vpop.f32.mrb[0].mxu0
        %4995 = vmatprep.mubr.f32.mxu0 0.0
        %4996 = vmatmul.mubr.f32.gmra.mrb[0].mxu0 %v2172
        %v4997 = vpop.f32.mrb[0].mxu0
        %v4998 = vadd.f32 0.0, %v4997
        %v4999 = vpop.f32.mrb[0].mxu0
        %5000 = vmatprep.mubr.f32.mxu0 0.0
        %5001 = vmatmul.mubr.f32.gmra.mrb[0].mxu0 %v2174
        %v5002 = vpop.f32.mrb[0].mxu0
        %v5003 = vadd.f32 0.0, %v5002
        %v5004 = vpop.f32.mrb[0].mxu0
        %5005 = vmatprep.mubr.f32.mxu0 0.0
        %5006 = vmatmul.mubr.f32.gmra.mrb[0].mxu0 %v2176
        %v5007 = vpop.f32.mrb[0].mxu0
        %v5008 = vadd.f32 0.0, %v5007
        %v5009 = vpop.f32.mrb[0].mxu0
        %5010 = vmatprep.mubr.f32.mxu0 0.0
        %5011 = vmatmul.mubr.f32.gmra.mrb[0].mxu0 %v2178
        %v5012 = vpop.f32.mrb[0].mxu0
        %v5013 = vadd.f32 0.0, %v5012
        %v5014 = vpop.f32.mrb[0].mxu0
        %5015 = vmatprep.mubr.f32.mxu0 0.0
        %5016 = vmatmul.mubr.f32.gmra.mrb[0].mxu0 %v2180
        %v5017 = vpop.f32.mrb[0].mxu0
        %v5018 = vadd.f32 0.0, %v5017
        %v5019 = vpop.f32.mrb[0].mxu0
        %5020 = vmatprep.mubr.f32.mxu0 0.0
        %5021 = vmatmul.mubr.f32.gmra.mrb[0].mxu0 %v2182
        %v5022 = vpop.f32.mrb[0].mxu0
        %v5023 = vadd.f32 0.0, %v5022
        %v5024 = vpop.f32.mrb[0].mxu0
        %5025 = vmatprep.mubr.f32.mxu0 0.0
        %5026 = vmatmul.mubr.f32.gmra.mrb[0].mxu0 %v2184
        %v5027 = vpop.f32.mrb[0].mxu0
        %v5028 = vadd.f32 0.0, %v5027
        %v5029 = vpop.f32.mrb[0].mxu0
        %5030 = vmatprep.mubr.f32.mxu0 0.0
        %5031 = vmatmul.mubr.f32.gmra.mrb[0].mxu0 %v2186
        %v5032 = vpop.f32.mrb[0].mxu0
        %v5033 = vadd.f32 0.0, %v5032
        %v5034 = vpop.f32.mrb[0].mxu0
        %5035 = vmatprep.mubr.f32.mxu0 0.0
        %5036 = vmatmul.mubr.f32.gmra.mrb[0].mxu0 %v2188
        %v5037 = vpop.f32.mrb[0].mxu0
        %v5038 = vadd.f32 0.0, %v5037
        %v5039 = vpop.f32.mrb[0].mxu0
        %5040 = vmatprep.mubr.f32.mxu0 0.0
        %5041 = vmatmul.mubr.f32.gmra.mrb[0].mxu0 %v2190
        %v5042 = vpop.f32.mrb[0].mxu0
        %v5043 = vadd.f32 0.0, %v5042
        %v5044 = vpop.f32.mrb[0].mxu0
        %5045 = vmatprep.mubr.f32.mxu0 0.0
        %5046 = vmatmul.mubr.f32.gmra.mrb[0].mxu0 %v2192
        %v5047 = vpop.f32.mrb[0].mxu0
        %v5048 = vadd.f32 0.0, %v5047
        %v5049 = vpop.f32.mrb[0].mxu0
        %5050 = vmatprep.mubr.f32.mxu0 0.0
        %5051 = vmatmul.mubr.f32.gmra.mrb[0].mxu0 %v2194
        %v5052 = vpop.f32.mrb[0].mxu0
        %v5053 = vadd.f32 0.0, %v5052
        %v5054 = vpop.f32.mrb[0].mxu0
        %5055 = vmatprep.mubr.f32.mxu0 0.0
        %5056 = vmatmul.mubr.f32.gmra.mrb[0].mxu0 %v2196
        %v5057 = vpop.f32.mrb[0].mxu0
        %v5058 = vadd.f32 0.0, %v5057
        %v5059 = vpop.f32.mrb[0].mxu0
        %5060 = vmatprep.mubr.f32.mxu0 0.0
        %5061 = vmatmul.mubr.f32.gmra.mrb[0].mxu0 %v2198
        %v5062 = vpop.f32.mrb[0].mxu0
        %v5063 = vadd.f32 0.0, %v5062
        %v5064 = vpop.f32.mrb[0].mxu0
        %5065 = vmatprep.mubr.f32.mxu0 0.0
        %5066 = vmatmul.mubr.f32.gmra.mrb[0].mxu0 %v2200
        %v5067 = vpop.f32.mrb[0].mxu0
        %v5068 = vadd.f32 0.0, %v5067
        %v5069 = vpop.f32.mrb[0].mxu0
        %5070 = vmatprep.mubr.f32.mxu0 0.0
        %5071 = vmatmul.mubr.f32.gmra.mrb[0].mxu0 %v2202
        %v5072 = vpop.f32.mrb[0].mxu0
        %v5073 = vadd.f32 0.0, %v5072
        %v5074 = vpop.f32.mrb[0].mxu0
        %5075 = vmatprep.mubr.f32.mxu0 0.0
        %5076 = vmatmul.mubr.f32.gmra.mrb[0].mxu0 %v2204
        %v5077 = vpop.f32.mrb[0].mxu0
        %v5078 = vadd.f32 0.0, %v5077
        %v5079 = vpop.f32.mrb[0].mxu0
        %5080 = vmatprep.mubr.f32.mxu0 0.0
        %5081 = vmatmul.mubr.f32.gmra.mrb[0].mxu0 %v3811
        %v5082 = vpop.f32.mrb[0].mxu0
        %v5083 = vadd.f32 0.0, %v5082
        %v5084 = vpop.f32.mrb[0].mxu0
        %5085 = vmatprep.mubr.f32.mxu0 0.0
        %5086 = vmatmul.mubr.f32.gmra.mrb[0].mxu0 %v3813
        %v5087 = vpop.f32.mrb[0].mxu0
        %v5088 = vadd.f32 0.0, %v5087
        %v5089 = vpop.f32.mrb[0].mxu0
        %5090 = vmatprep.mubr.f32.mxu0 0.0
        %5091 = vmatmul.mubr.f32.gmra.mrb[0].mxu0 %v2144
        %v5092 = vpop.f32.mrb[0].mxu0
        %v5093 = vadd.f32 0.0, %v5092
        %v5094 = vpop.f32.mrb[0].mxu0
        %5095 = vmatprep.mubr.f32.mxu0 0.0
        %5096 = vmatmul.mubr.f32.gmra.mrb[0].mxu0 %v2144
        %v5097 = vpop.f32.mrb[0].mxu0
        %v5098 = vadd.f32 0.0, %v5097
        %v5099 = vpop.f32.mrb[0].mxu0
        %5100 = vdwg.mxu0
        %v5101 = vadd.f32 %v4835, %v4943
        %v5102 = vadd.f32 %v4836, %v4948
        %v5103 = vadd.f32 %v4837, %v4953
        %v5104 = vadd.f32 %v4838, %v4958
        %v5105 = vadd.f32 %v4839, %v4963
        %v5106 = vadd.f32 %v4840, %v4968
        %v5107 = vadd.f32 %v4841, %v4973
        %v5108 = vadd.f32 %v4842, %v4978
        %v5109 = vadd.f32 %v4843, %v4983
        %v5110 = vadd.f32 %v4844, %v4988
        %v5111 = vadd.f32 %v4845, %v4993
        %v5112 = vadd.f32 %v4846, %v4998
        %v5113 = vadd.f32 %v4847, %v5003
        %v5114 = vadd.f32 %v4848, %v5008
        %v5115 = vadd.f32 %v4849, %v5013
        %v5116 = vadd.f32 %v4850, %v5018
        %v5117 = vadd.f32 %v4851, %v5023
        %v5118 = vadd.f32 %v4852, %v5028
        %v5119 = vadd.f32 %v4853, %v5033
        %v5120 = vadd.f32 %v4854, %v5038
        %v5121 = vadd.f32 %v4855, %v5043
        %v5122 = vadd.f32 %v4856, %v5048
        %v5123 = vadd.f32 %v4857, %v5053
        %v5124 = vadd.f32 %v4858, %v5058
        %v5125 = vadd.f32 %v4859, %v5063
        %v5126 = vadd.f32 %v4860, %v5068
        %v5127 = vadd.f32 %v4861, %v5073
        %v5128 = vadd.f32 %v4862, %v5078
        %v5129 = vadd.f32 %v4863, %v5083
        %v5130 = vadd.f32 %v4864, %v5088
        %v5131 = vadd.f32 %v4865, %v5093
        %v5132 = vadd.f32 %v4866, %v5098
        %v5133 = vmul.f32 %v2760, %v2850
        %v5134 = vmul.f32 %v2762, %v2855
        %v5135 = vmul.f32 %v2764, %v2860
        %v5136 = vmul.f32 %v2766, %v2865
        %v5137 = vmul.f32 %v2768, %v2870
        %v5138 = vmul.f32 %v2770, %v2875
        %v5139 = vmul.f32 %v2772, %v2880
        %v5140 = vmul.f32 %v2774, %v2885
        %v5141 = vmul.f32 %v2776, %v2890
        %v5142 = vmul.f32 %v2778, %v2895
        %v5143 = vmul.f32 %v2780, %v2900
        %v5144 = vmul.f32 %v2782, %v2905
        %v5145 = vmul.f32 %v2784, %v2910
        %v5146 = vmul.f32 %v2786, %v2915
        %v5147 = vmul.f32 %v2788, %v2920
        %v5148 = vmul.f32 %v2790, %v2925
        %v5149 = vmul.f32 %v2792, %v2930
        %v5150 = vmul.f32 %v2794, %v2935
        %v5151 = vmul.f32 %v2796, %v2940
        %v5152 = vmul.f32 %v2798, %v2945
        %v5153 = vmul.f32 %v2800, %v2950
        %v5154 = vmul.f32 %v2802, %v2955
        %v5155 = vmul.f32 %v2804, %v2960
        %v5156 = vmul.f32 %v2806, %v2965
        %v5157 = vmul.f32 %v2808, %v2970
        %v5158 = vmul.f32 %v2810, %v2975
        %v5159 = vmul.f32 %v2812, %v2980
        %v5160 = vmul.f32 %v2814, %v2985
        %v5161 = vmul.f32 %v4073, %v2990
        %v5162 = vmul.f32 %v4076, %v2995
        %v5163 = vmul.f32 %v3000, 0.0
        %v5164 = vmul.f32 %v3005, 0.0
        %s5165 = scalar_lea.vmem [#allocation2], 512
        %v5166 = vld [vmem:[%s5165] sm:$0xff]
        %v5167 = vld [vmem:[%s5165 + $0x8] sm:$0xff]
        %v5168 = vld [vmem:[%s5165 + $0x10] sm:$0xff]
        %v5169 = vld [vmem:[%s5165 + $0x18] sm:$0xff]
        %v5170 = vld [vmem:[%s5165 + $0x20] sm:$0xff]
        %v5171 = vld [vmem:[%s5165 + $0x28] sm:$0xff]
        %v5172 = vld [vmem:[%s5165 + $0x30] sm:$0xff]
        %v5173 = vld [vmem:[%s5165 + $0x38] sm:$0xff]
        %v5175 = vsel %vm629, %v5133, 0
        %v5178 = vsel %vm629, %v5134, 0
        %v5181 = vsel %vm629, %v5135, 0
        %v5184 = vsel %vm629, %v5136, 0
        %v5187 = vsel %vm629, %v5137, 0
        %v5190 = vsel %vm629, %v5138, 0
        %v5193 = vsel %vm629, %v5139, 0
        %v5196 = vsel %vm629, %v5140, 0
        %v5199 = vsel %vm629, %v5141, 0
        %v5202 = vsel %vm629, %v5142, 0
        %v5205 = vsel %vm629, %v5143, 0
        %v5208 = vsel %vm629, %v5144, 0
        %v5211 = vsel %vm629, %v5145, 0
        %v5214 = vsel %vm629, %v5146, 0
        %v5217 = vsel %vm629, %v5147, 0
        %v5220 = vsel %vm629, %v5148, 0
        %v5223 = vsel %vm629, %v5149, 0
        %v5226 = vsel %vm629, %v5150, 0
        %v5229 = vsel %vm629, %v5151, 0
        %v5232 = vsel %vm629, %v5152, 0
        %v5235 = vsel %vm629, %v5153, 0
        %v5238 = vsel %vm629, %v5154, 0
        %v5241 = vsel %vm629, %v5155, 0
        %v5244 = vsel %vm629, %v5156, 0
        %v5247 = vsel %vm629, %v5157, 0
        %v5250 = vsel %vm629, %v5158, 0
        %v5253 = vsel %vm629, %v5159, 0
        %v5256 = vsel %vm629, %v5160, 0
        %v5259 = vsel %vm629, %v5161, 0
        %v5262 = vsel %vm629, %v5162, 0
        %v5265 = vsel %vm629, %v5163, 0
        %v5268 = vsel %vm629, %v5164, 0
        %5270 = vmatprep.subr.mxu0 0.0
        %5271 = vmatpush1.msra.mxu0 %v5166
        %5272 = vmatprep.subr.mxu0 0.0
        %5273 = vmatpush1.msra.mxu0 %v5167
        %5274 = vmatprep.subr.mxu0 0.0
        %5275 = vmatpush1.msra.mxu0 %v5168
        %5276 = vmatprep.subr.mxu0 0.0
        %5277 = vmatpush1.msra.mxu0 %v5169
        %5278 = vmatprep.subr.mxu0 0.0
        %5279 = vmatpush1.msra.mxu0 %v5170
        %5280 = vmatprep.subr.mxu0 0.0
        %5281 = vmatpush1.msra.mxu0 %v5171
        %5282 = vmatprep.subr.mxu0 0.0
        %5283 = vmatpush1.msra.mxu0 %v5172
        %5284 = vmatprep.subr.mxu0 0.0
        %5285 = vmatpush1.msra.mxu0 %v5173
        %5286 = vmatprep.subr.mxu0 0.0
        %5287 = vmatpush1.msra.mxu0 0.0
        %5288 = vmatprep.subr.mxu0 0.0
        %5289 = vmatpush1.msra.mxu0 0.0
        %5290 = vmatprep.subr.mxu0 0.0
        %5291 = vmatpush1.msra.mxu0 0.0
        %5292 = vmatprep.subr.mxu0 0.0
        %5293 = vmatpush1.msra.mxu0 0.0
        %5294 = vmatprep.subr.mxu0 0.0
        %5295 = vmatpush1.msra.mxu0 0.0
        %5296 = vmatprep.subr.mxu0 0.0
        %5297 = vmatpush1.msra.mxu0 0.0
        %5298 = vmatprep.subr.mxu0 0.0
        %5299 = vmatpush1.msra.mxu0 0.0
        %5300 = vmatprep.subr.mxu0 0.0
        %5301 = vmatpush1.msra.mxu0 0.0
        %5302 = vmatprep.subr.mxu0 0.0
        %5303 = vmatpush1.msra.mxu0 0.0
        %5304 = vmatprep.subr.mxu0 0.0
        %5305 = vmatpush1.msra.mxu0 0.0
        %5306 = vmatprep.subr.mxu0 0.0
        %5307 = vmatpush1.msra.mxu0 0.0
        %5308 = vmatprep.subr.mxu0 0.0
        %5309 = vmatpush1.msra.mxu0 0.0
        %5310 = vmatprep.subr.mxu0 0.0
        %5311 = vmatpush1.msra.mxu0 0.0
        %5312 = vmatprep.subr.mxu0 0.0
        %5313 = vmatpush1.msra.mxu0 0.0
        %5314 = vmatprep.subr.mxu0 0.0
        %5315 = vmatpush1.msra.mxu0 0.0
        %5316 = vmatprep.subr.mxu0 0.0
        %5317 = vmatpush1.msra.mxu0 0.0
        %5318 = vmatprep.subr.mxu0 0.0
        %5319 = vmatpush1.msra.mxu0 0.0
        %5320 = vmatprep.subr.mxu0 0.0
        %5321 = vmatpush1.msra.mxu0 0.0
        %5322 = vmatprep.subr.mxu0 0.0
        %5323 = vmatpush1.msra.mxu0 0.0
        %5324 = vmatprep.subr.mxu0 0.0
        %5325 = vmatpush1.msra.mxu0 0.0
        %5326 = vmatprep.subr.mxu0 0.0
        %5327 = vmatpush1.msra.mxu0 0.0
        %5328 = vmatprep.subr.mxu0 0.0
        %5329 = vmatpush1.msra.mxu0 0.0
        %5330 = vmatprep.subr.mxu0 0.0
        %5331 = vmatpush1.msra.mxu0 0.0
        %5332 = vmatprep.subr.mxu0 0.0
        %5333 = vmatpush1.msra.mxu0 0.0
        %5334 = vmatprep.mubr.f32.mxu0 0.0
        %5335 = vmatmul.mubr.f32.gmra.mrb[0].mxu0 %v5175
        %v5336 = vpop.f32.mrb[0].mxu0
        %v5337 = vadd.f32 0.0, %v5336
        %v5338 = vpop.f32.mrb[0].mxu0
        %5339 = vmatprep.mubr.f32.mxu0 0.0
        %5340 = vmatmul.mubr.f32.gmra.mrb[0].mxu0 %v5178
        %v5341 = vpop.f32.mrb[0].mxu0
        %v5342 = vadd.f32 0.0, %v5341
        %v5343 = vpop.f32.mrb[0].mxu0
        %5344 = vmatprep.mubr.f32.mxu0 0.0
        %5345 = vmatmul.mubr.f32.gmra.mrb[0].mxu0 %v5181
        %v5346 = vpop.f32.mrb[0].mxu0
        %v5347 = vadd.f32 0.0, %v5346
        %v5348 = vpop.f32.mrb[0].mxu0
        %5349 = vmatprep.mubr.f32.mxu0 0.0
        %5350 = vmatmul.mubr.f32.gmra.mrb[0].mxu0 %v5184
        %v5351 = vpop.f32.mrb[0].mxu0
        %v5352 = vadd.f32 0.0, %v5351
        %v5353 = vpop.f32.mrb[0].mxu0
        %5354 = vmatprep.mubr.f32.mxu0 0.0
        %5355 = vmatmul.mubr.f32.gmra.mrb[0].mxu0 %v5187
        %v5356 = vpop.f32.mrb[0].mxu0
        %v5357 = vadd.f32 0.0, %v5356
        %v5358 = vpop.f32.mrb[0].mxu0
        %5359 = vmatprep.mubr.f32.mxu0 0.0
        %5360 = vmatmul.mubr.f32.gmra.mrb[0].mxu0 %v5190
        %v5361 = vpop.f32.mrb[0].mxu0
        %v5362 = vadd.f32 0.0, %v5361
        %v5363 = vpop.f32.mrb[0].mxu0
        %5364 = vmatprep.mubr.f32.mxu0 0.0
        %5365 = vmatmul.mubr.f32.gmra.mrb[0].mxu0 %v5193
        %v5366 = vpop.f32.mrb[0].mxu0
        %v5367 = vadd.f32 0.0, %v5366
        %v5368 = vpop.f32.mrb[0].mxu0
        %5369 = vmatprep.mubr.f32.mxu0 0.0
        %5370 = vmatmul.mubr.f32.gmra.mrb[0].mxu0 %v5196
        %v5371 = vpop.f32.mrb[0].mxu0
        %v5372 = vadd.f32 0.0, %v5371
        %v5373 = vpop.f32.mrb[0].mxu0
        %5374 = vmatprep.mubr.f32.mxu0 0.0
        %5375 = vmatmul.mubr.f32.gmra.mrb[0].mxu0 %v5199
        %v5376 = vpop.f32.mrb[0].mxu0
        %v5377 = vadd.f32 0.0, %v5376
        %v5378 = vpop.f32.mrb[0].mxu0
        %5379 = vmatprep.mubr.f32.mxu0 0.0
        %5380 = vmatmul.mubr.f32.gmra.mrb[0].mxu0 %v5202
        %v5381 = vpop.f32.mrb[0].mxu0
        %v5382 = vadd.f32 0.0, %v5381
        %v5383 = vpop.f32.mrb[0].mxu0
        %5384 = vmatprep.mubr.f32.mxu0 0.0
        %5385 = vmatmul.mubr.f32.gmra.mrb[0].mxu0 %v5205
        %v5386 = vpop.f32.mrb[0].mxu0
        %v5387 = vadd.f32 0.0, %v5386
        %v5388 = vpop.f32.mrb[0].mxu0
        %5389 = vmatprep.mubr.f32.mxu0 0.0
        %5390 = vmatmul.mubr.f32.gmra.mrb[0].mxu0 %v5208
        %v5391 = vpop.f32.mrb[0].mxu0
        %v5392 = vadd.f32 0.0, %v5391
        %v5393 = vpop.f32.mrb[0].mxu0
        %5394 = vmatprep.mubr.f32.mxu0 0.0
        %5395 = vmatmul.mubr.f32.gmra.mrb[0].mxu0 %v5211
        %v5396 = vpop.f32.mrb[0].mxu0
        %v5397 = vadd.f32 0.0, %v5396
        %v5398 = vpop.f32.mrb[0].mxu0
        %5399 = vmatprep.mubr.f32.mxu0 0.0
        %5400 = vmatmul.mubr.f32.gmra.mrb[0].mxu0 %v5214
        %v5401 = vpop.f32.mrb[0].mxu0
        %v5402 = vadd.f32 0.0, %v5401
        %v5403 = vpop.f32.mrb[0].mxu0
        %5404 = vmatprep.mubr.f32.mxu0 0.0
        %5405 = vmatmul.mubr.f32.gmra.mrb[0].mxu0 %v5217
        %v5406 = vpop.f32.mrb[0].mxu0
        %v5407 = vadd.f32 0.0, %v5406
        %v5408 = vpop.f32.mrb[0].mxu0
        %5409 = vmatprep.mubr.f32.mxu0 0.0
        %5410 = vmatmul.mubr.f32.gmra.mrb[0].mxu0 %v5220
        %v5411 = vpop.f32.mrb[0].mxu0
        %v5412 = vadd.f32 0.0, %v5411
        %v5413 = vpop.f32.mrb[0].mxu0
        %5414 = vmatprep.mubr.f32.mxu0 0.0
        %5415 = vmatmul.mubr.f32.gmra.mrb[0].mxu0 %v5223
        %v5416 = vpop.f32.mrb[0].mxu0
        %v5417 = vadd.f32 0.0, %v5416
        %v5418 = vpop.f32.mrb[0].mxu0
        %5419 = vmatprep.mubr.f32.mxu0 0.0
        %5420 = vmatmul.mubr.f32.gmra.mrb[0].mxu0 %v5226
        %v5421 = vpop.f32.mrb[0].mxu0
        %v5422 = vadd.f32 0.0, %v5421
        %v5423 = vpop.f32.mrb[0].mxu0
        %5424 = vmatprep.mubr.f32.mxu0 0.0
        %5425 = vmatmul.mubr.f32.gmra.mrb[0].mxu0 %v5229
        %v5426 = vpop.f32.mrb[0].mxu0
        %v5427 = vadd.f32 0.0, %v5426
        %v5428 = vpop.f32.mrb[0].mxu0
        %5429 = vmatprep.mubr.f32.mxu0 0.0
        %5430 = vmatmul.mubr.f32.gmra.mrb[0].mxu0 %v5232
        %v5431 = vpop.f32.mrb[0].mxu0
        %v5432 = vadd.f32 0.0, %v5431
        %v5433 = vpop.f32.mrb[0].mxu0
        %5434 = vmatprep.mubr.f32.mxu0 0.0
        %5435 = vmatmul.mubr.f32.gmra.mrb[0].mxu0 %v5235
        %v5436 = vpop.f32.mrb[0].mxu0
        %v5437 = vadd.f32 0.0, %v5436
        %v5438 = vpop.f32.mrb[0].mxu0
        %5439 = vmatprep.mubr.f32.mxu0 0.0
        %5440 = vmatmul.mubr.f32.gmra.mrb[0].mxu0 %v5238
        %v5441 = vpop.f32.mrb[0].mxu0
        %v5442 = vadd.f32 0.0, %v5441
        %v5443 = vpop.f32.mrb[0].mxu0
        %5444 = vmatprep.mubr.f32.mxu0 0.0
        %5445 = vmatmul.mubr.f32.gmra.mrb[0].mxu0 %v5241
        %v5446 = vpop.f32.mrb[0].mxu0
        %v5447 = vadd.f32 0.0, %v5446
        %v5448 = vpop.f32.mrb[0].mxu0
        %5449 = vmatprep.mubr.f32.mxu0 0.0
        %5450 = vmatmul.mubr.f32.gmra.mrb[0].mxu0 %v5244
        %v5451 = vpop.f32.mrb[0].mxu0
        %v5452 = vadd.f32 0.0, %v5451
        %v5453 = vpop.f32.mrb[0].mxu0
        %5454 = vmatprep.mubr.f32.mxu0 0.0
        %5455 = vmatmul.mubr.f32.gmra.mrb[0].mxu0 %v5247
        %v5456 = vpop.f32.mrb[0].mxu0
        %v5457 = vadd.f32 0.0, %v5456
        %v5458 = vpop.f32.mrb[0].mxu0
        %5459 = vmatprep.mubr.f32.mxu0 0.0
        %5460 = vmatmul.mubr.f32.gmra.mrb[0].mxu0 %v5250
        %v5461 = vpop.f32.mrb[0].mxu0
        %v5462 = vadd.f32 0.0, %v5461
        %v5463 = vpop.f32.mrb[0].mxu0
        %5464 = vmatprep.mubr.f32.mxu0 0.0
        %5465 = vmatmul.mubr.f32.gmra.mrb[0].mxu0 %v5253
        %v5466 = vpop.f32.mrb[0].mxu0
        %v5467 = vadd.f32 0.0, %v5466
        %v5468 = vpop.f32.mrb[0].mxu0
        %5469 = vmatprep.mubr.f32.mxu0 0.0
        %5470 = vmatmul.mubr.f32.gmra.mrb[0].mxu0 %v5256
        %v5471 = vpop.f32.mrb[0].mxu0
        %v5472 = vadd.f32 0.0, %v5471
        %v5473 = vpop.f32.mrb[0].mxu0
        %5474 = vmatprep.mubr.f32.mxu0 0.0
        %5475 = vmatmul.mubr.f32.gmra.mrb[0].mxu0 %v5259
        %v5476 = vpop.f32.mrb[0].mxu0
        %v5477 = vadd.f32 0.0, %v5476
        %v5478 = vpop.f32.mrb[0].mxu0
        %5479 = vmatprep.mubr.f32.mxu0 0.0
        %5480 = vmatmul.mubr.f32.gmra.mrb[0].mxu0 %v5262
        %v5481 = vpop.f32.mrb[0].mxu0
        %v5482 = vadd.f32 0.0, %v5481
        %v5483 = vpop.f32.mrb[0].mxu0
        %5484 = vmatprep.mubr.f32.mxu0 0.0
        %5485 = vmatmul.mubr.f32.gmra.mrb[0].mxu0 %v5265
        %v5486 = vpop.f32.mrb[0].mxu0
        %v5487 = vadd.f32 0.0, %v5486
        %v5488 = vpop.f32.mrb[0].mxu0
        %5489 = vmatprep.mubr.f32.mxu0 0.0
        %5490 = vmatmul.mubr.f32.gmra.mrb[0].mxu0 %v5268
        %v5491 = vpop.f32.mrb[0].mxu0
        %v5492 = vadd.f32 0.0, %v5491
        %v5493 = vpop.f32.mrb[0].mxu0
        %5494 = vdwg.mxu0
        %v5495 = vadd.f32 %v5101, %v5337
        %v5496 = vadd.f32 %v5102, %v5342
        %v5497 = vadd.f32 %v5103, %v5347
        %v5498 = vadd.f32 %v5104, %v5352
        %v5499 = vadd.f32 %v5105, %v5357
        %v5500 = vadd.f32 %v5106, %v5362
        %v5501 = vadd.f32 %v5107, %v5367
        %v5502 = vadd.f32 %v5108, %v5372
        %v5503 = vadd.f32 %v5109, %v5377
        %v5504 = vadd.f32 %v5110, %v5382
        %v5505 = vadd.f32 %v5111, %v5387
        %v5506 = vadd.f32 %v5112, %v5392
        %v5507 = vadd.f32 %v5113, %v5397
        %v5508 = vadd.f32 %v5114, %v5402
        %v5509 = vadd.f32 %v5115, %v5407
        %v5510 = vadd.f32 %v5116, %v5412
        %v5511 = vadd.f32 %v5117, %v5417
        %v5512 = vadd.f32 %v5118, %v5422
        %v5513 = vadd.f32 %v5119, %v5427
        %v5514 = vadd.f32 %v5120, %v5432
        %v5515 = vadd.f32 %v5121, %v5437
        %v5516 = vadd.f32 %v5122, %v5442
        %v5517 = vadd.f32 %v5123, %v5447
        %v5518 = vadd.f32 %v5124, %v5452
        %v5519 = vadd.f32 %v5125, %v5457
        %v5520 = vadd.f32 %v5126, %v5462
        %v5521 = vadd.f32 %v5127, %v5467
        %v5522 = vadd.f32 %v5128, %v5472
        %v5523 = vadd.f32 %v5129, %v5477
        %v5524 = vadd.f32 %v5130, %v5482
        %v5525 = vadd.f32 %v5131, %v5487
        %v5526 = vadd.f32 %v5132, %v5492
        %v5528 = vlaneseq
        %v5529 = vshrl.u32 %v5528, 7
        %v5530 = vsub.s32 0, %v5529
        %v5531 = vrot.slane %v1812, %v5530
        %v5533 = vadd.f32 %v5495, %v5531
        %v5534 = vadd.f32 %v5496, %v5531
        %v5535 = vadd.f32 %v5497, %v5531
        %v5536 = vadd.f32 %v5498, %v5531
        %v5537 = vadd.f32 %v5499, %v5531
        %v5538 = vadd.f32 %v5500, %v5531
        %v5539 = vadd.f32 %v5501, %v5531
        %v5540 = vadd.f32 %v5502, %v5531
        %v5541 = vadd.f32 %v5503, %v5531
        %v5542 = vadd.f32 %v5504, %v5531
        %v5543 = vadd.f32 %v5505, %v5531
        %v5544 = vadd.f32 %v5506, %v5531
        %v5545 = vadd.f32 %v5507, %v5531
        %v5546 = vadd.f32 %v5508, %v5531
        %v5547 = vadd.f32 %v5509, %v5531
        %v5548 = vadd.f32 %v5510, %v5531
        %v5549 = vadd.f32 %v5511, %v5531
        %v5550 = vadd.f32 %v5512, %v5531
        %v5551 = vadd.f32 %v5513, %v5531
        %v5552 = vadd.f32 %v5514, %v5531
        %v5553 = vadd.f32 %v5515, %v5531
        %v5554 = vadd.f32 %v5516, %v5531
        %v5555 = vadd.f32 %v5517, %v5531
        %v5556 = vadd.f32 %v5518, %v5531
        %v5557 = vadd.f32 %v5519, %v5531
        %v5558 = vadd.f32 %v5520, %v5531
        %v5559 = vadd.f32 %v5521, %v5531
        %v5560 = vadd.f32 %v5522, %v5531
        %v5561 = vadd.f32 %v5523, %v5531
        %v5562 = vadd.f32 %v5524, %v5531
        %v5563 = vadd.f32 %v5525, %v5531
        %v5564 = vadd.f32 %v5526, %v5531
        %v5565 = vld [vmem:[%s521] sm:$0x1]
        %v5567 = vlaneseq
        %v5568 = vshrl.u32 %v5567, 7
        %v5569 = vsub.s32 0, %v5568
        %v5570 = vrot.slane %v5565, %v5569
        %v5572 = vadd.f32 %v5533, %v5570
        %v5573 = vadd.f32 %v5534, %v5570
        %v5574 = vadd.f32 %v5535, %v5570
        %v5575 = vadd.f32 %v5536, %v5570
        %v5576 = vadd.f32 %v5537, %v5570
        %v5577 = vadd.f32 %v5538, %v5570
        %v5578 = vadd.f32 %v5539, %v5570
        %v5579 = vadd.f32 %v5540, %v5570
        %v5580 = vadd.f32 %v5541, %v5570
        %v5581 = vadd.f32 %v5542, %v5570
        %v5582 = vadd.f32 %v5543, %v5570
        %v5583 = vadd.f32 %v5544, %v5570
        %v5584 = vadd.f32 %v5545, %v5570
        %v5585 = vadd.f32 %v5546, %v5570
        %v5586 = vadd.f32 %v5547, %v5570
        %v5587 = vadd.f32 %v5548, %v5570
        %v5588 = vadd.f32 %v5549, %v5570
        %v5589 = vadd.f32 %v5550, %v5570
        %v5590 = vadd.f32 %v5551, %v5570
        %v5591 = vadd.f32 %v5552, %v5570
        %v5592 = vadd.f32 %v5553, %v5570
        %v5593 = vadd.f32 %v5554, %v5570
        %v5594 = vadd.f32 %v5555, %v5570
        %v5595 = vadd.f32 %v5556, %v5570
        %v5596 = vadd.f32 %v5557, %v5570
        %v5597 = vadd.f32 %v5558, %v5570
        %v5598 = vadd.f32 %v5559, %v5570
        %v5599 = vadd.f32 %v5560, %v5570
        %v5600 = vadd.f32 %v5561, %v5570
        %v5601 = vadd.f32 %v5562, %v5570
        %v5602 = vadd.f32 %v5563, %v5570
        %v5603 = vadd.f32 %v5564, %v5570
        %v5604 = vld [vmem:[%s9] sm:$0xff]
        %v5605 = vld [vmem:[%s9 + $0x8] sm:$0xff]
        %v5606 = vld [vmem:[%s9 + $0x10] sm:$0xff]
        %v5607 = vld [vmem:[%s9 + $0x18] sm:$0xff]
        %v5608 = vld [vmem:[%s9 + $0x20] sm:$0xff]
        %v5609 = vld [vmem:[%s9 + $0x28] sm:$0xff]
        %v5610 = vld [vmem:[%s9 + $0x30] sm:$0xff]
        %v5611 = vld [vmem:[%s9 + $0x38] sm:$0xff]
        %v5612 = vld [vmem:[%s9 + $0x40] sm:$0xff]
        %v5613 = vld [vmem:[%s9 + $0x48] sm:$0xff]
        %v5614 = vld [vmem:[%s9 + $0x50] sm:$0xff]
        %v5615 = vld [vmem:[%s9 + $0x58] sm:$0xff]
        %v5616 = vld [vmem:[%s9 + $0x60] sm:$0xff]
        %v5617 = vld [vmem:[%s9 + $0x68] sm:$0xff]
        %v5618 = vld [vmem:[%s9 + $0x70] sm:$0xff]
        %v5619 = vld [vmem:[%s9 + $0x78] sm:$0xff]
        %v5620 = vld [vmem:[%s7] sm:$0x1]
        %v5621 = vld [vmem:[%s8] sm:$0x1]
        %5622 = vmatprep.subr.mxu0 0.0
        %5623 = vmatpush1.msra.mxu0 %v5604
        %5624 = vmatprep.subr.mxu0 0.0
        %5625 = vmatpush1.msra.mxu0 %v5605
        %5626 = vmatprep.subr.mxu0 0.0
        %5627 = vmatpush1.msra.mxu0 %v5606
        %5628 = vmatprep.subr.mxu0 0.0
        %5629 = vmatpush1.msra.mxu0 %v5607
        %5630 = vmatprep.subr.mxu0 0.0
        %5631 = vmatpush1.msra.mxu0 %v5608
        %5632 = vmatprep.subr.mxu0 0.0
        %5633 = vmatpush1.msra.mxu0 %v5609
        %5634 = vmatprep.subr.mxu0 0.0
        %5635 = vmatpush1.msra.mxu0 %v5610
        %5636 = vmatprep.subr.mxu0 0.0
        %5637 = vmatpush1.msra.mxu0 %v5611
        %5638 = vmatprep.subr.mxu0 0.0
        %5639 = vmatpush1.msra.mxu0 %v5612
        %5640 = vmatprep.subr.mxu0 0.0
        %5641 = vmatpush1.msra.mxu0 %v5613
        %5642 = vmatprep.subr.mxu0 0.0
        %5643 = vmatpush1.msra.mxu0 %v5614
        %5644 = vmatprep.subr.mxu0 0.0
        %5645 = vmatpush1.msra.mxu0 %v5615
        %5646 = vmatprep.subr.mxu0 0.0
        %5647 = vmatpush1.msra.mxu0 %v5616
        %5648 = vmatprep.subr.mxu0 0.0
        %5649 = vmatpush1.msra.mxu0 %v5617
        %5650 = vmatprep.subr.mxu0 0.0
        %5651 = vmatpush1.msra.mxu0 %v5618
        %5652 = vmatprep.subr.mxu0 0.0
        %5653 = vmatpush1.msra.mxu0 %v5619
        %5654 = vmatprep.subr.mxu0 0.0
        %5655 = vmatpush1.msra.mxu0 0.0
        %5656 = vmatprep.subr.mxu0 0.0
        %5657 = vmatpush1.msra.mxu0 0.0
        %5658 = vmatprep.subr.mxu0 0.0
        %5659 = vmatpush1.msra.mxu0 0.0
        %5660 = vmatprep.subr.mxu0 0.0
        %5661 = vmatpush1.msra.mxu0 0.0
        %5662 = vmatprep.subr.mxu0 0.0
        %5663 = vmatpush1.msra.mxu0 0.0
        %5664 = vmatprep.subr.mxu0 0.0
        %5665 = vmatpush1.msra.mxu0 0.0
        %5666 = vmatprep.subr.mxu0 0.0
        %5667 = vmatpush1.msra.mxu0 0.0
        %5668 = vmatprep.subr.mxu0 0.0
        %5669 = vmatpush1.msra.mxu0 0.0
        %5670 = vmatprep.subr.mxu0 0.0
        %5671 = vmatpush1.msra.mxu0 0.0
        %5672 = vmatprep.subr.mxu0 0.0
        %5673 = vmatpush1.msra.mxu0 0.0
        %5674 = vmatprep.subr.mxu0 0.0
        %5675 = vmatpush1.msra.mxu0 0.0
        %5676 = vmatprep.subr.mxu0 0.0
        %5677 = vmatpush1.msra.mxu0 0.0
        %5678 = vmatprep.subr.mxu0 0.0
        %5679 = vmatpush1.msra.mxu0 0.0
        %5680 = vmatprep.subr.mxu0 0.0
        %5681 = vmatpush1.msra.mxu0 0.0
        %5682 = vmatprep.subr.mxu0 0.0
        %5683 = vmatpush1.msra.mxu0 0.0
        %5684 = vmatprep.subr.mxu0 0.0
        %5685 = vmatpush1.msra.mxu0 0.0
        %5686 = vmatprep.mubr.f32.mxu0 0.0
        %5687 = vmatmul.mubr.f32.gmra.mrb[0].mxu0 %v5572
        %v5688 = vpop.f32.mrb[0].mxu0
        %v5689 = vadd.f32 0.0, %v5688
        %v5690 = vpop.f32.mrb[0].mxu0
        %5691 = vmatprep.mubr.f32.mxu0 0.0
        %5692 = vmatmul.mubr.f32.gmra.mrb[0].mxu0 %v5573
        %v5693 = vpop.f32.mrb[0].mxu0
        %v5694 = vadd.f32 0.0, %v5693
        %v5695 = vpop.f32.mrb[0].mxu0
        %5696 = vmatprep.mubr.f32.mxu0 0.0
        %5697 = vmatmul.mubr.f32.gmra.mrb[0].mxu0 %v5574
        %v5698 = vpop.f32.mrb[0].mxu0
        %v5699 = vadd.f32 0.0, %v5698
        %v5700 = vpop.f32.mrb[0].mxu0
        %5701 = vmatprep.mubr.f32.mxu0 0.0
        %5702 = vmatmul.mubr.f32.gmra.mrb[0].mxu0 %v5575
        %v5703 = vpop.f32.mrb[0].mxu0
        %v5704 = vadd.f32 0.0, %v5703
        %v5705 = vpop.f32.mrb[0].mxu0
        %5706 = vmatprep.mubr.f32.mxu0 0.0
        %5707 = vmatmul.mubr.f32.gmra.mrb[0].mxu0 %v5576
        %v5708 = vpop.f32.mrb[0].mxu0
        %v5709 = vadd.f32 0.0, %v5708
        %v5710 = vpop.f32.mrb[0].mxu0
        %5711 = vmatprep.mubr.f32.mxu0 0.0
        %5712 = vmatmul.mubr.f32.gmra.mrb[0].mxu0 %v5577
        %v5713 = vpop.f32.mrb[0].mxu0
        %v5714 = vadd.f32 0.0, %v5713
        %v5715 = vpop.f32.mrb[0].mxu0
        %5716 = vmatprep.mubr.f32.mxu0 0.0
        %5717 = vmatmul.mubr.f32.gmra.mrb[0].mxu0 %v5578
        %v5718 = vpop.f32.mrb[0].mxu0
        %v5719 = vadd.f32 0.0, %v5718
        %v5720 = vpop.f32.mrb[0].mxu0
        %5721 = vmatprep.mubr.f32.mxu0 0.0
        %5722 = vmatmul.mubr.f32.gmra.mrb[0].mxu0 %v5579
        %v5723 = vpop.f32.mrb[0].mxu0
        %v5724 = vadd.f32 0.0, %v5723
        %v5725 = vpop.f32.mrb[0].mxu0
        %5726 = vmatprep.mubr.f32.mxu0 0.0
        %5727 = vmatmul.mubr.f32.gmra.mrb[0].mxu0 %v5580
        %v5728 = vpop.f32.mrb[0].mxu0
        %v5729 = vadd.f32 0.0, %v5728
        %v5730 = vpop.f32.mrb[0].mxu0
        %5731 = vmatprep.mubr.f32.mxu0 0.0
        %5732 = vmatmul.mubr.f32.gmra.mrb[0].mxu0 %v5581
        %v5733 = vpop.f32.mrb[0].mxu0
        %v5734 = vadd.f32 0.0, %v5733
        %v5735 = vpop.f32.mrb[0].mxu0
        %5736 = vmatprep.mubr.f32.mxu0 0.0
        %5737 = vmatmul.mubr.f32.gmra.mrb[0].mxu0 %v5582
        %v5738 = vpop.f32.mrb[0].mxu0
        %v5739 = vadd.f32 0.0, %v5738
        %v5740 = vpop.f32.mrb[0].mxu0
        %5741 = vmatprep.mubr.f32.mxu0 0.0
        %5742 = vmatmul.mubr.f32.gmra.mrb[0].mxu0 %v5583
        %v5743 = vpop.f32.mrb[0].mxu0
        %v5744 = vadd.f32 0.0, %v5743
        %v5745 = vpop.f32.mrb[0].mxu0
        %5746 = vmatprep.mubr.f32.mxu0 0.0
        %5747 = vmatmul.mubr.f32.gmra.mrb[0].mxu0 %v5584
        %v5748 = vpop.f32.mrb[0].mxu0
        %v5749 = vadd.f32 0.0, %v5748
        %v5750 = vpop.f32.mrb[0].mxu0
        %5751 = vmatprep.mubr.f32.mxu0 0.0
        %5752 = vmatmul.mubr.f32.gmra.mrb[0].mxu0 %v5585
        %v5753 = vpop.f32.mrb[0].mxu0
        %v5754 = vadd.f32 0.0, %v5753
        %v5755 = vpop.f32.mrb[0].mxu0
        %5756 = vmatprep.mubr.f32.mxu0 0.0
        %5757 = vmatmul.mubr.f32.gmra.mrb[0].mxu0 %v5586
        %v5758 = vpop.f32.mrb[0].mxu0
        %v5759 = vadd.f32 0.0, %v5758
        %v5760 = vpop.f32.mrb[0].mxu0
        %5761 = vmatprep.mubr.f32.mxu0 0.0
        %5762 = vmatmul.mubr.f32.gmra.mrb[0].mxu0 %v5587
        %v5763 = vpop.f32.mrb[0].mxu0
        %v5764 = vadd.f32 0.0, %v5763
        %v5765 = vpop.f32.mrb[0].mxu0
        %5766 = vmatprep.mubr.f32.mxu0 0.0
        %5767 = vmatmul.mubr.f32.gmra.mrb[0].mxu0 %v5588
        %v5768 = vpop.f32.mrb[0].mxu0
        %v5769 = vadd.f32 0.0, %v5768
        %v5770 = vpop.f32.mrb[0].mxu0
        %5771 = vmatprep.mubr.f32.mxu0 0.0
        %5772 = vmatmul.mubr.f32.gmra.mrb[0].mxu0 %v5589
        %v5773 = vpop.f32.mrb[0].mxu0
        %v5774 = vadd.f32 0.0, %v5773
        %v5775 = vpop.f32.mrb[0].mxu0
        %5776 = vmatprep.mubr.f32.mxu0 0.0
        %5777 = vmatmul.mubr.f32.gmra.mrb[0].mxu0 %v5590
        %v5778 = vpop.f32.mrb[0].mxu0
        %v5779 = vadd.f32 0.0, %v5778
        %v5780 = vpop.f32.mrb[0].mxu0
        %5781 = vmatprep.mubr.f32.mxu0 0.0
        %5782 = vmatmul.mubr.f32.gmra.mrb[0].mxu0 %v5591
        %v5783 = vpop.f32.mrb[0].mxu0
        %v5784 = vadd.f32 0.0, %v5783
        %v5785 = vpop.f32.mrb[0].mxu0
        %5786 = vmatprep.mubr.f32.mxu0 0.0
        %5787 = vmatmul.mubr.f32.gmra.mrb[0].mxu0 %v5592
        %v5788 = vpop.f32.mrb[0].mxu0
        %v5789 = vadd.f32 0.0, %v5788
        %v5790 = vpop.f32.mrb[0].mxu0
        %5791 = vmatprep.mubr.f32.mxu0 0.0
        %5792 = vmatmul.mubr.f32.gmra.mrb[0].mxu0 %v5593
        %v5793 = vpop.f32.mrb[0].mxu0
        %v5794 = vadd.f32 0.0, %v5793
        %v5795 = vpop.f32.mrb[0].mxu0
        %5796 = vmatprep.mubr.f32.mxu0 0.0
        %5797 = vmatmul.mubr.f32.gmra.mrb[0].mxu0 %v5594
        %v5798 = vpop.f32.mrb[0].mxu0
        %v5799 = vadd.f32 0.0, %v5798
        %v5800 = vpop.f32.mrb[0].mxu0
        %5801 = vmatprep.mubr.f32.mxu0 0.0
        %5802 = vmatmul.mubr.f32.gmra.mrb[0].mxu0 %v5595
        %v5803 = vpop.f32.mrb[0].mxu0
        %v5804 = vadd.f32 0.0, %v5803
        %v5805 = vpop.f32.mrb[0].mxu0
        %5806 = vmatprep.mubr.f32.mxu0 0.0
        %5807 = vmatmul.mubr.f32.gmra.mrb[0].mxu0 %v5596
        %v5808 = vpop.f32.mrb[0].mxu0
        %v5809 = vadd.f32 0.0, %v5808
        %v5810 = vpop.f32.mrb[0].mxu0
        %5811 = vmatprep.mubr.f32.mxu0 0.0
        %5812 = vmatmul.mubr.f32.gmra.mrb[0].mxu0 %v5597
        %v5813 = vpop.f32.mrb[0].mxu0
        %v5814 = vadd.f32 0.0, %v5813
        %v5815 = vpop.f32.mrb[0].mxu0
        %5816 = vmatprep.mubr.f32.mxu0 0.0
        %5817 = vmatmul.mubr.f32.gmra.mrb[0].mxu0 %v5598
        %v5818 = vpop.f32.mrb[0].mxu0
        %v5819 = vadd.f32 0.0, %v5818
        %v5820 = vpop.f32.mrb[0].mxu0
        %5821 = vmatprep.mubr.f32.mxu0 0.0
        %5822 = vmatmul.mubr.f32.gmra.mrb[0].mxu0 %v5599
        %v5823 = vpop.f32.mrb[0].mxu0
        %v5824 = vadd.f32 0.0, %v5823
        %v5825 = vpop.f32.mrb[0].mxu0
        %5826 = vmatprep.mubr.f32.mxu0 0.0
        %5827 = vmatmul.mubr.f32.gmra.mrb[0].mxu0 %v5600
        %v5828 = vpop.f32.mrb[0].mxu0
        %v5829 = vadd.f32 0.0, %v5828
        %v5830 = vpop.f32.mrb[0].mxu0
        %5831 = vmatprep.mubr.f32.mxu0 0.0
        %5832 = vmatmul.mubr.f32.gmra.mrb[0].mxu0 %v5601
        %v5833 = vpop.f32.mrb[0].mxu0
        %v5834 = vadd.f32 0.0, %v5833
        %v5835 = vpop.f32.mrb[0].mxu0
        %5836 = vmatprep.mubr.f32.mxu0 0.0
        %5837 = vmatmul.mubr.f32.gmra.mrb[0].mxu0 %v5602
        %v5838 = vpop.f32.mrb[0].mxu0
        %v5839 = vadd.f32 0.0, %v5838
        %v5840 = vpop.f32.mrb[0].mxu0
        %5841 = vmatprep.mubr.f32.mxu0 0.0
        %5842 = vmatmul.mubr.f32.gmra.mrb[0].mxu0 %v5603
        %v5843 = vpop.f32.mrb[0].mxu0
        %v5844 = vadd.f32 0.0, %v5843
        %v5845 = vpop.f32.mrb[0].mxu0
        %5846 = vdwg.mxu0
        %v5847 = vadd.f32 %v5689, %v5694
        %v5848 = vadd.f32 %v5847, %v5699
        %v5849 = vadd.f32 %v5848, %v5704
        %v5850 = vadd.f32 %v5849, %v5709
        %v5851 = vadd.f32 %v5850, %v5714
        %v5852 = vadd.f32 %v5851, %v5719
        %v5853 = vadd.f32 %v5852, %v5724
        %v5854 = vadd.f32 %v5853, %v5729
        %v5855 = vadd.f32 %v5854, %v5734
        %v5856 = vadd.f32 %v5855, %v5739
        %v5857 = vadd.f32 %v5856, %v5744
        %v5858 = vadd.f32 %v5857, %v5749
        %v5859 = vadd.f32 %v5858, %v5754
        %v5860 = vadd.f32 %v5859, %v5759
        %v5861 = vadd.f32 %v5860, %v5764
        %v5862 = vadd.f32 %v5861, %v5769
        %v5863 = vadd.f32 %v5862, %v5774
        %v5864 = vadd.f32 %v5863, %v5779
        %v5865 = vadd.f32 %v5864, %v5784
        %v5866 = vadd.f32 %v5865, %v5789
        %v5867 = vadd.f32 %v5866, %v5794
        %v5868 = vadd.f32 %v5867, %v5799
        %v5869 = vadd.f32 %v5868, %v5804
        %v5870 = vadd.f32 %v5869, %v5809
        %v5871 = vadd.f32 %v5870, %v5814
        %v5872 = vadd.f32 %v5871, %v5819
        %v5873 = vadd.f32 %v5872, %v5824
        %v5874 = vadd.f32 %v5873, %v5829
        %v5875 = vadd.f32 %v5874, %v5834
        %v5876 = vadd.f32 %v5875, %v5839
        %v5877 = vadd.f32 %v5876, %v5844
        %v5878 = vrot.slane %v5877, 4
        %v5879 = vadd.f32 %v5877, %v5878
        %v5880 = vrot.slane %v5879, 2
        %v5881 = vadd.f32 %v5879, %v5880
        %v5882 = vrot.slane %v5881, 1
        %v5883 = vadd.f32 %v5881, %v5882
        %v5884 = vmul.f32 %v5572, %v5572
        %v5885 = vmul.f32 %v5573, %v5573
        %v5886 = vmul.f32 %v5574, %v5574
        %v5887 = vmul.f32 %v5575, %v5575
        %v5888 = vmul.f32 %v5576, %v5576
        %v5889 = vmul.f32 %v5577, %v5577
        %v5890 = vmul.f32 %v5578, %v5578
        %v5891 = vmul.f32 %v5579, %v5579
        %v5892 = vmul.f32 %v5580, %v5580
        %v5893 = vmul.f32 %v5581, %v5581
        %v5894 = vmul.f32 %v5582, %v5582
        %v5895 = vmul.f32 %v5583, %v5583
        %v5896 = vmul.f32 %v5584, %v5584
        %v5897 = vmul.f32 %v5585, %v5585
        %v5898 = vmul.f32 %v5586, %v5586
        %v5899 = vmul.f32 %v5587, %v5587
        %v5900 = vmul.f32 %v5588, %v5588
        %v5901 = vmul.f32 %v5589, %v5589
        %v5902 = vmul.f32 %v5590, %v5590
        %v5903 = vmul.f32 %v5591, %v5591
        %v5904 = vmul.f32 %v5592, %v5592
        %v5905 = vmul.f32 %v5593, %v5593
        %v5906 = vmul.f32 %v5594, %v5594
        %v5907 = vmul.f32 %v5595, %v5595
        %v5908 = vmul.f32 %v5596, %v5596
        %v5909 = vmul.f32 %v5597, %v5597
        %v5910 = vmul.f32 %v5598, %v5598
        %v5911 = vmul.f32 %v5599, %v5599
        %v5912 = vmul.f32 %v5600, %v5600
        %v5913 = vmul.f32 %v5601, %v5601
        %v5914 = vmul.f32 %v5602, %v5602
        %v5915 = vmul.f32 %v5603, %v5603
        %5916 = vmatprep.subr.mxu0 0.0
        %5917 = vmatpush1.msra.mxu0 %v5604
        %5918 = vmatprep.subr.mxu0 0.0
        %5919 = vmatpush1.msra.mxu0 %v5605
        %5920 = vmatprep.subr.mxu0 0.0
        %5921 = vmatpush1.msra.mxu0 %v5606
        %5922 = vmatprep.subr.mxu0 0.0
        %5923 = vmatpush1.msra.mxu0 %v5607
        %5924 = vmatprep.subr.mxu0 0.0
        %5925 = vmatpush1.msra.mxu0 %v5608
        %5926 = vmatprep.subr.mxu0 0.0
        %5927 = vmatpush1.msra.mxu0 %v5609
        %5928 = vmatprep.subr.mxu0 0.0
        %5929 = vmatpush1.msra.mxu0 %v5610
        %5930 = vmatprep.subr.mxu0 0.0
        %5931 = vmatpush1.msra.mxu0 %v5611
        %5932 = vmatprep.subr.mxu0 0.0
        %5933 = vmatpush1.msra.mxu0 %v5612
        %5934 = vmatprep.subr.mxu0 0.0
        %5935 = vmatpush1.msra.mxu0 %v5613
        %5936 = vmatprep.subr.mxu0 0.0
        %5937 = vmatpush1.msra.mxu0 %v5614
        %5938 = vmatprep.subr.mxu0 0.0
        %5939 = vmatpush1.msra.mxu0 %v5615
        %5940 = vmatprep.subr.mxu0 0.0
        %5941 = vmatpush1.msra.mxu0 %v5616
        %5942 = vmatprep.subr.mxu0 0.0
        %5943 = vmatpush1.msra.mxu0 %v5617
        %5944 = vmatprep.subr.mxu0 0.0
        %5945 = vmatpush1.msra.mxu0 %v5618
        %5946 = vmatprep.subr.mxu0 0.0
        %5947 = vmatpush1.msra.mxu0 %v5619
        %5948 = vmatprep.subr.mxu0 0.0
        %5949 = vmatpush1.msra.mxu0 0.0
        %5950 = vmatprep.subr.mxu0 0.0
        %5951 = vmatpush1.msra.mxu0 0.0
        %5952 = vmatprep.subr.mxu0 0.0
        %5953 = vmatpush1.msra.mxu0 0.0
        %5954 = vmatprep.subr.mxu0 0.0
        %5955 = vmatpush1.msra.mxu0 0.0
        %5956 = vmatprep.subr.mxu0 0.0
        %5957 = vmatpush1.msra.mxu0 0.0
        %5958 = vmatprep.subr.mxu0 0.0
        %5959 = vmatpush1.msra.mxu0 0.0
        %5960 = vmatprep.subr.mxu0 0.0
        %5961 = vmatpush1.msra.mxu0 0.0
        %5962 = vmatprep.subr.mxu0 0.0
        %5963 = vmatpush1.msra.mxu0 0.0
        %5964 = vmatprep.subr.mxu0 0.0
        %5965 = vmatpush1.msra.mxu0 0.0
        %5966 = vmatprep.subr.mxu0 0.0
        %5967 = vmatpush1.msra.mxu0 0.0
        %5968 = vmatprep.subr.mxu0 0.0
        %5969 = vmatpush1.msra.mxu0 0.0
        %5970 = vmatprep.subr.mxu0 0.0
        %5971 = vmatpush1.msra.mxu0 0.0
        %5972 = vmatprep.subr.mxu0 0.0
        %5973 = vmatpush1.msra.mxu0 0.0
        %5974 = vmatprep.subr.mxu0 0.0
        %5975 = vmatpush1.msra.mxu0 0.0
        %5976 = vmatprep.subr.mxu0 0.0
        %5977 = vmatpush1.msra.mxu0 0.0
        %5978 = vmatprep.subr.mxu0 0.0
        %5979 = vmatpush1.msra.mxu0 0.0
        %5980 = vmatprep.mubr.f32.mxu0 0.0
        %5981 = vmatmul.mubr.f32.gmra.mrb[0].mxu0 %v5884
        %v5982 = vpop.f32.mrb[0].mxu0
        %v5983 = vadd.f32 0.0, %v5982
        %v5984 = vpop.f32.mrb[0].mxu0
        %5985 = vmatprep.mubr.f32.mxu0 0.0
        %5986 = vmatmul.mubr.f32.gmra.mrb[0].mxu0 %v5885
        %v5987 = vpop.f32.mrb[0].mxu0
        %v5988 = vadd.f32 0.0, %v5987
        %v5989 = vpop.f32.mrb[0].mxu0
        %5990 = vmatprep.mubr.f32.mxu0 0.0
        %5991 = vmatmul.mubr.f32.gmra.mrb[0].mxu0 %v5886
        %v5992 = vpop.f32.mrb[0].mxu0
        %v5993 = vadd.f32 0.0, %v5992
        %v5994 = vpop.f32.mrb[0].mxu0
        %5995 = vmatprep.mubr.f32.mxu0 0.0
        %5996 = vmatmul.mubr.f32.gmra.mrb[0].mxu0 %v5887
        %v5997 = vpop.f32.mrb[0].mxu0
        %v5998 = vadd.f32 0.0, %v5997
        %v5999 = vpop.f32.mrb[0].mxu0
        %6000 = vmatprep.mubr.f32.mxu0 0.0
        %6001 = vmatmul.mubr.f32.gmra.mrb[0].mxu0 %v5888
        %v6002 = vpop.f32.mrb[0].mxu0
        %v6003 = vadd.f32 0.0, %v6002
        %v6004 = vpop.f32.mrb[0].mxu0
        %6005 = vmatprep.mubr.f32.mxu0 0.0
        %6006 = vmatmul.mubr.f32.gmra.mrb[0].mxu0 %v5889
        %v6007 = vpop.f32.mrb[0].mxu0
        %v6008 = vadd.f32 0.0, %v6007
        %v6009 = vpop.f32.mrb[0].mxu0
        %6010 = vmatprep.mubr.f32.mxu0 0.0
        %6011 = vmatmul.mubr.f32.gmra.mrb[0].mxu0 %v5890
        %v6012 = vpop.f32.mrb[0].mxu0
        %v6013 = vadd.f32 0.0, %v6012
        %v6014 = vpop.f32.mrb[0].mxu0
        %6015 = vmatprep.mubr.f32.mxu0 0.0
        %6016 = vmatmul.mubr.f32.gmra.mrb[0].mxu0 %v5891
        %v6017 = vpop.f32.mrb[0].mxu0
        %v6018 = vadd.f32 0.0, %v6017
        %v6019 = vpop.f32.mrb[0].mxu0
        %6020 = vmatprep.mubr.f32.mxu0 0.0
        %6021 = vmatmul.mubr.f32.gmra.mrb[0].mxu0 %v5892
        %v6022 = vpop.f32.mrb[0].mxu0
        %v6023 = vadd.f32 0.0, %v6022
        %v6024 = vpop.f32.mrb[0].mxu0
        %6025 = vmatprep.mubr.f32.mxu0 0.0
        %6026 = vmatmul.mubr.f32.gmra.mrb[0].mxu0 %v5893
        %v6027 = vpop.f32.mrb[0].mxu0
        %v6028 = vadd.f32 0.0, %v6027
        %v6029 = vpop.f32.mrb[0].mxu0
        %6030 = vmatprep.mubr.f32.mxu0 0.0
        %6031 = vmatmul.mubr.f32.gmra.mrb[0].mxu0 %v5894
        %v6032 = vpop.f32.mrb[0].mxu0
        %v6033 = vadd.f32 0.0, %v6032
        %v6034 = vpop.f32.mrb[0].mxu0
        %6035 = vmatprep.mubr.f32.mxu0 0.0
        %6036 = vmatmul.mubr.f32.gmra.mrb[0].mxu0 %v5895
        %v6037 = vpop.f32.mrb[0].mxu0
        %v6038 = vadd.f32 0.0, %v6037
        %v6039 = vpop.f32.mrb[0].mxu0
        %6040 = vmatprep.mubr.f32.mxu0 0.0
        %6041 = vmatmul.mubr.f32.gmra.mrb[0].mxu0 %v5896
        %v6042 = vpop.f32.mrb[0].mxu0
        %v6043 = vadd.f32 0.0, %v6042
        %v6044 = vpop.f32.mrb[0].mxu0
        %6045 = vmatprep.mubr.f32.mxu0 0.0
        %6046 = vmatmul.mubr.f32.gmra.mrb[0].mxu0 %v5897
        %v6047 = vpop.f32.mrb[0].mxu0
        %v6048 = vadd.f32 0.0, %v6047
        %v6049 = vpop.f32.mrb[0].mxu0
        %6050 = vmatprep.mubr.f32.mxu0 0.0
        %6051 = vmatmul.mubr.f32.gmra.mrb[0].mxu0 %v5898
        %v6052 = vpop.f32.mrb[0].mxu0
        %v6053 = vadd.f32 0.0, %v6052
        %v6054 = vpop.f32.mrb[0].mxu0
        %6055 = vmatprep.mubr.f32.mxu0 0.0
        %6056 = vmatmul.mubr.f32.gmra.mrb[0].mxu0 %v5899
        %v6057 = vpop.f32.mrb[0].mxu0
        %v6058 = vadd.f32 0.0, %v6057
        %v6059 = vpop.f32.mrb[0].mxu0
        %6060 = vmatprep.mubr.f32.mxu0 0.0
        %6061 = vmatmul.mubr.f32.gmra.mrb[0].mxu0 %v5900
        %v6062 = vpop.f32.mrb[0].mxu0
        %v6063 = vadd.f32 0.0, %v6062
        %v6064 = vpop.f32.mrb[0].mxu0
        %6065 = vmatprep.mubr.f32.mxu0 0.0
        %6066 = vmatmul.mubr.f32.gmra.mrb[0].mxu0 %v5901
        %v6067 = vpop.f32.mrb[0].mxu0
        %v6068 = vadd.f32 0.0, %v6067
        %v6069 = vpop.f32.mrb[0].mxu0
        %6070 = vmatprep.mubr.f32.mxu0 0.0
        %6071 = vmatmul.mubr.f32.gmra.mrb[0].mxu0 %v5902
        %v6072 = vpop.f32.mrb[0].mxu0
        %v6073 = vadd.f32 0.0, %v6072
        %v6074 = vpop.f32.mrb[0].mxu0
        %6075 = vmatprep.mubr.f32.mxu0 0.0
        %6076 = vmatmul.mubr.f32.gmra.mrb[0].mxu0 %v5903
        %v6077 = vpop.f32.mrb[0].mxu0
        %v6078 = vadd.f32 0.0, %v6077
        %v6079 = vpop.f32.mrb[0].mxu0
        %6080 = vmatprep.mubr.f32.mxu0 0.0
        %6081 = vmatmul.mubr.f32.gmra.mrb[0].mxu0 %v5904
        %v6082 = vpop.f32.mrb[0].mxu0
        %v6083 = vadd.f32 0.0, %v6082
        %v6084 = vpop.f32.mrb[0].mxu0
        %6085 = vmatprep.mubr.f32.mxu0 0.0
        %6086 = vmatmul.mubr.f32.gmra.mrb[0].mxu0 %v5905
        %v6087 = vpop.f32.mrb[0].mxu0
        %v6088 = vadd.f32 0.0, %v6087
        %v6089 = vpop.f32.mrb[0].mxu0
        %6090 = vmatprep.mubr.f32.mxu0 0.0
        %6091 = vmatmul.mubr.f32.gmra.mrb[0].mxu0 %v5906
        %v6092 = vpop.f32.mrb[0].mxu0
        %v6093 = vadd.f32 0.0, %v6092
        %v6094 = vpop.f32.mrb[0].mxu0
        %6095 = vmatprep.mubr.f32.mxu0 0.0
        %6096 = vmatmul.mubr.f32.gmra.mrb[0].mxu0 %v5907
        %v6097 = vpop.f32.mrb[0].mxu0
        %v6098 = vadd.f32 0.0, %v6097
        %v6099 = vpop.f32.mrb[0].mxu0
        %6100 = vmatprep.mubr.f32.mxu0 0.0
        %6101 = vmatmul.mubr.f32.gmra.mrb[0].mxu0 %v5908
        %v6102 = vpop.f32.mrb[0].mxu0
        %v6103 = vadd.f32 0.0, %v6102
        %v6104 = vpop.f32.mrb[0].mxu0
        %6105 = vmatprep.mubr.f32.mxu0 0.0
        %6106 = vmatmul.mubr.f32.gmra.mrb[0].mxu0 %v5909
        %v6107 = vpop.f32.mrb[0].mxu0
        %v6108 = vadd.f32 0.0, %v6107
        %v6109 = vpop.f32.mrb[0].mxu0
        %6110 = vmatprep.mubr.f32.mxu0 0.0
        %6111 = vmatmul.mubr.f32.gmra.mrb[0].mxu0 %v5910
        %v6112 = vpop.f32.mrb[0].mxu0
        %v6113 = vadd.f32 0.0, %v6112
        %v6114 = vpop.f32.mrb[0].mxu0
        %6115 = vmatprep.mubr.f32.mxu0 0.0
        %6116 = vmatmul.mubr.f32.gmra.mrb[0].mxu0 %v5911
        %v6117 = vpop.f32.mrb[0].mxu0
        %v6118 = vadd.f32 0.0, %v6117
        %v6119 = vpop.f32.mrb[0].mxu0
        %6120 = vmatprep.mubr.f32.mxu0 0.0
        %6121 = vmatmul.mubr.f32.gmra.mrb[0].mxu0 %v5912
        %v6122 = vpop.f32.mrb[0].mxu0
        %v6123 = vadd.f32 0.0, %v6122
        %v6124 = vpop.f32.mrb[0].mxu0
        %6125 = vmatprep.mubr.f32.mxu0 0.0
        %6126 = vmatmul.mubr.f32.gmra.mrb[0].mxu0 %v5913
        %v6127 = vpop.f32.mrb[0].mxu0
        %v6128 = vadd.f32 0.0, %v6127
        %v6129 = vpop.f32.mrb[0].mxu0
        %6130 = vmatprep.mubr.f32.mxu0 0.0
        %6131 = vmatmul.mubr.f32.gmra.mrb[0].mxu0 %v5914
        %v6132 = vpop.f32.mrb[0].mxu0
        %v6133 = vadd.f32 0.0, %v6132
        %v6134 = vpop.f32.mrb[0].mxu0
        %6135 = vmatprep.mubr.f32.mxu0 0.0
        %6136 = vmatmul.mubr.f32.gmra.mrb[0].mxu0 %v5915
        %v6137 = vpop.f32.mrb[0].mxu0
        %v6138 = vadd.f32 0.0, %v6137
        %v6139 = vpop.f32.mrb[0].mxu0
        %6140 = vdwg.mxu0
        %v6141 = vadd.f32 %v5983, %v5988
        %v6142 = vadd.f32 %v6141, %v5993
        %v6143 = vadd.f32 %v6142, %v5998
        %v6144 = vadd.f32 %v6143, %v6003
        %v6145 = vadd.f32 %v6144, %v6008
        %v6146 = vadd.f32 %v6145, %v6013
        %v6147 = vadd.f32 %v6146, %v6018
        %v6148 = vadd.f32 %v6147, %v6023
        %v6149 = vadd.f32 %v6148, %v6028
        %v6150 = vadd.f32 %v6149, %v6033
        %v6151 = vadd.f32 %v6150, %v6038
        %v6152 = vadd.f32 %v6151, %v6043
        %v6153 = vadd.f32 %v6152, %v6048
        %v6154 = vadd.f32 %v6153, %v6053
        %v6155 = vadd.f32 %v6154, %v6058
        %v6156 = vadd.f32 %v6155, %v6063
        %v6157 = vadd.f32 %v6156, %v6068
        %v6158 = vadd.f32 %v6157, %v6073
        %v6159 = vadd.f32 %v6158, %v6078
        %v6160 = vadd.f32 %v6159, %v6083
        %v6161 = vadd.f32 %v6160, %v6088
        %v6162 = vadd.f32 %v6161, %v6093
        %v6163 = vadd.f32 %v6162, %v6098
        %v6164 = vadd.f32 %v6163, %v6103
        %v6165 = vadd.f32 %v6164, %v6108
        %v6166 = vadd.f32 %v6165, %v6113
        %v6167 = vadd.f32 %v6166, %v6118
        %v6168 = vadd.f32 %v6167, %v6123
        %v6169 = vadd.f32 %v6168, %v6128
        %v6170 = vadd.f32 %v6169, %v6133
        %v6171 = vadd.f32 %v6170, %v6138
        %v6172 = vrot.slane %v6171, 4
        %v6173 = vadd.f32 %v6171, %v6172
        %v6174 = vrot.slane %v6173, 2
        %v6175 = vadd.f32 %v6173, %v6174
        %v6176 = vrot.slane %v6175, 1
        %v6177 = vadd.f32 %v6175, %v6176
        %v6178 = vmul.f32 %v5883, 0.0009765625
        %v6179 = vmul.f32 %v6177, 0.0009765625
        %v6180 = vmul.f32 %v6178, %v6178
        %v6181 = vsub.f32 %v6179, %v6180
        %v6182 = vadd.f32 %v6181, 1e-05
        %v6183 = vrsqrt.pop %v6182
        %v6184 = vsub.f32 %v5572, %v6178
        %v6185 = vsub.f32 %v5573, %v6178
        %v6186 = vsub.f32 %v5574, %v6178
        %v6187 = vsub.f32 %v5575, %v6178
        %v6188 = vsub.f32 %v5576, %v6178
        %v6189 = vsub.f32 %v5577, %v6178
        %v6190 = vsub.f32 %v5578, %v6178
        %v6191 = vsub.f32 %v5579, %v6178
        %v6192 = vsub.f32 %v5580, %v6178
        %v6193 = vsub.f32 %v5581, %v6178
        %v6194 = vsub.f32 %v5582, %v6178
        %v6195 = vsub.f32 %v5583, %v6178
        %v6196 = vsub.f32 %v5584, %v6178
        %v6197 = vsub.f32 %v5585, %v6178
        %v6198 = vsub.f32 %v5586, %v6178
        %v6199 = vsub.f32 %v5587, %v6178
        %v6200 = vsub.f32 %v5588, %v6178
        %v6201 = vsub.f32 %v5589, %v6178
        %v6202 = vsub.f32 %v5590, %v6178
        %v6203 = vsub.f32 %v5591, %v6178
        %v6204 = vsub.f32 %v5592, %v6178
        %v6205 = vsub.f32 %v5593, %v6178
        %v6206 = vsub.f32 %v5594, %v6178
        %v6207 = vsub.f32 %v5595, %v6178
        %v6208 = vsub.f32 %v5596, %v6178
        %v6209 = vsub.f32 %v5597, %v6178
        %v6210 = vsub.f32 %v5598, %v6178
        %v6211 = vsub.f32 %v5599, %v6178
        %v6212 = vsub.f32 %v5600, %v6178
        %v6213 = vsub.f32 %v5601, %v6178
        %v6214 = vsub.f32 %v5602, %v6178
        %v6215 = vsub.f32 %v5603, %v6178
        %v6216 = vmul.f32 %v6184, %v6183
        %v6217 = vmul.f32 %v6185, %v6183
        %v6218 = vmul.f32 %v6186, %v6183
        %v6219 = vmul.f32 %v6187, %v6183
        %v6220 = vmul.f32 %v6188, %v6183
        %v6221 = vmul.f32 %v6189, %v6183
        %v6222 = vmul.f32 %v6190, %v6183
        %v6223 = vmul.f32 %v6191, %v6183
        %v6224 = vmul.f32 %v6192, %v6183
        %v6225 = vmul.f32 %v6193, %v6183
        %v6226 = vmul.f32 %v6194, %v6183
        %v6227 = vmul.f32 %v6195, %v6183
        %v6228 = vmul.f32 %v6196, %v6183
        %v6229 = vmul.f32 %v6197, %v6183
        %v6230 = vmul.f32 %v6198, %v6183
        %v6231 = vmul.f32 %v6199, %v6183
        %v6232 = vmul.f32 %v6200, %v6183
        %v6233 = vmul.f32 %v6201, %v6183
        %v6234 = vmul.f32 %v6202, %v6183
        %v6235 = vmul.f32 %v6203, %v6183
        %v6236 = vmul.f32 %v6204, %v6183
        %v6237 = vmul.f32 %v6205, %v6183
        %v6238 = vmul.f32 %v6206, %v6183
        %v6239 = vmul.f32 %v6207, %v6183
        %v6240 = vmul.f32 %v6208, %v6183
        %v6241 = vmul.f32 %v6209, %v6183
        %v6242 = vmul.f32 %v6210, %v6183
        %v6243 = vmul.f32 %v6211, %v6183
        %v6244 = vmul.f32 %v6212, %v6183
        %v6245 = vmul.f32 %v6213, %v6183
        %v6246 = vmul.f32 %v6214, %v6183
        %v6247 = vmul.f32 %v6215, %v6183
        %v6249 = vlaneseq
        %v6250 = vshrl.u32 %v6249, 7
        %v6251 = vsub.s32 0, %v6250
        %v6252 = vrot.slane %v5620, %v6251
        %v6254 = vmul.f32 %v6216, %v6252
        %v6255 = vmul.f32 %v6217, %v6252
        %v6256 = vmul.f32 %v6218, %v6252
        %v6257 = vmul.f32 %v6219, %v6252
        %v6258 = vmul.f32 %v6220, %v6252
        %v6259 = vmul.f32 %v6221, %v6252
        %v6260 = vmul.f32 %v6222, %v6252
        %v6261 = vmul.f32 %v6223, %v6252
        %v6262 = vmul.f32 %v6224, %v6252
        %v6263 = vmul.f32 %v6225, %v6252
        %v6264 = vmul.f32 %v6226, %v6252
        %v6265 = vmul.f32 %v6227, %v6252
        %v6266 = vmul.f32 %v6228, %v6252
        %v6267 = vmul.f32 %v6229, %v6252
        %v6268 = vmul.f32 %v6230, %v6252
        %v6269 = vmul.f32 %v6231, %v6252
        %v6270 = vmul.f32 %v6232, %v6252
        %v6271 = vmul.f32 %v6233, %v6252
        %v6272 = vmul.f32 %v6234, %v6252
        %v6273 = vmul.f32 %v6235, %v6252
        %v6274 = vmul.f32 %v6236, %v6252
        %v6275 = vmul.f32 %v6237, %v6252
        %v6276 = vmul.f32 %v6238, %v6252
        %v6277 = vmul.f32 %v6239, %v6252
        %v6278 = vmul.f32 %v6240, %v6252
        %v6279 = vmul.f32 %v6241, %v6252
        %v6280 = vmul.f32 %v6242, %v6252
        %v6281 = vmul.f32 %v6243, %v6252
        %v6282 = vmul.f32 %v6244, %v6252
        %v6283 = vmul.f32 %v6245, %v6252
        %v6284 = vmul.f32 %v6246, %v6252
        %v6285 = vmul.f32 %v6247, %v6252
        %v6287 = vlaneseq
        %v6288 = vshrl.u32 %v6287, 7
        %v6289 = vsub.s32 0, %v6288
        %v6290 = vrot.slane %v5621, %v6289
        %v6292 = vadd.f32 %v6254, %v6290
        %v6293 = vadd.f32 %v6255, %v6290
        %v6294 = vadd.f32 %v6256, %v6290
        %v6295 = vadd.f32 %v6257, %v6290
        %v6296 = vadd.f32 %v6258, %v6290
        %v6297 = vadd.f32 %v6259, %v6290
        %v6298 = vadd.f32 %v6260, %v6290
        %v6299 = vadd.f32 %v6261, %v6290
        %v6300 = vadd.f32 %v6262, %v6290
        %v6301 = vadd.f32 %v6263, %v6290
        %v6302 = vadd.f32 %v6264, %v6290
        %v6303 = vadd.f32 %v6265, %v6290
        %v6304 = vadd.f32 %v6266, %v6290
        %v6305 = vadd.f32 %v6267, %v6290
        %v6306 = vadd.f32 %v6268, %v6290
        %v6307 = vadd.f32 %v6269, %v6290
        %v6308 = vadd.f32 %v6270, %v6290
        %v6309 = vadd.f32 %v6271, %v6290
        %v6310 = vadd.f32 %v6272, %v6290
        %v6311 = vadd.f32 %v6273, %v6290
        %v6312 = vadd.f32 %v6274, %v6290
        %v6313 = vadd.f32 %v6275, %v6290
        %v6314 = vadd.f32 %v6276, %v6290
        %v6315 = vadd.f32 %v6277, %v6290
        %v6316 = vadd.f32 %v6278, %v6290
        %v6317 = vadd.f32 %v6279, %v6290
        %v6318 = vadd.f32 %v6280, %v6290
        %v6319 = vadd.f32 %v6281, %v6290
        %v6320 = vadd.f32 %v6282, %v6290
        %v6321 = vadd.f32 %v6283, %v6290
        %v6322 = vadd.f32 %v6284, %v6290
        %v6323 = vadd.f32 %v6285, %v6290
        %v6324 = vsub.f32 0.0, %v6292
        %v6325 = vsub.f32 0.0, %v6293
        %v6326 = vsub.f32 0.0, %v6294
        %v6327 = vsub.f32 0.0, %v6295
        %v6328 = vsub.f32 0.0, %v6296
        %v6329 = vsub.f32 0.0, %v6297
        %v6330 = vsub.f32 0.0, %v6298
        %v6331 = vsub.f32 0.0, %v6299
        %v6332 = vsub.f32 0.0, %v6300
        %v6333 = vsub.f32 0.0, %v6301
        %v6334 = vsub.f32 0.0, %v6302
        %v6335 = vsub.f32 0.0, %v6303
        %v6336 = vsub.f32 0.0, %v6304
        %v6337 = vsub.f32 0.0, %v6305
        %v6338 = vsub.f32 0.0, %v6306
        %v6339 = vsub.f32 0.0, %v6307
        %v6340 = vsub.f32 0.0, %v6308
        %v6341 = vsub.f32 0.0, %v6309
        %v6342 = vsub.f32 0.0, %v6310
        %v6343 = vsub.f32 0.0, %v6311
        %v6344 = vsub.f32 0.0, %v6312
        %v6345 = vsub.f32 0.0, %v6313
        %v6346 = vsub.f32 0.0, %v6314
        %v6347 = vsub.f32 0.0, %v6315
        %v6348 = vsub.f32 0.0, %v6316
        %v6349 = vsub.f32 0.0, %v6317
        %v6350 = vsub.f32 0.0, %v6318
        %v6351 = vsub.f32 0.0, %v6319
        %v6352 = vsub.f32 0.0, %v6320
        %v6353 = vsub.f32 0.0, %v6321
        %v6354 = vsub.f32 0.0, %v6322
        %v6355 = vsub.f32 0.0, %v6323
        %v6356 = vmul.f32 %v6324, 1.442695
        %v6357 = vpow.pop %v6356
        %v6358 = vmul.f32 %v6325, 1.442695
        %v6359 = vpow.pop %v6358
        %v6360 = vmul.f32 %v6326, 1.442695
        %v6361 = vpow.pop %v6360
        %v6362 = vmul.f32 %v6327, 1.442695
        %v6363 = vpow.pop %v6362
        %v6364 = vmul.f32 %v6328, 1.442695
        %v6365 = vpow.pop %v6364
        %v6366 = vmul.f32 %v6329, 1.442695
        %v6367 = vpow.pop %v6366
        %v6368 = vmul.f32 %v6330, 1.442695
        %v6369 = vpow.pop %v6368
        %v6370 = vmul.f32 %v6331, 1.442695
        %v6371 = vpow.pop %v6370
        %v6372 = vmul.f32 %v6332, 1.442695
        %v6373 = vpow.pop %v6372
        %v6374 = vmul.f32 %v6333, 1.442695
        %v6375 = vpow.pop %v6374
        %v6376 = vmul.f32 %v6334, 1.442695
        %v6377 = vpow.pop %v6376
        %v6378 = vmul.f32 %v6335, 1.442695
        %v6379 = vpow.pop %v6378
        %v6380 = vmul.f32 %v6336, 1.442695
        %v6381 = vpow.pop %v6380
        %v6382 = vmul.f32 %v6337, 1.442695
        %v6383 = vpow.pop %v6382
        %v6384 = vmul.f32 %v6338, 1.442695
        %v6385 = vpow.pop %v6384
        %v6386 = vmul.f32 %v6339, 1.442695
        %v6387 = vpow.pop %v6386
        %v6388 = vmul.f32 %v6340, 1.442695
        %v6389 = vpow.pop %v6388
        %v6390 = vmul.f32 %v6341, 1.442695
        %v6391 = vpow.pop %v6390
        %v6392 = vmul.f32 %v6342, 1.442695
        %v6393 = vpow.pop %v6392
        %v6394 = vmul.f32 %v6343, 1.442695
        %v6395 = vpow.pop %v6394
        %v6396 = vmul.f32 %v6344, 1.442695
        %v6397 = vpow.pop %v6396
        %v6398 = vmul.f32 %v6345, 1.442695
        %v6399 = vpow.pop %v6398
        %v6400 = vmul.f32 %v6346, 1.442695
        %v6401 = vpow.pop %v6400
        %v6402 = vmul.f32 %v6347, 1.442695
        %v6403 = vpow.pop %v6402
        %v6404 = vmul.f32 %v6348, 1.442695
        %v6405 = vpow.pop %v6404
        %v6406 = vmul.f32 %v6349, 1.442695
        %v6407 = vpow.pop %v6406
        %v6408 = vmul.f32 %v6350, 1.442695
        %v6409 = vpow.pop %v6408
        %v6410 = vmul.f32 %v6351, 1.442695
        %v6411 = vpow.pop %v6410
        %v6412 = vmul.f32 %v6352, 1.442695
        %v6413 = vpow.pop %v6412
        %v6414 = vmul.f32 %v6353, 1.442695
        %v6415 = vpow.pop %v6414
        %v6416 = vmul.f32 %v6354, 1.442695
        %v6417 = vpow.pop %v6416
        %v6418 = vmul.f32 %v6355, 1.442695
        %v6419 = vpow.pop %v6418
        %v6420 = vadd.f32 %v6357, 1.0
        %v6421 = vadd.f32 %v6359, 1.0
        %v6422 = vadd.f32 %v6361, 1.0
        %v6423 = vadd.f32 %v6363, 1.0
        %v6424 = vadd.f32 %v6365, 1.0
        %v6425 = vadd.f32 %v6367, 1.0
        %v6426 = vadd.f32 %v6369, 1.0
        %v6427 = vadd.f32 %v6371, 1.0
        %v6428 = vadd.f32 %v6373, 1.0
        %v6429 = vadd.f32 %v6375, 1.0
        %v6430 = vadd.f32 %v6377, 1.0
        %v6431 = vadd.f32 %v6379, 1.0
        %v6432 = vadd.f32 %v6381, 1.0
        %v6433 = vadd.f32 %v6383, 1.0
        %v6434 = vadd.f32 %v6385, 1.0
        %v6435 = vadd.f32 %v6387, 1.0
        %v6436 = vadd.f32 %v6389, 1.0
        %v6437 = vadd.f32 %v6391, 1.0
        %v6438 = vadd.f32 %v6393, 1.0
        %v6439 = vadd.f32 %v6395, 1.0
        %v6440 = vadd.f32 %v6397, 1.0
        %v6441 = vadd.f32 %v6399, 1.0
        %v6442 = vadd.f32 %v6401, 1.0
        %v6443 = vadd.f32 %v6403, 1.0
        %v6444 = vadd.f32 %v6405, 1.0
        %v6445 = vadd.f32 %v6407, 1.0
        %v6446 = vadd.f32 %v6409, 1.0
        %v6447 = vadd.f32 %v6411, 1.0
        %v6448 = vadd.f32 %v6413, 1.0
        %v6449 = vadd.f32 %v6415, 1.0
        %v6450 = vadd.f32 %v6417, 1.0
        %v6451 = vadd.f32 %v6419, 1.0
        %v6452 = vrcp.pop %v6420
        %v6453 = vmul.f32 1.0, %v6452
        %v6454 = vrcp.pop %v6421
        %v6455 = vmul.f32 1.0, %v6454
        %v6456 = vrcp.pop %v6422
        %v6457 = vmul.f32 1.0, %v6456
        %v6458 = vrcp.pop %v6423
        %v6459 = vmul.f32 1.0, %v6458
        %v6460 = vrcp.pop %v6424
        %v6461 = vmul.f32 1.0, %v6460
        %v6462 = vrcp.pop %v6425
        %v6463 = vmul.f32 1.0, %v6462
        %v6464 = vrcp.pop %v6426
        %v6465 = vmul.f32 1.0, %v6464
        %v6466 = vrcp.pop %v6427
        %v6467 = vmul.f32 1.0, %v6466
        %v6468 = vrcp.pop %v6428
        %v6469 = vmul.f32 1.0, %v6468
        %v6470 = vrcp.pop %v6429
        %v6471 = vmul.f32 1.0, %v6470
        %v6472 = vrcp.pop %v6430
        %v6473 = vmul.f32 1.0, %v6472
        %v6474 = vrcp.pop %v6431
        %v6475 = vmul.f32 1.0, %v6474
        %v6476 = vrcp.pop %v6432
        %v6477 = vmul.f32 1.0, %v6476
        %v6478 = vrcp.pop %v6433
        %v6479 = vmul.f32 1.0, %v6478
        %v6480 = vrcp.pop %v6434
        %v6481 = vmul.f32 1.0, %v6480
        %v6482 = vrcp.pop %v6435
        %v6483 = vmul.f32 1.0, %v6482
        %v6484 = vrcp.pop %v6436
        %v6485 = vmul.f32 1.0, %v6484
        %v6486 = vrcp.pop %v6437
        %v6487 = vmul.f32 1.0, %v6486
        %v6488 = vrcp.pop %v6438
        %v6489 = vmul.f32 1.0, %v6488
        %v6490 = vrcp.pop %v6439
        %v6491 = vmul.f32 1.0, %v6490
        %v6492 = vrcp.pop %v6440
        %v6493 = vmul.f32 1.0, %v6492
        %v6494 = vrcp.pop %v6441
        %v6495 = vmul.f32 1.0, %v6494
        %v6496 = vrcp.pop %v6442
        %v6497 = vmul.f32 1.0, %v6496
        %v6498 = vrcp.pop %v6443
        %v6499 = vmul.f32 1.0, %v6498
        %v6500 = vrcp.pop %v6444
        %v6501 = vmul.f32 1.0, %v6500
        %v6502 = vrcp.pop %v6445
        %v6503 = vmul.f32 1.0, %v6502
        %v6504 = vrcp.pop %v6446
        %v6505 = vmul.f32 1.0, %v6504
        %v6506 = vrcp.pop %v6447
        %v6507 = vmul.f32 1.0, %v6506
        %v6508 = vrcp.pop %v6448
        %v6509 = vmul.f32 1.0, %v6508
        %v6510 = vrcp.pop %v6449
        %v6511 = vmul.f32 1.0, %v6510
        %v6512 = vrcp.pop %v6450
        %v6513 = vmul.f32 1.0, %v6512
        %v6514 = vrcp.pop %v6451
        %v6515 = vmul.f32 1.0, %v6514
        %v6516 = vmul.f32 %v6292, %v6453
        %v6517 = vmul.f32 %v6293, %v6455
        %v6518 = vmul.f32 %v6294, %v6457
        %v6519 = vmul.f32 %v6295, %v6459
        %v6520 = vmul.f32 %v6296, %v6461
        %v6521 = vmul.f32 %v6297, %v6463
        %v6522 = vmul.f32 %v6298, %v6465
        %v6523 = vmul.f32 %v6299, %v6467
        %v6524 = vmul.f32 %v6300, %v6469
        %v6525 = vmul.f32 %v6301, %v6471
        %v6526 = vmul.f32 %v6302, %v6473
        %v6527 = vmul.f32 %v6303, %v6475
        %v6528 = vmul.f32 %v6304, %v6477
        %v6529 = vmul.f32 %v6305, %v6479
        %v6530 = vmul.f32 %v6306, %v6481
        %v6531 = vmul.f32 %v6307, %v6483
        %v6532 = vmul.f32 %v6308, %v6485
        %v6533 = vmul.f32 %v6309, %v6487
        %v6534 = vmul.f32 %v6310, %v6489
        %v6535 = vmul.f32 %v6311, %v6491
        %v6536 = vmul.f32 %v6312, %v6493
        %v6537 = vmul.f32 %v6313, %v6495
        %v6538 = vmul.f32 %v6314, %v6497
        %v6539 = vmul.f32 %v6315, %v6499
        %v6540 = vmul.f32 %v6316, %v6501
        %v6541 = vmul.f32 %v6317, %v6503
        %v6542 = vmul.f32 %v6318, %v6505
        %v6543 = vmul.f32 %v6319, %v6507
        %v6544 = vmul.f32 %v6320, %v6509
        %v6545 = vmul.f32 %v6321, %v6511
        %v6546 = vmul.f32 %v6322, %v6513
        %v6547 = vmul.f32 %v6323, %v6515
        %v6548 = vld [vmem:[%s11] sm:$0x1]
        %v6579 = vrot.slane %v6516, 7
        %v6580 = vrot.slane %v6517, 7
        %v6581 = vsel %vm1843, %v6579, %v6580
        %v6582 = vrot.slane %v6518, 7
        %v6583 = vsel %vm1843, %v6580, %v6582
        %v6584 = vrot.slane %v6519, 7
        %v6585 = vsel %vm1843, %v6582, %v6584
        %v6586 = vrot.slane %v6520, 7
        %v6587 = vsel %vm1843, %v6584, %v6586
        %v6588 = vrot.slane %v6521, 7
        %v6589 = vsel %vm1843, %v6586, %v6588
        %v6590 = vrot.slane %v6522, 7
        %v6591 = vsel %vm1843, %v6588, %v6590
        %v6592 = vrot.slane %v6523, 7
        %v6593 = vsel %vm1843, %v6590, %v6592
        %v6594 = vrot.slane %v6524, 7
        %v6595 = vsel %vm1843, %v6592, %v6594
        %v6596 = vrot.slane %v6525, 7
        %v6597 = vsel %vm1843, %v6594, %v6596
        %v6598 = vrot.slane %v6526, 7
        %v6599 = vsel %vm1843, %v6596, %v6598
        %v6600 = vrot.slane %v6527, 7
        %v6601 = vsel %vm1843, %v6598, %v6600
        %v6602 = vrot.slane %v6528, 7
        %v6603 = vsel %vm1843, %v6600, %v6602
        %v6604 = vrot.slane %v6529, 7
        %v6605 = vsel %vm1843, %v6602, %v6604
        %v6606 = vrot.slane %v6530, 7
        %v6607 = vsel %vm1843, %v6604, %v6606
        %v6608 = vrot.slane %v6531, 7
        %v6609 = vsel %vm1843, %v6606, %v6608
        %v6610 = vrot.slane %v6532, 7
        %v6611 = vsel %vm1843, %v6608, %v6610
        %v6612 = vrot.slane %v6533, 7
        %v6613 = vsel %vm1843, %v6610, %v6612
        %v6614 = vrot.slane %v6534, 7
        %v6615 = vsel %vm1843, %v6612, %v6614
        %v6616 = vrot.slane %v6535, 7
        %v6617 = vsel %vm1843, %v6614, %v6616
        %v6618 = vrot.slane %v6536, 7
        %v6619 = vsel %vm1843, %v6616, %v6618
        %v6620 = vrot.slane %v6537, 7
        %v6621 = vsel %vm1843, %v6618, %v6620
        %v6622 = vrot.slane %v6538, 7
        %v6623 = vsel %vm1843, %v6620, %v6622
        %v6624 = vrot.slane %v6539, 7
        %v6625 = vsel %vm1843, %v6622, %v6624
        %v6626 = vrot.slane %v6540, 7
        %v6627 = vsel %vm1843, %v6624, %v6626
        %v6628 = vrot.slane %v6541, 7
        %v6629 = vsel %vm1843, %v6626, %v6628
        %v6630 = vrot.slane %v6542, 7
        %v6631 = vsel %vm1843, %v6628, %v6630
        %v6632 = vrot.slane %v6543, 7
        %v6633 = vsel %vm1843, %v6630, %v6632
        %v6634 = vrot.slane %v6544, 7
        %v6635 = vsel %vm1843, %v6632, %v6634
        %v6636 = vrot.slane %v6545, 7
        %v6637 = vsel %vm1843, %v6634, %v6636
        %v6668 = vsel %vm1843, 0.0, %v6579
        %v6669 = vmul.f32 %v6668, %v1947
        %v6670 = vmul.f32 %v6581, %v1952
        %v6671 = vmul.f32 %v6583, %v1957
        %v6672 = vmul.f32 %v6585, %v1962
        %v6673 = vmul.f32 %v6587, %v1967
        %v6674 = vmul.f32 %v6589, %v1972
        %v6675 = vmul.f32 %v6591, %v1977
        %v6676 = vmul.f32 %v6593, %v1982
        %v6677 = vmul.f32 %v6595, %v1987
        %v6678 = vmul.f32 %v6597, %v1992
        %v6679 = vmul.f32 %v6599, %v1997
        %v6680 = vmul.f32 %v6601, %v2002
        %v6681 = vmul.f32 %v6603, %v2007
        %v6682 = vmul.f32 %v6605, %v2012
        %v6683 = vmul.f32 %v6607, %v2017
        %v6684 = vmul.f32 %v6609, %v2022
        %v6685 = vmul.f32 %v6611, %v2027
        %v6686 = vmul.f32 %v6613, %v2032
        %v6687 = vmul.f32 %v6615, %v2037
        %v6688 = vmul.f32 %v6617, %v2042
        %v6689 = vmul.f32 %v6619, %v2047
        %v6690 = vmul.f32 %v6621, %v2052
        %v6691 = vmul.f32 %v6623, %v2057
        %v6692 = vmul.f32 %v6625, %v2062
        %v6693 = vmul.f32 %v6627, %v2067
        %v6694 = vmul.f32 %v6629, %v2072
        %v6695 = vmul.f32 %v6631, %v2077
        %v6696 = vmul.f32 %v6633, %v2082
        %v6697 = vmul.f32 %v6635, %v2087
        %v6698 = vmul.f32 %v6637, %v2092
        %v6699 = vld [vmem:[%s10] sm:$0xff]
        %v6700 = vld [vmem:[%s10 + $0x8] sm:$0xff]
        %v6701 = vld [vmem:[%s10 + $0x10] sm:$0xff]
        %v6702 = vld [vmem:[%s10 + $0x18] sm:$0xff]
        %v6703 = vld [vmem:[%s10 + $0x20] sm:$0xff]
        %v6704 = vld [vmem:[%s10 + $0x28] sm:$0xff]
        %v6705 = vld [vmem:[%s10 + $0x30] sm:$0xff]
        %v6706 = vld [vmem:[%s10 + $0x38] sm:$0xff]
        %v6707 = vld [vmem:[%s10 + $0x40] sm:$0xff]
        %v6708 = vld [vmem:[%s10 + $0x48] sm:$0xff]
        %v6709 = vld [vmem:[%s10 + $0x50] sm:$0xff]
        %v6710 = vld [vmem:[%s10 + $0x58] sm:$0xff]
        %v6711 = vld [vmem:[%s10 + $0x60] sm:$0xff]
        %v6712 = vld [vmem:[%s10 + $0x68] sm:$0xff]
        %v6713 = vld [vmem:[%s10 + $0x70] sm:$0xff]
        %v6714 = vld [vmem:[%s10 + $0x78] sm:$0xff]
        %s6715 = scalar_lea.vmem %s10, 128
        %v6716 = vld [vmem:[%s6715] sm:$0xff]
        %v6717 = vld [vmem:[%s6715 + $0x8] sm:$0xff]
        %v6718 = vld [vmem:[%s6715 + $0x10] sm:$0xff]
        %v6719 = vld [vmem:[%s6715 + $0x18] sm:$0xff]
        %v6720 = vld [vmem:[%s6715 + $0x20] sm:$0xff]
        %v6721 = vld [vmem:[%s6715 + $0x28] sm:$0xff]
        %v6722 = vld [vmem:[%s6715 + $0x30] sm:$0xff]
        %v6723 = vld [vmem:[%s6715 + $0x38] sm:$0xff]
        %v6724 = vld [vmem:[%s6715 + $0x40] sm:$0xff]
        %v6725 = vld [vmem:[%s6715 + $0x48] sm:$0xff]
        %v6726 = vld [vmem:[%s6715 + $0x50] sm:$0xff]
        %v6727 = vld [vmem:[%s6715 + $0x58] sm:$0xff]
        %v6728 = vld [vmem:[%s6715 + $0x60] sm:$0xff]
        %v6729 = vld [vmem:[%s6715 + $0x68] sm:$0xff]
        %v6730 = vld [vmem:[%s6715 + $0x70] sm:$0xff]
        %v6731 = vld [vmem:[%s6715 + $0x78] sm:$0xff]
        %6732 = vmatprep.subr.mxu0 0.0
        %6733 = vmatpush1.msra.mxu0 %v6716
        %6734 = vmatprep.subr.mxu0 0.0
        %6735 = vmatpush1.msra.mxu0 %v6717
        %6736 = vmatprep.subr.mxu0 0.0
        %6737 = vmatpush1.msra.mxu0 %v6718
        %6738 = vmatprep.subr.mxu0 0.0
        %6739 = vmatpush1.msra.mxu0 %v6719
        %6740 = vmatprep.subr.mxu0 0.0
        %6741 = vmatpush1.msra.mxu0 %v6720
        %6742 = vmatprep.subr.mxu0 0.0
        %6743 = vmatpush1.msra.mxu0 %v6721
        %6744 = vmatprep.subr.mxu0 0.0
        %6745 = vmatpush1.msra.mxu0 %v6722
        %6746 = vmatprep.subr.mxu0 0.0
        %6747 = vmatpush1.msra.mxu0 %v6723
        %6748 = vmatprep.subr.mxu0 0.0
        %6749 = vmatpush1.msra.mxu0 %v6724
        %6750 = vmatprep.subr.mxu0 0.0
        %6751 = vmatpush1.msra.mxu0 %v6725
        %6752 = vmatprep.subr.mxu0 0.0
        %6753 = vmatpush1.msra.mxu0 %v6726
        %6754 = vmatprep.subr.mxu0 0.0
        %6755 = vmatpush1.msra.mxu0 %v6727
        %6756 = vmatprep.subr.mxu0 0.0
        %6757 = vmatpush1.msra.mxu0 %v6728
        %6758 = vmatprep.subr.mxu0 0.0
        %6759 = vmatpush1.msra.mxu0 %v6729
        %6760 = vmatprep.subr.mxu0 0.0
        %6761 = vmatpush1.msra.mxu0 %v6730
        %6762 = vmatprep.subr.mxu0 0.0
        %6763 = vmatpush1.msra.mxu0 %v6731
        %6764 = vmatprep.subr.mxu0 0.0
        %6765 = vmatpush1.msra.mxu0 0.0
        %6766 = vmatprep.subr.mxu0 0.0
        %6767 = vmatpush1.msra.mxu0 0.0
        %6768 = vmatprep.subr.mxu0 0.0
        %6769 = vmatpush1.msra.mxu0 0.0
        %6770 = vmatprep.subr.mxu0 0.0
        %6771 = vmatpush1.msra.mxu0 0.0
        %6772 = vmatprep.subr.mxu0 0.0
        %6773 = vmatpush1.msra.mxu0 0.0
        %6774 = vmatprep.subr.mxu0 0.0
        %6775 = vmatpush1.msra.mxu0 0.0
        %6776 = vmatprep.subr.mxu0 0.0
        %6777 = vmatpush1.msra.mxu0 0.0
        %6778 = vmatprep.subr.mxu0 0.0
        %6779 = vmatpush1.msra.mxu0 0.0
        %6780 = vmatprep.subr.mxu0 0.0
        %6781 = vmatpush1.msra.mxu0 0.0
        %6782 = vmatprep.subr.mxu0 0.0
        %6783 = vmatpush1.msra.mxu0 0.0
        %6784 = vmatprep.subr.mxu0 0.0
        %6785 = vmatpush1.msra.mxu0 0.0
        %6786 = vmatprep.subr.mxu0 0.0
        %6787 = vmatpush1.msra.mxu0 0.0
        %6788 = vmatprep.subr.mxu0 0.0
        %6789 = vmatpush1.msra.mxu0 0.0
        %6790 = vmatprep.subr.mxu0 0.0
        %6791 = vmatpush1.msra.mxu0 0.0
        %6792 = vmatprep.subr.mxu0 0.0
        %6793 = vmatpush1.msra.mxu0 0.0
        %6794 = vmatprep.subr.mxu0 0.0
        %6795 = vmatpush1.msra.mxu0 0.0
        %6796 = vmatprep.mubr.f32.mxu0 0.0
        %6797 = vmatmul.mubr.f32.gmra.mrb[0].mxu0 0.0
        %v6798 = vpop.f32.mrb[0].mxu0
        %v6799 = vadd.f32 0.0, %v6798
        %v6800 = vpop.f32.mrb[0].mxu0
        %6801 = vmatprep.mubr.f32.mxu0 0.0
        %6802 = vmatmul.mubr.f32.gmra.mrb[0].mxu0 0.0
        %v6803 = vpop.f32.mrb[0].mxu0
        %v6804 = vadd.f32 0.0, %v6803
        %v6805 = vpop.f32.mrb[0].mxu0
        %6806 = vmatprep.mubr.f32.mxu0 0.0
        %6807 = vmatmul.mubr.f32.gmra.mrb[0].mxu0 %v6516
        %v6808 = vpop.f32.mrb[0].mxu0
        %v6809 = vadd.f32 0.0, %v6808
        %v6810 = vpop.f32.mrb[0].mxu0
        %6811 = vmatprep.mubr.f32.mxu0 0.0
        %6812 = vmatmul.mubr.f32.gmra.mrb[0].mxu0 %v6517
        %v6813 = vpop.f32.mrb[0].mxu0
        %v6814 = vadd.f32 0.0, %v6813
        %v6815 = vpop.f32.mrb[0].mxu0
        %6816 = vmatprep.mubr.f32.mxu0 0.0
        %6817 = vmatmul.mubr.f32.gmra.mrb[0].mxu0 %v6518
        %v6818 = vpop.f32.mrb[0].mxu0
        %v6819 = vadd.f32 0.0, %v6818
        %v6820 = vpop.f32.mrb[0].mxu0
        %6821 = vmatprep.mubr.f32.mxu0 0.0
        %6822 = vmatmul.mubr.f32.gmra.mrb[0].mxu0 %v6519
        %v6823 = vpop.f32.mrb[0].mxu0
        %v6824 = vadd.f32 0.0, %v6823
        %v6825 = vpop.f32.mrb[0].mxu0
        %6826 = vmatprep.mubr.f32.mxu0 0.0
        %6827 = vmatmul.mubr.f32.gmra.mrb[0].mxu0 %v6520
        %v6828 = vpop.f32.mrb[0].mxu0
        %v6829 = vadd.f32 0.0, %v6828
        %v6830 = vpop.f32.mrb[0].mxu0
        %6831 = vmatprep.mubr.f32.mxu0 0.0
        %6832 = vmatmul.mubr.f32.gmra.mrb[0].mxu0 %v6521
        %v6833 = vpop.f32.mrb[0].mxu0
        %v6834 = vadd.f32 0.0, %v6833
        %v6835 = vpop.f32.mrb[0].mxu0
        %6836 = vmatprep.mubr.f32.mxu0 0.0
        %6837 = vmatmul.mubr.f32.gmra.mrb[0].mxu0 %v6522
        %v6838 = vpop.f32.mrb[0].mxu0
        %v6839 = vadd.f32 0.0, %v6838
        %v6840 = vpop.f32.mrb[0].mxu0
        %6841 = vmatprep.mubr.f32.mxu0 0.0
        %6842 = vmatmul.mubr.f32.gmra.mrb[0].mxu0 %v6523
        %v6843 = vpop.f32.mrb[0].mxu0
        %v6844 = vadd.f32 0.0, %v6843
        %v6845 = vpop.f32.mrb[0].mxu0
        %6846 = vmatprep.mubr.f32.mxu0 0.0
        %6847 = vmatmul.mubr.f32.gmra.mrb[0].mxu0 %v6524
        %v6848 = vpop.f32.mrb[0].mxu0
        %v6849 = vadd.f32 0.0, %v6848
        %v6850 = vpop.f32.mrb[0].mxu0
        %6851 = vmatprep.mubr.f32.mxu0 0.0
        %6852 = vmatmul.mubr.f32.gmra.mrb[0].mxu0 %v6525
        %v6853 = vpop.f32.mrb[0].mxu0
        %v6854 = vadd.f32 0.0, %v6853
        %v6855 = vpop.f32.mrb[0].mxu0
        %6856 = vmatprep.mubr.f32.mxu0 0.0
        %6857 = vmatmul.mubr.f32.gmra.mrb[0].mxu0 %v6526
        %v6858 = vpop.f32.mrb[0].mxu0
        %v6859 = vadd.f32 0.0, %v6858
        %v6860 = vpop.f32.mrb[0].mxu0
        %6861 = vmatprep.mubr.f32.mxu0 0.0
        %6862 = vmatmul.mubr.f32.gmra.mrb[0].mxu0 %v6527
        %v6863 = vpop.f32.mrb[0].mxu0
        %v6864 = vadd.f32 0.0, %v6863
        %v6865 = vpop.f32.mrb[0].mxu0
        %6866 = vmatprep.mubr.f32.mxu0 0.0
        %6867 = vmatmul.mubr.f32.gmra.mrb[0].mxu0 %v6528
        %v6868 = vpop.f32.mrb[0].mxu0
        %v6869 = vadd.f32 0.0, %v6868
        %v6870 = vpop.f32.mrb[0].mxu0
        %6871 = vmatprep.mubr.f32.mxu0 0.0
        %6872 = vmatmul.mubr.f32.gmra.mrb[0].mxu0 %v6529
        %v6873 = vpop.f32.mrb[0].mxu0
        %v6874 = vadd.f32 0.0, %v6873
        %v6875 = vpop.f32.mrb[0].mxu0
        %6876 = vmatprep.mubr.f32.mxu0 0.0
        %6877 = vmatmul.mubr.f32.gmra.mrb[0].mxu0 %v6530
        %v6878 = vpop.f32.mrb[0].mxu0
        %v6879 = vadd.f32 0.0, %v6878
        %v6880 = vpop.f32.mrb[0].mxu0
        %6881 = vmatprep.mubr.f32.mxu0 0.0
        %6882 = vmatmul.mubr.f32.gmra.mrb[0].mxu0 %v6531
        %v6883 = vpop.f32.mrb[0].mxu0
        %v6884 = vadd.f32 0.0, %v6883
        %v6885 = vpop.f32.mrb[0].mxu0
        %6886 = vmatprep.mubr.f32.mxu0 0.0
        %6887 = vmatmul.mubr.f32.gmra.mrb[0].mxu0 %v6532
        %v6888 = vpop.f32.mrb[0].mxu0
        %v6889 = vadd.f32 0.0, %v6888
        %v6890 = vpop.f32.mrb[0].mxu0
        %6891 = vmatprep.mubr.f32.mxu0 0.0
        %6892 = vmatmul.mubr.f32.gmra.mrb[0].mxu0 %v6533
        %v6893 = vpop.f32.mrb[0].mxu0
        %v6894 = vadd.f32 0.0, %v6893
        %v6895 = vpop.f32.mrb[0].mxu0
        %6896 = vmatprep.mubr.f32.mxu0 0.0
        %6897 = vmatmul.mubr.f32.gmra.mrb[0].mxu0 %v6534
        %v6898 = vpop.f32.mrb[0].mxu0
        %v6899 = vadd.f32 0.0, %v6898
        %v6900 = vpop.f32.mrb[0].mxu0
        %6901 = vmatprep.mubr.f32.mxu0 0.0
        %6902 = vmatmul.mubr.f32.gmra.mrb[0].mxu0 %v6535
        %v6903 = vpop.f32.mrb[0].mxu0
        %v6904 = vadd.f32 0.0, %v6903
        %v6905 = vpop.f32.mrb[0].mxu0
        %6906 = vmatprep.mubr.f32.mxu0 0.0
        %6907 = vmatmul.mubr.f32.gmra.mrb[0].mxu0 %v6536
        %v6908 = vpop.f32.mrb[0].mxu0
        %v6909 = vadd.f32 0.0, %v6908
        %v6910 = vpop.f32.mrb[0].mxu0
        %6911 = vmatprep.mubr.f32.mxu0 0.0
        %6912 = vmatmul.mubr.f32.gmra.mrb[0].mxu0 %v6537
        %v6913 = vpop.f32.mrb[0].mxu0
        %v6914 = vadd.f32 0.0, %v6913
        %v6915 = vpop.f32.mrb[0].mxu0
        %6916 = vmatprep.mubr.f32.mxu0 0.0
        %6917 = vmatmul.mubr.f32.gmra.mrb[0].mxu0 %v6538
        %v6918 = vpop.f32.mrb[0].mxu0
        %v6919 = vadd.f32 0.0, %v6918
        %v6920 = vpop.f32.mrb[0].mxu0
        %6921 = vmatprep.mubr.f32.mxu0 0.0
        %6922 = vmatmul.mubr.f32.gmra.mrb[0].mxu0 %v6539
        %v6923 = vpop.f32.mrb[0].mxu0
        %v6924 = vadd.f32 0.0, %v6923
        %v6925 = vpop.f32.mrb[0].mxu0
        %6926 = vmatprep.mubr.f32.mxu0 0.0
        %6927 = vmatmul.mubr.f32.gmra.mrb[0].mxu0 %v6540
        %v6928 = vpop.f32.mrb[0].mxu0
        %v6929 = vadd.f32 0.0, %v6928
        %v6930 = vpop.f32.mrb[0].mxu0
        %6931 = vmatprep.mubr.f32.mxu0 0.0
        %6932 = vmatmul.mubr.f32.gmra.mrb[0].mxu0 %v6541
        %v6933 = vpop.f32.mrb[0].mxu0
        %v6934 = vadd.f32 0.0, %v6933
        %v6935 = vpop.f32.mrb[0].mxu0
        %6936 = vmatprep.mubr.f32.mxu0 0.0
        %6937 = vmatmul.mubr.f32.gmra.mrb[0].mxu0 %v6542
        %v6938 = vpop.f32.mrb[0].mxu0
        %v6939 = vadd.f32 0.0, %v6938
        %v6940 = vpop.f32.mrb[0].mxu0
        %6941 = vmatprep.mubr.f32.mxu0 0.0
        %6942 = vmatmul.mubr.f32.gmra.mrb[0].mxu0 %v6543
        %v6943 = vpop.f32.mrb[0].mxu0
        %v6944 = vadd.f32 0.0, %v6943
        %v6945 = vpop.f32.mrb[0].mxu0
        %6946 = vmatprep.mubr.f32.mxu0 0.0
        %6947 = vmatmul.mubr.f32.gmra.mrb[0].mxu0 %v6544
        %v6948 = vpop.f32.mrb[0].mxu0
        %v6949 = vadd.f32 0.0, %v6948
        %v6950 = vpop.f32.mrb[0].mxu0
        %6951 = vmatprep.mubr.f32.mxu0 0.0
        %6952 = vmatmul.mubr.f32.gmra.mrb[0].mxu0 %v6545
        %v6953 = vpop.f32.mrb[0].mxu0
        %v6954 = vadd.f32 0.0, %v6953
        %v6955 = vpop.f32.mrb[0].mxu0
        %6956 = vdwg.mxu0
        %6957 = vmatprep.subr.mxu0 0.0
        %6958 = vmatpush1.msra.mxu0 %v6699
        %6959 = vmatprep.subr.mxu0 0.0
        %6960 = vmatpush1.msra.mxu0 %v6700
        %6961 = vmatprep.subr.mxu0 0.0
        %6962 = vmatpush1.msra.mxu0 %v6701
        %6963 = vmatprep.subr.mxu0 0.0
        %6964 = vmatpush1.msra.mxu0 %v6702
        %6965 = vmatprep.subr.mxu0 0.0
        %6966 = vmatpush1.msra.mxu0 %v6703
        %6967 = vmatprep.subr.mxu0 0.0
        %6968 = vmatpush1.msra.mxu0 %v6704
        %6969 = vmatprep.subr.mxu0 0.0
        %6970 = vmatpush1.msra.mxu0 %v6705
        %6971 = vmatprep.subr.mxu0 0.0
        %6972 = vmatpush1.msra.mxu0 %v6706
        %6973 = vmatprep.subr.mxu0 0.0
        %6974 = vmatpush1.msra.mxu0 %v6707
        %6975 = vmatprep.subr.mxu0 0.0
        %6976 = vmatpush1.msra.mxu0 %v6708
        %6977 = vmatprep.subr.mxu0 0.0
        %6978 = vmatpush1.msra.mxu0 %v6709
        %6979 = vmatprep.subr.mxu0 0.0
        %6980 = vmatpush1.msra.mxu0 %v6710
        %6981 = vmatprep.subr.mxu0 0.0
        %6982 = vmatpush1.msra.mxu0 %v6711
        %6983 = vmatprep.subr.mxu0 0.0
        %6984 = vmatpush1.msra.mxu0 %v6712
        %6985 = vmatprep.subr.mxu0 0.0
        %6986 = vmatpush1.msra.mxu0 %v6713
        %6987 = vmatprep.subr.mxu0 0.0
        %6988 = vmatpush1.msra.mxu0 %v6714
        %6989 = vmatprep.subr.mxu0 0.0
        %6990 = vmatpush1.msra.mxu0 0.0
        %6991 = vmatprep.subr.mxu0 0.0
        %6992 = vmatpush1.msra.mxu0 0.0
        %6993 = vmatprep.subr.mxu0 0.0
        %6994 = vmatpush1.msra.mxu0 0.0
        %6995 = vmatprep.subr.mxu0 0.0
        %6996 = vmatpush1.msra.mxu0 0.0
        %6997 = vmatprep.subr.mxu0 0.0
        %6998 = vmatpush1.msra.mxu0 0.0
        %6999 = vmatprep.subr.mxu0 0.0
        %7000 = vmatpush1.msra.mxu0 0.0
        %7001 = vmatprep.subr.mxu0 0.0
        %7002 = vmatpush1.msra.mxu0 0.0
        %7003 = vmatprep.subr.mxu0 0.0
        %7004 = vmatpush1.msra.mxu0 0.0
        %7005 = vmatprep.subr.mxu0 0.0
        %7006 = vmatpush1.msra.mxu0 0.0
        %7007 = vmatprep.subr.mxu0 0.0
        %7008 = vmatpush1.msra.mxu0 0.0
        %7009 = vmatprep.subr.mxu0 0.0
        %7010 = vmatpush1.msra.mxu0 0.0
        %7011 = vmatprep.subr.mxu0 0.0
        %7012 = vmatpush1.msra.mxu0 0.0
        %7013 = vmatprep.subr.mxu0 0.0
        %7014 = vmatpush1.msra.mxu0 0.0
        %7015 = vmatprep.subr.mxu0 0.0
        %7016 = vmatpush1.msra.mxu0 0.0
        %7017 = vmatprep.subr.mxu0 0.0
        %7018 = vmatpush1.msra.mxu0 0.0
        %7019 = vmatprep.subr.mxu0 0.0
        %7020 = vmatpush1.msra.mxu0 0.0
        %7021 = vmatprep.mubr.f32.mxu0 0.0
        %7022 = vmatmul.mubr.f32.gmra.mrb[0].mxu0 %v2094
        %v7023 = vpop.f32.mrb[0].mxu0
        %v7024 = vadd.f32 %v6799, %v7023
        %v7025 = vpop.f32.mrb[0].mxu0
        %7026 = vmatprep.mubr.f32.mxu0 0.0
        %7027 = vmatmul.mubr.f32.gmra.mrb[0].mxu0 %v2095
        %v7028 = vpop.f32.mrb[0].mxu0
        %v7029 = vadd.f32 %v6804, %v7028
        %v7030 = vpop.f32.mrb[0].mxu0
        %7031 = vmatprep.mubr.f32.mxu0 0.0
        %7032 = vmatmul.mubr.f32.gmra.mrb[0].mxu0 %v6669
        %v7033 = vpop.f32.mrb[0].mxu0
        %v7034 = vadd.f32 %v6809, %v7033
        %v7035 = vpop.f32.mrb[0].mxu0
        %7036 = vmatprep.mubr.f32.mxu0 0.0
        %7037 = vmatmul.mubr.f32.gmra.mrb[0].mxu0 %v6670
        %v7038 = vpop.f32.mrb[0].mxu0
        %v7039 = vadd.f32 %v6814, %v7038
        %v7040 = vpop.f32.mrb[0].mxu0
        %7041 = vmatprep.mubr.f32.mxu0 0.0
        %7042 = vmatmul.mubr.f32.gmra.mrb[0].mxu0 %v6671
        %v7043 = vpop.f32.mrb[0].mxu0
        %v7044 = vadd.f32 %v6819, %v7043
        %v7045 = vpop.f32.mrb[0].mxu0
        %7046 = vmatprep.mubr.f32.mxu0 0.0
        %7047 = vmatmul.mubr.f32.gmra.mrb[0].mxu0 %v6672
        %v7048 = vpop.f32.mrb[0].mxu0
        %v7049 = vadd.f32 %v6824, %v7048
        %v7050 = vpop.f32.mrb[0].mxu0
        %7051 = vmatprep.mubr.f32.mxu0 0.0
        %7052 = vmatmul.mubr.f32.gmra.mrb[0].mxu0 %v6673
        %v7053 = vpop.f32.mrb[0].mxu0
        %v7054 = vadd.f32 %v6829, %v7053
        %v7055 = vpop.f32.mrb[0].mxu0
        %7056 = vmatprep.mubr.f32.mxu0 0.0
        %7057 = vmatmul.mubr.f32.gmra.mrb[0].mxu0 %v6674
        %v7058 = vpop.f32.mrb[0].mxu0
        %v7059 = vadd.f32 %v6834, %v7058
        %v7060 = vpop.f32.mrb[0].mxu0
        %7061 = vmatprep.mubr.f32.mxu0 0.0
        %7062 = vmatmul.mubr.f32.gmra.mrb[0].mxu0 %v6675
        %v7063 = vpop.f32.mrb[0].mxu0
        %v7064 = vadd.f32 %v6839, %v7063
        %v7065 = vpop.f32.mrb[0].mxu0
        %7066 = vmatprep.mubr.f32.mxu0 0.0
        %7067 = vmatmul.mubr.f32.gmra.mrb[0].mxu0 %v6676
        %v7068 = vpop.f32.mrb[0].mxu0
        %v7069 = vadd.f32 %v6844, %v7068
        %v7070 = vpop.f32.mrb[0].mxu0
        %7071 = vmatprep.mubr.f32.mxu0 0.0
        %7072 = vmatmul.mubr.f32.gmra.mrb[0].mxu0 %v6677
        %v7073 = vpop.f32.mrb[0].mxu0
        %v7074 = vadd.f32 %v6849, %v7073
        %v7075 = vpop.f32.mrb[0].mxu0
        %7076 = vmatprep.mubr.f32.mxu0 0.0
        %7077 = vmatmul.mubr.f32.gmra.mrb[0].mxu0 %v6678
        %v7078 = vpop.f32.mrb[0].mxu0
        %v7079 = vadd.f32 %v6854, %v7078
        %v7080 = vpop.f32.mrb[0].mxu0
        %7081 = vmatprep.mubr.f32.mxu0 0.0
        %7082 = vmatmul.mubr.f32.gmra.mrb[0].mxu0 %v6679
        %v7083 = vpop.f32.mrb[0].mxu0
        %v7084 = vadd.f32 %v6859, %v7083
        %v7085 = vpop.f32.mrb[0].mxu0
        %7086 = vmatprep.mubr.f32.mxu0 0.0
        %7087 = vmatmul.mubr.f32.gmra.mrb[0].mxu0 %v6680
        %v7088 = vpop.f32.mrb[0].mxu0
        %v7089 = vadd.f32 %v6864, %v7088
        %v7090 = vpop.f32.mrb[0].mxu0
        %7091 = vmatprep.mubr.f32.mxu0 0.0
        %7092 = vmatmul.mubr.f32.gmra.mrb[0].mxu0 %v6681
        %v7093 = vpop.f32.mrb[0].mxu0
        %v7094 = vadd.f32 %v6869, %v7093
        %v7095 = vpop.f32.mrb[0].mxu0
        %7096 = vmatprep.mubr.f32.mxu0 0.0
        %7097 = vmatmul.mubr.f32.gmra.mrb[0].mxu0 %v6682
        %v7098 = vpop.f32.mrb[0].mxu0
        %v7099 = vadd.f32 %v6874, %v7098
        %v7100 = vpop.f32.mrb[0].mxu0
        %7101 = vmatprep.mubr.f32.mxu0 0.0
        %7102 = vmatmul.mubr.f32.gmra.mrb[0].mxu0 %v6683
        %v7103 = vpop.f32.mrb[0].mxu0
        %v7104 = vadd.f32 %v6879, %v7103
        %v7105 = vpop.f32.mrb[0].mxu0
        %7106 = vmatprep.mubr.f32.mxu0 0.0
        %7107 = vmatmul.mubr.f32.gmra.mrb[0].mxu0 %v6684
        %v7108 = vpop.f32.mrb[0].mxu0
        %v7109 = vadd.f32 %v6884, %v7108
        %v7110 = vpop.f32.mrb[0].mxu0
        %7111 = vmatprep.mubr.f32.mxu0 0.0
        %7112 = vmatmul.mubr.f32.gmra.mrb[0].mxu0 %v6685
        %v7113 = vpop.f32.mrb[0].mxu0
        %v7114 = vadd.f32 %v6889, %v7113
        %v7115 = vpop.f32.mrb[0].mxu0
        %7116 = vmatprep.mubr.f32.mxu0 0.0
        %7117 = vmatmul.mubr.f32.gmra.mrb[0].mxu0 %v6686
        %v7118 = vpop.f32.mrb[0].mxu0
        %v7119 = vadd.f32 %v6894, %v7118
        %v7120 = vpop.f32.mrb[0].mxu0
        %7121 = vmatprep.mubr.f32.mxu0 0.0
        %7122 = vmatmul.mubr.f32.gmra.mrb[0].mxu0 %v6687
        %v7123 = vpop.f32.mrb[0].mxu0
        %v7124 = vadd.f32 %v6899, %v7123
        %v7125 = vpop.f32.mrb[0].mxu0
        %7126 = vmatprep.mubr.f32.mxu0 0.0
        %7127 = vmatmul.mubr.f32.gmra.mrb[0].mxu0 %v6688
        %v7128 = vpop.f32.mrb[0].mxu0
        %v7129 = vadd.f32 %v6904, %v7128
        %v7130 = vpop.f32.mrb[0].mxu0
        %7131 = vmatprep.mubr.f32.mxu0 0.0
        %7132 = vmatmul.mubr.f32.gmra.mrb[0].mxu0 %v6689
        %v7133 = vpop.f32.mrb[0].mxu0
        %v7134 = vadd.f32 %v6909, %v7133
        %v7135 = vpop.f32.mrb[0].mxu0
        %7136 = vmatprep.mubr.f32.mxu0 0.0
        %7137 = vmatmul.mubr.f32.gmra.mrb[0].mxu0 %v6690
        %v7138 = vpop.f32.mrb[0].mxu0
        %v7139 = vadd.f32 %v6914, %v7138
        %v7140 = vpop.f32.mrb[0].mxu0
        %7141 = vmatprep.mubr.f32.mxu0 0.0
        %7142 = vmatmul.mubr.f32.gmra.mrb[0].mxu0 %v6691
        %v7143 = vpop.f32.mrb[0].mxu0
        %v7144 = vadd.f32 %v6919, %v7143
        %v7145 = vpop.f32.mrb[0].mxu0
        %7146 = vmatprep.mubr.f32.mxu0 0.0
        %7147 = vmatmul.mubr.f32.gmra.mrb[0].mxu0 %v6692
        %v7148 = vpop.f32.mrb[0].mxu0
        %v7149 = vadd.f32 %v6924, %v7148
        %v7150 = vpop.f32.mrb[0].mxu0
        %7151 = vmatprep.mubr.f32.mxu0 0.0
        %7152 = vmatmul.mubr.f32.gmra.mrb[0].mxu0 %v6693
        %v7153 = vpop.f32.mrb[0].mxu0
        %v7154 = vadd.f32 %v6929, %v7153
        %v7155 = vpop.f32.mrb[0].mxu0
        %7156 = vmatprep.mubr.f32.mxu0 0.0
        %7157 = vmatmul.mubr.f32.gmra.mrb[0].mxu0 %v6694
        %v7158 = vpop.f32.mrb[0].mxu0
        %v7159 = vadd.f32 %v6934, %v7158
        %v7160 = vpop.f32.mrb[0].mxu0
        %7161 = vmatprep.mubr.f32.mxu0 0.0
        %7162 = vmatmul.mubr.f32.gmra.mrb[0].mxu0 %v6695
        %v7163 = vpop.f32.mrb[0].mxu0
        %v7164 = vadd.f32 %v6939, %v7163
        %v7165 = vpop.f32.mrb[0].mxu0
        %7166 = vmatprep.mubr.f32.mxu0 0.0
        %7167 = vmatmul.mubr.f32.gmra.mrb[0].mxu0 %v6696
        %v7168 = vpop.f32.mrb[0].mxu0
        %v7169 = vadd.f32 %v6944, %v7168
        %v7170 = vpop.f32.mrb[0].mxu0
        %7171 = vmatprep.mubr.f32.mxu0 0.0
        %7172 = vmatmul.mubr.f32.gmra.mrb[0].mxu0 %v6697
        %v7173 = vpop.f32.mrb[0].mxu0
        %v7174 = vadd.f32 %v6949, %v7173
        %v7175 = vpop.f32.mrb[0].mxu0
        %7176 = vmatprep.mubr.f32.mxu0 0.0
        %7177 = vmatmul.mubr.f32.gmra.mrb[0].mxu0 %v6698
        %v7178 = vpop.f32.mrb[0].mxu0
        %v7179 = vadd.f32 %v6954, %v7178
        %v7180 = vpop.f32.mrb[0].mxu0
        %7181 = vdwg.mxu0
        %v7183 = vrot.slane %v6516, 1
        %v7184 = vrot.slane %v6517, 1
        %v7185 = vsel %vm2753, %v7183, %v7184
        %v7186 = vrot.slane %v6518, 1
        %v7187 = vsel %vm2753, %v7184, %v7186
        %v7188 = vrot.slane %v6519, 1
        %v7189 = vsel %vm2753, %v7186, %v7188
        %v7190 = vrot.slane %v6520, 1
        %v7191 = vsel %vm2753, %v7188, %v7190
        %v7192 = vrot.slane %v6521, 1
        %v7193 = vsel %vm2753, %v7190, %v7192
        %v7194 = vrot.slane %v6522, 1
        %v7195 = vsel %vm2753, %v7192, %v7194
        %v7196 = vrot.slane %v6523, 1
        %v7197 = vsel %vm2753, %v7194, %v7196
        %v7198 = vrot.slane %v6524, 1
        %v7199 = vsel %vm2753, %v7196, %v7198
        %v7200 = vrot.slane %v6525, 1
        %v7201 = vsel %vm2753, %v7198, %v7200
        %v7202 = vrot.slane %v6526, 1
        %v7203 = vsel %vm2753, %v7200, %v7202
        %v7204 = vrot.slane %v6527, 1
        %v7205 = vsel %vm2753, %v7202, %v7204
        %v7206 = vrot.slane %v6528, 1
        %v7207 = vsel %vm2753, %v7204, %v7206
        %v7208 = vrot.slane %v6529, 1
        %v7209 = vsel %vm2753, %v7206, %v7208
        %v7210 = vrot.slane %v6530, 1
        %v7211 = vsel %vm2753, %v7208, %v7210
        %v7212 = vrot.slane %v6531, 1
        %v7213 = vsel %vm2753, %v7210, %v7212
        %v7214 = vrot.slane %v6532, 1
        %v7215 = vsel %vm2753, %v7212, %v7214
        %v7216 = vrot.slane %v6533, 1
        %v7217 = vsel %vm2753, %v7214, %v7216
        %v7218 = vrot.slane %v6534, 1
        %v7219 = vsel %vm2753, %v7216, %v7218
        %v7220 = vrot.slane %v6535, 1
        %v7221 = vsel %vm2753, %v7218, %v7220
        %v7222 = vrot.slane %v6536, 1
        %v7223 = vsel %vm2753, %v7220, %v7222
        %v7224 = vrot.slane %v6537, 1
        %v7225 = vsel %vm2753, %v7222, %v7224
        %v7226 = vrot.slane %v6538, 1
        %v7227 = vsel %vm2753, %v7224, %v7226
        %v7228 = vrot.slane %v6539, 1
        %v7229 = vsel %vm2753, %v7226, %v7228
        %v7230 = vrot.slane %v6540, 1
        %v7231 = vsel %vm2753, %v7228, %v7230
        %v7232 = vrot.slane %v6541, 1
        %v7233 = vsel %vm2753, %v7230, %v7232
        %v7234 = vrot.slane %v6542, 1
        %v7235 = vsel %vm2753, %v7232, %v7234
        %v7236 = vrot.slane %v6543, 1
        %v7237 = vsel %vm2753, %v7234, %v7236
        %v7238 = vrot.slane %v6544, 1
        %v7239 = vsel %vm2753, %v7236, %v7238
        %v7240 = vrot.slane %v6545, 1
        %v7241 = vsel %vm2753, %v7238, %v7240
        %v7242 = vrot.slane %v6546, 1
        %v7243 = vsel %vm2753, %v7240, %v7242
        %v7275 = vsel %vm2753, 0.0, %v7183
        %v7276 = vmul.f32 %v7275, %v2855
        %v7277 = vmul.f32 %v7185, %v2860
        %v7278 = vmul.f32 %v7187, %v2865
        %v7279 = vmul.f32 %v7189, %v2870
        %v7280 = vmul.f32 %v7191, %v2875
        %v7281 = vmul.f32 %v7193, %v2880
        %v7282 = vmul.f32 %v7195, %v2885
        %v7283 = vmul.f32 %v7197, %v2890
        %v7284 = vmul.f32 %v7199, %v2895
        %v7285 = vmul.f32 %v7201, %v2900
        %v7286 = vmul.f32 %v7203, %v2905
        %v7287 = vmul.f32 %v7205, %v2910
        %v7288 = vmul.f32 %v7207, %v2915
        %v7289 = vmul.f32 %v7209, %v2920
        %v7290 = vmul.f32 %v7211, %v2925
        %v7291 = vmul.f32 %v7213, %v2930
        %v7292 = vmul.f32 %v7215, %v2935
        %v7293 = vmul.f32 %v7217, %v2940
        %v7294 = vmul.f32 %v7219, %v2945
        %v7295 = vmul.f32 %v7221, %v2950
        %v7296 = vmul.f32 %v7223, %v2955
        %v7297 = vmul.f32 %v7225, %v2960
        %v7298 = vmul.f32 %v7227, %v2965
        %v7299 = vmul.f32 %v7229, %v2970
        %v7300 = vmul.f32 %v7231, %v2975
        %v7301 = vmul.f32 %v7233, %v2980
        %v7302 = vmul.f32 %v7235, %v2985
        %v7303 = vmul.f32 %v7237, %v2990
        %v7304 = vmul.f32 %v7239, %v2995
        %v7305 = vmul.f32 %v7241, %v3000
        %v7306 = vmul.f32 %v7243, %v3005
        %s7307 = scalar_lea.vmem %s10, 256
        %v7308 = vld [vmem:[%s7307] sm:$0xff]
        %v7309 = vld [vmem:[%s7307 + $0x8] sm:$0xff]
        %v7310 = vld [vmem:[%s7307 + $0x10] sm:$0xff]
        %v7311 = vld [vmem:[%s7307 + $0x18] sm:$0xff]
        %v7312 = vld [vmem:[%s7307 + $0x20] sm:$0xff]
        %v7313 = vld [vmem:[%s7307 + $0x28] sm:$0xff]
        %v7314 = vld [vmem:[%s7307 + $0x30] sm:$0xff]
        %v7315 = vld [vmem:[%s7307 + $0x38] sm:$0xff]
        %v7316 = vld [vmem:[%s7307 + $0x40] sm:$0xff]
        %v7317 = vld [vmem:[%s7307 + $0x48] sm:$0xff]
        %v7318 = vld [vmem:[%s7307 + $0x50] sm:$0xff]
        %v7319 = vld [vmem:[%s7307 + $0x58] sm:$0xff]
        %v7320 = vld [vmem:[%s7307 + $0x60] sm:$0xff]
        %v7321 = vld [vmem:[%s7307 + $0x68] sm:$0xff]
        %v7322 = vld [vmem:[%s7307 + $0x70] sm:$0xff]
        %v7323 = vld [vmem:[%s7307 + $0x78] sm:$0xff]
        %7324 = vmatprep.subr.mxu0 0.0
        %7325 = vmatpush1.msra.mxu0 %v7308
        %7326 = vmatprep.subr.mxu0 0.0
        %7327 = vmatpush1.msra.mxu0 %v7309
        %7328 = vmatprep.subr.mxu0 0.0
        %7329 = vmatpush1.msra.mxu0 %v7310
        %7330 = vmatprep.subr.mxu0 0.0
        %7331 = vmatpush1.msra.mxu0 %v7311
        %7332 = vmatprep.subr.mxu0 0.0
        %7333 = vmatpush1.msra.mxu0 %v7312
        %7334 = vmatprep.subr.mxu0 0.0
        %7335 = vmatpush1.msra.mxu0 %v7313
        %7336 = vmatprep.subr.mxu0 0.0
        %7337 = vmatpush1.msra.mxu0 %v7314
        %7338 = vmatprep.subr.mxu0 0.0
        %7339 = vmatpush1.msra.mxu0 %v7315
        %7340 = vmatprep.subr.mxu0 0.0
        %7341 = vmatpush1.msra.mxu0 %v7316
        %7342 = vmatprep.subr.mxu0 0.0
        %7343 = vmatpush1.msra.mxu0 %v7317
        %7344 = vmatprep.subr.mxu0 0.0
        %7345 = vmatpush1.msra.mxu0 %v7318
        %7346 = vmatprep.subr.mxu0 0.0
        %7347 = vmatpush1.msra.mxu0 %v7319
        %7348 = vmatprep.subr.mxu0 0.0
        %7349 = vmatpush1.msra.mxu0 %v7320
        %7350 = vmatprep.subr.mxu0 0.0
        %7351 = vmatpush1.msra.mxu0 %v7321
        %7352 = vmatprep.subr.mxu0 0.0
        %7353 = vmatpush1.msra.mxu0 %v7322
        %7354 = vmatprep.subr.mxu0 0.0
        %7355 = vmatpush1.msra.mxu0 %v7323
        %7356 = vmatprep.subr.mxu0 0.0
        %7357 = vmatpush1.msra.mxu0 0.0
        %7358 = vmatprep.subr.mxu0 0.0
        %7359 = vmatpush1.msra.mxu0 0.0
        %7360 = vmatprep.subr.mxu0 0.0
        %7361 = vmatpush1.msra.mxu0 0.0
        %7362 = vmatprep.subr.mxu0 0.0
        %7363 = vmatpush1.msra.mxu0 0.0
        %7364 = vmatprep.subr.mxu0 0.0
        %7365 = vmatpush1.msra.mxu0 0.0
        %7366 = vmatprep.subr.mxu0 0.0
        %7367 = vmatpush1.msra.mxu0 0.0
        %7368 = vmatprep.subr.mxu0 0.0
        %7369 = vmatpush1.msra.mxu0 0.0
        %7370 = vmatprep.subr.mxu0 0.0
        %7371 = vmatpush1.msra.mxu0 0.0
        %7372 = vmatprep.subr.mxu0 0.0
        %7373 = vmatpush1.msra.mxu0 0.0
        %7374 = vmatprep.subr.mxu0 0.0
        %7375 = vmatpush1.msra.mxu0 0.0
        %7376 = vmatprep.subr.mxu0 0.0
        %7377 = vmatpush1.msra.mxu0 0.0
        %7378 = vmatprep.subr.mxu0 0.0
        %7379 = vmatpush1.msra.mxu0 0.0
        %7380 = vmatprep.subr.mxu0 0.0
        %7381 = vmatpush1.msra.mxu0 0.0
        %7382 = vmatprep.subr.mxu0 0.0
        %7383 = vmatpush1.msra.mxu0 0.0
        %7384 = vmatprep.subr.mxu0 0.0
        %7385 = vmatpush1.msra.mxu0 0.0
        %7386 = vmatprep.subr.mxu0 0.0
        %7387 = vmatpush1.msra.mxu0 0.0
        %7388 = vmatprep.mubr.f32.mxu0 0.0
        %7389 = vmatmul.mubr.f32.gmra.mrb[0].mxu0 %v3007
        %v7390 = vpop.f32.mrb[0].mxu0
        %v7391 = vadd.f32 0.0, %v7390
        %v7392 = vpop.f32.mrb[0].mxu0
        %7393 = vmatprep.mubr.f32.mxu0 0.0
        %7394 = vmatmul.mubr.f32.gmra.mrb[0].mxu0 %v7276
        %v7395 = vpop.f32.mrb[0].mxu0
        %v7396 = vadd.f32 0.0, %v7395
        %v7397 = vpop.f32.mrb[0].mxu0
        %7398 = vmatprep.mubr.f32.mxu0 0.0
        %7399 = vmatmul.mubr.f32.gmra.mrb[0].mxu0 %v7277
        %v7400 = vpop.f32.mrb[0].mxu0
        %v7401 = vadd.f32 0.0, %v7400
        %v7402 = vpop.f32.mrb[0].mxu0
        %7403 = vmatprep.mubr.f32.mxu0 0.0
        %7404 = vmatmul.mubr.f32.gmra.mrb[0].mxu0 %v7278
        %v7405 = vpop.f32.mrb[0].mxu0
        %v7406 = vadd.f32 0.0, %v7405
        %v7407 = vpop.f32.mrb[0].mxu0
        %7408 = vmatprep.mubr.f32.mxu0 0.0
        %7409 = vmatmul.mubr.f32.gmra.mrb[0].mxu0 %v7279
        %v7410 = vpop.f32.mrb[0].mxu0
        %v7411 = vadd.f32 0.0, %v7410
        %v7412 = vpop.f32.mrb[0].mxu0
        %7413 = vmatprep.mubr.f32.mxu0 0.0
        %7414 = vmatmul.mubr.f32.gmra.mrb[0].mxu0 %v7280
        %v7415 = vpop.f32.mrb[0].mxu0
        %v7416 = vadd.f32 0.0, %v7415
        %v7417 = vpop.f32.mrb[0].mxu0
        %7418 = vmatprep.mubr.f32.mxu0 0.0
        %7419 = vmatmul.mubr.f32.gmra.mrb[0].mxu0 %v7281
        %v7420 = vpop.f32.mrb[0].mxu0
        %v7421 = vadd.f32 0.0, %v7420
        %v7422 = vpop.f32.mrb[0].mxu0
        %7423 = vmatprep.mubr.f32.mxu0 0.0
        %7424 = vmatmul.mubr.f32.gmra.mrb[0].mxu0 %v7282
        %v7425 = vpop.f32.mrb[0].mxu0
        %v7426 = vadd.f32 0.0, %v7425
        %v7427 = vpop.f32.mrb[0].mxu0
        %7428 = vmatprep.mubr.f32.mxu0 0.0
        %7429 = vmatmul.mubr.f32.gmra.mrb[0].mxu0 %v7283
        %v7430 = vpop.f32.mrb[0].mxu0
        %v7431 = vadd.f32 0.0, %v7430
        %v7432 = vpop.f32.mrb[0].mxu0
        %7433 = vmatprep.mubr.f32.mxu0 0.0
        %7434 = vmatmul.mubr.f32.gmra.mrb[0].mxu0 %v7284
        %v7435 = vpop.f32.mrb[0].mxu0
        %v7436 = vadd.f32 0.0, %v7435
        %v7437 = vpop.f32.mrb[0].mxu0
        %7438 = vmatprep.mubr.f32.mxu0 0.0
        %7439 = vmatmul.mubr.f32.gmra.mrb[0].mxu0 %v7285
        %v7440 = vpop.f32.mrb[0].mxu0
        %v7441 = vadd.f32 0.0, %v7440
        %v7442 = vpop.f32.mrb[0].mxu0
        %7443 = vmatprep.mubr.f32.mxu0 0.0
        %7444 = vmatmul.mubr.f32.gmra.mrb[0].mxu0 %v7286
        %v7445 = vpop.f32.mrb[0].mxu0
        %v7446 = vadd.f32 0.0, %v7445
        %v7447 = vpop.f32.mrb[0].mxu0
        %7448 = vmatprep.mubr.f32.mxu0 0.0
        %7449 = vmatmul.mubr.f32.gmra.mrb[0].mxu0 %v7287
        %v7450 = vpop.f32.mrb[0].mxu0
        %v7451 = vadd.f32 0.0, %v7450
        %v7452 = vpop.f32.mrb[0].mxu0
        %7453 = vmatprep.mubr.f32.mxu0 0.0
        %7454 = vmatmul.mubr.f32.gmra.mrb[0].mxu0 %v7288
        %v7455 = vpop.f32.mrb[0].mxu0
        %v7456 = vadd.f32 0.0, %v7455
        %v7457 = vpop.f32.mrb[0].mxu0
        %7458 = vmatprep.mubr.f32.mxu0 0.0
        %7459 = vmatmul.mubr.f32.gmra.mrb[0].mxu0 %v7289
        %v7460 = vpop.f32.mrb[0].mxu0
        %v7461 = vadd.f32 0.0, %v7460
        %v7462 = vpop.f32.mrb[0].mxu0
        %7463 = vmatprep.mubr.f32.mxu0 0.0
        %7464 = vmatmul.mubr.f32.gmra.mrb[0].mxu0 %v7290
        %v7465 = vpop.f32.mrb[0].mxu0
        %v7466 = vadd.f32 0.0, %v7465
        %v7467 = vpop.f32.mrb[0].mxu0
        %7468 = vmatprep.mubr.f32.mxu0 0.0
        %7469 = vmatmul.mubr.f32.gmra.mrb[0].mxu0 %v7291
        %v7470 = vpop.f32.mrb[0].mxu0
        %v7471 = vadd.f32 0.0, %v7470
        %v7472 = vpop.f32.mrb[0].mxu0
        %7473 = vmatprep.mubr.f32.mxu0 0.0
        %7474 = vmatmul.mubr.f32.gmra.mrb[0].mxu0 %v7292
        %v7475 = vpop.f32.mrb[0].mxu0
        %v7476 = vadd.f32 0.0, %v7475
        %v7477 = vpop.f32.mrb[0].mxu0
        %7478 = vmatprep.mubr.f32.mxu0 0.0
        %7479 = vmatmul.mubr.f32.gmra.mrb[0].mxu0 %v7293
        %v7480 = vpop.f32.mrb[0].mxu0
        %v7481 = vadd.f32 0.0, %v7480
        %v7482 = vpop.f32.mrb[0].mxu0
        %7483 = vmatprep.mubr.f32.mxu0 0.0
        %7484 = vmatmul.mubr.f32.gmra.mrb[0].mxu0 %v7294
        %v7485 = vpop.f32.mrb[0].mxu0
        %v7486 = vadd.f32 0.0, %v7485
        %v7487 = vpop.f32.mrb[0].mxu0
        %7488 = vmatprep.mubr.f32.mxu0 0.0
        %7489 = vmatmul.mubr.f32.gmra.mrb[0].mxu0 %v7295
        %v7490 = vpop.f32.mrb[0].mxu0
        %v7491 = vadd.f32 0.0, %v7490
        %v7492 = vpop.f32.mrb[0].mxu0
        %7493 = vmatprep.mubr.f32.mxu0 0.0
        %7494 = vmatmul.mubr.f32.gmra.mrb[0].mxu0 %v7296
        %v7495 = vpop.f32.mrb[0].mxu0
        %v7496 = vadd.f32 0.0, %v7495
        %v7497 = vpop.f32.mrb[0].mxu0
        %7498 = vmatprep.mubr.f32.mxu0 0.0
        %7499 = vmatmul.mubr.f32.gmra.mrb[0].mxu0 %v7297
        %v7500 = vpop.f32.mrb[0].mxu0
        %v7501 = vadd.f32 0.0, %v7500
        %v7502 = vpop.f32.mrb[0].mxu0
        %7503 = vmatprep.mubr.f32.mxu0 0.0
        %7504 = vmatmul.mubr.f32.gmra.mrb[0].mxu0 %v7298
        %v7505 = vpop.f32.mrb[0].mxu0
        %v7506 = vadd.f32 0.0, %v7505
        %v7507 = vpop.f32.mrb[0].mxu0
        %7508 = vmatprep.mubr.f32.mxu0 0.0
        %7509 = vmatmul.mubr.f32.gmra.mrb[0].mxu0 %v7299
        %v7510 = vpop.f32.mrb[0].mxu0
        %v7511 = vadd.f32 0.0, %v7510
        %v7512 = vpop.f32.mrb[0].mxu0
        %7513 = vmatprep.mubr.f32.mxu0 0.0
        %7514 = vmatmul.mubr.f32.gmra.mrb[0].mxu0 %v7300
        %v7515 = vpop.f32.mrb[0].mxu0
        %v7516 = vadd.f32 0.0, %v7515
        %v7517 = vpop.f32.mrb[0].mxu0
        %7518 = vmatprep.mubr.f32.mxu0 0.0
        %7519 = vmatmul.mubr.f32.gmra.mrb[0].mxu0 %v7301
        %v7520 = vpop.f32.mrb[0].mxu0
        %v7521 = vadd.f32 0.0, %v7520
        %v7522 = vpop.f32.mrb[0].mxu0
        %7523 = vmatprep.mubr.f32.mxu0 0.0
        %7524 = vmatmul.mubr.f32.gmra.mrb[0].mxu0 %v7302
        %v7525 = vpop.f32.mrb[0].mxu0
        %v7526 = vadd.f32 0.0, %v7525
        %v7527 = vpop.f32.mrb[0].mxu0
        %7528 = vmatprep.mubr.f32.mxu0 0.0
        %7529 = vmatmul.mubr.f32.gmra.mrb[0].mxu0 %v7303
        %v7530 = vpop.f32.mrb[0].mxu0
        %v7531 = vadd.f32 0.0, %v7530
        %v7532 = vpop.f32.mrb[0].mxu0
        %7533 = vmatprep.mubr.f32.mxu0 0.0
        %7534 = vmatmul.mubr.f32.gmra.mrb[0].mxu0 %v7304
        %v7535 = vpop.f32.mrb[0].mxu0
        %v7536 = vadd.f32 0.0, %v7535
        %v7537 = vpop.f32.mrb[0].mxu0
        %7538 = vmatprep.mubr.f32.mxu0 0.0
        %7539 = vmatmul.mubr.f32.gmra.mrb[0].mxu0 %v7305
        %v7540 = vpop.f32.mrb[0].mxu0
        %v7541 = vadd.f32 0.0, %v7540
        %v7542 = vpop.f32.mrb[0].mxu0
        %7543 = vmatprep.mubr.f32.mxu0 0.0
        %7544 = vmatmul.mubr.f32.gmra.mrb[0].mxu0 %v7306
        %v7545 = vpop.f32.mrb[0].mxu0
        %v7546 = vadd.f32 0.0, %v7545
        %v7547 = vpop.f32.mrb[0].mxu0
        %7548 = vdwg.mxu0
        %v7549 = vadd.f32 %v7024, %v7391
        %v7550 = vadd.f32 %v7029, %v7396
        %v7551 = vadd.f32 %v7034, %v7401
        %v7552 = vadd.f32 %v7039, %v7406
        %v7553 = vadd.f32 %v7044, %v7411
        %v7554 = vadd.f32 %v7049, %v7416
        %v7555 = vadd.f32 %v7054, %v7421
        %v7556 = vadd.f32 %v7059, %v7426
        %v7557 = vadd.f32 %v7064, %v7431
        %v7558 = vadd.f32 %v7069, %v7436
        %v7559 = vadd.f32 %v7074, %v7441
        %v7560 = vadd.f32 %v7079, %v7446
        %v7561 = vadd.f32 %v7084, %v7451
        %v7562 = vadd.f32 %v7089, %v7456
        %v7563 = vadd.f32 %v7094, %v7461
        %v7564 = vadd.f32 %v7099, %v7466
        %v7565 = vadd.f32 %v7104, %v7471
        %v7566 = vadd.f32 %v7109, %v7476
        %v7567 = vadd.f32 %v7114, %v7481
        %v7568 = vadd.f32 %v7119, %v7486
        %v7569 = vadd.f32 %v7124, %v7491
        %v7570 = vadd.f32 %v7129, %v7496
        %v7571 = vadd.f32 %v7134, %v7501
        %v7572 = vadd.f32 %v7139, %v7506
        %v7573 = vadd.f32 %v7144, %v7511
        %v7574 = vadd.f32 %v7149, %v7516
        %v7575 = vadd.f32 %v7154, %v7521
        %v7576 = vadd.f32 %v7159, %v7526
        %v7577 = vadd.f32 %v7164, %v7531
        %v7578 = vadd.f32 %v7169, %v7536
        %v7579 = vadd.f32 %v7174, %v7541
        %v7580 = vadd.f32 %v7179, %v7546
        %v7582 = vrot.slane %v6546, 7
        %v7583 = vsel %vm1843, %v6636, %v7582
        %v7584 = vrot.slane %v6547, 7
        %v7585 = vsel %vm1843, %v7582, %v7584
        %v7588 = vmul.f32 %v6668, %v1937
        %v7589 = vmul.f32 %v6581, %v1942
        %v7590 = vmul.f32 %v6583, %v1947
        %v7591 = vmul.f32 %v6585, %v1952
        %v7592 = vmul.f32 %v6587, %v1957
        %v7593 = vmul.f32 %v6589, %v1962
        %v7594 = vmul.f32 %v6591, %v1967
        %v7595 = vmul.f32 %v6593, %v1972
        %v7596 = vmul.f32 %v6595, %v1977
        %v7597 = vmul.f32 %v6597, %v1982
        %v7598 = vmul.f32 %v6599, %v1987
        %v7599 = vmul.f32 %v6601, %v1992
        %v7600 = vmul.f32 %v6603, %v1997
        %v7601 = vmul.f32 %v6605, %v2002
        %v7602 = vmul.f32 %v6607, %v2007
        %v7603 = vmul.f32 %v6609, %v2012
        %v7604 = vmul.f32 %v6611, %v2017
        %v7605 = vmul.f32 %v6613, %v2022
        %v7606 = vmul.f32 %v6615, %v2027
        %v7607 = vmul.f32 %v6617, %v2032
        %v7608 = vmul.f32 %v6619, %v2037
        %v7609 = vmul.f32 %v6621, %v2042
        %v7610 = vmul.f32 %v6623, %v2047
        %v7611 = vmul.f32 %v6625, %v2052
        %v7612 = vmul.f32 %v6627, %v2057
        %v7613 = vmul.f32 %v6629, %v2062
        %v7614 = vmul.f32 %v6631, %v2067
        %v7615 = vmul.f32 %v6633, %v2072
        %v7616 = vmul.f32 %v6635, %v2077
        %v7617 = vmul.f32 %v6637, %v2082
        %v7618 = vmul.f32 %v7583, %v2087
        %v7619 = vmul.f32 %v7585, %v2092
        %s7620 = scalar_lea.vmem %s10, 384
        %v7621 = vld [vmem:[%s7620] sm:$0xff]
        %v7622 = vld [vmem:[%s7620 + $0x8] sm:$0xff]
        %v7623 = vld [vmem:[%s7620 + $0x10] sm:$0xff]
        %v7624 = vld [vmem:[%s7620 + $0x18] sm:$0xff]
        %v7625 = vld [vmem:[%s7620 + $0x20] sm:$0xff]
        %v7626 = vld [vmem:[%s7620 + $0x28] sm:$0xff]
        %v7627 = vld [vmem:[%s7620 + $0x30] sm:$0xff]
        %v7628 = vld [vmem:[%s7620 + $0x38] sm:$0xff]
        %v7629 = vld [vmem:[%s7620 + $0x40] sm:$0xff]
        %v7630 = vld [vmem:[%s7620 + $0x48] sm:$0xff]
        %v7631 = vld [vmem:[%s7620 + $0x50] sm:$0xff]
        %v7632 = vld [vmem:[%s7620 + $0x58] sm:$0xff]
        %v7633 = vld [vmem:[%s7620 + $0x60] sm:$0xff]
        %v7634 = vld [vmem:[%s7620 + $0x68] sm:$0xff]
        %v7635 = vld [vmem:[%s7620 + $0x70] sm:$0xff]
        %v7636 = vld [vmem:[%s7620 + $0x78] sm:$0xff]
        %7637 = vmatprep.subr.mxu0 0.0
        %7638 = vmatpush1.msra.mxu0 %v7621
        %7639 = vmatprep.subr.mxu0 0.0
        %7640 = vmatpush1.msra.mxu0 %v7622
        %7641 = vmatprep.subr.mxu0 0.0
        %7642 = vmatpush1.msra.mxu0 %v7623
        %7643 = vmatprep.subr.mxu0 0.0
        %7644 = vmatpush1.msra.mxu0 %v7624
        %7645 = vmatprep.subr.mxu0 0.0
        %7646 = vmatpush1.msra.mxu0 %v7625
        %7647 = vmatprep.subr.mxu0 0.0
        %7648 = vmatpush1.msra.mxu0 %v7626
        %7649 = vmatprep.subr.mxu0 0.0
        %7650 = vmatpush1.msra.mxu0 %v7627
        %7651 = vmatprep.subr.mxu0 0.0
        %7652 = vmatpush1.msra.mxu0 %v7628
        %7653 = vmatprep.subr.mxu0 0.0
        %7654 = vmatpush1.msra.mxu0 %v7629
        %7655 = vmatprep.subr.mxu0 0.0
        %7656 = vmatpush1.msra.mxu0 %v7630
        %7657 = vmatprep.subr.mxu0 0.0
        %7658 = vmatpush1.msra.mxu0 %v7631
        %7659 = vmatprep.subr.mxu0 0.0
        %7660 = vmatpush1.msra.mxu0 %v7632
        %7661 = vmatprep.subr.mxu0 0.0
        %7662 = vmatpush1.msra.mxu0 %v7633
        %7663 = vmatprep.subr.mxu0 0.0
        %7664 = vmatpush1.msra.mxu0 %v7634
        %7665 = vmatprep.subr.mxu0 0.0
        %7666 = vmatpush1.msra.mxu0 %v7635
        %7667 = vmatprep.subr.mxu0 0.0
        %7668 = vmatpush1.msra.mxu0 %v7636
        %7669 = vmatprep.subr.mxu0 0.0
        %7670 = vmatpush1.msra.mxu0 0.0
        %7671 = vmatprep.subr.mxu0 0.0
        %7672 = vmatpush1.msra.mxu0 0.0
        %7673 = vmatprep.subr.mxu0 0.0
        %7674 = vmatpush1.msra.mxu0 0.0
        %7675 = vmatprep.subr.mxu0 0.0
        %7676 = vmatpush1.msra.mxu0 0.0
        %7677 = vmatprep.subr.mxu0 0.0
        %7678 = vmatpush1.msra.mxu0 0.0
        %7679 = vmatprep.subr.mxu0 0.0
        %7680 = vmatpush1.msra.mxu0 0.0
        %7681 = vmatprep.subr.mxu0 0.0
        %7682 = vmatpush1.msra.mxu0 0.0
        %7683 = vmatprep.subr.mxu0 0.0
        %7684 = vmatpush1.msra.mxu0 0.0
        %7685 = vmatprep.subr.mxu0 0.0
        %7686 = vmatpush1.msra.mxu0 0.0
        %7687 = vmatprep.subr.mxu0 0.0
        %7688 = vmatpush1.msra.mxu0 0.0
        %7689 = vmatprep.subr.mxu0 0.0
        %7690 = vmatpush1.msra.mxu0 0.0
        %7691 = vmatprep.subr.mxu0 0.0
        %7692 = vmatpush1.msra.mxu0 0.0
        %7693 = vmatprep.subr.mxu0 0.0
        %7694 = vmatpush1.msra.mxu0 0.0
        %7695 = vmatprep.subr.mxu0 0.0
        %7696 = vmatpush1.msra.mxu0 0.0
        %7697 = vmatprep.subr.mxu0 0.0
        %7698 = vmatpush1.msra.mxu0 0.0
        %7699 = vmatprep.subr.mxu0 0.0
        %7700 = vmatpush1.msra.mxu0 0.0
        %7701 = vmatprep.mubr.f32.mxu0 0.0
        %7702 = vmatmul.mubr.f32.gmra.mrb[0].mxu0 %v7588
        %v7703 = vpop.f32.mrb[0].mxu0
        %v7704 = vadd.f32 0.0, %v7703
        %v7705 = vpop.f32.mrb[0].mxu0
        %7706 = vmatprep.mubr.f32.mxu0 0.0
        %7707 = vmatmul.mubr.f32.gmra.mrb[0].mxu0 %v7589
        %v7708 = vpop.f32.mrb[0].mxu0
        %v7709 = vadd.f32 0.0, %v7708
        %v7710 = vpop.f32.mrb[0].mxu0
        %7711 = vmatprep.mubr.f32.mxu0 0.0
        %7712 = vmatmul.mubr.f32.gmra.mrb[0].mxu0 %v7590
        %v7713 = vpop.f32.mrb[0].mxu0
        %v7714 = vadd.f32 0.0, %v7713
        %v7715 = vpop.f32.mrb[0].mxu0
        %7716 = vmatprep.mubr.f32.mxu0 0.0
        %7717 = vmatmul.mubr.f32.gmra.mrb[0].mxu0 %v7591
        %v7718 = vpop.f32.mrb[0].mxu0
        %v7719 = vadd.f32 0.0, %v7718
        %v7720 = vpop.f32.mrb[0].mxu0
        %7721 = vmatprep.mubr.f32.mxu0 0.0
        %7722 = vmatmul.mubr.f32.gmra.mrb[0].mxu0 %v7592
        %v7723 = vpop.f32.mrb[0].mxu0
        %v7724 = vadd.f32 0.0, %v7723
        %v7725 = vpop.f32.mrb[0].mxu0
        %7726 = vmatprep.mubr.f32.mxu0 0.0
        %7727 = vmatmul.mubr.f32.gmra.mrb[0].mxu0 %v7593
        %v7728 = vpop.f32.mrb[0].mxu0
        %v7729 = vadd.f32 0.0, %v7728
        %v7730 = vpop.f32.mrb[0].mxu0
        %7731 = vmatprep.mubr.f32.mxu0 0.0
        %7732 = vmatmul.mubr.f32.gmra.mrb[0].mxu0 %v7594
        %v7733 = vpop.f32.mrb[0].mxu0
        %v7734 = vadd.f32 0.0, %v7733
        %v7735 = vpop.f32.mrb[0].mxu0
        %7736 = vmatprep.mubr.f32.mxu0 0.0
        %7737 = vmatmul.mubr.f32.gmra.mrb[0].mxu0 %v7595
        %v7738 = vpop.f32.mrb[0].mxu0
        %v7739 = vadd.f32 0.0, %v7738
        %v7740 = vpop.f32.mrb[0].mxu0
        %7741 = vmatprep.mubr.f32.mxu0 0.0
        %7742 = vmatmul.mubr.f32.gmra.mrb[0].mxu0 %v7596
        %v7743 = vpop.f32.mrb[0].mxu0
        %v7744 = vadd.f32 0.0, %v7743
        %v7745 = vpop.f32.mrb[0].mxu0
        %7746 = vmatprep.mubr.f32.mxu0 0.0
        %7747 = vmatmul.mubr.f32.gmra.mrb[0].mxu0 %v7597
        %v7748 = vpop.f32.mrb[0].mxu0
        %v7749 = vadd.f32 0.0, %v7748
        %v7750 = vpop.f32.mrb[0].mxu0
        %7751 = vmatprep.mubr.f32.mxu0 0.0
        %7752 = vmatmul.mubr.f32.gmra.mrb[0].mxu0 %v7598
        %v7753 = vpop.f32.mrb[0].mxu0
        %v7754 = vadd.f32 0.0, %v7753
        %v7755 = vpop.f32.mrb[0].mxu0
        %7756 = vmatprep.mubr.f32.mxu0 0.0
        %7757 = vmatmul.mubr.f32.gmra.mrb[0].mxu0 %v7599
        %v7758 = vpop.f32.mrb[0].mxu0
        %v7759 = vadd.f32 0.0, %v7758
        %v7760 = vpop.f32.mrb[0].mxu0
        %7761 = vmatprep.mubr.f32.mxu0 0.0
        %7762 = vmatmul.mubr.f32.gmra.mrb[0].mxu0 %v7600
        %v7763 = vpop.f32.mrb[0].mxu0
        %v7764 = vadd.f32 0.0, %v7763
        %v7765 = vpop.f32.mrb[0].mxu0
        %7766 = vmatprep.mubr.f32.mxu0 0.0
        %7767 = vmatmul.mubr.f32.gmra.mrb[0].mxu0 %v7601
        %v7768 = vpop.f32.mrb[0].mxu0
        %v7769 = vadd.f32 0.0, %v7768
        %v7770 = vpop.f32.mrb[0].mxu0
        %7771 = vmatprep.mubr.f32.mxu0 0.0
        %7772 = vmatmul.mubr.f32.gmra.mrb[0].mxu0 %v7602
        %v7773 = vpop.f32.mrb[0].mxu0
        %v7774 = vadd.f32 0.0, %v7773
        %v7775 = vpop.f32.mrb[0].mxu0
        %7776 = vmatprep.mubr.f32.mxu0 0.0
        %7777 = vmatmul.mubr.f32.gmra.mrb[0].mxu0 %v7603
        %v7778 = vpop.f32.mrb[0].mxu0
        %v7779 = vadd.f32 0.0, %v7778
        %v7780 = vpop.f32.mrb[0].mxu0
        %7781 = vmatprep.mubr.f32.mxu0 0.0
        %7782 = vmatmul.mubr.f32.gmra.mrb[0].mxu0 %v7604
        %v7783 = vpop.f32.mrb[0].mxu0
        %v7784 = vadd.f32 0.0, %v7783
        %v7785 = vpop.f32.mrb[0].mxu0
        %7786 = vmatprep.mubr.f32.mxu0 0.0
        %7787 = vmatmul.mubr.f32.gmra.mrb[0].mxu0 %v7605
        %v7788 = vpop.f32.mrb[0].mxu0
        %v7789 = vadd.f32 0.0, %v7788
        %v7790 = vpop.f32.mrb[0].mxu0
        %7791 = vmatprep.mubr.f32.mxu0 0.0
        %7792 = vmatmul.mubr.f32.gmra.mrb[0].mxu0 %v7606
        %v7793 = vpop.f32.mrb[0].mxu0
        %v7794 = vadd.f32 0.0, %v7793
        %v7795 = vpop.f32.mrb[0].mxu0
        %7796 = vmatprep.mubr.f32.mxu0 0.0
        %7797 = vmatmul.mubr.f32.gmra.mrb[0].mxu0 %v7607
        %v7798 = vpop.f32.mrb[0].mxu0
        %v7799 = vadd.f32 0.0, %v7798
        %v7800 = vpop.f32.mrb[0].mxu0
        %7801 = vmatprep.mubr.f32.mxu0 0.0
        %7802 = vmatmul.mubr.f32.gmra.mrb[0].mxu0 %v7608
        %v7803 = vpop.f32.mrb[0].mxu0
        %v7804 = vadd.f32 0.0, %v7803
        %v7805 = vpop.f32.mrb[0].mxu0
        %7806 = vmatprep.mubr.f32.mxu0 0.0
        %7807 = vmatmul.mubr.f32.gmra.mrb[0].mxu0 %v7609
        %v7808 = vpop.f32.mrb[0].mxu0
        %v7809 = vadd.f32 0.0, %v7808
        %v7810 = vpop.f32.mrb[0].mxu0
        %7811 = vmatprep.mubr.f32.mxu0 0.0
        %7812 = vmatmul.mubr.f32.gmra.mrb[0].mxu0 %v7610
        %v7813 = vpop.f32.mrb[0].mxu0
        %v7814 = vadd.f32 0.0, %v7813
        %v7815 = vpop.f32.mrb[0].mxu0
        %7816 = vmatprep.mubr.f32.mxu0 0.0
        %7817 = vmatmul.mubr.f32.gmra.mrb[0].mxu0 %v7611
        %v7818 = vpop.f32.mrb[0].mxu0
        %v7819 = vadd.f32 0.0, %v7818
        %v7820 = vpop.f32.mrb[0].mxu0
        %7821 = vmatprep.mubr.f32.mxu0 0.0
        %7822 = vmatmul.mubr.f32.gmra.mrb[0].mxu0 %v7612
        %v7823 = vpop.f32.mrb[0].mxu0
        %v7824 = vadd.f32 0.0, %v7823
        %v7825 = vpop.f32.mrb[0].mxu0
        %7826 = vmatprep.mubr.f32.mxu0 0.0
        %7827 = vmatmul.mubr.f32.gmra.mrb[0].mxu0 %v7613
        %v7828 = vpop.f32.mrb[0].mxu0
        %v7829 = vadd.f32 0.0, %v7828
        %v7830 = vpop.f32.mrb[0].mxu0
        %7831 = vmatprep.mubr.f32.mxu0 0.0
        %7832 = vmatmul.mubr.f32.gmra.mrb[0].mxu0 %v7614
        %v7833 = vpop.f32.mrb[0].mxu0
        %v7834 = vadd.f32 0.0, %v7833
        %v7835 = vpop.f32.mrb[0].mxu0
        %7836 = vmatprep.mubr.f32.mxu0 0.0
        %7837 = vmatmul.mubr.f32.gmra.mrb[0].mxu0 %v7615
        %v7838 = vpop.f32.mrb[0].mxu0
        %v7839 = vadd.f32 0.0, %v7838
        %v7840 = vpop.f32.mrb[0].mxu0
        %7841 = vmatprep.mubr.f32.mxu0 0.0
        %7842 = vmatmul.mubr.f32.gmra.mrb[0].mxu0 %v7616
        %v7843 = vpop.f32.mrb[0].mxu0
        %v7844 = vadd.f32 0.0, %v7843
        %v7845 = vpop.f32.mrb[0].mxu0
        %7846 = vmatprep.mubr.f32.mxu0 0.0
        %7847 = vmatmul.mubr.f32.gmra.mrb[0].mxu0 %v7617
        %v7848 = vpop.f32.mrb[0].mxu0
        %v7849 = vadd.f32 0.0, %v7848
        %v7850 = vpop.f32.mrb[0].mxu0
        %7851 = vmatprep.mubr.f32.mxu0 0.0
        %7852 = vmatmul.mubr.f32.gmra.mrb[0].mxu0 %v7618
        %v7853 = vpop.f32.mrb[0].mxu0
        %v7854 = vadd.f32 0.0, %v7853
        %v7855 = vpop.f32.mrb[0].mxu0
        %7856 = vmatprep.mubr.f32.mxu0 0.0
        %7857 = vmatmul.mubr.f32.gmra.mrb[0].mxu0 %v7619
        %v7858 = vpop.f32.mrb[0].mxu0
        %v7859 = vadd.f32 0.0, %v7858
        %v7860 = vpop.f32.mrb[0].mxu0
        %7861 = vdwg.mxu0
        %v7862 = vadd.f32 %v7549, %v7704
        %v7863 = vadd.f32 %v7550, %v7709
        %v7864 = vadd.f32 %v7551, %v7714
        %v7865 = vadd.f32 %v7552, %v7719
        %v7866 = vadd.f32 %v7553, %v7724
        %v7867 = vadd.f32 %v7554, %v7729
        %v7868 = vadd.f32 %v7555, %v7734
        %v7869 = vadd.f32 %v7556, %v7739
        %v7870 = vadd.f32 %v7557, %v7744
        %v7871 = vadd.f32 %v7558, %v7749
        %v7872 = vadd.f32 %v7559, %v7754
        %v7873 = vadd.f32 %v7560, %v7759
        %v7874 = vadd.f32 %v7561, %v7764
        %v7875 = vadd.f32 %v7562, %v7769
        %v7876 = vadd.f32 %v7563, %v7774
        %v7877 = vadd.f32 %v7564, %v7779
        %v7878 = vadd.f32 %v7565, %v7784
        %v7879 = vadd.f32 %v7566, %v7789
        %v7880 = vadd.f32 %v7567, %v7794
        %v7881 = vadd.f32 %v7568, %v7799
        %v7882 = vadd.f32 %v7569, %v7804
        %v7883 = vadd.f32 %v7570, %v7809
        %v7884 = vadd.f32 %v7571, %v7814
        %v7885 = vadd.f32 %v7572, %v7819
        %v7886 = vadd.f32 %v7573, %v7824
        %v7887 = vadd.f32 %v7574, %v7829
        %v7888 = vadd.f32 %v7575, %v7834
        %v7889 = vadd.f32 %v7576, %v7839
        %v7890 = vadd.f32 %v7577, %v7844
        %v7891 = vadd.f32 %v7578, %v7849
        %v7892 = vadd.f32 %v7579, %v7854
        %v7893 = vadd.f32 %v7580, %v7859
        %s7894 = scalar_lea.vmem %s10, 512
        %v7895 = vld [vmem:[%s7894] sm:$0xff]
        %v7896 = vld [vmem:[%s7894 + $0x8] sm:$0xff]
        %v7897 = vld [vmem:[%s7894 + $0x10] sm:$0xff]
        %v7898 = vld [vmem:[%s7894 + $0x18] sm:$0xff]
        %v7899 = vld [vmem:[%s7894 + $0x20] sm:$0xff]
        %v7900 = vld [vmem:[%s7894 + $0x28] sm:$0xff]
        %v7901 = vld [vmem:[%s7894 + $0x30] sm:$0xff]
        %v7902 = vld [vmem:[%s7894 + $0x38] sm:$0xff]
        %v7903 = vld [vmem:[%s7894 + $0x40] sm:$0xff]
        %v7904 = vld [vmem:[%s7894 + $0x48] sm:$0xff]
        %v7905 = vld [vmem:[%s7894 + $0x50] sm:$0xff]
        %v7906 = vld [vmem:[%s7894 + $0x58] sm:$0xff]
        %v7907 = vld [vmem:[%s7894 + $0x60] sm:$0xff]
        %v7908 = vld [vmem:[%s7894 + $0x68] sm:$0xff]
        %v7909 = vld [vmem:[%s7894 + $0x70] sm:$0xff]
        %v7910 = vld [vmem:[%s7894 + $0x78] sm:$0xff]
        %7911 = vmatprep.subr.mxu0 0.0
        %7912 = vmatpush1.msra.mxu0 %v7895
        %7913 = vmatprep.subr.mxu0 0.0
        %7914 = vmatpush1.msra.mxu0 %v7896
        %7915 = vmatprep.subr.mxu0 0.0
        %7916 = vmatpush1.msra.mxu0 %v7897
        %7917 = vmatprep.subr.mxu0 0.0
        %7918 = vmatpush1.msra.mxu0 %v7898
        %7919 = vmatprep.subr.mxu0 0.0
        %7920 = vmatpush1.msra.mxu0 %v7899
        %7921 = vmatprep.subr.mxu0 0.0
        %7922 = vmatpush1.msra.mxu0 %v7900
        %7923 = vmatprep.subr.mxu0 0.0
        %7924 = vmatpush1.msra.mxu0 %v7901
        %7925 = vmatprep.subr.mxu0 0.0
        %7926 = vmatpush1.msra.mxu0 %v7902
        %7927 = vmatprep.subr.mxu0 0.0
        %7928 = vmatpush1.msra.mxu0 %v7903
        %7929 = vmatprep.subr.mxu0 0.0
        %7930 = vmatpush1.msra.mxu0 %v7904
        %7931 = vmatprep.subr.mxu0 0.0
        %7932 = vmatpush1.msra.mxu0 %v7905
        %7933 = vmatprep.subr.mxu0 0.0
        %7934 = vmatpush1.msra.mxu0 %v7906
        %7935 = vmatprep.subr.mxu0 0.0
        %7936 = vmatpush1.msra.mxu0 %v7907
        %7937 = vmatprep.subr.mxu0 0.0
        %7938 = vmatpush1.msra.mxu0 %v7908
        %7939 = vmatprep.subr.mxu0 0.0
        %7940 = vmatpush1.msra.mxu0 %v7909
        %7941 = vmatprep.subr.mxu0 0.0
        %7942 = vmatpush1.msra.mxu0 %v7910
        %7943 = vmatprep.subr.mxu0 0.0
        %7944 = vmatpush1.msra.mxu0 0.0
        %7945 = vmatprep.subr.mxu0 0.0
        %7946 = vmatpush1.msra.mxu0 0.0
        %7947 = vmatprep.subr.mxu0 0.0
        %7948 = vmatpush1.msra.mxu0 0.0
        %7949 = vmatprep.subr.mxu0 0.0
        %7950 = vmatpush1.msra.mxu0 0.0
        %7951 = vmatprep.subr.mxu0 0.0
        %7952 = vmatpush1.msra.mxu0 0.0
        %7953 = vmatprep.subr.mxu0 0.0
        %7954 = vmatpush1.msra.mxu0 0.0
        %7955 = vmatprep.subr.mxu0 0.0
        %7956 = vmatpush1.msra.mxu0 0.0
        %7957 = vmatprep.subr.mxu0 0.0
        %7958 = vmatpush1.msra.mxu0 0.0
        %7959 = vmatprep.subr.mxu0 0.0
        %7960 = vmatpush1.msra.mxu0 0.0
        %7961 = vmatprep.subr.mxu0 0.0
        %7962 = vmatpush1.msra.mxu0 0.0
        %7963 = vmatprep.subr.mxu0 0.0
        %7964 = vmatpush1.msra.mxu0 0.0
        %7965 = vmatprep.subr.mxu0 0.0
        %7966 = vmatpush1.msra.mxu0 0.0
        %7967 = vmatprep.subr.mxu0 0.0
        %7968 = vmatpush1.msra.mxu0 0.0
        %7969 = vmatprep.subr.mxu0 0.0
        %7970 = vmatpush1.msra.mxu0 0.0
        %7971 = vmatprep.subr.mxu0 0.0
        %7972 = vmatpush1.msra.mxu0 0.0
        %7973 = vmatprep.subr.mxu0 0.0
        %7974 = vmatpush1.msra.mxu0 0.0
        %7975 = vmatprep.mubr.f32.mxu0 0.0
        %7976 = vmatmul.mubr.f32.gmra.mrb[0].mxu0 %v6516
        %v7977 = vpop.f32.mrb[0].mxu0
        %v7978 = vadd.f32 0.0, %v7977
        %v7979 = vpop.f32.mrb[0].mxu0
        %7980 = vmatprep.mubr.f32.mxu0 0.0
        %7981 = vmatmul.mubr.f32.gmra.mrb[0].mxu0 %v6517
        %v7982 = vpop.f32.mrb[0].mxu0
        %v7983 = vadd.f32 0.0, %v7982
        %v7984 = vpop.f32.mrb[0].mxu0
        %7985 = vmatprep.mubr.f32.mxu0 0.0
        %7986 = vmatmul.mubr.f32.gmra.mrb[0].mxu0 %v6518
        %v7987 = vpop.f32.mrb[0].mxu0
        %v7988 = vadd.f32 0.0, %v7987
        %v7989 = vpop.f32.mrb[0].mxu0
        %7990 = vmatprep.mubr.f32.mxu0 0.0
        %7991 = vmatmul.mubr.f32.gmra.mrb[0].mxu0 %v6519
        %v7992 = vpop.f32.mrb[0].mxu0
        %v7993 = vadd.f32 0.0, %v7992
        %v7994 = vpop.f32.mrb[0].mxu0
        %7995 = vmatprep.mubr.f32.mxu0 0.0
        %7996 = vmatmul.mubr.f32.gmra.mrb[0].mxu0 %v6520
        %v7997 = vpop.f32.mrb[0].mxu0
        %v7998 = vadd.f32 0.0, %v7997
        %v7999 = vpop.f32.mrb[0].mxu0
        %8000 = vmatprep.mubr.f32.mxu0 0.0
        %8001 = vmatmul.mubr.f32.gmra.mrb[0].mxu0 %v6521
        %v8002 = vpop.f32.mrb[0].mxu0
        %v8003 = vadd.f32 0.0, %v8002
        %v8004 = vpop.f32.mrb[0].mxu0
        %8005 = vmatprep.mubr.f32.mxu0 0.0
        %8006 = vmatmul.mubr.f32.gmra.mrb[0].mxu0 %v6522
        %v8007 = vpop.f32.mrb[0].mxu0
        %v8008 = vadd.f32 0.0, %v8007
        %v8009 = vpop.f32.mrb[0].mxu0
        %8010 = vmatprep.mubr.f32.mxu0 0.0
        %8011 = vmatmul.mubr.f32.gmra.mrb[0].mxu0 %v6523
        %v8012 = vpop.f32.mrb[0].mxu0
        %v8013 = vadd.f32 0.0, %v8012
        %v8014 = vpop.f32.mrb[0].mxu0
        %8015 = vmatprep.mubr.f32.mxu0 0.0
        %8016 = vmatmul.mubr.f32.gmra.mrb[0].mxu0 %v6524
        %v8017 = vpop.f32.mrb[0].mxu0
        %v8018 = vadd.f32 0.0, %v8017
        %v8019 = vpop.f32.mrb[0].mxu0
        %8020 = vmatprep.mubr.f32.mxu0 0.0
        %8021 = vmatmul.mubr.f32.gmra.mrb[0].mxu0 %v6525
        %v8022 = vpop.f32.mrb[0].mxu0
        %v8023 = vadd.f32 0.0, %v8022
        %v8024 = vpop.f32.mrb[0].mxu0
        %8025 = vmatprep.mubr.f32.mxu0 0.0
        %8026 = vmatmul.mubr.f32.gmra.mrb[0].mxu0 %v6526
        %v8027 = vpop.f32.mrb[0].mxu0
        %v8028 = vadd.f32 0.0, %v8027
        %v8029 = vpop.f32.mrb[0].mxu0
        %8030 = vmatprep.mubr.f32.mxu0 0.0
        %8031 = vmatmul.mubr.f32.gmra.mrb[0].mxu0 %v6527
        %v8032 = vpop.f32.mrb[0].mxu0
        %v8033 = vadd.f32 0.0, %v8032
        %v8034 = vpop.f32.mrb[0].mxu0
        %8035 = vmatprep.mubr.f32.mxu0 0.0
        %8036 = vmatmul.mubr.f32.gmra.mrb[0].mxu0 %v6528
        %v8037 = vpop.f32.mrb[0].mxu0
        %v8038 = vadd.f32 0.0, %v8037
        %v8039 = vpop.f32.mrb[0].mxu0
        %8040 = vmatprep.mubr.f32.mxu0 0.0
        %8041 = vmatmul.mubr.f32.gmra.mrb[0].mxu0 %v6529
        %v8042 = vpop.f32.mrb[0].mxu0
        %v8043 = vadd.f32 0.0, %v8042
        %v8044 = vpop.f32.mrb[0].mxu0
        %8045 = vmatprep.mubr.f32.mxu0 0.0
        %8046 = vmatmul.mubr.f32.gmra.mrb[0].mxu0 %v6530
        %v8047 = vpop.f32.mrb[0].mxu0
        %v8048 = vadd.f32 0.0, %v8047
        %v8049 = vpop.f32.mrb[0].mxu0
        %8050 = vmatprep.mubr.f32.mxu0 0.0
        %8051 = vmatmul.mubr.f32.gmra.mrb[0].mxu0 %v6531
        %v8052 = vpop.f32.mrb[0].mxu0
        %v8053 = vadd.f32 0.0, %v8052
        %v8054 = vpop.f32.mrb[0].mxu0
        %8055 = vmatprep.mubr.f32.mxu0 0.0
        %8056 = vmatmul.mubr.f32.gmra.mrb[0].mxu0 %v6532
        %v8057 = vpop.f32.mrb[0].mxu0
        %v8058 = vadd.f32 0.0, %v8057
        %v8059 = vpop.f32.mrb[0].mxu0
        %8060 = vmatprep.mubr.f32.mxu0 0.0
        %8061 = vmatmul.mubr.f32.gmra.mrb[0].mxu0 %v6533
        %v8062 = vpop.f32.mrb[0].mxu0
        %v8063 = vadd.f32 0.0, %v8062
        %v8064 = vpop.f32.mrb[0].mxu0
        %8065 = vmatprep.mubr.f32.mxu0 0.0
        %8066 = vmatmul.mubr.f32.gmra.mrb[0].mxu0 %v6534
        %v8067 = vpop.f32.mrb[0].mxu0
        %v8068 = vadd.f32 0.0, %v8067
        %v8069 = vpop.f32.mrb[0].mxu0
        %8070 = vmatprep.mubr.f32.mxu0 0.0
        %8071 = vmatmul.mubr.f32.gmra.mrb[0].mxu0 %v6535
        %v8072 = vpop.f32.mrb[0].mxu0
        %v8073 = vadd.f32 0.0, %v8072
        %v8074 = vpop.f32.mrb[0].mxu0
        %8075 = vmatprep.mubr.f32.mxu0 0.0
        %8076 = vmatmul.mubr.f32.gmra.mrb[0].mxu0 %v6536
        %v8077 = vpop.f32.mrb[0].mxu0
        %v8078 = vadd.f32 0.0, %v8077
        %v8079 = vpop.f32.mrb[0].mxu0
        %8080 = vmatprep.mubr.f32.mxu0 0.0
        %8081 = vmatmul.mubr.f32.gmra.mrb[0].mxu0 %v6537
        %v8082 = vpop.f32.mrb[0].mxu0
        %v8083 = vadd.f32 0.0, %v8082
        %v8084 = vpop.f32.mrb[0].mxu0
        %8085 = vmatprep.mubr.f32.mxu0 0.0
        %8086 = vmatmul.mubr.f32.gmra.mrb[0].mxu0 %v6538
        %v8087 = vpop.f32.mrb[0].mxu0
        %v8088 = vadd.f32 0.0, %v8087
        %v8089 = vpop.f32.mrb[0].mxu0
        %8090 = vmatprep.mubr.f32.mxu0 0.0
        %8091 = vmatmul.mubr.f32.gmra.mrb[0].mxu0 %v6539
        %v8092 = vpop.f32.mrb[0].mxu0
        %v8093 = vadd.f32 0.0, %v8092
        %v8094 = vpop.f32.mrb[0].mxu0
        %8095 = vmatprep.mubr.f32.mxu0 0.0
        %8096 = vmatmul.mubr.f32.gmra.mrb[0].mxu0 %v6540
        %v8097 = vpop.f32.mrb[0].mxu0
        %v8098 = vadd.f32 0.0, %v8097
        %v8099 = vpop.f32.mrb[0].mxu0
        %8100 = vmatprep.mubr.f32.mxu0 0.0
        %8101 = vmatmul.mubr.f32.gmra.mrb[0].mxu0 %v6541
        %v8102 = vpop.f32.mrb[0].mxu0
        %v8103 = vadd.f32 0.0, %v8102
        %v8104 = vpop.f32.mrb[0].mxu0
        %8105 = vmatprep.mubr.f32.mxu0 0.0
        %8106 = vmatmul.mubr.f32.gmra.mrb[0].mxu0 %v6542
        %v8107 = vpop.f32.mrb[0].mxu0
        %v8108 = vadd.f32 0.0, %v8107
        %v8109 = vpop.f32.mrb[0].mxu0
        %8110 = vmatprep.mubr.f32.mxu0 0.0
        %8111 = vmatmul.mubr.f32.gmra.mrb[0].mxu0 %v6543
        %v8112 = vpop.f32.mrb[0].mxu0
        %v8113 = vadd.f32 0.0, %v8112
        %v8114 = vpop.f32.mrb[0].mxu0
        %8115 = vmatprep.mubr.f32.mxu0 0.0
        %8116 = vmatmul.mubr.f32.gmra.mrb[0].mxu0 %v6544
        %v8117 = vpop.f32.mrb[0].mxu0
        %v8118 = vadd.f32 0.0, %v8117
        %v8119 = vpop.f32.mrb[0].mxu0
        %8120 = vmatprep.mubr.f32.mxu0 0.0
        %8121 = vmatmul.mubr.f32.gmra.mrb[0].mxu0 %v6545
        %v8122 = vpop.f32.mrb[0].mxu0
        %v8123 = vadd.f32 0.0, %v8122
        %v8124 = vpop.f32.mrb[0].mxu0
        %8125 = vmatprep.mubr.f32.mxu0 0.0
        %8126 = vmatmul.mubr.f32.gmra.mrb[0].mxu0 %v6546
        %v8127 = vpop.f32.mrb[0].mxu0
        %v8128 = vadd.f32 0.0, %v8127
        %v8129 = vpop.f32.mrb[0].mxu0
        %8130 = vmatprep.mubr.f32.mxu0 0.0
        %8131 = vmatmul.mubr.f32.gmra.mrb[0].mxu0 %v6547
        %v8132 = vpop.f32.mrb[0].mxu0
        %v8133 = vadd.f32 0.0, %v8132
        %v8134 = vpop.f32.mrb[0].mxu0
        %8135 = vdwg.mxu0
        %v8136 = vadd.f32 %v7862, %v7978
        %v8137 = vadd.f32 %v7863, %v7983
        %v8138 = vadd.f32 %v7864, %v7988
        %v8139 = vadd.f32 %v7865, %v7993
        %v8140 = vadd.f32 %v7866, %v7998
        %v8141 = vadd.f32 %v7867, %v8003
        %v8142 = vadd.f32 %v7868, %v8008
        %v8143 = vadd.f32 %v7869, %v8013
        %v8144 = vadd.f32 %v7870, %v8018
        %v8145 = vadd.f32 %v7871, %v8023
        %v8146 = vadd.f32 %v7872, %v8028
        %v8147 = vadd.f32 %v7873, %v8033
        %v8148 = vadd.f32 %v7874, %v8038
        %v8149 = vadd.f32 %v7875, %v8043
        %v8150 = vadd.f32 %v7876, %v8048
        %v8151 = vadd.f32 %v7877, %v8053
        %v8152 = vadd.f32 %v7878, %v8058
        %v8153 = vadd.f32 %v7879, %v8063
        %v8154 = vadd.f32 %v7880, %v8068
        %v8155 = vadd.f32 %v7881, %v8073
        %v8156 = vadd.f32 %v7882, %v8078
        %v8157 = vadd.f32 %v7883, %v8083
        %v8158 = vadd.f32 %v7884, %v8088
        %v8159 = vadd.f32 %v7885, %v8093
        %v8160 = vadd.f32 %v7886, %v8098
        %v8161 = vadd.f32 %v7887, %v8103
        %v8162 = vadd.f32 %v7888, %v8108
        %v8163 = vadd.f32 %v7889, %v8113
        %v8164 = vadd.f32 %v7890, %v8118
        %v8165 = vadd.f32 %v7891, %v8123
        %v8166 = vadd.f32 %v7892, %v8128
        %v8167 = vadd.f32 %v7893, %v8133
        %v8168 = vrot.slane %v6547, 1
        %v8169 = vsel %vm2753, %v7242, %v8168
        %v8172 = vsel %vm2753, %v8168, 0.0
        %v8173 = vmul.f32 %v7185, %v2850
        %v8174 = vmul.f32 %v7187, %v2855
        %v8175 = vmul.f32 %v7189, %v2860
        %v8176 = vmul.f32 %v7191, %v2865
        %v8177 = vmul.f32 %v7193, %v2870
        %v8178 = vmul.f32 %v7195, %v2875
        %v8179 = vmul.f32 %v7197, %v2880
        %v8180 = vmul.f32 %v7199, %v2885
        %v8181 = vmul.f32 %v7201, %v2890
        %v8182 = vmul.f32 %v7203, %v2895
        %v8183 = vmul.f32 %v7205, %v2900
        %v8184 = vmul.f32 %v7207, %v2905
        %v8185 = vmul.f32 %v7209, %v2910
        %v8186 = vmul.f32 %v7211, %v2915
        %v8187 = vmul.f32 %v7213, %v2920
        %v8188 = vmul.f32 %v7215, %v2925
        %v8189 = vmul.f32 %v7217, %v2930
        %v8190 = vmul.f32 %v7219, %v2935
        %v8191 = vmul.f32 %v7221, %v2940
        %v8192 = vmul.f32 %v7223, %v2945
        %v8193 = vmul.f32 %v7225, %v2950
        %v8194 = vmul.f32 %v7227, %v2955
        %v8195 = vmul.f32 %v7229, %v2960
        %v8196 = vmul.f32 %v7231, %v2965
        %v8197 = vmul.f32 %v7233, %v2970
        %v8198 = vmul.f32 %v7235, %v2975
        %v8199 = vmul.f32 %v7237, %v2980
        %v8200 = vmul.f32 %v7239, %v2985
        %v8201 = vmul.f32 %v7241, %v2990
        %v8202 = vmul.f32 %v7243, %v2995
        %v8203 = vmul.f32 %v8169, %v3000
        %v8204 = vmul.f32 %v8172, %v3005
        %s8205 = scalar_lea.vmem %s10, 640
        %v8206 = vld [vmem:[%s8205] sm:$0xff]
        %v8207 = vld [vmem:[%s8205 + $0x8] sm:$0xff]
        %v8208 = vld [vmem:[%s8205 + $0x10] sm:$0xff]
        %v8209 = vld [vmem:[%s8205 + $0x18] sm:$0xff]
        %v8210 = vld [vmem:[%s8205 + $0x20] sm:$0xff]
        %v8211 = vld [vmem:[%s8205 + $0x28] sm:$0xff]
        %v8212 = vld [vmem:[%s8205 + $0x30] sm:$0xff]
        %v8213 = vld [vmem:[%s8205 + $0x38] sm:$0xff]
        %v8214 = vld [vmem:[%s8205 + $0x40] sm:$0xff]
        %v8215 = vld [vmem:[%s8205 + $0x48] sm:$0xff]
        %v8216 = vld [vmem:[%s8205 + $0x50] sm:$0xff]
        %v8217 = vld [vmem:[%s8205 + $0x58] sm:$0xff]
        %v8218 = vld [vmem:[%s8205 + $0x60] sm:$0xff]
        %v8219 = vld [vmem:[%s8205 + $0x68] sm:$0xff]
        %v8220 = vld [vmem:[%s8205 + $0x70] sm:$0xff]
        %v8221 = vld [vmem:[%s8205 + $0x78] sm:$0xff]
        %8222 = vmatprep.subr.mxu0 0.0
        %8223 = vmatpush1.msra.mxu0 %v8206
        %8224 = vmatprep.subr.mxu0 0.0
        %8225 = vmatpush1.msra.mxu0 %v8207
        %8226 = vmatprep.subr.mxu0 0.0
        %8227 = vmatpush1.msra.mxu0 %v8208
        %8228 = vmatprep.subr.mxu0 0.0
        %8229 = vmatpush1.msra.mxu0 %v8209
        %8230 = vmatprep.subr.mxu0 0.0
        %8231 = vmatpush1.msra.mxu0 %v8210
        %8232 = vmatprep.subr.mxu0 0.0
        %8233 = vmatpush1.msra.mxu0 %v8211
        %8234 = vmatprep.subr.mxu0 0.0
        %8235 = vmatpush1.msra.mxu0 %v8212
        %8236 = vmatprep.subr.mxu0 0.0
        %8237 = vmatpush1.msra.mxu0 %v8213
        %8238 = vmatprep.subr.mxu0 0.0
        %8239 = vmatpush1.msra.mxu0 %v8214
        %8240 = vmatprep.subr.mxu0 0.0
        %8241 = vmatpush1.msra.mxu0 %v8215
        %8242 = vmatprep.subr.mxu0 0.0
        %8243 = vmatpush1.msra.mxu0 %v8216
        %8244 = vmatprep.subr.mxu0 0.0
        %8245 = vmatpush1.msra.mxu0 %v8217
        %8246 = vmatprep.subr.mxu0 0.0
        %8247 = vmatpush1.msra.mxu0 %v8218
        %8248 = vmatprep.subr.mxu0 0.0
        %8249 = vmatpush1.msra.mxu0 %v8219
        %8250 = vmatprep.subr.mxu0 0.0
        %8251 = vmatpush1.msra.mxu0 %v8220
        %8252 = vmatprep.subr.mxu0 0.0
        %8253 = vmatpush1.msra.mxu0 %v8221
        %8254 = vmatprep.subr.mxu0 0.0
        %8255 = vmatpush1.msra.mxu0 0.0
        %8256 = vmatprep.subr.mxu0 0.0
        %8257 = vmatpush1.msra.mxu0 0.0
        %8258 = vmatprep.subr.mxu0 0.0
        %8259 = vmatpush1.msra.mxu0 0.0
        %8260 = vmatprep.subr.mxu0 0.0
        %8261 = vmatpush1.msra.mxu0 0.0
        %8262 = vmatprep.subr.mxu0 0.0
        %8263 = vmatpush1.msra.mxu0 0.0
        %8264 = vmatprep.subr.mxu0 0.0
        %8265 = vmatpush1.msra.mxu0 0.0
        %8266 = vmatprep.subr.mxu0 0.0
        %8267 = vmatpush1.msra.mxu0 0.0
        %8268 = vmatprep.subr.mxu0 0.0
        %8269 = vmatpush1.msra.mxu0 0.0
        %8270 = vmatprep.subr.mxu0 0.0
        %8271 = vmatpush1.msra.mxu0 0.0
        %8272 = vmatprep.subr.mxu0 0.0
        %8273 = vmatpush1.msra.mxu0 0.0
        %8274 = vmatprep.subr.mxu0 0.0
        %8275 = vmatpush1.msra.mxu0 0.0
        %8276 = vmatprep.subr.mxu0 0.0
        %8277 = vmatpush1.msra.mxu0 0.0
        %8278 = vmatprep.subr.mxu0 0.0
        %8279 = vmatpush1.msra.mxu0 0.0
        %8280 = vmatprep.subr.mxu0 0.0
        %8281 = vmatpush1.msra.mxu0 0.0
        %8282 = vmatprep.subr.mxu0 0.0
        %8283 = vmatpush1.msra.mxu0 0.0
        %8284 = vmatprep.subr.mxu0 0.0
        %8285 = vmatpush1.msra.mxu0 0.0
        %8286 = vmatprep.mubr.f32.mxu0 0.0
        %8287 = vmatmul.mubr.f32.gmra.mrb[0].mxu0 %v8173
        %v8288 = vpop.f32.mrb[0].mxu0
        %v8289 = vadd.f32 0.0, %v8288
        %v8290 = vpop.f32.mrb[0].mxu0
        %8291 = vmatprep.mubr.f32.mxu0 0.0
        %8292 = vmatmul.mubr.f32.gmra.mrb[0].mxu0 %v8174
        %v8293 = vpop.f32.mrb[0].mxu0
        %v8294 = vadd.f32 0.0, %v8293
        %v8295 = vpop.f32.mrb[0].mxu0
        %8296 = vmatprep.mubr.f32.mxu0 0.0
        %8297 = vmatmul.mubr.f32.gmra.mrb[0].mxu0 %v8175
        %v8298 = vpop.f32.mrb[0].mxu0
        %v8299 = vadd.f32 0.0, %v8298
        %v8300 = vpop.f32.mrb[0].mxu0
        %8301 = vmatprep.mubr.f32.mxu0 0.0
        %8302 = vmatmul.mubr.f32.gmra.mrb[0].mxu0 %v8176
        %v8303 = vpop.f32.mrb[0].mxu0
        %v8304 = vadd.f32 0.0, %v8303
        %v8305 = vpop.f32.mrb[0].mxu0
        %8306 = vmatprep.mubr.f32.mxu0 0.0
        %8307 = vmatmul.mubr.f32.gmra.mrb[0].mxu0 %v8177
        %v8308 = vpop.f32.mrb[0].mxu0
        %v8309 = vadd.f32 0.0, %v8308
        %v8310 = vpop.f32.mrb[0].mxu0
        %8311 = vmatprep.mubr.f32.mxu0 0.0
        %8312 = vmatmul.mubr.f32.gmra.mrb[0].mxu0 %v8178
        %v8313 = vpop.f32.mrb[0].mxu0
        %v8314 = vadd.f32 0.0, %v8313
        %v8315 = vpop.f32.mrb[0].mxu0
        %8316 = vmatprep.mubr.f32.mxu0 0.0
        %8317 = vmatmul.mubr.f32.gmra.mrb[0].mxu0 %v8179
        %v8318 = vpop.f32.mrb[0].mxu0
        %v8319 = vadd.f32 0.0, %v8318
        %v8320 = vpop.f32.mrb[0].mxu0
        %8321 = vmatprep.mubr.f32.mxu0 0.0
        %8322 = vmatmul.mubr.f32.gmra.mrb[0].mxu0 %v8180
        %v8323 = vpop.f32.mrb[0].mxu0
        %v8324 = vadd.f32 0.0, %v8323
        %v8325 = vpop.f32.mrb[0].mxu0
        %8326 = vmatprep.mubr.f32.mxu0 0.0
        %8327 = vmatmul.mubr.f32.gmra.mrb[0].mxu0 %v8181
        %v8328 = vpop.f32.mrb[0].mxu0
        %v8329 = vadd.f32 0.0, %v8328
        %v8330 = vpop.f32.mrb[0].mxu0
        %8331 = vmatprep.mubr.f32.mxu0 0.0
        %8332 = vmatmul.mubr.f32.gmra.mrb[0].mxu0 %v8182
        %v8333 = vpop.f32.mrb[0].mxu0
        %v8334 = vadd.f32 0.0, %v8333
        %v8335 = vpop.f32.mrb[0].mxu0
        %8336 = vmatprep.mubr.f32.mxu0 0.0
        %8337 = vmatmul.mubr.f32.gmra.mrb[0].mxu0 %v8183
        %v8338 = vpop.f32.mrb[0].mxu0
        %v8339 = vadd.f32 0.0, %v8338
        %v8340 = vpop.f32.mrb[0].mxu0
        %8341 = vmatprep.mubr.f32.mxu0 0.0
        %8342 = vmatmul.mubr.f32.gmra.mrb[0].mxu0 %v8184
        %v8343 = vpop.f32.mrb[0].mxu0
        %v8344 = vadd.f32 0.0, %v8343
        %v8345 = vpop.f32.mrb[0].mxu0
        %8346 = vmatprep.mubr.f32.mxu0 0.0
        %8347 = vmatmul.mubr.f32.gmra.mrb[0].mxu0 %v8185
        %v8348 = vpop.f32.mrb[0].mxu0
        %v8349 = vadd.f32 0.0, %v8348
        %v8350 = vpop.f32.mrb[0].mxu0
        %8351 = vmatprep.mubr.f32.mxu0 0.0
        %8352 = vmatmul.mubr.f32.gmra.mrb[0].mxu0 %v8186
        %v8353 = vpop.f32.mrb[0].mxu0
        %v8354 = vadd.f32 0.0, %v8353
        %v8355 = vpop.f32.mrb[0].mxu0
        %8356 = vmatprep.mubr.f32.mxu0 0.0
        %8357 = vmatmul.mubr.f32.gmra.mrb[0].mxu0 %v8187
        %v8358 = vpop.f32.mrb[0].mxu0
        %v8359 = vadd.f32 0.0, %v8358
        %v8360 = vpop.f32.mrb[0].mxu0
        %8361 = vmatprep.mubr.f32.mxu0 0.0
        %8362 = vmatmul.mubr.f32.gmra.mrb[0].mxu0 %v8188
        %v8363 = vpop.f32.mrb[0].mxu0
        %v8364 = vadd.f32 0.0, %v8363
        %v8365 = vpop.f32.mrb[0].mxu0
        %8366 = vmatprep.mubr.f32.mxu0 0.0
        %8367 = vmatmul.mubr.f32.gmra.mrb[0].mxu0 %v8189
        %v8368 = vpop.f32.mrb[0].mxu0
        %v8369 = vadd.f32 0.0, %v8368
        %v8370 = vpop.f32.mrb[0].mxu0
        %8371 = vmatprep.mubr.f32.mxu0 0.0
        %8372 = vmatmul.mubr.f32.gmra.mrb[0].mxu0 %v8190
        %v8373 = vpop.f32.mrb[0].mxu0
        %v8374 = vadd.f32 0.0, %v8373
        %v8375 = vpop.f32.mrb[0].mxu0
        %8376 = vmatprep.mubr.f32.mxu0 0.0
        %8377 = vmatmul.mubr.f32.gmra.mrb[0].mxu0 %v8191
        %v8378 = vpop.f32.mrb[0].mxu0
        %v8379 = vadd.f32 0.0, %v8378
        %v8380 = vpop.f32.mrb[0].mxu0
        %8381 = vmatprep.mubr.f32.mxu0 0.0
        %8382 = vmatmul.mubr.f32.gmra.mrb[0].mxu0 %v8192
        %v8383 = vpop.f32.mrb[0].mxu0
        %v8384 = vadd.f32 0.0, %v8383
        %v8385 = vpop.f32.mrb[0].mxu0
        %8386 = vmatprep.mubr.f32.mxu0 0.0
        %8387 = vmatmul.mubr.f32.gmra.mrb[0].mxu0 %v8193
        %v8388 = vpop.f32.mrb[0].mxu0
        %v8389 = vadd.f32 0.0, %v8388
        %v8390 = vpop.f32.mrb[0].mxu0
        %8391 = vmatprep.mubr.f32.mxu0 0.0
        %8392 = vmatmul.mubr.f32.gmra.mrb[0].mxu0 %v8194
        %v8393 = vpop.f32.mrb[0].mxu0
        %v8394 = vadd.f32 0.0, %v8393
        %v8395 = vpop.f32.mrb[0].mxu0
        %8396 = vmatprep.mubr.f32.mxu0 0.0
        %8397 = vmatmul.mubr.f32.gmra.mrb[0].mxu0 %v8195
        %v8398 = vpop.f32.mrb[0].mxu0
        %v8399 = vadd.f32 0.0, %v8398
        %v8400 = vpop.f32.mrb[0].mxu0
        %8401 = vmatprep.mubr.f32.mxu0 0.0
        %8402 = vmatmul.mubr.f32.gmra.mrb[0].mxu0 %v8196
        %v8403 = vpop.f32.mrb[0].mxu0
        %v8404 = vadd.f32 0.0, %v8403
        %v8405 = vpop.f32.mrb[0].mxu0
        %8406 = vmatprep.mubr.f32.mxu0 0.0
        %8407 = vmatmul.mubr.f32.gmra.mrb[0].mxu0 %v8197
        %v8408 = vpop.f32.mrb[0].mxu0
        %v8409 = vadd.f32 0.0, %v8408
        %v8410 = vpop.f32.mrb[0].mxu0
        %8411 = vmatprep.mubr.f32.mxu0 0.0
        %8412 = vmatmul.mubr.f32.gmra.mrb[0].mxu0 %v8198
        %v8413 = vpop.f32.mrb[0].mxu0
        %v8414 = vadd.f32 0.0, %v8413
        %v8415 = vpop.f32.mrb[0].mxu0
        %8416 = vmatprep.mubr.f32.mxu0 0.0
        %8417 = vmatmul.mubr.f32.gmra.mrb[0].mxu0 %v8199
        %v8418 = vpop.f32.mrb[0].mxu0
        %v8419 = vadd.f32 0.0, %v8418
        %v8420 = vpop.f32.mrb[0].mxu0
        %8421 = vmatprep.mubr.f32.mxu0 0.0
        %8422 = vmatmul.mubr.f32.gmra.mrb[0].mxu0 %v8200
        %v8423 = vpop.f32.mrb[0].mxu0
        %v8424 = vadd.f32 0.0, %v8423
        %v8425 = vpop.f32.mrb[0].mxu0
        %8426 = vmatprep.mubr.f32.mxu0 0.0
        %8427 = vmatmul.mubr.f32.gmra.mrb[0].mxu0 %v8201
        %v8428 = vpop.f32.mrb[0].mxu0
        %v8429 = vadd.f32 0.0, %v8428
        %v8430 = vpop.f32.mrb[0].mxu0
        %8431 = vmatprep.mubr.f32.mxu0 0.0
        %8432 = vmatmul.mubr.f32.gmra.mrb[0].mxu0 %v8202
        %v8433 = vpop.f32.mrb[0].mxu0
        %v8434 = vadd.f32 0.0, %v8433
        %v8435 = vpop.f32.mrb[0].mxu0
        %8436 = vmatprep.mubr.f32.mxu0 0.0
        %8437 = vmatmul.mubr.f32.gmra.mrb[0].mxu0 %v8203
        %v8438 = vpop.f32.mrb[0].mxu0
        %v8439 = vadd.f32 0.0, %v8438
        %v8440 = vpop.f32.mrb[0].mxu0
        %8441 = vmatprep.mubr.f32.mxu0 0.0
        %8442 = vmatmul.mubr.f32.gmra.mrb[0].mxu0 %v8204
        %v8443 = vpop.f32.mrb[0].mxu0
        %v8444 = vadd.f32 0.0, %v8443
        %v8445 = vpop.f32.mrb[0].mxu0
        %8446 = vdwg.mxu0
        %v8447 = vadd.f32 %v8136, %v8289
        %v8448 = vadd.f32 %v8137, %v8294
        %v8449 = vadd.f32 %v8138, %v8299
        %v8450 = vadd.f32 %v8139, %v8304
        %v8451 = vadd.f32 %v8140, %v8309
        %v8452 = vadd.f32 %v8141, %v8314
        %v8453 = vadd.f32 %v8142, %v8319
        %v8454 = vadd.f32 %v8143, %v8324
        %v8455 = vadd.f32 %v8144, %v8329
        %v8456 = vadd.f32 %v8145, %v8334
        %v8457 = vadd.f32 %v8146, %v8339
        %v8458 = vadd.f32 %v8147, %v8344
        %v8459 = vadd.f32 %v8148, %v8349
        %v8460 = vadd.f32 %v8149, %v8354
        %v8461 = vadd.f32 %v8150, %v8359
        %v8462 = vadd.f32 %v8151, %v8364
        %v8463 = vadd.f32 %v8152, %v8369
        %v8464 = vadd.f32 %v8153, %v8374
        %v8465 = vadd.f32 %v8154, %v8379
        %v8466 = vadd.f32 %v8155, %v8384
        %v8467 = vadd.f32 %v8156, %v8389
        %v8468 = vadd.f32 %v8157, %v8394
        %v8469 = vadd.f32 %v8158, %v8399
        %v8470 = vadd.f32 %v8159, %v8404
        %v8471 = vadd.f32 %v8160, %v8409
        %v8472 = vadd.f32 %v8161, %v8414
        %v8473 = vadd.f32 %v8162, %v8419
        %v8474 = vadd.f32 %v8163, %v8424
        %v8475 = vadd.f32 %v8164, %v8429
        %v8476 = vadd.f32 %v8165, %v8434
        %v8477 = vadd.f32 %v8166, %v8439
        %v8478 = vadd.f32 %v8167, %v8444
        %v8480 = vsel %vm1843, %v7584, 0.0
        %v8481 = vmul.f32 %v6583, %v1937
        %v8482 = vmul.f32 %v6585, %v1942
        %v8483 = vmul.f32 %v6587, %v1947
        %v8484 = vmul.f32 %v6589, %v1952
        %v8485 = vmul.f32 %v6591, %v1957
        %v8486 = vmul.f32 %v6593, %v1962
        %v8487 = vmul.f32 %v6595, %v1967
        %v8488 = vmul.f32 %v6597, %v1972
        %v8489 = vmul.f32 %v6599, %v1977
        %v8490 = vmul.f32 %v6601, %v1982
        %v8491 = vmul.f32 %v6603, %v1987
        %v8492 = vmul.f32 %v6605, %v1992
        %v8493 = vmul.f32 %v6607, %v1997
        %v8494 = vmul.f32 %v6609, %v2002
        %v8495 = vmul.f32 %v6611, %v2007
        %v8496 = vmul.f32 %v6613, %v2012
        %v8497 = vmul.f32 %v6615, %v2017
        %v8498 = vmul.f32 %v6617, %v2022
        %v8499 = vmul.f32 %v6619, %v2027
        %v8500 = vmul.f32 %v6621, %v2032
        %v8501 = vmul.f32 %v6623, %v2037
        %v8502 = vmul.f32 %v6625, %v2042
        %v8503 = vmul.f32 %v6627, %v2047
        %v8504 = vmul.f32 %v6629, %v2052
        %v8505 = vmul.f32 %v6631, %v2057
        %v8506 = vmul.f32 %v6633, %v2062
        %v8507 = vmul.f32 %v6635, %v2067
        %v8508 = vmul.f32 %v6637, %v2072
        %v8509 = vmul.f32 %v7583, %v2077
        %v8510 = vmul.f32 %v7585, %v2082
        %v8511 = vmul.f32 %v8480, %v2087
        %s8512 = scalar_lea.vmem %s10, 768
        %v8513 = vld [vmem:[%s8512] sm:$0xff]
        %v8514 = vld [vmem:[%s8512 + $0x8] sm:$0xff]
        %v8515 = vld [vmem:[%s8512 + $0x10] sm:$0xff]
        %v8516 = vld [vmem:[%s8512 + $0x18] sm:$0xff]
        %v8517 = vld [vmem:[%s8512 + $0x20] sm:$0xff]
        %v8518 = vld [vmem:[%s8512 + $0x28] sm:$0xff]
        %v8519 = vld [vmem:[%s8512 + $0x30] sm:$0xff]
        %v8520 = vld [vmem:[%s8512 + $0x38] sm:$0xff]
        %v8521 = vld [vmem:[%s8512 + $0x40] sm:$0xff]
        %v8522 = vld [vmem:[%s8512 + $0x48] sm:$0xff]
        %v8523 = vld [vmem:[%s8512 + $0x50] sm:$0xff]
        %v8524 = vld [vmem:[%s8512 + $0x58] sm:$0xff]
        %v8525 = vld [vmem:[%s8512 + $0x60] sm:$0xff]
        %v8526 = vld [vmem:[%s8512 + $0x68] sm:$0xff]
        %v8527 = vld [vmem:[%s8512 + $0x70] sm:$0xff]
        %v8528 = vld [vmem:[%s8512 + $0x78] sm:$0xff]
        %8529 = vmatprep.subr.mxu0 0.0
        %8530 = vmatpush1.msra.mxu0 %v8513
        %8531 = vmatprep.subr.mxu0 0.0
        %8532 = vmatpush1.msra.mxu0 %v8514
        %8533 = vmatprep.subr.mxu0 0.0
        %8534 = vmatpush1.msra.mxu0 %v8515
        %8535 = vmatprep.subr.mxu0 0.0
        %8536 = vmatpush1.msra.mxu0 %v8516
        %8537 = vmatprep.subr.mxu0 0.0
        %8538 = vmatpush1.msra.mxu0 %v8517
        %8539 = vmatprep.subr.mxu0 0.0
        %8540 = vmatpush1.msra.mxu0 %v8518
        %8541 = vmatprep.subr.mxu0 0.0
        %8542 = vmatpush1.msra.mxu0 %v8519
        %8543 = vmatprep.subr.mxu0 0.0
        %8544 = vmatpush1.msra.mxu0 %v8520
        %8545 = vmatprep.subr.mxu0 0.0
        %8546 = vmatpush1.msra.mxu0 %v8521
        %8547 = vmatprep.subr.mxu0 0.0
        %8548 = vmatpush1.msra.mxu0 %v8522
        %8549 = vmatprep.subr.mxu0 0.0
        %8550 = vmatpush1.msra.mxu0 %v8523
        %8551 = vmatprep.subr.mxu0 0.0
        %8552 = vmatpush1.msra.mxu0 %v8524
        %8553 = vmatprep.subr.mxu0 0.0
        %8554 = vmatpush1.msra.mxu0 %v8525
        %8555 = vmatprep.subr.mxu0 0.0
        %8556 = vmatpush1.msra.mxu0 %v8526
        %8557 = vmatprep.subr.mxu0 0.0
        %8558 = vmatpush1.msra.mxu0 %v8527
        %8559 = vmatprep.subr.mxu0 0.0
        %8560 = vmatpush1.msra.mxu0 %v8528
        %8561 = vmatprep.subr.mxu0 0.0
        %8562 = vmatpush1.msra.mxu0 0.0
        %8563 = vmatprep.subr.mxu0 0.0
        %8564 = vmatpush1.msra.mxu0 0.0
        %8565 = vmatprep.subr.mxu0 0.0
        %8566 = vmatpush1.msra.mxu0 0.0
        %8567 = vmatprep.subr.mxu0 0.0
        %8568 = vmatpush1.msra.mxu0 0.0
        %8569 = vmatprep.subr.mxu0 0.0
        %8570 = vmatpush1.msra.mxu0 0.0
        %8571 = vmatprep.subr.mxu0 0.0
        %8572 = vmatpush1.msra.mxu0 0.0
        %8573 = vmatprep.subr.mxu0 0.0
        %8574 = vmatpush1.msra.mxu0 0.0
        %8575 = vmatprep.subr.mxu0 0.0
        %8576 = vmatpush1.msra.mxu0 0.0
        %8577 = vmatprep.subr.mxu0 0.0
        %8578 = vmatpush1.msra.mxu0 0.0
        %8579 = vmatprep.subr.mxu0 0.0
        %8580 = vmatpush1.msra.mxu0 0.0
        %8581 = vmatprep.subr.mxu0 0.0
        %8582 = vmatpush1.msra.mxu0 0.0
        %8583 = vmatprep.subr.mxu0 0.0
        %8584 = vmatpush1.msra.mxu0 0.0
        %8585 = vmatprep.subr.mxu0 0.0
        %8586 = vmatpush1.msra.mxu0 0.0
        %8587 = vmatprep.subr.mxu0 0.0
        %8588 = vmatpush1.msra.mxu0 0.0
        %8589 = vmatprep.subr.mxu0 0.0
        %8590 = vmatpush1.msra.mxu0 0.0
        %8591 = vmatprep.subr.mxu0 0.0
        %8592 = vmatpush1.msra.mxu0 0.0
        %8593 = vmatprep.mubr.f32.mxu0 0.0
        %8594 = vmatmul.mubr.f32.gmra.mrb[0].mxu0 %v8481
        %v8595 = vpop.f32.mrb[0].mxu0
        %v8596 = vadd.f32 0.0, %v8595
        %v8597 = vpop.f32.mrb[0].mxu0
        %8598 = vmatprep.mubr.f32.mxu0 0.0
        %8599 = vmatmul.mubr.f32.gmra.mrb[0].mxu0 %v8482
        %v8600 = vpop.f32.mrb[0].mxu0
        %v8601 = vadd.f32 0.0, %v8600
        %v8602 = vpop.f32.mrb[0].mxu0
        %8603 = vmatprep.mubr.f32.mxu0 0.0
        %8604 = vmatmul.mubr.f32.gmra.mrb[0].mxu0 %v8483
        %v8605 = vpop.f32.mrb[0].mxu0
        %v8606 = vadd.f32 0.0, %v8605
        %v8607 = vpop.f32.mrb[0].mxu0
        %8608 = vmatprep.mubr.f32.mxu0 0.0
        %8609 = vmatmul.mubr.f32.gmra.mrb[0].mxu0 %v8484
        %v8610 = vpop.f32.mrb[0].mxu0
        %v8611 = vadd.f32 0.0, %v8610
        %v8612 = vpop.f32.mrb[0].mxu0
        %8613 = vmatprep.mubr.f32.mxu0 0.0
        %8614 = vmatmul.mubr.f32.gmra.mrb[0].mxu0 %v8485
        %v8615 = vpop.f32.mrb[0].mxu0
        %v8616 = vadd.f32 0.0, %v8615
        %v8617 = vpop.f32.mrb[0].mxu0
        %8618 = vmatprep.mubr.f32.mxu0 0.0
        %8619 = vmatmul.mubr.f32.gmra.mrb[0].mxu0 %v8486
        %v8620 = vpop.f32.mrb[0].mxu0
        %v8621 = vadd.f32 0.0, %v8620
        %v8622 = vpop.f32.mrb[0].mxu0
        %8623 = vmatprep.mubr.f32.mxu0 0.0
        %8624 = vmatmul.mubr.f32.gmra.mrb[0].mxu0 %v8487
        %v8625 = vpop.f32.mrb[0].mxu0
        %v8626 = vadd.f32 0.0, %v8625
        %v8627 = vpop.f32.mrb[0].mxu0
        %8628 = vmatprep.mubr.f32.mxu0 0.0
        %8629 = vmatmul.mubr.f32.gmra.mrb[0].mxu0 %v8488
        %v8630 = vpop.f32.mrb[0].mxu0
        %v8631 = vadd.f32 0.0, %v8630
        %v8632 = vpop.f32.mrb[0].mxu0
        %8633 = vmatprep.mubr.f32.mxu0 0.0
        %8634 = vmatmul.mubr.f32.gmra.mrb[0].mxu0 %v8489
        %v8635 = vpop.f32.mrb[0].mxu0
        %v8636 = vadd.f32 0.0, %v8635
        %v8637 = vpop.f32.mrb[0].mxu0
        %8638 = vmatprep.mubr.f32.mxu0 0.0
        %8639 = vmatmul.mubr.f32.gmra.mrb[0].mxu0 %v8490
        %v8640 = vpop.f32.mrb[0].mxu0
        %v8641 = vadd.f32 0.0, %v8640
        %v8642 = vpop.f32.mrb[0].mxu0
        %8643 = vmatprep.mubr.f32.mxu0 0.0
        %8644 = vmatmul.mubr.f32.gmra.mrb[0].mxu0 %v8491
        %v8645 = vpop.f32.mrb[0].mxu0
        %v8646 = vadd.f32 0.0, %v8645
        %v8647 = vpop.f32.mrb[0].mxu0
        %8648 = vmatprep.mubr.f32.mxu0 0.0
        %8649 = vmatmul.mubr.f32.gmra.mrb[0].mxu0 %v8492
        %v8650 = vpop.f32.mrb[0].mxu0
        %v8651 = vadd.f32 0.0, %v8650
        %v8652 = vpop.f32.mrb[0].mxu0
        %8653 = vmatprep.mubr.f32.mxu0 0.0
        %8654 = vmatmul.mubr.f32.gmra.mrb[0].mxu0 %v8493
        %v8655 = vpop.f32.mrb[0].mxu0
        %v8656 = vadd.f32 0.0, %v8655
        %v8657 = vpop.f32.mrb[0].mxu0
        %8658 = vmatprep.mubr.f32.mxu0 0.0
        %8659 = vmatmul.mubr.f32.gmra.mrb[0].mxu0 %v8494
        %v8660 = vpop.f32.mrb[0].mxu0
        %v8661 = vadd.f32 0.0, %v8660
        %v8662 = vpop.f32.mrb[0].mxu0
        %8663 = vmatprep.mubr.f32.mxu0 0.0
        %8664 = vmatmul.mubr.f32.gmra.mrb[0].mxu0 %v8495
        %v8665 = vpop.f32.mrb[0].mxu0
        %v8666 = vadd.f32 0.0, %v8665
        %v8667 = vpop.f32.mrb[0].mxu0
        %8668 = vmatprep.mubr.f32.mxu0 0.0
        %8669 = vmatmul.mubr.f32.gmra.mrb[0].mxu0 %v8496
        %v8670 = vpop.f32.mrb[0].mxu0
        %v8671 = vadd.f32 0.0, %v8670
        %v8672 = vpop.f32.mrb[0].mxu0
        %8673 = vmatprep.mubr.f32.mxu0 0.0
        %8674 = vmatmul.mubr.f32.gmra.mrb[0].mxu0 %v8497
        %v8675 = vpop.f32.mrb[0].mxu0
        %v8676 = vadd.f32 0.0, %v8675
        %v8677 = vpop.f32.mrb[0].mxu0
        %8678 = vmatprep.mubr.f32.mxu0 0.0
        %8679 = vmatmul.mubr.f32.gmra.mrb[0].mxu0 %v8498
        %v8680 = vpop.f32.mrb[0].mxu0
        %v8681 = vadd.f32 0.0, %v8680
        %v8682 = vpop.f32.mrb[0].mxu0
        %8683 = vmatprep.mubr.f32.mxu0 0.0
        %8684 = vmatmul.mubr.f32.gmra.mrb[0].mxu0 %v8499
        %v8685 = vpop.f32.mrb[0].mxu0
        %v8686 = vadd.f32 0.0, %v8685
        %v8687 = vpop.f32.mrb[0].mxu0
        %8688 = vmatprep.mubr.f32.mxu0 0.0
        %8689 = vmatmul.mubr.f32.gmra.mrb[0].mxu0 %v8500
        %v8690 = vpop.f32.mrb[0].mxu0
        %v8691 = vadd.f32 0.0, %v8690
        %v8692 = vpop.f32.mrb[0].mxu0
        %8693 = vmatprep.mubr.f32.mxu0 0.0
        %8694 = vmatmul.mubr.f32.gmra.mrb[0].mxu0 %v8501
        %v8695 = vpop.f32.mrb[0].mxu0
        %v8696 = vadd.f32 0.0, %v8695
        %v8697 = vpop.f32.mrb[0].mxu0
        %8698 = vmatprep.mubr.f32.mxu0 0.0
        %8699 = vmatmul.mubr.f32.gmra.mrb[0].mxu0 %v8502
        %v8700 = vpop.f32.mrb[0].mxu0
        %v8701 = vadd.f32 0.0, %v8700
        %v8702 = vpop.f32.mrb[0].mxu0
        %8703 = vmatprep.mubr.f32.mxu0 0.0
        %8704 = vmatmul.mubr.f32.gmra.mrb[0].mxu0 %v8503
        %v8705 = vpop.f32.mrb[0].mxu0
        %v8706 = vadd.f32 0.0, %v8705
        %v8707 = vpop.f32.mrb[0].mxu0
        %8708 = vmatprep.mubr.f32.mxu0 0.0
        %8709 = vmatmul.mubr.f32.gmra.mrb[0].mxu0 %v8504
        %v8710 = vpop.f32.mrb[0].mxu0
        %v8711 = vadd.f32 0.0, %v8710
        %v8712 = vpop.f32.mrb[0].mxu0
        %8713 = vmatprep.mubr.f32.mxu0 0.0
        %8714 = vmatmul.mubr.f32.gmra.mrb[0].mxu0 %v8505
        %v8715 = vpop.f32.mrb[0].mxu0
        %v8716 = vadd.f32 0.0, %v8715
        %v8717 = vpop.f32.mrb[0].mxu0
        %8718 = vmatprep.mubr.f32.mxu0 0.0
        %8719 = vmatmul.mubr.f32.gmra.mrb[0].mxu0 %v8506
        %v8720 = vpop.f32.mrb[0].mxu0
        %v8721 = vadd.f32 0.0, %v8720
        %v8722 = vpop.f32.mrb[0].mxu0
        %8723 = vmatprep.mubr.f32.mxu0 0.0
        %8724 = vmatmul.mubr.f32.gmra.mrb[0].mxu0 %v8507
        %v8725 = vpop.f32.mrb[0].mxu0
        %v8726 = vadd.f32 0.0, %v8725
        %v8727 = vpop.f32.mrb[0].mxu0
        %8728 = vmatprep.mubr.f32.mxu0 0.0
        %8729 = vmatmul.mubr.f32.gmra.mrb[0].mxu0 %v8508
        %v8730 = vpop.f32.mrb[0].mxu0
        %v8731 = vadd.f32 0.0, %v8730
        %v8732 = vpop.f32.mrb[0].mxu0
        %8733 = vmatprep.mubr.f32.mxu0 0.0
        %8734 = vmatmul.mubr.f32.gmra.mrb[0].mxu0 %v8509
        %v8735 = vpop.f32.mrb[0].mxu0
        %v8736 = vadd.f32 0.0, %v8735
        %v8737 = vpop.f32.mrb[0].mxu0
        %8738 = vmatprep.mubr.f32.mxu0 0.0
        %8739 = vmatmul.mubr.f32.gmra.mrb[0].mxu0 %v8510
        %v8740 = vpop.f32.mrb[0].mxu0
        %v8741 = vadd.f32 0.0, %v8740
        %v8742 = vpop.f32.mrb[0].mxu0
        %8743 = vmatprep.mubr.f32.mxu0 0.0
        %8744 = vmatmul.mubr.f32.gmra.mrb[0].mxu0 %v8511
        %v8745 = vpop.f32.mrb[0].mxu0
        %v8746 = vadd.f32 0.0, %v8745
        %v8747 = vpop.f32.mrb[0].mxu0
        %8748 = vmatprep.mubr.f32.mxu0 0.0
        %8749 = vmatmul.mubr.f32.gmra.mrb[0].mxu0 %v4504
        %v8750 = vpop.f32.mrb[0].mxu0
        %v8751 = vadd.f32 0.0, %v8750
        %v8752 = vpop.f32.mrb[0].mxu0
        %8753 = vdwg.mxu0
        %v8754 = vadd.f32 %v8447, %v8596
        %v8755 = vadd.f32 %v8448, %v8601
        %v8756 = vadd.f32 %v8449, %v8606
        %v8757 = vadd.f32 %v8450, %v8611
        %v8758 = vadd.f32 %v8451, %v8616
        %v8759 = vadd.f32 %v8452, %v8621
        %v8760 = vadd.f32 %v8453, %v8626
        %v8761 = vadd.f32 %v8454, %v8631
        %v8762 = vadd.f32 %v8455, %v8636
        %v8763 = vadd.f32 %v8456, %v8641
        %v8764 = vadd.f32 %v8457, %v8646
        %v8765 = vadd.f32 %v8458, %v8651
        %v8766 = vadd.f32 %v8459, %v8656
        %v8767 = vadd.f32 %v8460, %v8661
        %v8768 = vadd.f32 %v8461, %v8666
        %v8769 = vadd.f32 %v8462, %v8671
        %v8770 = vadd.f32 %v8463, %v8676
        %v8771 = vadd.f32 %v8464, %v8681
        %v8772 = vadd.f32 %v8465, %v8686
        %v8773 = vadd.f32 %v8466, %v8691
        %v8774 = vadd.f32 %v8467, %v8696
        %v8775 = vadd.f32 %v8468, %v8701
        %v8776 = vadd.f32 %v8469, %v8706
        %v8777 = vadd.f32 %v8470, %v8711
        %v8778 = vadd.f32 %v8471, %v8716
        %v8779 = vadd.f32 %v8472, %v8721
        %v8780 = vadd.f32 %v8473, %v8726
        %v8781 = vadd.f32 %v8474, %v8731
        %v8782 = vadd.f32 %v8475, %v8736
        %v8783 = vadd.f32 %v8476, %v8741
        %v8784 = vadd.f32 %v8477, %v8746
        %v8785 = vadd.f32 %v8478, %v8751
        %s8786 = scalar_lea.vmem %s10, 896
        %v8787 = vld [vmem:[%s8786] sm:$0xff]
        %v8788 = vld [vmem:[%s8786 + $0x8] sm:$0xff]
        %v8789 = vld [vmem:[%s8786 + $0x10] sm:$0xff]
        %v8790 = vld [vmem:[%s8786 + $0x18] sm:$0xff]
        %v8791 = vld [vmem:[%s8786 + $0x20] sm:$0xff]
        %v8792 = vld [vmem:[%s8786 + $0x28] sm:$0xff]
        %v8793 = vld [vmem:[%s8786 + $0x30] sm:$0xff]
        %v8794 = vld [vmem:[%s8786 + $0x38] sm:$0xff]
        %v8795 = vld [vmem:[%s8786 + $0x40] sm:$0xff]
        %v8796 = vld [vmem:[%s8786 + $0x48] sm:$0xff]
        %v8797 = vld [vmem:[%s8786 + $0x50] sm:$0xff]
        %v8798 = vld [vmem:[%s8786 + $0x58] sm:$0xff]
        %v8799 = vld [vmem:[%s8786 + $0x60] sm:$0xff]
        %v8800 = vld [vmem:[%s8786 + $0x68] sm:$0xff]
        %v8801 = vld [vmem:[%s8786 + $0x70] sm:$0xff]
        %v8802 = vld [vmem:[%s8786 + $0x78] sm:$0xff]
        %8803 = vmatprep.subr.mxu0 0.0
        %8804 = vmatpush1.msra.mxu0 %v8787
        %8805 = vmatprep.subr.mxu0 0.0
        %8806 = vmatpush1.msra.mxu0 %v8788
        %8807 = vmatprep.subr.mxu0 0.0
        %8808 = vmatpush1.msra.mxu0 %v8789
        %8809 = vmatprep.subr.mxu0 0.0
        %8810 = vmatpush1.msra.mxu0 %v8790
        %8811 = vmatprep.subr.mxu0 0.0
        %8812 = vmatpush1.msra.mxu0 %v8791
        %8813 = vmatprep.subr.mxu0 0.0
        %8814 = vmatpush1.msra.mxu0 %v8792
        %8815 = vmatprep.subr.mxu0 0.0
        %8816 = vmatpush1.msra.mxu0 %v8793
        %8817 = vmatprep.subr.mxu0 0.0
        %8818 = vmatpush1.msra.mxu0 %v8794
        %8819 = vmatprep.subr.mxu0 0.0
        %8820 = vmatpush1.msra.mxu0 %v8795
        %8821 = vmatprep.subr.mxu0 0.0
        %8822 = vmatpush1.msra.mxu0 %v8796
        %8823 = vmatprep.subr.mxu0 0.0
        %8824 = vmatpush1.msra.mxu0 %v8797
        %8825 = vmatprep.subr.mxu0 0.0
        %8826 = vmatpush1.msra.mxu0 %v8798
        %8827 = vmatprep.subr.mxu0 0.0
        %8828 = vmatpush1.msra.mxu0 %v8799
        %8829 = vmatprep.subr.mxu0 0.0
        %8830 = vmatpush1.msra.mxu0 %v8800
        %8831 = vmatprep.subr.mxu0 0.0
        %8832 = vmatpush1.msra.mxu0 %v8801
        %8833 = vmatprep.subr.mxu0 0.0
        %8834 = vmatpush1.msra.mxu0 %v8802
        %8835 = vmatprep.subr.mxu0 0.0
        %8836 = vmatpush1.msra.mxu0 0.0
        %8837 = vmatprep.subr.mxu0 0.0
        %8838 = vmatpush1.msra.mxu0 0.0
        %8839 = vmatprep.subr.mxu0 0.0
        %8840 = vmatpush1.msra.mxu0 0.0
        %8841 = vmatprep.subr.mxu0 0.0
        %8842 = vmatpush1.msra.mxu0 0.0
        %8843 = vmatprep.subr.mxu0 0.0
        %8844 = vmatpush1.msra.mxu0 0.0
        %8845 = vmatprep.subr.mxu0 0.0
        %8846 = vmatpush1.msra.mxu0 0.0
        %8847 = vmatprep.subr.mxu0 0.0
        %8848 = vmatpush1.msra.mxu0 0.0
        %8849 = vmatprep.subr.mxu0 0.0
        %8850 = vmatpush1.msra.mxu0 0.0
        %8851 = vmatprep.subr.mxu0 0.0
        %8852 = vmatpush1.msra.mxu0 0.0
        %8853 = vmatprep.subr.mxu0 0.0
        %8854 = vmatpush1.msra.mxu0 0.0
        %8855 = vmatprep.subr.mxu0 0.0
        %8856 = vmatpush1.msra.mxu0 0.0
        %8857 = vmatprep.subr.mxu0 0.0
        %8858 = vmatpush1.msra.mxu0 0.0
        %8859 = vmatprep.subr.mxu0 0.0
        %8860 = vmatpush1.msra.mxu0 0.0
        %8861 = vmatprep.subr.mxu0 0.0
        %8862 = vmatpush1.msra.mxu0 0.0
        %8863 = vmatprep.subr.mxu0 0.0
        %8864 = vmatpush1.msra.mxu0 0.0
        %8865 = vmatprep.subr.mxu0 0.0
        %8866 = vmatpush1.msra.mxu0 0.0
        %8867 = vmatprep.mubr.f32.mxu0 0.0
        %8868 = vmatmul.mubr.f32.gmra.mrb[0].mxu0 %v6518
        %v8869 = vpop.f32.mrb[0].mxu0
        %v8870 = vadd.f32 0.0, %v8869
        %v8871 = vpop.f32.mrb[0].mxu0
        %8872 = vmatprep.mubr.f32.mxu0 0.0
        %8873 = vmatmul.mubr.f32.gmra.mrb[0].mxu0 %v6519
        %v8874 = vpop.f32.mrb[0].mxu0
        %v8875 = vadd.f32 0.0, %v8874
        %v8876 = vpop.f32.mrb[0].mxu0
        %8877 = vmatprep.mubr.f32.mxu0 0.0
        %8878 = vmatmul.mubr.f32.gmra.mrb[0].mxu0 %v6520
        %v8879 = vpop.f32.mrb[0].mxu0
        %v8880 = vadd.f32 0.0, %v8879
        %v8881 = vpop.f32.mrb[0].mxu0
        %8882 = vmatprep.mubr.f32.mxu0 0.0
        %8883 = vmatmul.mubr.f32.gmra.mrb[0].mxu0 %v6521
        %v8884 = vpop.f32.mrb[0].mxu0
        %v8885 = vadd.f32 0.0, %v8884
        %v8886 = vpop.f32.mrb[0].mxu0
        %8887 = vmatprep.mubr.f32.mxu0 0.0
        %8888 = vmatmul.mubr.f32.gmra.mrb[0].mxu0 %v6522
        %v8889 = vpop.f32.mrb[0].mxu0
        %v8890 = vadd.f32 0.0, %v8889
        %v8891 = vpop.f32.mrb[0].mxu0
        %8892 = vmatprep.mubr.f32.mxu0 0.0
        %8893 = vmatmul.mubr.f32.gmra.mrb[0].mxu0 %v6523
        %v8894 = vpop.f32.mrb[0].mxu0
        %v8895 = vadd.f32 0.0, %v8894
        %v8896 = vpop.f32.mrb[0].mxu0
        %8897 = vmatprep.mubr.f32.mxu0 0.0
        %8898 = vmatmul.mubr.f32.gmra.mrb[0].mxu0 %v6524
        %v8899 = vpop.f32.mrb[0].mxu0
        %v8900 = vadd.f32 0.0, %v8899
        %v8901 = vpop.f32.mrb[0].mxu0
        %8902 = vmatprep.mubr.f32.mxu0 0.0
        %8903 = vmatmul.mubr.f32.gmra.mrb[0].mxu0 %v6525
        %v8904 = vpop.f32.mrb[0].mxu0
        %v8905 = vadd.f32 0.0, %v8904
        %v8906 = vpop.f32.mrb[0].mxu0
        %8907 = vmatprep.mubr.f32.mxu0 0.0
        %8908 = vmatmul.mubr.f32.gmra.mrb[0].mxu0 %v6526
        %v8909 = vpop.f32.mrb[0].mxu0
        %v8910 = vadd.f32 0.0, %v8909
        %v8911 = vpop.f32.mrb[0].mxu0
        %8912 = vmatprep.mubr.f32.mxu0 0.0
        %8913 = vmatmul.mubr.f32.gmra.mrb[0].mxu0 %v6527
        %v8914 = vpop.f32.mrb[0].mxu0
        %v8915 = vadd.f32 0.0, %v8914
        %v8916 = vpop.f32.mrb[0].mxu0
        %8917 = vmatprep.mubr.f32.mxu0 0.0
        %8918 = vmatmul.mubr.f32.gmra.mrb[0].mxu0 %v6528
        %v8919 = vpop.f32.mrb[0].mxu0
        %v8920 = vadd.f32 0.0, %v8919
        %v8921 = vpop.f32.mrb[0].mxu0
        %8922 = vmatprep.mubr.f32.mxu0 0.0
        %8923 = vmatmul.mubr.f32.gmra.mrb[0].mxu0 %v6529
        %v8924 = vpop.f32.mrb[0].mxu0
        %v8925 = vadd.f32 0.0, %v8924
        %v8926 = vpop.f32.mrb[0].mxu0
        %8927 = vmatprep.mubr.f32.mxu0 0.0
        %8928 = vmatmul.mubr.f32.gmra.mrb[0].mxu0 %v6530
        %v8929 = vpop.f32.mrb[0].mxu0
        %v8930 = vadd.f32 0.0, %v8929
        %v8931 = vpop.f32.mrb[0].mxu0
        %8932 = vmatprep.mubr.f32.mxu0 0.0
        %8933 = vmatmul.mubr.f32.gmra.mrb[0].mxu0 %v6531
        %v8934 = vpop.f32.mrb[0].mxu0
        %v8935 = vadd.f32 0.0, %v8934
        %v8936 = vpop.f32.mrb[0].mxu0
        %8937 = vmatprep.mubr.f32.mxu0 0.0
        %8938 = vmatmul.mubr.f32.gmra.mrb[0].mxu0 %v6532
        %v8939 = vpop.f32.mrb[0].mxu0
        %v8940 = vadd.f32 0.0, %v8939
        %v8941 = vpop.f32.mrb[0].mxu0
        %8942 = vmatprep.mubr.f32.mxu0 0.0
        %8943 = vmatmul.mubr.f32.gmra.mrb[0].mxu0 %v6533
        %v8944 = vpop.f32.mrb[0].mxu0
        %v8945 = vadd.f32 0.0, %v8944
        %v8946 = vpop.f32.mrb[0].mxu0
        %8947 = vmatprep.mubr.f32.mxu0 0.0
        %8948 = vmatmul.mubr.f32.gmra.mrb[0].mxu0 %v6534
        %v8949 = vpop.f32.mrb[0].mxu0
        %v8950 = vadd.f32 0.0, %v8949
        %v8951 = vpop.f32.mrb[0].mxu0
        %8952 = vmatprep.mubr.f32.mxu0 0.0
        %8953 = vmatmul.mubr.f32.gmra.mrb[0].mxu0 %v6535
        %v8954 = vpop.f32.mrb[0].mxu0
        %v8955 = vadd.f32 0.0, %v8954
        %v8956 = vpop.f32.mrb[0].mxu0
        %8957 = vmatprep.mubr.f32.mxu0 0.0
        %8958 = vmatmul.mubr.f32.gmra.mrb[0].mxu0 %v6536
        %v8959 = vpop.f32.mrb[0].mxu0
        %v8960 = vadd.f32 0.0, %v8959
        %v8961 = vpop.f32.mrb[0].mxu0
        %8962 = vmatprep.mubr.f32.mxu0 0.0
        %8963 = vmatmul.mubr.f32.gmra.mrb[0].mxu0 %v6537
        %v8964 = vpop.f32.mrb[0].mxu0
        %v8965 = vadd.f32 0.0, %v8964
        %v8966 = vpop.f32.mrb[0].mxu0
        %8967 = vmatprep.mubr.f32.mxu0 0.0
        %8968 = vmatmul.mubr.f32.gmra.mrb[0].mxu0 %v6538
        %v8969 = vpop.f32.mrb[0].mxu0
        %v8970 = vadd.f32 0.0, %v8969
        %v8971 = vpop.f32.mrb[0].mxu0
        %8972 = vmatprep.mubr.f32.mxu0 0.0
        %8973 = vmatmul.mubr.f32.gmra.mrb[0].mxu0 %v6539
        %v8974 = vpop.f32.mrb[0].mxu0
        %v8975 = vadd.f32 0.0, %v8974
        %v8976 = vpop.f32.mrb[0].mxu0
        %8977 = vmatprep.mubr.f32.mxu0 0.0
        %8978 = vmatmul.mubr.f32.gmra.mrb[0].mxu0 %v6540
        %v8979 = vpop.f32.mrb[0].mxu0
        %v8980 = vadd.f32 0.0, %v8979
        %v8981 = vpop.f32.mrb[0].mxu0
        %8982 = vmatprep.mubr.f32.mxu0 0.0
        %8983 = vmatmul.mubr.f32.gmra.mrb[0].mxu0 %v6541
        %v8984 = vpop.f32.mrb[0].mxu0
        %v8985 = vadd.f32 0.0, %v8984
        %v8986 = vpop.f32.mrb[0].mxu0
        %8987 = vmatprep.mubr.f32.mxu0 0.0
        %8988 = vmatmul.mubr.f32.gmra.mrb[0].mxu0 %v6542
        %v8989 = vpop.f32.mrb[0].mxu0
        %v8990 = vadd.f32 0.0, %v8989
        %v8991 = vpop.f32.mrb[0].mxu0
        %8992 = vmatprep.mubr.f32.mxu0 0.0
        %8993 = vmatmul.mubr.f32.gmra.mrb[0].mxu0 %v6543
        %v8994 = vpop.f32.mrb[0].mxu0
        %v8995 = vadd.f32 0.0, %v8994
        %v8996 = vpop.f32.mrb[0].mxu0
        %8997 = vmatprep.mubr.f32.mxu0 0.0
        %8998 = vmatmul.mubr.f32.gmra.mrb[0].mxu0 %v6544
        %v8999 = vpop.f32.mrb[0].mxu0
        %v9000 = vadd.f32 0.0, %v8999
        %v9001 = vpop.f32.mrb[0].mxu0
        %9002 = vmatprep.mubr.f32.mxu0 0.0
        %9003 = vmatmul.mubr.f32.gmra.mrb[0].mxu0 %v6545
        %v9004 = vpop.f32.mrb[0].mxu0
        %v9005 = vadd.f32 0.0, %v9004
        %v9006 = vpop.f32.mrb[0].mxu0
        %9007 = vmatprep.mubr.f32.mxu0 0.0
        %9008 = vmatmul.mubr.f32.gmra.mrb[0].mxu0 %v6546
        %v9009 = vpop.f32.mrb[0].mxu0
        %v9010 = vadd.f32 0.0, %v9009
        %v9011 = vpop.f32.mrb[0].mxu0
        %9012 = vmatprep.mubr.f32.mxu0 0.0
        %9013 = vmatmul.mubr.f32.gmra.mrb[0].mxu0 %v6547
        %v9014 = vpop.f32.mrb[0].mxu0
        %v9015 = vadd.f32 0.0, %v9014
        %v9016 = vpop.f32.mrb[0].mxu0
        %9017 = vmatprep.mubr.f32.mxu0 0.0
        %9018 = vmatmul.mubr.f32.gmra.mrb[0].mxu0 0.0
        %v9019 = vpop.f32.mrb[0].mxu0
        %v9020 = vadd.f32 0.0, %v9019
        %v9021 = vpop.f32.mrb[0].mxu0
        %9022 = vmatprep.mubr.f32.mxu0 0.0
        %9023 = vmatmul.mubr.f32.gmra.mrb[0].mxu0 0.0
        %v9024 = vpop.f32.mrb[0].mxu0
        %v9025 = vadd.f32 0.0, %v9024
        %v9026 = vpop.f32.mrb[0].mxu0
        %9027 = vdwg.mxu0
        %v9028 = vadd.f32 %v8754, %v8870
        %v9029 = vadd.f32 %v8755, %v8875
        %v9030 = vadd.f32 %v8756, %v8880
        %v9031 = vadd.f32 %v8757, %v8885
        %v9032 = vadd.f32 %v8758, %v8890
        %v9033 = vadd.f32 %v8759, %v8895
        %v9034 = vadd.f32 %v8760, %v8900
        %v9035 = vadd.f32 %v8761, %v8905
        %v9036 = vadd.f32 %v8762, %v8910
        %v9037 = vadd.f32 %v8763, %v8915
        %v9038 = vadd.f32 %v8764, %v8920
        %v9039 = vadd.f32 %v8765, %v8925
        %v9040 = vadd.f32 %v8766, %v8930
        %v9041 = vadd.f32 %v8767, %v8935
        %v9042 = vadd.f32 %v8768, %v8940
        %v9043 = vadd.f32 %v8769, %v8945
        %v9044 = vadd.f32 %v8770, %v8950
        %v9045 = vadd.f32 %v8771, %v8955
        %v9046 = vadd.f32 %v8772, %v8960
        %v9047 = vadd.f32 %v8773, %v8965
        %v9048 = vadd.f32 %v8774, %v8970
        %v9049 = vadd.f32 %v8775, %v8975
        %v9050 = vadd.f32 %v8776, %v8980
        %v9051 = vadd.f32 %v8777, %v8985
        %v9052 = vadd.f32 %v8778, %v8990
        %v9053 = vadd.f32 %v8779, %v8995
        %v9054 = vadd.f32 %v8780, %v9000
        %v9055 = vadd.f32 %v8781, %v9005
        %v9056 = vadd.f32 %v8782, %v9010
        %v9057 = vadd.f32 %v8783, %v9015
        %v9058 = vadd.f32 %v8784, %v9020
        %v9059 = vadd.f32 %v8785, %v9025
        %v9060 = vmul.f32 %v7189, %v2850
        %v9061 = vmul.f32 %v7191, %v2855
        %v9062 = vmul.f32 %v7193, %v2860
        %v9063 = vmul.f32 %v7195, %v2865
        %v9064 = vmul.f32 %v7197, %v2870
        %v9065 = vmul.f32 %v7199, %v2875
        %v9066 = vmul.f32 %v7201, %v2880
        %v9067 = vmul.f32 %v7203, %v2885
        %v9068 = vmul.f32 %v7205, %v2890
        %v9069 = vmul.f32 %v7207, %v2895
        %v9070 = vmul.f32 %v7209, %v2900
        %v9071 = vmul.f32 %v7211, %v2905
        %v9072 = vmul.f32 %v7213, %v2910
        %v9073 = vmul.f32 %v7215, %v2915
        %v9074 = vmul.f32 %v7217, %v2920
        %v9075 = vmul.f32 %v7219, %v2925
        %v9076 = vmul.f32 %v7221, %v2930
        %v9077 = vmul.f32 %v7223, %v2935
        %v9078 = vmul.f32 %v7225, %v2940
        %v9079 = vmul.f32 %v7227, %v2945
        %v9080 = vmul.f32 %v7229, %v2950
        %v9081 = vmul.f32 %v7231, %v2955
        %v9082 = vmul.f32 %v7233, %v2960
        %v9083 = vmul.f32 %v7235, %v2965
        %v9084 = vmul.f32 %v7237, %v2970
        %v9085 = vmul.f32 %v7239, %v2975
        %v9086 = vmul.f32 %v7241, %v2980
        %v9087 = vmul.f32 %v7243, %v2985
        %v9088 = vmul.f32 %v8169, %v2990
        %v9089 = vmul.f32 %v8172, %v2995
        %s9090 = scalar_lea.vmem %s10, 1024
        %v9091 = vld [vmem:[%s9090] sm:$0xff]
        %v9092 = vld [vmem:[%s9090 + $0x8] sm:$0xff]
        %v9093 = vld [vmem:[%s9090 + $0x10] sm:$0xff]
        %v9094 = vld [vmem:[%s9090 + $0x18] sm:$0xff]
        %v9095 = vld [vmem:[%s9090 + $0x20] sm:$0xff]
        %v9096 = vld [vmem:[%s9090 + $0x28] sm:$0xff]
        %v9097 = vld [vmem:[%s9090 + $0x30] sm:$0xff]
        %v9098 = vld [vmem:[%s9090 + $0x38] sm:$0xff]
        %v9099 = vld [vmem:[%s9090 + $0x40] sm:$0xff]
        %v9100 = vld [vmem:[%s9090 + $0x48] sm:$0xff]
        %v9101 = vld [vmem:[%s9090 + $0x50] sm:$0xff]
        %v9102 = vld [vmem:[%s9090 + $0x58] sm:$0xff]
        %v9103 = vld [vmem:[%s9090 + $0x60] sm:$0xff]
        %v9104 = vld [vmem:[%s9090 + $0x68] sm:$0xff]
        %v9105 = vld [vmem:[%s9090 + $0x70] sm:$0xff]
        %v9106 = vld [vmem:[%s9090 + $0x78] sm:$0xff]
        %9107 = vmatprep.subr.mxu0 0.0
        %9108 = vmatpush1.msra.mxu0 %v9091
        %9109 = vmatprep.subr.mxu0 0.0
        %9110 = vmatpush1.msra.mxu0 %v9092
        %9111 = vmatprep.subr.mxu0 0.0
        %9112 = vmatpush1.msra.mxu0 %v9093
        %9113 = vmatprep.subr.mxu0 0.0
        %9114 = vmatpush1.msra.mxu0 %v9094
        %9115 = vmatprep.subr.mxu0 0.0
        %9116 = vmatpush1.msra.mxu0 %v9095
        %9117 = vmatprep.subr.mxu0 0.0
        %9118 = vmatpush1.msra.mxu0 %v9096
        %9119 = vmatprep.subr.mxu0 0.0
        %9120 = vmatpush1.msra.mxu0 %v9097
        %9121 = vmatprep.subr.mxu0 0.0
        %9122 = vmatpush1.msra.mxu0 %v9098
        %9123 = vmatprep.subr.mxu0 0.0
        %9124 = vmatpush1.msra.mxu0 %v9099
        %9125 = vmatprep.subr.mxu0 0.0
        %9126 = vmatpush1.msra.mxu0 %v9100
        %9127 = vmatprep.subr.mxu0 0.0
        %9128 = vmatpush1.msra.mxu0 %v9101
        %9129 = vmatprep.subr.mxu0 0.0
        %9130 = vmatpush1.msra.mxu0 %v9102
        %9131 = vmatprep.subr.mxu0 0.0
        %9132 = vmatpush1.msra.mxu0 %v9103
        %9133 = vmatprep.subr.mxu0 0.0
        %9134 = vmatpush1.msra.mxu0 %v9104
        %9135 = vmatprep.subr.mxu0 0.0
        %9136 = vmatpush1.msra.mxu0 %v9105
        %9137 = vmatprep.subr.mxu0 0.0
        %9138 = vmatpush1.msra.mxu0 %v9106
        %9139 = vmatprep.subr.mxu0 0.0
        %9140 = vmatpush1.msra.mxu0 0.0
        %9141 = vmatprep.subr.mxu0 0.0
        %9142 = vmatpush1.msra.mxu0 0.0
        %9143 = vmatprep.subr.mxu0 0.0
        %9144 = vmatpush1.msra.mxu0 0.0
        %9145 = vmatprep.subr.mxu0 0.0
        %9146 = vmatpush1.msra.mxu0 0.0
        %9147 = vmatprep.subr.mxu0 0.0
        %9148 = vmatpush1.msra.mxu0 0.0
        %9149 = vmatprep.subr.mxu0 0.0
        %9150 = vmatpush1.msra.mxu0 0.0
        %9151 = vmatprep.subr.mxu0 0.0
        %9152 = vmatpush1.msra.mxu0 0.0
        %9153 = vmatprep.subr.mxu0 0.0
        %9154 = vmatpush1.msra.mxu0 0.0
        %9155 = vmatprep.subr.mxu0 0.0
        %9156 = vmatpush1.msra.mxu0 0.0
        %9157 = vmatprep.subr.mxu0 0.0
        %9158 = vmatpush1.msra.mxu0 0.0
        %9159 = vmatprep.subr.mxu0 0.0
        %9160 = vmatpush1.msra.mxu0 0.0
        %9161 = vmatprep.subr.mxu0 0.0
        %9162 = vmatpush1.msra.mxu0 0.0
        %9163 = vmatprep.subr.mxu0 0.0
        %9164 = vmatpush1.msra.mxu0 0.0
        %9165 = vmatprep.subr.mxu0 0.0
        %9166 = vmatpush1.msra.mxu0 0.0
        %9167 = vmatprep.subr.mxu0 0.0
        %9168 = vmatpush1.msra.mxu0 0.0
        %9169 = vmatprep.subr.mxu0 0.0
        %9170 = vmatpush1.msra.mxu0 0.0
        %9171 = vmatprep.mubr.f32.mxu0 0.0
        %9172 = vmatmul.mubr.f32.gmra.mrb[0].mxu0 %v9060
        %v9173 = vpop.f32.mrb[0].mxu0
        %v9174 = vadd.f32 0.0, %v9173
        %v9175 = vpop.f32.mrb[0].mxu0
        %9176 = vmatprep.mubr.f32.mxu0 0.0
        %9177 = vmatmul.mubr.f32.gmra.mrb[0].mxu0 %v9061
        %v9178 = vpop.f32.mrb[0].mxu0
        %v9179 = vadd.f32 0.0, %v9178
        %v9180 = vpop.f32.mrb[0].mxu0
        %9181 = vmatprep.mubr.f32.mxu0 0.0
        %9182 = vmatmul.mubr.f32.gmra.mrb[0].mxu0 %v9062
        %v9183 = vpop.f32.mrb[0].mxu0
        %v9184 = vadd.f32 0.0, %v9183
        %v9185 = vpop.f32.mrb[0].mxu0
        %9186 = vmatprep.mubr.f32.mxu0 0.0
        %9187 = vmatmul.mubr.f32.gmra.mrb[0].mxu0 %v9063
        %v9188 = vpop.f32.mrb[0].mxu0
        %v9189 = vadd.f32 0.0, %v9188
        %v9190 = vpop.f32.mrb[0].mxu0
        %9191 = vmatprep.mubr.f32.mxu0 0.0
        %9192 = vmatmul.mubr.f32.gmra.mrb[0].mxu0 %v9064
        %v9193 = vpop.f32.mrb[0].mxu0
        %v9194 = vadd.f32 0.0, %v9193
        %v9195 = vpop.f32.mrb[0].mxu0
        %9196 = vmatprep.mubr.f32.mxu0 0.0
        %9197 = vmatmul.mubr.f32.gmra.mrb[0].mxu0 %v9065
        %v9198 = vpop.f32.mrb[0].mxu0
        %v9199 = vadd.f32 0.0, %v9198
        %v9200 = vpop.f32.mrb[0].mxu0
        %9201 = vmatprep.mubr.f32.mxu0 0.0
        %9202 = vmatmul.mubr.f32.gmra.mrb[0].mxu0 %v9066
        %v9203 = vpop.f32.mrb[0].mxu0
        %v9204 = vadd.f32 0.0, %v9203
        %v9205 = vpop.f32.mrb[0].mxu0
        %9206 = vmatprep.mubr.f32.mxu0 0.0
        %9207 = vmatmul.mubr.f32.gmra.mrb[0].mxu0 %v9067
        %v9208 = vpop.f32.mrb[0].mxu0
        %v9209 = vadd.f32 0.0, %v9208
        %v9210 = vpop.f32.mrb[0].mxu0
        %9211 = vmatprep.mubr.f32.mxu0 0.0
        %9212 = vmatmul.mubr.f32.gmra.mrb[0].mxu0 %v9068
        %v9213 = vpop.f32.mrb[0].mxu0
        %v9214 = vadd.f32 0.0, %v9213
        %v9215 = vpop.f32.mrb[0].mxu0
        %9216 = vmatprep.mubr.f32.mxu0 0.0
        %9217 = vmatmul.mubr.f32.gmra.mrb[0].mxu0 %v9069
        %v9218 = vpop.f32.mrb[0].mxu0
        %v9219 = vadd.f32 0.0, %v9218
        %v9220 = vpop.f32.mrb[0].mxu0
        %9221 = vmatprep.mubr.f32.mxu0 0.0
        %9222 = vmatmul.mubr.f32.gmra.mrb[0].mxu0 %v9070
        %v9223 = vpop.f32.mrb[0].mxu0
        %v9224 = vadd.f32 0.0, %v9223
        %v9225 = vpop.f32.mrb[0].mxu0
        %9226 = vmatprep.mubr.f32.mxu0 0.0
        %9227 = vmatmul.mubr.f32.gmra.mrb[0].mxu0 %v9071
        %v9228 = vpop.f32.mrb[0].mxu0
        %v9229 = vadd.f32 0.0, %v9228
        %v9230 = vpop.f32.mrb[0].mxu0
        %9231 = vmatprep.mubr.f32.mxu0 0.0
        %9232 = vmatmul.mubr.f32.gmra.mrb[0].mxu0 %v9072
        %v9233 = vpop.f32.mrb[0].mxu0
        %v9234 = vadd.f32 0.0, %v9233
        %v9235 = vpop.f32.mrb[0].mxu0
        %9236 = vmatprep.mubr.f32.mxu0 0.0
        %9237 = vmatmul.mubr.f32.gmra.mrb[0].mxu0 %v9073
        %v9238 = vpop.f32.mrb[0].mxu0
        %v9239 = vadd.f32 0.0, %v9238
        %v9240 = vpop.f32.mrb[0].mxu0
        %9241 = vmatprep.mubr.f32.mxu0 0.0
        %9242 = vmatmul.mubr.f32.gmra.mrb[0].mxu0 %v9074
        %v9243 = vpop.f32.mrb[0].mxu0
        %v9244 = vadd.f32 0.0, %v9243
        %v9245 = vpop.f32.mrb[0].mxu0
        %9246 = vmatprep.mubr.f32.mxu0 0.0
        %9247 = vmatmul.mubr.f32.gmra.mrb[0].mxu0 %v9075
        %v9248 = vpop.f32.mrb[0].mxu0
        %v9249 = vadd.f32 0.0, %v9248
        %v9250 = vpop.f32.mrb[0].mxu0
        %9251 = vmatprep.mubr.f32.mxu0 0.0
        %9252 = vmatmul.mubr.f32.gmra.mrb[0].mxu0 %v9076
        %v9253 = vpop.f32.mrb[0].mxu0
        %v9254 = vadd.f32 0.0, %v9253
        %v9255 = vpop.f32.mrb[0].mxu0
        %9256 = vmatprep.mubr.f32.mxu0 0.0
        %9257 = vmatmul.mubr.f32.gmra.mrb[0].mxu0 %v9077
        %v9258 = vpop.f32.mrb[0].mxu0
        %v9259 = vadd.f32 0.0, %v9258
        %v9260 = vpop.f32.mrb[0].mxu0
        %9261 = vmatprep.mubr.f32.mxu0 0.0
        %9262 = vmatmul.mubr.f32.gmra.mrb[0].mxu0 %v9078
        %v9263 = vpop.f32.mrb[0].mxu0
        %v9264 = vadd.f32 0.0, %v9263
        %v9265 = vpop.f32.mrb[0].mxu0
        %9266 = vmatprep.mubr.f32.mxu0 0.0
        %9267 = vmatmul.mubr.f32.gmra.mrb[0].mxu0 %v9079
        %v9268 = vpop.f32.mrb[0].mxu0
        %v9269 = vadd.f32 0.0, %v9268
        %v9270 = vpop.f32.mrb[0].mxu0
        %9271 = vmatprep.mubr.f32.mxu0 0.0
        %9272 = vmatmul.mubr.f32.gmra.mrb[0].mxu0 %v9080
        %v9273 = vpop.f32.mrb[0].mxu0
        %v9274 = vadd.f32 0.0, %v9273
        %v9275 = vpop.f32.mrb[0].mxu0
        %9276 = vmatprep.mubr.f32.mxu0 0.0
        %9277 = vmatmul.mubr.f32.gmra.mrb[0].mxu0 %v9081
        %v9278 = vpop.f32.mrb[0].mxu0
        %v9279 = vadd.f32 0.0, %v9278
        %v9280 = vpop.f32.mrb[0].mxu0
        %9281 = vmatprep.mubr.f32.mxu0 0.0
        %9282 = vmatmul.mubr.f32.gmra.mrb[0].mxu0 %v9082
        %v9283 = vpop.f32.mrb[0].mxu0
        %v9284 = vadd.f32 0.0, %v9283
        %v9285 = vpop.f32.mrb[0].mxu0
        %9286 = vmatprep.mubr.f32.mxu0 0.0
        %9287 = vmatmul.mubr.f32.gmra.mrb[0].mxu0 %v9083
        %v9288 = vpop.f32.mrb[0].mxu0
        %v9289 = vadd.f32 0.0, %v9288
        %v9290 = vpop.f32.mrb[0].mxu0
        %9291 = vmatprep.mubr.f32.mxu0 0.0
        %9292 = vmatmul.mubr.f32.gmra.mrb[0].mxu0 %v9084
        %v9293 = vpop.f32.mrb[0].mxu0
        %v9294 = vadd.f32 0.0, %v9293
        %v9295 = vpop.f32.mrb[0].mxu0
        %9296 = vmatprep.mubr.f32.mxu0 0.0
        %9297 = vmatmul.mubr.f32.gmra.mrb[0].mxu0 %v9085
        %v9298 = vpop.f32.mrb[0].mxu0
        %v9299 = vadd.f32 0.0, %v9298
        %v9300 = vpop.f32.mrb[0].mxu0
        %9301 = vmatprep.mubr.f32.mxu0 0.0
        %9302 = vmatmul.mubr.f32.gmra.mrb[0].mxu0 %v9086
        %v9303 = vpop.f32.mrb[0].mxu0
        %v9304 = vadd.f32 0.0, %v9303
        %v9305 = vpop.f32.mrb[0].mxu0
        %9306 = vmatprep.mubr.f32.mxu0 0.0
        %9307 = vmatmul.mubr.f32.gmra.mrb[0].mxu0 %v9087
        %v9308 = vpop.f32.mrb[0].mxu0
        %v9309 = vadd.f32 0.0, %v9308
        %v9310 = vpop.f32.mrb[0].mxu0
        %9311 = vmatprep.mubr.f32.mxu0 0.0
        %9312 = vmatmul.mubr.f32.gmra.mrb[0].mxu0 %v9088
        %v9313 = vpop.f32.mrb[0].mxu0
        %v9314 = vadd.f32 0.0, %v9313
        %v9315 = vpop.f32.mrb[0].mxu0
        %9316 = vmatprep.mubr.f32.mxu0 0.0
        %9317 = vmatmul.mubr.f32.gmra.mrb[0].mxu0 %v9089
        %v9318 = vpop.f32.mrb[0].mxu0
        %v9319 = vadd.f32 0.0, %v9318
        %v9320 = vpop.f32.mrb[0].mxu0
        %9321 = vmatprep.mubr.f32.mxu0 0.0
        %9322 = vmatmul.mubr.f32.gmra.mrb[0].mxu0 %v5163
        %v9323 = vpop.f32.mrb[0].mxu0
        %v9324 = vadd.f32 0.0, %v9323
        %v9325 = vpop.f32.mrb[0].mxu0
        %9326 = vmatprep.mubr.f32.mxu0 0.0
        %9327 = vmatmul.mubr.f32.gmra.mrb[0].mxu0 %v5164
        %v9328 = vpop.f32.mrb[0].mxu0
        %v9329 = vadd.f32 0.0, %v9328
        %v9330 = vpop.f32.mrb[0].mxu0
        %9331 = vdwg.mxu0
        %v9332 = vadd.f32 %v9028, %v9174
        %v9333 = vadd.f32 %v9029, %v9179
        %v9334 = vadd.f32 %v9030, %v9184
        %v9335 = vadd.f32 %v9031, %v9189
        %v9336 = vadd.f32 %v9032, %v9194
        %v9337 = vadd.f32 %v9033, %v9199
        %v9338 = vadd.f32 %v9034, %v9204
        %v9339 = vadd.f32 %v9035, %v9209
        %v9340 = vadd.f32 %v9036, %v9214
        %v9341 = vadd.f32 %v9037, %v9219
        %v9342 = vadd.f32 %v9038, %v9224
        %v9343 = vadd.f32 %v9039, %v9229
        %v9344 = vadd.f32 %v9040, %v9234
        %v9345 = vadd.f32 %v9041, %v9239
        %v9346 = vadd.f32 %v9042, %v9244
        %v9347 = vadd.f32 %v9043, %v9249
        %v9348 = vadd.f32 %v9044, %v9254
        %v9349 = vadd.f32 %v9045, %v9259
        %v9350 = vadd.f32 %v9046, %v9264
        %v9351 = vadd.f32 %v9047, %v9269
        %v9352 = vadd.f32 %v9048, %v9274
        %v9353 = vadd.f32 %v9049, %v9279
        %v9354 = vadd.f32 %v9050, %v9284
        %v9355 = vadd.f32 %v9051, %v9289
        %v9356 = vadd.f32 %v9052, %v9294
        %v9357 = vadd.f32 %v9053, %v9299
        %v9358 = vadd.f32 %v9054, %v9304
        %v9359 = vadd.f32 %v9055, %v9309
        %v9360 = vadd.f32 %v9056, %v9314
        %v9361 = vadd.f32 %v9057, %v9319
        %v9362 = vadd.f32 %v9058, %v9324
        %v9363 = vadd.f32 %v9059, %v9329
        %v9365 = vlaneseq
        %v9366 = vshrl.u32 %v9365, 7
        %v9367 = vsub.s32 0, %v9366
        %v9368 = vrot.slane %v6548, %v9367
        %v9370 = vadd.f32 %v9332, %v9368
        %v9371 = vadd.f32 %v9333, %v9368
        %v9372 = vadd.f32 %v9334, %v9368
        %v9373 = vadd.f32 %v9335, %v9368
        %v9374 = vadd.f32 %v9336, %v9368
        %v9375 = vadd.f32 %v9337, %v9368
        %v9376 = vadd.f32 %v9338, %v9368
        %v9377 = vadd.f32 %v9339, %v9368
        %v9378 = vadd.f32 %v9340, %v9368
        %v9379 = vadd.f32 %v9341, %v9368
        %v9380 = vadd.f32 %v9342, %v9368
        %v9381 = vadd.f32 %v9343, %v9368
        %v9382 = vadd.f32 %v9344, %v9368
        %v9383 = vadd.f32 %v9345, %v9368
        %v9384 = vadd.f32 %v9346, %v9368
        %v9385 = vadd.f32 %v9347, %v9368
        %v9386 = vadd.f32 %v9348, %v9368
        %v9387 = vadd.f32 %v9349, %v9368
        %v9388 = vadd.f32 %v9350, %v9368
        %v9389 = vadd.f32 %v9351, %v9368
        %v9390 = vadd.f32 %v9352, %v9368
        %v9391 = vadd.f32 %v9353, %v9368
        %v9392 = vadd.f32 %v9354, %v9368
        %v9393 = vadd.f32 %v9355, %v9368
        %v9394 = vadd.f32 %v9356, %v9368
        %v9395 = vadd.f32 %v9357, %v9368
        %v9396 = vadd.f32 %v9358, %v9368
        %v9397 = vadd.f32 %v9359, %v9368
        %v9398 = vadd.f32 %v9360, %v9368
        %v9399 = vadd.f32 %v9361, %v9368
        %v9400 = vadd.f32 %v9362, %v9368
        %v9401 = vadd.f32 %v9363, %v9368
        %v9402 = vld [vmem:[%s12] sm:$0xff]
        %v9403 = vld [vmem:[%s12 + $0x8] sm:$0xff]
        %v9404 = vld [vmem:[%s12 + $0x10] sm:$0xff]
        %v9405 = vld [vmem:[%s12 + $0x18] sm:$0xff]
        %v9406 = vld [vmem:[%s12 + $0x20] sm:$0xff]
        %v9407 = vld [vmem:[%s12 + $0x28] sm:$0xff]
        %v9408 = vld [vmem:[%s12 + $0x30] sm:$0xff]
        %v9409 = vld [vmem:[%s12 + $0x38] sm:$0xff]
        %v9410 = vld [vmem:[%s13] sm:$0x1]
        %v9412 = vlaneseq
        %v9413 = vshrl.u32 %v9412, 7
        %v9414 = vsub.s32 0, %v9413
        %v9415 = vrot.slane %v9410, %v9414
        %9417 = vmatprep.subr.mxu0 0.0
        %9418 = vmatpush1.msra.mxu0 %v9402
        %9419 = vmatprep.subr.mxu0 0.0
        %9420 = vmatpush1.msra.mxu0 %v9403
        %9421 = vmatprep.subr.mxu0 0.0
        %9422 = vmatpush1.msra.mxu0 %v9404
        %9423 = vmatprep.subr.mxu0 0.0
        %9424 = vmatpush1.msra.mxu0 %v9405
        %9425 = vmatprep.subr.mxu0 0.0
        %9426 = vmatpush1.msra.mxu0 %v9406
        %9427 = vmatprep.subr.mxu0 0.0
        %9428 = vmatpush1.msra.mxu0 %v9407
        %9429 = vmatprep.subr.mxu0 0.0
        %9430 = vmatpush1.msra.mxu0 %v9408
        %9431 = vmatprep.subr.mxu0 0.0
        %9432 = vmatpush1.msra.mxu0 %v9409
        %9433 = vmatprep.subr.mxu0 0.0
        %9434 = vmatpush1.msra.mxu0 0.0
        %9435 = vmatprep.subr.mxu0 0.0
        %9436 = vmatpush1.msra.mxu0 0.0
        %9437 = vmatprep.subr.mxu0 0.0
        %9438 = vmatpush1.msra.mxu0 0.0
        %9439 = vmatprep.subr.mxu0 0.0
        %9440 = vmatpush1.msra.mxu0 0.0
        %9441 = vmatprep.subr.mxu0 0.0
        %9442 = vmatpush1.msra.mxu0 0.0
        %9443 = vmatprep.subr.mxu0 0.0
        %9444 = vmatpush1.msra.mxu0 0.0
        %9445 = vmatprep.subr.mxu0 0.0
        %9446 = vmatpush1.msra.mxu0 0.0
        %9447 = vmatprep.subr.mxu0 0.0
        %9448 = vmatpush1.msra.mxu0 0.0
        %9449 = vmatprep.subr.mxu0 0.0
        %9450 = vmatpush1.msra.mxu0 0.0
        %9451 = vmatprep.subr.mxu0 0.0
        %9452 = vmatpush1.msra.mxu0 0.0
        %9453 = vmatprep.subr.mxu0 0.0
        %9454 = vmatpush1.msra.mxu0 0.0
        %9455 = vmatprep.subr.mxu0 0.0
        %9456 = vmatpush1.msra.mxu0 0.0
        %9457 = vmatprep.subr.mxu0 0.0
        %9458 = vmatpush1.msra.mxu0 0.0
        %9459 = vmatprep.subr.mxu0 0.0
        %9460 = vmatpush1.msra.mxu0 0.0
        %9461 = vmatprep.subr.mxu0 0.0
        %9462 = vmatpush1.msra.mxu0 0.0
        %9463 = vmatprep.subr.mxu0 0.0
        %9464 = vmatpush1.msra.mxu0 0.0
        %9465 = vmatprep.subr.mxu0 0.0
        %9466 = vmatpush1.msra.mxu0 0.0
        %9467 = vmatprep.subr.mxu0 0.0
        %9468 = vmatpush1.msra.mxu0 0.0
        %9469 = vmatprep.subr.mxu0 0.0
        %9470 = vmatpush1.msra.mxu0 0.0
        %9471 = vmatprep.subr.mxu0 0.0
        %9472 = vmatpush1.msra.mxu0 0.0
        %9473 = vmatprep.subr.mxu0 0.0
        %9474 = vmatpush1.msra.mxu0 0.0
        %9475 = vmatprep.subr.mxu0 0.0
        %9476 = vmatpush1.msra.mxu0 0.0
        %9477 = vmatprep.subr.mxu0 0.0
        %9478 = vmatpush1.msra.mxu0 0.0
        %9479 = vmatprep.subr.mxu0 0.0
        %9480 = vmatpush1.msra.mxu0 0.0
        %9481 = vmatprep.mubr.f32.mxu0 0.0
        %9482 = vmatmul.mubr.f32.gmra.mrb[0].mxu0 %v631
        %v9483 = vpop.f32.mrb[0].mxu0
        %v9484 = vadd.f32 %v9415, %v9483
        %v9485 = vpop.f32.mrb[0].mxu0
        %9486 = vmatprep.mubr.f32.mxu0 0.0
        %9487 = vmatmul.mubr.f32.gmra.mrb[0].mxu0 %v634
        %v9488 = vpop.f32.mrb[0].mxu0
        %v9489 = vadd.f32 %v9415, %v9488
        %v9490 = vpop.f32.mrb[0].mxu0
        %9491 = vmatprep.mubr.f32.mxu0 0.0
        %9492 = vmatmul.mubr.f32.gmra.mrb[0].mxu0 %v637
        %v9493 = vpop.f32.mrb[0].mxu0
        %v9494 = vadd.f32 %v9415, %v9493
        %v9495 = vpop.f32.mrb[0].mxu0
        %9496 = vmatprep.mubr.f32.mxu0 0.0
        %9497 = vmatmul.mubr.f32.gmra.mrb[0].mxu0 %v640
        %v9498 = vpop.f32.mrb[0].mxu0
        %v9499 = vadd.f32 %v9415, %v9498
        %v9500 = vpop.f32.mrb[0].mxu0
        %9501 = vmatprep.mubr.f32.mxu0 0.0
        %9502 = vmatmul.mubr.f32.gmra.mrb[0].mxu0 %v643
        %v9503 = vpop.f32.mrb[0].mxu0
        %v9504 = vadd.f32 %v9415, %v9503
        %v9505 = vpop.f32.mrb[0].mxu0
        %9506 = vmatprep.mubr.f32.mxu0 0.0
        %9507 = vmatmul.mubr.f32.gmra.mrb[0].mxu0 %v646
        %v9508 = vpop.f32.mrb[0].mxu0
        %v9509 = vadd.f32 %v9415, %v9508
        %v9510 = vpop.f32.mrb[0].mxu0
        %9511 = vmatprep.mubr.f32.mxu0 0.0
        %9512 = vmatmul.mubr.f32.gmra.mrb[0].mxu0 %v649
        %v9513 = vpop.f32.mrb[0].mxu0
        %v9514 = vadd.f32 %v9415, %v9513
        %v9515 = vpop.f32.mrb[0].mxu0
        %9516 = vmatprep.mubr.f32.mxu0 0.0
        %9517 = vmatmul.mubr.f32.gmra.mrb[0].mxu0 %v652
        %v9518 = vpop.f32.mrb[0].mxu0
        %v9519 = vadd.f32 %v9415, %v9518
        %v9520 = vpop.f32.mrb[0].mxu0
        %9521 = vmatprep.mubr.f32.mxu0 0.0
        %9522 = vmatmul.mubr.f32.gmra.mrb[0].mxu0 %v655
        %v9523 = vpop.f32.mrb[0].mxu0
        %v9524 = vadd.f32 %v9415, %v9523
        %v9525 = vpop.f32.mrb[0].mxu0
        %9526 = vmatprep.mubr.f32.mxu0 0.0
        %9527 = vmatmul.mubr.f32.gmra.mrb[0].mxu0 %v658
        %v9528 = vpop.f32.mrb[0].mxu0
        %v9529 = vadd.f32 %v9415, %v9528
        %v9530 = vpop.f32.mrb[0].mxu0
        %9531 = vmatprep.mubr.f32.mxu0 0.0
        %9532 = vmatmul.mubr.f32.gmra.mrb[0].mxu0 %v661
        %v9533 = vpop.f32.mrb[0].mxu0
        %v9534 = vadd.f32 %v9415, %v9533
        %v9535 = vpop.f32.mrb[0].mxu0
        %9536 = vmatprep.mubr.f32.mxu0 0.0
        %9537 = vmatmul.mubr.f32.gmra.mrb[0].mxu0 %v664
        %v9538 = vpop.f32.mrb[0].mxu0
        %v9539 = vadd.f32 %v9415, %v9538
        %v9540 = vpop.f32.mrb[0].mxu0
        %9541 = vmatprep.mubr.f32.mxu0 0.0
        %9542 = vmatmul.mubr.f32.gmra.mrb[0].mxu0 %v667
        %v9543 = vpop.f32.mrb[0].mxu0
        %v9544 = vadd.f32 %v9415, %v9543
        %v9545 = vpop.f32.mrb[0].mxu0
        %9546 = vmatprep.mubr.f32.mxu0 0.0
        %9547 = vmatmul.mubr.f32.gmra.mrb[0].mxu0 %v670
        %v9548 = vpop.f32.mrb[0].mxu0
        %v9549 = vadd.f32 %v9415, %v9548
        %v9550 = vpop.f32.mrb[0].mxu0
        %9551 = vmatprep.mubr.f32.mxu0 0.0
        %9552 = vmatmul.mubr.f32.gmra.mrb[0].mxu0 %v673
        %v9553 = vpop.f32.mrb[0].mxu0
        %v9554 = vadd.f32 %v9415, %v9553
        %v9555 = vpop.f32.mrb[0].mxu0
        %9556 = vmatprep.mubr.f32.mxu0 0.0
        %9557 = vmatmul.mubr.f32.gmra.mrb[0].mxu0 %v676
        %v9558 = vpop.f32.mrb[0].mxu0
        %v9559 = vadd.f32 %v9415, %v9558
        %v9560 = vpop.f32.mrb[0].mxu0
        %9561 = vmatprep.mubr.f32.mxu0 0.0
        %9562 = vmatmul.mubr.f32.gmra.mrb[0].mxu0 %v679
        %v9563 = vpop.f32.mrb[0].mxu0
        %v9564 = vadd.f32 %v9415, %v9563
        %v9565 = vpop.f32.mrb[0].mxu0
        %9566 = vmatprep.mubr.f32.mxu0 0.0
        %9567 = vmatmul.mubr.f32.gmra.mrb[0].mxu0 %v682
        %v9568 = vpop.f32.mrb[0].mxu0
        %v9569 = vadd.f32 %v9415, %v9568
        %v9570 = vpop.f32.mrb[0].mxu0
        %9571 = vmatprep.mubr.f32.mxu0 0.0
        %9572 = vmatmul.mubr.f32.gmra.mrb[0].mxu0 %v685
        %v9573 = vpop.f32.mrb[0].mxu0
        %v9574 = vadd.f32 %v9415, %v9573
        %v9575 = vpop.f32.mrb[0].mxu0
        %9576 = vmatprep.mubr.f32.mxu0 0.0
        %9577 = vmatmul.mubr.f32.gmra.mrb[0].mxu0 %v688
        %v9578 = vpop.f32.mrb[0].mxu0
        %v9579 = vadd.f32 %v9415, %v9578
        %v9580 = vpop.f32.mrb[0].mxu0
        %9581 = vmatprep.mubr.f32.mxu0 0.0
        %9582 = vmatmul.mubr.f32.gmra.mrb[0].mxu0 %v691
        %v9583 = vpop.f32.mrb[0].mxu0
        %v9584 = vadd.f32 %v9415, %v9583
        %v9585 = vpop.f32.mrb[0].mxu0
        %9586 = vmatprep.mubr.f32.mxu0 0.0
        %9587 = vmatmul.mubr.f32.gmra.mrb[0].mxu0 %v694
        %v9588 = vpop.f32.mrb[0].mxu0
        %v9589 = vadd.f32 %v9415, %v9588
        %v9590 = vpop.f32.mrb[0].mxu0
        %9591 = vmatprep.mubr.f32.mxu0 0.0
        %9592 = vmatmul.mubr.f32.gmra.mrb[0].mxu0 %v697
        %v9593 = vpop.f32.mrb[0].mxu0
        %v9594 = vadd.f32 %v9415, %v9593
        %v9595 = vpop.f32.mrb[0].mxu0
        %9596 = vmatprep.mubr.f32.mxu0 0.0
        %9597 = vmatmul.mubr.f32.gmra.mrb[0].mxu0 %v700
        %v9598 = vpop.f32.mrb[0].mxu0
        %v9599 = vadd.f32 %v9415, %v9598
        %v9600 = vpop.f32.mrb[0].mxu0
        %9601 = vmatprep.mubr.f32.mxu0 0.0
        %9602 = vmatmul.mubr.f32.gmra.mrb[0].mxu0 %v703
        %v9603 = vpop.f32.mrb[0].mxu0
        %v9604 = vadd.f32 %v9415, %v9603
        %v9605 = vpop.f32.mrb[0].mxu0
        %9606 = vmatprep.mubr.f32.mxu0 0.0
        %9607 = vmatmul.mubr.f32.gmra.mrb[0].mxu0 %v706
        %v9608 = vpop.f32.mrb[0].mxu0
        %v9609 = vadd.f32 %v9415, %v9608
        %v9610 = vpop.f32.mrb[0].mxu0
        %9611 = vmatprep.mubr.f32.mxu0 0.0
        %9612 = vmatmul.mubr.f32.gmra.mrb[0].mxu0 %v709
        %v9613 = vpop.f32.mrb[0].mxu0
        %v9614 = vadd.f32 %v9415, %v9613
        %v9615 = vpop.f32.mrb[0].mxu0
        %9616 = vmatprep.mubr.f32.mxu0 0.0
        %9617 = vmatmul.mubr.f32.gmra.mrb[0].mxu0 %v712
        %v9618 = vpop.f32.mrb[0].mxu0
        %v9619 = vadd.f32 %v9415, %v9618
        %v9620 = vpop.f32.mrb[0].mxu0
        %9621 = vmatprep.mubr.f32.mxu0 0.0
        %9622 = vmatmul.mubr.f32.gmra.mrb[0].mxu0 %v715
        %v9623 = vpop.f32.mrb[0].mxu0
        %v9624 = vadd.f32 %v9415, %v9623
        %v9625 = vpop.f32.mrb[0].mxu0
        %9626 = vmatprep.mubr.f32.mxu0 0.0
        %9627 = vmatmul.mubr.f32.gmra.mrb[0].mxu0 %v718
        %v9628 = vpop.f32.mrb[0].mxu0
        %v9629 = vadd.f32 %v9415, %v9628
        %v9630 = vpop.f32.mrb[0].mxu0
        %9631 = vmatprep.mubr.f32.mxu0 0.0
        %9632 = vmatmul.mubr.f32.gmra.mrb[0].mxu0 %v721
        %v9633 = vpop.f32.mrb[0].mxu0
        %v9634 = vadd.f32 %v9415, %v9633
        %v9635 = vpop.f32.mrb[0].mxu0
        %9636 = vmatprep.mubr.f32.mxu0 0.0
        %9637 = vmatmul.mubr.f32.gmra.mrb[0].mxu0 %v724
        %v9638 = vpop.f32.mrb[0].mxu0
        %v9639 = vadd.f32 %v9415, %v9638
        %v9640 = vpop.f32.mrb[0].mxu0
        %9641 = vdwg.mxu0
        %v9642 = vadd.f32 %v9370, %v9484
        %v9643 = vadd.f32 %v9371, %v9489
        %v9644 = vadd.f32 %v9372, %v9494
        %v9645 = vadd.f32 %v9373, %v9499
        %v9646 = vadd.f32 %v9374, %v9504
        %v9647 = vadd.f32 %v9375, %v9509
        %v9648 = vadd.f32 %v9376, %v9514
        %v9649 = vadd.f32 %v9377, %v9519
        %v9650 = vadd.f32 %v9378, %v9524
        %v9651 = vadd.f32 %v9379, %v9529
        %v9652 = vadd.f32 %v9380, %v9534
        %v9653 = vadd.f32 %v9381, %v9539
        %v9654 = vadd.f32 %v9382, %v9544
        %v9655 = vadd.f32 %v9383, %v9549
        %v9656 = vadd.f32 %v9384, %v9554
        %v9657 = vadd.f32 %v9385, %v9559
        %v9658 = vadd.f32 %v9386, %v9564
        %v9659 = vadd.f32 %v9387, %v9569
        %v9660 = vadd.f32 %v9388, %v9574
        %v9661 = vadd.f32 %v9389, %v9579
        %v9662 = vadd.f32 %v9390, %v9584
        %v9663 = vadd.f32 %v9391, %v9589
        %v9664 = vadd.f32 %v9392, %v9594
        %v9665 = vadd.f32 %v9393, %v9599
        %v9666 = vadd.f32 %v9394, %v9604
        %v9667 = vadd.f32 %v9395, %v9609
        %v9668 = vadd.f32 %v9396, %v9614
        %v9669 = vadd.f32 %v9397, %v9619
        %v9670 = vadd.f32 %v9398, %v9624
        %v9671 = vadd.f32 %v9399, %v9629
        %v9672 = vadd.f32 %v9400, %v9634
        %v9673 = vadd.f32 %v9401, %v9639
        %9674 = vst [vmem:[%s513] sm:$0xff] %v9642
        %9675 = vst [vmem:[%s513 + $0x8] sm:$0xff] %v9643
        %9676 = vst [vmem:[%s513 + $0x10] sm:$0xff] %v9644
        %9677 = vst [vmem:[%s513 + $0x18] sm:$0xff] %v9645
        %9678 = vst [vmem:[%s513 + $0x20] sm:$0xff] %v9646
        %9679 = vst [vmem:[%s513 + $0x28] sm:$0xff] %v9647
        %9680 = vst [vmem:[%s513 + $0x30] sm:$0xff] %v9648
        %9681 = vst [vmem:[%s513 + $0x38] sm:$0xff] %v9649
        %9682 = vst [vmem:[%s513 + $0x40] sm:$0xff] %v9650
        %9683 = vst [vmem:[%s513 + $0x48] sm:$0xff] %v9651
        %9684 = vst [vmem:[%s513 + $0x50] sm:$0xff] %v9652
        %9685 = vst [vmem:[%s513 + $0x58] sm:$0xff] %v9653
        %9686 = vst [vmem:[%s513 + $0x60] sm:$0xff] %v9654
        %9687 = vst [vmem:[%s513 + $0x68] sm:$0xff] %v9655
        %9688 = vst [vmem:[%s513 + $0x70] sm:$0xff] %v9656
        %9689 = vst [vmem:[%s513 + $0x78] sm:$0xff] %v9657
        %9690 = vst [vmem:[%s513 + $0x80] sm:$0xff] %v9658
        %9691 = vst [vmem:[%s513 + $0x88] sm:$0xff] %v9659
        %9692 = vst [vmem:[%s513 + $0x90] sm:$0xff] %v9660
        %9693 = vst [vmem:[%s513 + $0x98] sm:$0xff] %v9661
        %9694 = vst [vmem:[%s513 + $0xa0] sm:$0xff] %v9662
        %9695 = vst [vmem:[%s513 + $0xa8] sm:$0xff] %v9663
        %9696 = vst [vmem:[%s513 + $0xb0] sm:$0xff] %v9664
        %9697 = vst [vmem:[%s513 + $0xb8] sm:$0xff] %v9665
        %9698 = vst [vmem:[%s513 + $0xc0] sm:$0xff] %v9666
        %9699 = vst [vmem:[%s513 + $0xc8] sm:$0xff] %v9667
        %9700 = vst [vmem:[%s513 + $0xd0] sm:$0xff] %v9668
        %9701 = vst [vmem:[%s513 + $0xd8] sm:$0xff] %v9669
        %9702 = vst [vmem:[%s513 + $0xe0] sm:$0xff] %v9670
        %9703 = vst [vmem:[%s513 + $0xe8] sm:$0xff] %v9671
        %9704 = vst [vmem:[%s513 + $0xf0] sm:$0xff] %v9672
        %9705 = vst [vmem:[%s513 + $0xf8] sm:$0xff] %v9673
        %s9706 = sand.u32 %s363, 1
        %s9707 = scalar_lea.sflag [#allocation4], %s9706
        %s9708 = sand.u32 %s363, 1
        %s9709 = smul.addr %s9708, 256
        %s9710 = scalar_lea.vmem [#allocation5], %s9709
        // Predicated region
        $region85: #{tpu_custom_call.1} parent=79 // pred_check
          %p9711 = pneg %p373
        $region86: #{tpu_custom_call.1} parent=79 // pred_check_branch
          %9713 = sbr.rel (%p9711) target = $region88
        $region87: #{tpu_custom_call.1} parent=79 // pred_region
          %s9715 = ssub.s32 4096, 4096
          %9716 = vsyncadd %s9707, %s9715
          %s9717 = smul.addr %s30, 32
          %s9718 = smul.addr %s9717, 128
          %s9719 = scalar_lea.hbm %s15, %s9718
          %s9720 = sshll.u32 %s9710, 4
          %s9721 = int_to_ptr.vmem [resolvable:$true] %s9720
          %9726 = dma.vmem_to_hbm [thread:$0]  %s9721, 4096, %s9719, %s9707, 128, 128, 8
        $region88: #{tpu_custom_call.1} parent=79 // pred_fallthru
          _
      $region80: #{tpu_custom_call.1} parent=5 // pred_fallthru
        _
      %p9727 = scmp.le.s32.totalorder 2, %s25
      // Predicated region
      $region89: #{tpu_custom_call.1} parent=5 // pred_check
        %p9728 = pneg %p9727
      $region90: #{tpu_custom_call.1} parent=5 // pred_check_branch
        %9730 = sbr.rel (%p9728) target = $region92
      $region91: #{tpu_custom_call.1} parent=5 // pred_region
        %s9731 = ssub.s32 %s25, 2
        // Predicated region
        $region93: #{tpu_custom_call.1} parent=91 // pred_check
          %p9732 = pneg %p379
        $region94: #{tpu_custom_call.1} parent=91 // pred_check_branch
          %9734 = sbr.rel (%p9732) target = $region96
        $region95: #{tpu_custom_call.1} parent=91 // pred_region
          %s9735 = sand.u32 %s364, 1
          %s9736 = scalar_lea.sflag [#allocation4], %s9735
          %s9737 = sand.u32 %s364, 1
          %s9738 = smul.addr %s9737, 256
          %s9739 = scalar_lea.vmem [#allocation5], %s9738
          %9740 = dma.done %s9736, 4096
        $region96: #{tpu_custom_call.1} parent=91 // pred_fallthru
          _
      $region92: #{tpu_custom_call.1} parent=5 // pred_fallthru
        _
    $region6: #{tpu_custom_call.1} parent=1 // loop_footer
      %s29 = sadd.s32 1, %s25
    $region7: #{tpu_custom_call.1} parent=1 // loop_footer_branch
      %24 = sbr.rel target = $region3
    $region8: #{tpu_custom_call.1} parent=1 // loop_exit
      _
    %9741 = vsyncpa [#allocation3], 1
    %s9742 = scalar_lea.sflag [#allocation3], 1
    %9743 = vsyncpa %s9742, 1
    %9744 = vsyncpa [#allocation4], 1
    %s9745 = scalar_lea.sflag [#allocation4], 1
    %9746 = vsyncpa %s9745, 1

</llo_original>
